<compile_context>
chip_gen: v7x
topology: tpu7x:2x2x1
jax: 0.10.0
libtpu: 0.0.40
codegen_flags: <defaults>
</compile_context>

<pallas_src>
import functools

import jax
import jax.numpy as jnp
from jax import lax
from jax.experimental import pallas as pl
from jax.experimental.pallas import tpu as pltpu

NUM_RNN_LAYERS = 3
LN_EPS = 1e-5
LANE = 128
SUBLANE = 8


def _round_up(x, m):
    return (x + m - 1) // m * m


def _swish(v):
    return v * jax.nn.sigmoid(v)


def _layer_norm(v, g, b):
    # plain LayerNorm (used by the pure-JAX reference only)
    mu = jnp.mean(v, axis=-1, keepdims=True)
    var = jnp.mean(jnp.square(v - mu), axis=-1, keepdims=True)
    return (v - mu) * lax.rsqrt(var + LN_EPS) * g + b


def _masked_layer_norm(v, g, b, mask, inv_n):
    # LayerNorm over the first n_real lanes of a lane-padded tensor.
    # Relies on padded lanes of v being exactly zero and g/b zero-padded,
    # so padded output lanes come out exactly zero.  `mask`/`inv_n` are
    # hoisted by the caller (computed once per kernel invocation).
    mu = jnp.sum(v, axis=-1, keepdims=True) * inv_n
    d = jnp.where(mask, v - mu, 0.0)
    var = jnp.sum(d * d, axis=-1, keepdims=True) * inv_n
    return d * lax.rsqrt(var + LN_EPS) * g + b


def _vmem_limit(nbytes):
    return int(max(16 * 2**20, min(int(1.5 * nbytes) + (2 << 20), 112 * 2**20)))


# --------------------------------------------------------------------------
# GRU kernel: 3-layer batch_first GRU (PyTorch gate order r, z, n), lane-padded.
#   x_ref:   (T, Bp, D)      h0_ref: (L, Bp, Hp)
#   wihX:    (Din, 3Hp)      whhX:   (Hp, 3Hp)      biases: (1, 3Hp)
#   seq_ref: (T, Bp, Hp)     hn_ref: (L, Bp, Hp)    gi_ref (scratch): (T, Bp, 3Hp)
# Gate g occupies lanes [g*Hp : g*Hp+H]; padded lanes of weights/biases are 0,
# so padded lanes of h stay exactly 0 throughout the recurrence.
# --------------------------------------------------------------------------
def gru_kernel(x_ref, h0_ref,
               wih0_ref, whh0_ref, bih0_ref, bhh0_ref,
               wih1_ref, whh1_ref, bih1_ref, bhh1_ref,
               wih2_ref, whh2_ref, bih2_ref, bhh2_ref,
               seq_ref, hn_ref, gi_ref):
    T, Bp, D = x_ref.shape
    Hp = seq_ref.shape[2]
    if T <= 8:
        unroll = T
    elif T % 8 == 0:
        unroll = 8
    elif T % 4 == 0:
        unroll = 4
    else:
        unroll = 1

    layers = (
        (wih0_ref, whh0_ref, bih0_ref, bhh0_ref),
        (wih1_ref, whh1_ref, bih1_ref, bhh1_ref),
        (wih2_ref, whh2_ref, bih2_ref, bhh2_ref),
    )
    for l, (wih_r, whh_r, bih_r, bhh_r) in enumerate(layers):
        whh = whh_r[...]          # (Hp, 3Hp) - loaded once per layer
        bhh = bhh_r[...]          # (1, 3Hp)

        # Hoisted input-to-hidden matmul: one MXU-shaped (T*Bp, Din)@(Din, 3Hp).
        # For l > 0 the previous layer's full output is already in seq_ref; the
        # read happens entirely before the time loop overwrites it.
        if l == 0:
            inp2d = x_ref[...].reshape(T * Bp, D)
        else:
            inp2d = seq_ref[...].reshape(T * Bp, Hp)
        gi_ref[...] = (jnp.dot(inp2d, wih_r[...],
                               preferred_element_type=jnp.float32)
                       + bih_r[...]).reshape(T, Bp, 3 * Hp)

        def step(t, h_prev, _whh=whh, _bhh=bhh):
            gi = gi_ref[t]                                      # (Bp, 3Hp)
            gh = jnp.dot(h_prev, _whh,
                         preferred_element_type=jnp.float32) + _bhh
            # r and z in one fused 2Hp-wide sigmoid (lane-aligned slices).
            rz = jax.nn.sigmoid(gi[:, 0:2 * Hp] + gh[:, 0:2 * Hp])
            r = rz[:, 0:Hp]
            z = rz[:, Hp:2 * Hp]
            n = jnp.tanh(gi[:, 2 * Hp:3 * Hp] + r * gh[:, 2 * Hp:3 * Hp])
            h_new = (1.0 - z) * n + z * h_prev
            seq_ref[t] = h_new                                  # full-lane store
            return h_new

        h_final = lax.fori_loop(0, T, step, h0_ref[l], unroll=unroll)
        hn_ref[l] = h_final


# --------------------------------------------------------------------------
# MLP head kernel (one row tile per grid step):
#   input ResBlock (no residual) -> merge Linear (concat realized as split
#   matmul y @ Wa + rnn @ Wb) -> 3 residual ResBlocks -> output Linear.
# All feature dims lane-padded; LayerNorm normalizes over the real H lanes.
# --------------------------------------------------------------------------
def mlp_kernel(h_real, x_ref, rnn_ref,
               win_ref, bin_ref, gin_ref, ben_ref,
               wma_ref, wmb_ref, bm_ref,
               wb1_ref, bb1_ref, gb1_ref, beb1_ref,
               wb2_ref, bb2_ref, gb2_ref, beb2_ref,
               wb3_ref, bb3_ref, gb3_ref, beb3_ref,
               wout_ref, bout_ref, o_ref):
    x = x_ref[...]            # (TM, D)
    rnn = rnn_ref[...]        # (TM, Hp)
    TM = x.shape[0]
    Hp = rnn.shape[1]
    # LayerNorm lane mask / scale: hoisted once, reused by all 4 LayerNorms.
    ln_mask = lax.broadcasted_iota(jnp.int32, (TM, Hp), 1) < h_real
    inv_n = 1.0 / float(h_real)
    # TODO(synk): dropout is inference-mode identity; training-mode (stochastic) dropout not implemented.
    y = _swish(jnp.dot(x, win_ref[...], preferred_element_type=jnp.float32)
               + bin_ref[...])
    y = _masked_layer_norm(y, gin_ref[...], ben_ref[...], ln_mask, inv_n)
    out = _swish(jnp.dot(y, wma_ref[...], preferred_element_type=jnp.float32)
                 + jnp.dot(rnn, wmb_ref[...], preferred_element_type=jnp.float32)
                 + bm_ref[...])
    for w_r, b_r, g_r, be_r in ((wb1_ref, bb1_ref, gb1_ref, beb1_ref),
                                (wb2_ref, bb2_ref, gb2_ref, beb2_ref),
                                (wb3_ref, bb3_ref, gb3_ref, beb3_ref)):
        h = _swish(jnp.dot(out, w_r[...], preferred_element_type=jnp.float32)
                   + b_r[...])
        out = _masked_layer_norm(out + h, g_r[...], be_r[...], ln_mask, inv_n)
    o_ref[...] = (jnp.dot(out, wout_ref[...], preferred_element_type=jnp.float32)
                  + bout_ref[...])


# --------------------------------------------------------------------------
# Parameter construction (deterministic, synthetic, UNPADDED / pre-transposed).
# --------------------------------------------------------------------------
def init_params(key, input_dim, hidden, output_dim):
    H = hidden
    params = {}
    keys = iter(jax.random.split(key, 64))

    def nrm(shape, scale=0.1):
        return scale * jax.random.normal(next(keys), shape, jnp.float32)

    for l in range(NUM_RNN_LAYERS):
        din = input_dim if l == 0 else H
        params[f"gru_wih_t{l}"] = nrm((din, 3 * H))   # (Din, 3H), gates r,z,n
        params[f"gru_whh_t{l}"] = nrm((H, 3 * H))
        params[f"gru_bih{l}"] = nrm((1, 3 * H))
        params[f"gru_bhh{l}"] = nrm((1, 3 * H))
    params["w_in_t"] = nrm((input_dim, H))
    params["b_in"] = nrm((1, H))
    params["g_in"] = jnp.ones((1, H), jnp.float32)
    params["be_in"] = jnp.zeros((1, H), jnp.float32)
    params["w_mg_a_t"] = nrm((H, H))     # merge Linear(2H,H), split halves
    params["w_mg_b_t"] = nrm((H, H))
    params["b_mg"] = nrm((1, H))
    for i in range(1, 4):
        params[f"w_b{i}_t"] = nrm((H, H))
        params[f"b_b{i}"] = nrm((1, H))
        params[f"g_b{i}"] = jnp.ones((1, H), jnp.float32)
        params[f"be_b{i}"] = jnp.zeros((1, H), jnp.float32)
    params["w_out_t"] = nrm((H, output_dim))
    params["b_out"] = nrm((1, output_dim))
    return params


# --------------------------------------------------------------------------
# Padding helpers (layout plumbing in plain JAX).
# --------------------------------------------------------------------------
def _pad2(a, rows, cols):
    return jnp.pad(a, ((0, rows - a.shape[0]), (0, cols - a.shape[1])))


def _pad_gru_gates(w, rows_p, h, hp):
    # (rows, 3h) -> (rows_p, 3hp): each gate block placed lane-aligned at g*hp.
    gates = [w[:, g * h:(g + 1) * h] for g in range(3)]
    return jnp.concatenate([_pad2(g, rows_p, hp) for g in gates], axis=1)


# --------------------------------------------------------------------------
# Forward wrapper.
# --------------------------------------------------------------------------
def rnn_model_forward(x, params, hidden, h_state=None):
    B, T, D = x.shape
    H = hidden
    L = NUM_RNN_LAYERS
    O = params["w_out_t"].shape[1]
    x = x.astype(jnp.float32)

    Bp = _round_up(max(B, 1), SUBLANE)
    Hp = _round_up(H, LANE)
    Op = _round_up(O, LANE)

    if h_state is None:
        h_state = jnp.zeros((L, B, H), jnp.float32)
    h0_p = jnp.pad(h_state.astype(jnp.float32),
                   ((0, 0), (0, Bp - B), (0, Hp - H)))

    # time-major, batch-padded input (pad rows/lanes are zero)
    x_tm = jnp.pad(jnp.transpose(x, (1, 0, 2)), ((0, 0), (0, Bp - B), (0, 0)))

    # ---- GRU: grid-less, hoisted input matmul, unrolled recurrence ----------
    gru_args = [x_tm, h0_p]
    for l in range(L):
        din_p = D if l == 0 else Hp
        gru_args += [
            _pad_gru_gates(params[f"gru_wih_t{l}"], din_p, H, Hp),
            _pad_gru_gates(params[f"gru_whh_t{l}"], Hp, H, Hp),
            _pad_gru_gates(params[f"gru_bih{l}"], 1, H, Hp),
            _pad_gru_gates(params[f"gru_bhh{l}"], 1, H, Hp),
        ]

    vmem = pl.BlockSpec(memory_space=pltpu.MemorySpace.VMEM)
    gru_bytes = sum(int(a.size) * 4 for a in gru_args)
    gru_bytes += (T * Bp * Hp + L * Bp * Hp + T * Bp * 3 * Hp) * 4  # outs + scratch
    gru_flops = 0
    for l in range(L):
        din = D if l == 0 else Hp
        gru_flops += 2 * T * Bp * din * 3 * Hp     # hoisted gi matmul
        gru_flops += 2 * T * Bp * Hp * 3 * Hp      # recurrent gh matmuls
    gru_cost = pl.CostEstimate(flops=int(gru_flops),
                               transcendentals=int(3 * L * T * Bp * Hp),
                               bytes_accessed=int(gru_bytes))

    seq_tm, hn_p = pl.pallas_call(
        gru_kernel,
        out_shape=(jax.ShapeDtypeStruct((T, Bp, Hp), jnp.float32),
                   jax.ShapeDtypeStruct((L, Bp, Hp), jnp.float32)),
        in_specs=[vmem] * len(gru_args),
        out_specs=(vmem, vmem),
        scratch_shapes=[pltpu.VMEM((T, Bp, 3 * Hp), jnp.float32)],
        compiler_params=pltpu.CompilerParams(
            vmem_limit_bytes=_vmem_limit(gru_bytes)),
        cost_estimate=gru_cost,
    )(*gru_args)
    # TODO(synk): for very large T, x/seq should stay in HBM (pl.ANY) and be
    # double-buffered in time chunks; whole-in-VMEM is fine at these sizes.

    # ---- MLP head: gridded over rows, time-major flatten (no seq transpose) --
    N = T * Bp
    TM = min(512, N)                      # row tile; fits v7x 64 MiB with 2x buffering
    Nr = _round_up(N, TM)

    x_flat = x_tm.reshape(N, D)
    rnn_flat = seq_tm.reshape(N, Hp)
    if Nr != N:
        x_flat = jnp.pad(x_flat, ((0, Nr - N), (0, 0)))
        rnn_flat = jnp.pad(rnn_flat, ((0, Nr - N), (0, 0)))

    mlp_params = [
        _pad2(params["w_in_t"], D, Hp), _pad2(params["b_in"], 1, Hp),
        _pad2(params["g_in"], 1, Hp), _pad2(params["be_in"], 1, Hp),
        _pad2(params["w_mg_a_t"], Hp, Hp), _pad2(params["w_mg_b_t"], Hp, Hp),
        _pad2(params["b_mg"], 1, Hp),
    ]
    for i in range(1, 4):
        mlp_params += [_pad2(params[f"w_b{i}_t"], Hp, Hp),
                       _pad2(params[f"b_b{i}"], 1, Hp),
                       _pad2(params[f"g_b{i}"], 1, Hp),
                       _pad2(params[f"be_b{i}"], 1, Hp)]
    mlp_params += [_pad2(params["w_out_t"], Hp, Op), _pad2(params["b_out"], 1, Op)]

    row_spec_x = pl.BlockSpec((TM, D), lambda i: (i, 0))
    row_spec_rnn = pl.BlockSpec((TM, Hp), lambda i: (i, 0))
    w_specs = [pl.BlockSpec(p.shape, lambda i: (0, 0)) for p in mlp_params]
    out_spec = pl.BlockSpec((TM, Op), lambda i: (i, 0))

    w_bytes = sum(int(p.size) * 4 for p in mlp_params)
    blk_bytes = TM * (D + Hp + Op) * 4
    mlp_bytes = Nr * (D + Hp + Op) * 4 + w_bytes
    mlp_flops = 2 * Nr * (D * Hp + 2 * Hp * Hp + 3 * Hp * Hp + Hp * Op)
    mlp_cost = pl.CostEstimate(flops=int(mlp_flops),
                               transcendentals=int(5 * Nr * Hp),
                               bytes_accessed=int(mlp_bytes))

    out_flat = pl.pallas_call(
        functools.partial(mlp_kernel, H),
        out_shape=jax.ShapeDtypeStruct((Nr, Op), jnp.float32),
        grid=(Nr // TM,),
        in_specs=[row_spec_x, row_spec_rnn] + w_specs,
        out_specs=out_spec,
        compiler_params=pltpu.CompilerParams(
            dimension_semantics=("parallel",),
            vmem_limit_bytes=_vmem_limit(4 * blk_bytes + w_bytes)),
        cost_estimate=mlp_cost,
    )(x_flat, rnn_flat, *mlp_params)

    out = out_flat[:N].reshape(T, Bp, Op)[:, :B, :O]
    out = jnp.transpose(out, (1, 0, 2))            # (B, T, O): tiny transpose only
    h_n = hn_p[:, :B, :H]
    return out, h_n


# --------------------------------------------------------------------------
# Pure-JAX reference (same math, unpadded) for validation.
# --------------------------------------------------------------------------
def reference_forward(x, params, hidden, h_state=None):
    B, T, D = x.shape
    H = hidden
    L = NUM_RNN_LAYERS
    x = x.astype(jnp.float32)
    if h_state is None:
        h_state = jnp.zeros((L, B, H), jnp.float32)
    seq = jnp.transpose(x, (1, 0, 2))
    finals = []
    for l in range(L):
        wih_t = params[f"gru_wih_t{l}"]
        whh_t = params[f"gru_whh_t{l}"]
        bih = params[f"gru_bih{l}"]
        bhh = params[f"gru_bhh{l}"]

        def step(h, x_t, _wih=wih_t, _whh=whh_t, _bih=bih, _bhh=bhh):
            gi = x_t @ _wih + _bih
            gh = h @ _whh + _bhh
            r = jax.nn.sigmoid(gi[:, :H] + gh[:, :H])
            z = jax.nn.sigmoid(gi[:, H:2 * H] + gh[:, H:2 * H])
            n = jnp.tanh(gi[:, 2 * H:] + r * gh[:, 2 * H:])
            h_new = (1.0 - z) * n + z * h
            return h_new, h_new

        h_f, seq = lax.scan(step, h_state[l], seq)
        finals.append(h_f)
    rnn_flat = jnp.transpose(seq, (1, 0, 2)).reshape(B * T, H)
    x_flat = x.reshape(B * T, D)
    y = _swish(x_flat @ params["w_in_t"] + params["b_in"])
    y = _layer_norm(y, params["g_in"], params["be_in"])
    out = _swish(y @ params["w_mg_a_t"] + rnn_flat @ params["w_mg_b_t"] + params["b_mg"])
    for i in range(1, 4):
        h = _swish(out @ params[f"w_b{i}_t"] + params[f"b_b{i}"])
        out = _layer_norm(out + h, params[f"g_b{i}"], params[f"be_b{i}"])
    out = out @ params["w_out_t"] + params["b_out"]
    return out.reshape(B, T, -1), jnp.stack(finals)


if __name__ == "__main__":
    B, T, D, H, O = 2, 8, 16, 32, 8
    key = jax.random.PRNGKey(0)
    kx, kp = jax.random.split(key)
    x = jax.random.normal(kx, (B, T, D), jnp.float32)
    params = init_params(kp, D, H, O)

    out, h_n = rnn_model_forward(x, params, H)
    jax.block_until_ready((out, h_n))

    ref_out, ref_hn = reference_forward(x, params, H)
    assert out.shape == (B, T, O), out.shape
    assert h_n.shape == (NUM_RNN_LAYERS, B, H), h_n.shape
    assert jnp.allclose(out, ref_out, atol=2e-3, rtol=2e-3), \
        float(jnp.max(jnp.abs(out - ref_out)))
    assert jnp.allclose(h_n, ref_hn, atol=2e-3, rtol=2e-3), \
        float(jnp.max(jnp.abs(h_n - ref_hn)))

    print("KERNEL_OK")
</pallas_src>

<mosaic_0001>
module attributes {stable_mosaic.version = 11 : i64} {
  func.func @gru_kernel(%arg0: memref<8x8x16xf32, #tpu.memory_space<vmem>>, %arg1: memref<3x8x128xf32, #tpu.memory_space<vmem>>, %arg2: memref<16x384xf32, #tpu.memory_space<vmem>>, %arg3: memref<128x384xf32, #tpu.memory_space<vmem>>, %arg4: memref<1x384xf32, #tpu.memory_space<vmem>>, %arg5: memref<1x384xf32, #tpu.memory_space<vmem>>, %arg6: memref<128x384xf32, #tpu.memory_space<vmem>>, %arg7: memref<128x384xf32, #tpu.memory_space<vmem>>, %arg8: memref<1x384xf32, #tpu.memory_space<vmem>>, %arg9: memref<1x384xf32, #tpu.memory_space<vmem>>, %arg10: memref<128x384xf32, #tpu.memory_space<vmem>>, %arg11: memref<128x384xf32, #tpu.memory_space<vmem>>, %arg12: memref<1x384xf32, #tpu.memory_space<vmem>>, %arg13: memref<1x384xf32, #tpu.memory_space<vmem>>, %arg14: memref<8x8x128xf32, #tpu.memory_space<vmem>>, %arg15: memref<3x8x128xf32, #tpu.memory_space<vmem>>, %arg16: memref<8x8x384xf32, #tpu.memory_space<vmem>>) attributes {dimension_semantics = [], scalar_prefetch = 0 : i64, scratch_operands = 1 : i64, tpu.core_type = #tpu.core_type<tc>} {
    %c0 = arith.constant 0 : index
    %c0_0 = arith.constant 0 : index
    %0 = vector.load %arg3[%c0, %c0_0] : memref<128x384xf32, #tpu.memory_space<vmem>>, vector<128x384xf32>
    %c0_1 = arith.constant 0 : index
    %c0_2 = arith.constant 0 : index
    %1 = vector.load %arg5[%c0_1, %c0_2] : memref<1x384xf32, #tpu.memory_space<vmem>>, vector<1x384xf32>
    %c0_3 = arith.constant 0 : index
    %c0_4 = arith.constant 0 : index
    %c0_5 = arith.constant 0 : index
    %2 = vector.load %arg0[%c0_3, %c0_4, %c0_5] : memref<8x8x16xf32, #tpu.memory_space<vmem>>, vector<8x8x16xf32>
    %3 = vector.shape_cast %2 : vector<8x8x16xf32> to vector<64x16xf32>
    %c0_6 = arith.constant 0 : index
    %c0_7 = arith.constant 0 : index
    %4 = vector.load %arg2[%c0_6, %c0_7] : memref<16x384xf32, #tpu.memory_space<vmem>>, vector<16x384xf32>
    %cst = arith.constant dense<0.000000e+00> : vector<64x384xf32>
    %5 = tpu.matmul %3, %4, %cst {dimension_numbers = #tpu.dot_dimension_numbers<[1], [0], [0], [1], [0, 0, 1, 1], [], []>} : vector<64x16xf32>, vector<16x384xf32>, vector<64x384xf32> -> vector<64x384xf32>
    %c0_8 = arith.constant 0 : index
    %c0_9 = arith.constant 0 : index
    %6 = vector.load %arg4[%c0_8, %c0_9] : memref<1x384xf32, #tpu.memory_space<vmem>>, vector<1x384xf32>
    %7 = vector.broadcast %6 : vector<1x384xf32> to vector<64x384xf32>
    %8 = arith.addf %5, %7 : vector<64x384xf32>
    %9 = vector.shape_cast %8 : vector<64x384xf32> to vector<8x8x384xf32>
    %c0_10 = arith.constant 0 : index
    %c0_11 = arith.constant 0 : index
    %c0_12 = arith.constant 0 : index
    %10 = vector.load %arg16[%c0_10, %c0_11, %c0_12] : memref<8x8x384xf32, #tpu.memory_space<vmem>>, vector<8x8x384xf32>
    tpu.vector_store %arg16[%c0_10, %c0_11, %c0_12], %9 {strides = array<i32>} : memref<8x8x384xf32, #tpu.memory_space<vmem>>, vector<8x8x384xf32>,
    %c0_13 = arith.constant 0 : index
    %c0_14 = arith.constant 0 : index
    %c0_15 = arith.constant 0 : index
    %11 = vector.load %arg1[%c0_13, %c0_14, %c0_15] : memref<3x8x128xf32, #tpu.memory_space<vmem>>, vector<1x8x128xf32>
    %12 = vector.shape_cast %11 : vector<1x8x128xf32> to vector<8x128xf32>
    %c0_i32 = arith.constant 0 : i32
    %13 = arith.index_cast %c0_i32 : i32 to index
    %c0_16 = arith.constant 0 : index
    %c0_17 = arith.constant 0 : index
    %14 = vector.load %arg16[%13, %c0_16, %c0_17] : memref<8x8x384xf32, #tpu.memory_space<vmem>>, vector<1x8x384xf32>
    %15 = vector.shape_cast %14 : vector<1x8x384xf32> to vector<8x384xf32>
    %cst_18 = arith.constant dense<0.000000e+00> : vector<8x384xf32>
    %16 = tpu.matmul %12, %0, %cst_18 {dimension_numbers = #tpu.dot_dimension_numbers<[1], [0], [0], [1], [0, 0, 1, 1], [], []>} : vector<8x128xf32>, vector<128x384xf32>, vector<8x384xf32> -> vector<8x384xf32>
    %17 = vector.broadcast %1 : vector<1x384xf32> to vector<8x384xf32>
    %18 = arith.addf %16, %17 : vector<8x384xf32>
    %19 = vector.extract_strided_slice %15 {offsets = [0, 0], sizes = [8, 256], strides = [1, 1]} : vector<8x384xf32> to vector<8x256xf32>
    %20 = vector.extract_strided_slice %18 {offsets = [0, 0], sizes = [8, 256], strides = [1, 1]} : vector<8x384xf32> to vector<8x256xf32>
    %21 = arith.addf %19, %20 : vector<8x256xf32>
    %22 = arith.negf %21 : vector<8x256xf32>
    %23 = math.exp %22 : vector<8x256xf32>
    %cst_19 = arith.constant 1.000000e+00 : f32
    %24 = vector.broadcast %cst_19 : f32 to vector<8x256xf32>
    %25 = arith.addf %24, %23 : vector<8x256xf32>
    %26 = arith.divf %24, %25 : vector<8x256xf32>
    %27 = vector.extract_strided_slice %26 {offsets = [0, 0], sizes = [8, 128], strides = [1, 1]} : vector<8x256xf32> to vector<8x128xf32>
    %28 = vector.extract_strided_slice %26 {offsets = [0, 128], sizes = [8, 128], strides = [1, 1]} : vector<8x256xf32> to vector<8x128xf32>
    %29 = vector.extract_strided_slice %15 {offsets = [0, 256], sizes = [8, 128], strides = [1, 1]} : vector<8x384xf32> to vector<8x128xf32>
    %30 = vector.extract_strided_slice %18 {offsets = [0, 256], sizes = [8, 128], strides = [1, 1]} : vector<8x384xf32> to vector<8x128xf32>
    %31 = arith.mulf %27, %30 : vector<8x128xf32>
    %32 = arith.addf %29, %31 : vector<8x128xf32>
    %33 = math.tanh %32 : vector<8x128xf32>
    %cst_20 = arith.constant 1.000000e+00 : f32
    %34 = vector.broadcast %cst_20 : f32 to vector<8x128xf32>
    %35 = arith.subf %34, %28 : vector<8x128xf32>
    %36 = arith.mulf %35, %33 : vector<8x128xf32>
    %37 = arith.mulf %28, %12 : vector<8x128xf32>
    %38 = arith.addf %36, %37 : vector<8x128xf32>
    %39 = arith.index_cast %c0_i32 : i32 to index
    %c0_21 = arith.constant 0 : index
    %c0_22 = arith.constant 0 : index
    %40 = vector.load %arg14[%39, %c0_21, %c0_22] : memref<8x8x128xf32, #tpu.memory_space<vmem>>, vector<1x8x128xf32>
    %41 = vector.shape_cast %40 : vector<1x8x128xf32> to vector<8x128xf32>
    %42 = vector.shape_cast %38 : vector<8x128xf32> to vector<1x8x128xf32>
    tpu.vector_store %arg14[%39, %c0_21, %c0_22], %42 {strides = array<i32>} : memref<8x8x128xf32, #tpu.memory_space<vmem>>, vector<1x8x128xf32>,
    %c1_i32 = arith.constant 1 : i32
    %43 = arith.index_cast %c1_i32 : i32 to index
    %c0_23 = arith.constant 0 : index
    %c0_24 = arith.constant 0 : index
    %44 = vector.load %arg16[%43, %c0_23, %c0_24] : memref<8x8x384xf32, #tpu.memory_space<vmem>>, vector<1x8x384xf32>
    %45 = vector.shape_cast %44 : vector<1x8x384xf32> to vector<8x384xf32>
    %cst_25 = arith.constant dense<0.000000e+00> : vector<8x384xf32>
    %46 = tpu.matmul %38, %0, %cst_25 {dimension_numbers = #tpu.dot_dimension_numbers<[1], [0], [0], [1], [0, 0, 1, 1], [], []>} : vector<8x128xf32>, vector<128x384xf32>, vector<8x384xf32> -> vector<8x384xf32>
    %47 = vector.broadcast %1 : vector<1x384xf32> to vector<8x384xf32>
    %48 = arith.addf %46, %47 : vector<8x384xf32>
    %49 = vector.extract_strided_slice %45 {offsets = [0, 0], sizes = [8, 256], strides = [1, 1]} : vector<8x384xf32> to vector<8x256xf32>
    %50 = vector.extract_strided_slice %48 {offsets = [0, 0], sizes = [8, 256], strides = [1, 1]} : vector<8x384xf32> to vector<8x256xf32>
    %51 = arith.addf %49, %50 : vector<8x256xf32>
    %52 = arith.negf %51 : vector<8x256xf32>
    %53 = math.exp %52 : vector<8x256xf32>
    %cst_26 = arith.constant 1.000000e+00 : f32
    %54 = vector.broadcast %cst_26 : f32 to vector<8x256xf32>
    %55 = arith.addf %54, %53 : vector<8x256xf32>
    %56 = arith.divf %54, %55 : vector<8x256xf32>
    %57 = vector.extract_strided_slice %56 {offsets = [0, 0], sizes = [8, 128], strides = [1, 1]} : vector<8x256xf32> to vector<8x128xf32>
    %58 = vector.extract_strided_slice %56 {offsets = [0, 128], sizes = [8, 128], strides = [1, 1]} : vector<8x256xf32> to vector<8x128xf32>
    %59 = vector.extract_strided_slice %45 {offsets = [0, 256], sizes = [8, 128], strides = [1, 1]} : vector<8x384xf32> to vector<8x128xf32>
    %60 = vector.extract_strided_slice %48 {offsets = [0, 256], sizes = [8, 128], strides = [1, 1]} : vector<8x384xf32> to vector<8x128xf32>
    %61 = arith.mulf %57, %60 : vector<8x128xf32>
    %62 = arith.addf %59, %61 : vector<8x128xf32>
    %63 = math.tanh %62 : vector<8x128xf32>
    %cst_27 = arith.constant 1.000000e+00 : f32
    %64 = vector.broadcast %cst_27 : f32 to vector<8x128xf32>
    %65 = arith.subf %64, %58 : vector<8x128xf32>
    %66 = arith.mulf %65, %63 : vector<8x128xf32>
    %67 = arith.mulf %58, %38 : vector<8x128xf32>
    %68 = arith.addf %66, %67 : vector<8x128xf32>
    %69 = arith.index_cast %c1_i32 : i32 to index
    %c0_28 = arith.constant 0 : index
    %c0_29 = arith.constant 0 : index
    %70 = vector.load %arg14[%69, %c0_28, %c0_29] : memref<8x8x128xf32, #tpu.memory_space<vmem>>, vector<1x8x128xf32>
    %71 = vector.shape_cast %70 : vector<1x8x128xf32> to vector<8x128xf32>
    %72 = vector.shape_cast %68 : vector<8x128xf32> to vector<1x8x128xf32>
    tpu.vector_store %arg14[%69, %c0_28, %c0_29], %72 {strides = array<i32>} : memref<8x8x128xf32, #tpu.memory_space<vmem>>, vector<1x8x128xf32>,
    %c2_i32 = arith.constant 2 : i32
    %73 = arith.index_cast %c2_i32 : i32 to index
    %c0_30 = arith.constant 0 : index
    %c0_31 = arith.constant 0 : index
    %74 = vector.load %arg16[%73, %c0_30, %c0_31] : memref<8x8x384xf32, #tpu.memory_space<vmem>>, vector<1x8x384xf32>
    %75 = vector.shape_cast %74 : vector<1x8x384xf32> to vector<8x384xf32>
    %cst_32 = arith.constant dense<0.000000e+00> : vector<8x384xf32>
    %76 = tpu.matmul %68, %0, %cst_32 {dimension_numbers = #tpu.dot_dimension_numbers<[1], [0], [0], [1], [0, 0, 1, 1], [], []>} : vector<8x128xf32>, vector<128x384xf32>, vector<8x384xf32> -> vector<8x384xf32>
    %77 = vector.broadcast %1 : vector<1x384xf32> to vector<8x384xf32>
    %78 = arith.addf %76, %77 : vector<8x384xf32>
    %79 = vector.extract_strided_slice %75 {offsets = [0, 0], sizes = [8, 256], strides = [1, 1]} : vector<8x384xf32> to vector<8x256xf32>
    %80 = vector.extract_strided_slice %78 {offsets = [0, 0], sizes = [8, 256], strides = [1, 1]} : vector<8x384xf32> to vector<8x256xf32>
    %81 = arith.addf %79, %80 : vector<8x256xf32>
    %82 = arith.negf %81 : vector<8x256xf32>
    %83 = math.exp %82 : vector<8x256xf32>
    %cst_33 = arith.constant 1.000000e+00 : f32
    %84 = vector.broadcast %cst_33 : f32 to vector<8x256xf32>
    %85 = arith.addf %84, %83 : vector<8x256xf32>
    %86 = arith.divf %84, %85 : vector<8x256xf32>
    %87 = vector.extract_strided_slice %86 {offsets = [0, 0], sizes = [8, 128], strides = [1, 1]} : vector<8x256xf32> to vector<8x128xf32>
    %88 = vector.extract_strided_slice %86 {offsets = [0, 128], sizes = [8, 128], strides = [1, 1]} : vector<8x256xf32> to vector<8x128xf32>
    %89 = vector.extract_strided_slice %75 {offsets = [0, 256], sizes = [8, 128], strides = [1, 1]} : vector<8x384xf32> to vector<8x128xf32>
    %90 = vector.extract_strided_slice %78 {offsets = [0, 256], sizes = [8, 128], strides = [1, 1]} : vector<8x384xf32> to vector<8x128xf32>
    %91 = arith.mulf %87, %90 : vector<8x128xf32>
    %92 = arith.addf %89, %91 : vector<8x128xf32>
    %93 = math.tanh %92 : vector<8x128xf32>
    %cst_34 = arith.constant 1.000000e+00 : f32
    %94 = vector.broadcast %cst_34 : f32 to vector<8x128xf32>
    %95 = arith.subf %94, %88 : vector<8x128xf32>
    %96 = arith.mulf %95, %93 : vector<8x128xf32>
    %97 = arith.mulf %88, %68 : vector<8x128xf32>
    %98 = arith.addf %96, %97 : vector<8x128xf32>
    %99 = arith.index_cast %c2_i32 : i32 to index
    %c0_35 = arith.constant 0 : index
    %c0_36 = arith.constant 0 : index
    %100 = vector.load %arg14[%99, %c0_35, %c0_36] : memref<8x8x128xf32, #tpu.memory_space<vmem>>, vector<1x8x128xf32>
    %101 = vector.shape_cast %100 : vector<1x8x128xf32> to vector<8x128xf32>
    %102 = vector.shape_cast %98 : vector<8x128xf32> to vector<1x8x128xf32>
    tpu.vector_store %arg14[%99, %c0_35, %c0_36], %102 {strides = array<i32>} : memref<8x8x128xf32, #tpu.memory_space<vmem>>, vector<1x8x128xf32>,
    %c3_i32 = arith.constant 3 : i32
    %103 = arith.index_cast %c3_i32 : i32 to index
    %c0_37 = arith.constant 0 : index
    %c0_38 = arith.constant 0 : index
    %104 = vector.load %arg16[%103, %c0_37, %c0_38] : memref<8x8x384xf32, #tpu.memory_space<vmem>>, vector<1x8x384xf32>
    %105 = vector.shape_cast %104 : vector<1x8x384xf32> to vector<8x384xf32>
    %cst_39 = arith.constant dense<0.000000e+00> : vector<8x384xf32>
    %106 = tpu.matmul %98, %0, %cst_39 {dimension_numbers = #tpu.dot_dimension_numbers<[1], [0], [0], [1], [0, 0, 1, 1], [], []>} : vector<8x128xf32>, vector<128x384xf32>, vector<8x384xf32> -> vector<8x384xf32>
    %107 = vector.broadcast %1 : vector<1x384xf32> to vector<8x384xf32>
    %108 = arith.addf %106, %107 : vector<8x384xf32>
    %109 = vector.extract_strided_slice %105 {offsets = [0, 0], sizes = [8, 256], strides = [1, 1]} : vector<8x384xf32> to vector<8x256xf32>
    %110 = vector.extract_strided_slice %108 {offsets = [0, 0], sizes = [8, 256], strides = [1, 1]} : vector<8x384xf32> to vector<8x256xf32>
    %111 = arith.addf %109, %110 : vector<8x256xf32>
    %112 = arith.negf %111 : vector<8x256xf32>
    %113 = math.exp %112 : vector<8x256xf32>
    %cst_40 = arith.constant 1.000000e+00 : f32
    %114 = vector.broadcast %cst_40 : f32 to vector<8x256xf32>
    %115 = arith.addf %114, %113 : vector<8x256xf32>
    %116 = arith.divf %114, %115 : vector<8x256xf32>
    %117 = vector.extract_strided_slice %116 {offsets = [0, 0], sizes = [8, 128], strides = [1, 1]} : vector<8x256xf32> to vector<8x128xf32>
    %118 = vector.extract_strided_slice %116 {offsets = [0, 128], sizes = [8, 128], strides = [1, 1]} : vector<8x256xf32> to vector<8x128xf32>
    %119 = vector.extract_strided_slice %105 {offsets = [0, 256], sizes = [8, 128], strides = [1, 1]} : vector<8x384xf32> to vector<8x128xf32>
    %120 = vector.extract_strided_slice %108 {offsets = [0, 256], sizes = [8, 128], strides = [1, 1]} : vector<8x384xf32> to vector<8x128xf32>
    %121 = arith.mulf %117, %120 : vector<8x128xf32>
    %122 = arith.addf %119, %121 : vector<8x128xf32>
    %123 = math.tanh %122 : vector<8x128xf32>
    %cst_41 = arith.constant 1.000000e+00 : f32
    %124 = vector.broadcast %cst_41 : f32 to vector<8x128xf32>
    %125 = arith.subf %124, %118 : vector<8x128xf32>
    %126 = arith.mulf %125, %123 : vector<8x128xf32>
    %127 = arith.mulf %118, %98 : vector<8x128xf32>
    %128 = arith.addf %126, %127 : vector<8x128xf32>
    %129 = arith.index_cast %c3_i32 : i32 to index
    %c0_42 = arith.constant 0 : index
    %c0_43 = arith.constant 0 : index
    %130 = vector.load %arg14[%129, %c0_42, %c0_43] : memref<8x8x128xf32, #tpu.memory_space<vmem>>, vector<1x8x128xf32>
    %131 = vector.shape_cast %130 : vector<1x8x128xf32> to vector<8x128xf32>
    %132 = vector.shape_cast %128 : vector<8x128xf32> to vector<1x8x128xf32>
    tpu.vector_store %arg14[%129, %c0_42, %c0_43], %132 {strides = array<i32>} : memref<8x8x128xf32, #tpu.memory_space<vmem>>, vector<1x8x128xf32>,
    %c4_i32 = arith.constant 4 : i32
    %133 = arith.index_cast %c4_i32 : i32 to index
    %c0_44 = arith.constant 0 : index
    %c0_45 = arith.constant 0 : index
    %134 = vector.load %arg16[%133, %c0_44, %c0_45] : memref<8x8x384xf32, #tpu.memory_space<vmem>>, vector<1x8x384xf32>
    %135 = vector.shape_cast %134 : vector<1x8x384xf32> to vector<8x384xf32>
    %cst_46 = arith.constant dense<0.000000e+00> : vector<8x384xf32>
    %136 = tpu.matmul %128, %0, %cst_46 {dimension_numbers = #tpu.dot_dimension_numbers<[1], [0], [0], [1], [0, 0, 1, 1], [], []>} : vector<8x128xf32>, vector<128x384xf32>, vector<8x384xf32> -> vector<8x384xf32>
    %137 = vector.broadcast %1 : vector<1x384xf32> to vector<8x384xf32>
    %138 = arith.addf %136, %137 : vector<8x384xf32>
    %139 = vector.extract_strided_slice %135 {offsets = [0, 0], sizes = [8, 256], strides = [1, 1]} : vector<8x384xf32> to vector<8x256xf32>
    %140 = vector.extract_strided_slice %138 {offsets = [0, 0], sizes = [8, 256], strides = [1, 1]} : vector<8x384xf32> to vector<8x256xf32>
    %141 = arith.addf %139, %140 : vector<8x256xf32>
    %142 = arith.negf %141 : vector<8x256xf32>
    %143 = math.exp %142 : vector<8x256xf32>
    %cst_47 = arith.constant 1.000000e+00 : f32
    %144 = vector.broadcast %cst_47 : f32 to vector<8x256xf32>
    %145 = arith.addf %144, %143 : vector<8x256xf32>
    %146 = arith.divf %144, %145 : vector<8x256xf32>
    %147 = vector.extract_strided_slice %146 {offsets = [0, 0], sizes = [8, 128], strides = [1, 1]} : vector<8x256xf32> to vector<8x128xf32>
    %148 = vector.extract_strided_slice %146 {offsets = [0, 128], sizes = [8, 128], strides = [1, 1]} : vector<8x256xf32> to vector<8x128xf32>
    %149 = vector.extract_strided_slice %135 {offsets = [0, 256], sizes = [8, 128], strides = [1, 1]} : vector<8x384xf32> to vector<8x128xf32>
    %150 = vector.extract_strided_slice %138 {offsets = [0, 256], sizes = [8, 128], strides = [1, 1]} : vector<8x384xf32> to vector<8x128xf32>
    %151 = arith.mulf %147, %150 : vector<8x128xf32>
    %152 = arith.addf %149, %151 : vector<8x128xf32>
    %153 = math.tanh %152 : vector<8x128xf32>
    %cst_48 = arith.constant 1.000000e+00 : f32
    %154 = vector.broadcast %cst_48 : f32 to vector<8x128xf32>
    %155 = arith.subf %154, %148 : vector<8x128xf32>
    %156 = arith.mulf %155, %153 : vector<8x128xf32>
    %157 = arith.mulf %148, %128 : vector<8x128xf32>
    %158 = arith.addf %156, %157 : vector<8x128xf32>
    %159 = arith.index_cast %c4_i32 : i32 to index
    %c0_49 = arith.constant 0 : index
    %c0_50 = arith.constant 0 : index
    %160 = vector.load %arg14[%159, %c0_49, %c0_50] : memref<8x8x128xf32, #tpu.memory_space<vmem>>, vector<1x8x128xf32>
    %161 = vector.shape_cast %160 : vector<1x8x128xf32> to vector<8x128xf32>
    %162 = vector.shape_cast %158 : vector<8x128xf32> to vector<1x8x128xf32>
    tpu.vector_store %arg14[%159, %c0_49, %c0_50], %162 {strides = array<i32>} : memref<8x8x128xf32, #tpu.memory_space<vmem>>, vector<1x8x128xf32>,
    %c5_i32 = arith.constant 5 : i32
    %163 = arith.index_cast %c5_i32 : i32 to index
    %c0_51 = arith.constant 0 : index
    %c0_52 = arith.constant 0 : index
    %164 = vector.load %arg16[%163, %c0_51, %c0_52] : memref<8x8x384xf32, #tpu.memory_space<vmem>>, vector<1x8x384xf32>
    %165 = vector.shape_cast %164 : vector<1x8x384xf32> to vector<8x384xf32>
    %cst_53 = arith.constant dense<0.000000e+00> : vector<8x384xf32>
    %166 = tpu.matmul %158, %0, %cst_53 {dimension_numbers = #tpu.dot_dimension_numbers<[1], [0], [0], [1], [0, 0, 1, 1], [], []>} : vector<8x128xf32>, vector<128x384xf32>, vector<8x384xf32> -> vector<8x384xf32>
    %167 = vector.broadcast %1 : vector<1x384xf32> to vector<8x384xf32>
    %168 = arith.addf %166, %167 : vector<8x384xf32>
    %169 = vector.extract_strided_slice %165 {offsets = [0, 0], sizes = [8, 256], strides = [1, 1]} : vector<8x384xf32> to vector<8x256xf32>
    %170 = vector.extract_strided_slice %168 {offsets = [0, 0], sizes = [8, 256], strides = [1, 1]} : vector<8x384xf32> to vector<8x256xf32>
    %171 = arith.addf %169, %170 : vector<8x256xf32>
    %172 = arith.negf %171 : vector<8x256xf32>
    %173 = math.exp %172 : vector<8x256xf32>
    %cst_54 = arith.constant 1.000000e+00 : f32
    %174 = vector.broadcast %cst_54 : f32 to vector<8x256xf32>
    %175 = arith.addf %174, %173 : vector<8x256xf32>
    %176 = arith.divf %174, %175 : vector<8x256xf32>
    %177 = vector.extract_strided_slice %176 {offsets = [0, 0], sizes = [8, 128], strides = [1, 1]} : vector<8x256xf32> to vector<8x128xf32>
    %178 = vector.extract_strided_slice %176 {offsets = [0, 128], sizes = [8, 128], strides = [1, 1]} : vector<8x256xf32> to vector<8x128xf32>
    %179 = vector.extract_strided_slice %165 {offsets = [0, 256], sizes = [8, 128], strides = [1, 1]} : vector<8x384xf32> to vector<8x128xf32>
    %180 = vector.extract_strided_slice %168 {offsets = [0, 256], sizes = [8, 128], strides = [1, 1]} : vector<8x384xf32> to vector<8x128xf32>
    %181 = arith.mulf %177, %180 : vector<8x128xf32>
    %182 = arith.addf %179, %181 : vector<8x128xf32>
    %183 = math.tanh %182 : vector<8x128xf32>
    %cst_55 = arith.constant 1.000000e+00 : f32
    %184 = vector.broadcast %cst_55 : f32 to vector<8x128xf32>
    %185 = arith.subf %184, %178 : vector<8x128xf32>
    %186 = arith.mulf %185, %183 : vector<8x128xf32>
    %187 = arith.mulf %178, %158 : vector<8x128xf32>
    %188 = arith.addf %186, %187 : vector<8x128xf32>
    %189 = arith.index_cast %c5_i32 : i32 to index
    %c0_56 = arith.constant 0 : index
    %c0_57 = arith.constant 0 : index
    %190 = vector.load %arg14[%189, %c0_56, %c0_57] : memref<8x8x128xf32, #tpu.memory_space<vmem>>, vector<1x8x128xf32>
    %191 = vector.shape_cast %190 : vector<1x8x128xf32> to vector<8x128xf32>
    %192 = vector.shape_cast %188 : vector<8x128xf32> to vector<1x8x128xf32>
    tpu.vector_store %arg14[%189, %c0_56, %c0_57], %192 {strides = array<i32>} : memref<8x8x128xf32, #tpu.memory_space<vmem>>, vector<1x8x128xf32>,
    %c6_i32 = arith.constant 6 : i32
    %193 = arith.index_cast %c6_i32 : i32 to index
    %c0_58 = arith.constant 0 : index
    %c0_59 = arith.constant 0 : index
    %194 = vector.load %arg16[%193, %c0_58, %c0_59] : memref<8x8x384xf32, #tpu.memory_space<vmem>>, vector<1x8x384xf32>
    %195 = vector.shape_cast %194 : vector<1x8x384xf32> to vector<8x384xf32>
    %cst_60 = arith.constant dense<0.000000e+00> : vector<8x384xf32>
    %196 = tpu.matmul %188, %0, %cst_60 {dimension_numbers = #tpu.dot_dimension_numbers<[1], [0], [0], [1], [0, 0, 1, 1], [], []>} : vector<8x128xf32>, vector<128x384xf32>, vector<8x384xf32> -> vector<8x384xf32>
    %197 = vector.broadcast %1 : vector<1x384xf32> to vector<8x384xf32>
    %198 = arith.addf %196, %197 : vector<8x384xf32>
    %199 = vector.extract_strided_slice %195 {offsets = [0, 0], sizes = [8, 256], strides = [1, 1]} : vector<8x384xf32> to vector<8x256xf32>
    %200 = vector.extract_strided_slice %198 {offsets = [0, 0], sizes = [8, 256], strides = [1, 1]} : vector<8x384xf32> to vector<8x256xf32>
    %201 = arith.addf %199, %200 : vector<8x256xf32>
    %202 = arith.negf %201 : vector<8x256xf32>
    %203 = math.exp %202 : vector<8x256xf32>
    %cst_61 = arith.constant 1.000000e+00 : f32
    %204 = vector.broadcast %cst_61 : f32 to vector<8x256xf32>
    %205 = arith.addf %204, %203 : vector<8x256xf32>
    %206 = arith.divf %204, %205 : vector<8x256xf32>
    %207 = vector.extract_strided_slice %206 {offsets = [0, 0], sizes = [8, 128], strides = [1, 1]} : vector<8x256xf32> to vector<8x128xf32>
    %208 = vector.extract_strided_slice %206 {offsets = [0, 128], sizes = [8, 128], strides = [1, 1]} : vector<8x256xf32> to vector<8x128xf32>
    %209 = vector.extract_strided_slice %195 {offsets = [0, 256], sizes = [8, 128], strides = [1, 1]} : vector<8x384xf32> to vector<8x128xf32>
    %210 = vector.extract_strided_slice %198 {offsets = [0, 256], sizes = [8, 128], strides = [1, 1]} : vector<8x384xf32> to vector<8x128xf32>
    %211 = arith.mulf %207, %210 : vector<8x128xf32>
    %212 = arith.addf %209, %211 : vector<8x128xf32>
    %213 = math.tanh %212 : vector<8x128xf32>
    %cst_62 = arith.constant 1.000000e+00 : f32
    %214 = vector.broadcast %cst_62 : f32 to vector<8x128xf32>
    %215 = arith.subf %214, %208 : vector<8x128xf32>
    %216 = arith.mulf %215, %213 : vector<8x128xf32>
    %217 = arith.mulf %208, %188 : vector<8x128xf32>
    %218 = arith.addf %216, %217 : vector<8x128xf32>
    %219 = arith.index_cast %c6_i32 : i32 to index
    %c0_63 = arith.constant 0 : index
    %c0_64 = arith.constant 0 : index
    %220 = vector.load %arg14[%219, %c0_63, %c0_64] : memref<8x8x128xf32, #tpu.memory_space<vmem>>, vector<1x8x128xf32>
    %221 = vector.shape_cast %220 : vector<1x8x128xf32> to vector<8x128xf32>
    %222 = vector.shape_cast %218 : vector<8x128xf32> to vector<1x8x128xf32>
    tpu.vector_store %arg14[%219, %c0_63, %c0_64], %222 {strides = array<i32>} : memref<8x8x128xf32, #tpu.memory_space<vmem>>, vector<1x8x128xf32>,
    %c7_i32 = arith.constant 7 : i32
    %223 = arith.index_cast %c7_i32 : i32 to index
    %c0_65 = arith.constant 0 : index
    %c0_66 = arith.constant 0 : index
    %224 = vector.load %arg16[%223, %c0_65, %c0_66] : memref<8x8x384xf32, #tpu.memory_space<vmem>>, vector<1x8x384xf32>
    %225 = vector.shape_cast %224 : vector<1x8x384xf32> to vector<8x384xf32>
    %cst_67 = arith.constant dense<0.000000e+00> : vector<8x384xf32>
    %226 = tpu.matmul %218, %0, %cst_67 {dimension_numbers = #tpu.dot_dimension_numbers<[1], [0], [0], [1], [0, 0, 1, 1], [], []>} : vector<8x128xf32>, vector<128x384xf32>, vector<8x384xf32> -> vector<8x384xf32>
    %227 = vector.broadcast %1 : vector<1x384xf32> to vector<8x384xf32>
    %228 = arith.addf %226, %227 : vector<8x384xf32>
    %229 = vector.extract_strided_slice %225 {offsets = [0, 0], sizes = [8, 256], strides = [1, 1]} : vector<8x384xf32> to vector<8x256xf32>
    %230 = vector.extract_strided_slice %228 {offsets = [0, 0], sizes = [8, 256], strides = [1, 1]} : vector<8x384xf32> to vector<8x256xf32>
    %231 = arith.addf %229, %230 : vector<8x256xf32>
    %232 = arith.negf %231 : vector<8x256xf32>
    %233 = math.exp %232 : vector<8x256xf32>
    %cst_68 = arith.constant 1.000000e+00 : f32
    %234 = vector.broadcast %cst_68 : f32 to vector<8x256xf32>
    %235 = arith.addf %234, %233 : vector<8x256xf32>
    %236 = arith.divf %234, %235 : vector<8x256xf32>
    %237 = vector.extract_strided_slice %236 {offsets = [0, 0], sizes = [8, 128], strides = [1, 1]} : vector<8x256xf32> to vector<8x128xf32>
    %238 = vector.extract_strided_slice %236 {offsets = [0, 128], sizes = [8, 128], strides = [1, 1]} : vector<8x256xf32> to vector<8x128xf32>
    %239 = vector.extract_strided_slice %225 {offsets = [0, 256], sizes = [8, 128], strides = [1, 1]} : vector<8x384xf32> to vector<8x128xf32>
    %240 = vector.extract_strided_slice %228 {offsets = [0, 256], sizes = [8, 128], strides = [1, 1]} : vector<8x384xf32> to vector<8x128xf32>
    %241 = arith.mulf %237, %240 : vector<8x128xf32>
    %242 = arith.addf %239, %241 : vector<8x128xf32>
    %243 = math.tanh %242 : vector<8x128xf32>
    %cst_69 = arith.constant 1.000000e+00 : f32
    %244 = vector.broadcast %cst_69 : f32 to vector<8x128xf32>
    %245 = arith.subf %244, %238 : vector<8x128xf32>
    %246 = arith.mulf %245, %243 : vector<8x128xf32>
    %247 = arith.mulf %238, %218 : vector<8x128xf32>
    %248 = arith.addf %246, %247 : vector<8x128xf32>
    %249 = arith.index_cast %c7_i32 : i32 to index
    %c0_70 = arith.constant 0 : index
    %c0_71 = arith.constant 0 : index
    %250 = vector.load %arg14[%249, %c0_70, %c0_71] : memref<8x8x128xf32, #tpu.memory_space<vmem>>, vector<1x8x128xf32>
    %251 = vector.shape_cast %250 : vector<1x8x128xf32> to vector<8x128xf32>
    %252 = vector.shape_cast %248 : vector<8x128xf32> to vector<1x8x128xf32>
    tpu.vector_store %arg14[%249, %c0_70, %c0_71], %252 {strides = array<i32>} : memref<8x8x128xf32, #tpu.memory_space<vmem>>, vector<1x8x128xf32>,
    %c8_i32 = arith.constant 8 : i32
    %c0_72 = arith.constant 0 : index
    %c0_73 = arith.constant 0 : index
    %c0_74 = arith.constant 0 : index
    %253 = vector.load %arg15[%c0_72, %c0_73, %c0_74] : memref<3x8x128xf32, #tpu.memory_space<vmem>>, vector<1x8x128xf32>
    %254 = vector.shape_cast %253 : vector<1x8x128xf32> to vector<8x128xf32>
    %255 = vector.shape_cast %248 : vector<8x128xf32> to vector<1x8x128xf32>
    tpu.vector_store %arg15[%c0_72, %c0_73, %c0_74], %255 {strides = array<i32>} : memref<3x8x128xf32, #tpu.memory_space<vmem>>, vector<1x8x128xf32>,
    %c0_75 = arith.constant 0 : index
    %c0_76 = arith.constant 0 : index
    %256 = vector.load %arg7[%c0_75, %c0_76] : memref<128x384xf32, #tpu.memory_space<vmem>>, vector<128x384xf32>
    %c0_77 = arith.constant 0 : index
    %c0_78 = arith.constant 0 : index
    %257 = vector.load %arg9[%c0_77, %c0_78] : memref<1x384xf32, #tpu.memory_space<vmem>>, vector<1x384xf32>
    %c0_79 = arith.constant 0 : index
    %c0_80 = arith.constant 0 : index
    %c0_81 = arith.constant 0 : index
    %258 = vector.load %arg14[%c0_79, %c0_80, %c0_81] : memref<8x8x128xf32, #tpu.memory_space<vmem>>, vector<8x8x128xf32>
    %259 = vector.shape_cast %258 : vector<8x8x128xf32> to vector<64x128xf32>
    %c0_82 = arith.constant 0 : index
    %c0_83 = arith.constant 0 : index
    %260 = vector.load %arg6[%c0_82, %c0_83] : memref<128x384xf32, #tpu.memory_space<vmem>>, vector<128x384xf32>
    %cst_84 = arith.constant dense<0.000000e+00> : vector<64x384xf32>
    %261 = tpu.matmul %259, %260, %cst_84 {dimension_numbers = #tpu.dot_dimension_numbers<[1], [0], [0], [1], [0, 0, 1, 1], [], []>} : vector<64x128xf32>, vector<128x384xf32>, vector<64x384xf32> -> vector<64x384xf32>
    %c0_85 = arith.constant 0 : index
    %c0_86 = arith.constant 0 : index
    %262 = vector.load %arg8[%c0_85, %c0_86] : memref<1x384xf32, #tpu.memory_space<vmem>>, vector<1x384xf32>
    %263 = vector.broadcast %262 : vector<1x384xf32> to vector<64x384xf32>
    %264 = arith.addf %261, %263 : vector<64x384xf32>
    %265 = vector.shape_cast %264 : vector<64x384xf32> to vector<8x8x384xf32>
    %c0_87 = arith.constant 0 : index
    %c0_88 = arith.constant 0 : index
    %c0_89 = arith.constant 0 : index
    %266 = vector.load %arg16[%c0_87, %c0_88, %c0_89] : memref<8x8x384xf32, #tpu.memory_space<vmem>>, vector<8x8x384xf32>
    tpu.vector_store %arg16[%c0_87, %c0_88, %c0_89], %265 {strides = array<i32>} : memref<8x8x384xf32, #tpu.memory_space<vmem>>, vector<8x8x384xf32>,
    %c1 = arith.constant 1 : index
    %c0_90 = arith.constant 0 : index
    %c0_91 = arith.constant 0 : index
    %267 = vector.load %arg1[%c1, %c0_90, %c0_91] : memref<3x8x128xf32, #tpu.memory_space<vmem>>, vector<1x8x128xf32>
    %268 = vector.shape_cast %267 : vector<1x8x128xf32> to vector<8x128xf32>
    %c0_i32_92 = arith.constant 0 : i32
    %269 = arith.index_cast %c0_i32_92 : i32 to index
    %c0_93 = arith.constant 0 : index
    %c0_94 = arith.constant 0 : index
    %270 = vector.load %arg16[%269, %c0_93, %c0_94] : memref<8x8x384xf32, #tpu.memory_space<vmem>>, vector<1x8x384xf32>
    %271 = vector.shape_cast %270 : vector<1x8x384xf32> to vector<8x384xf32>
    %cst_95 = arith.constant dense<0.000000e+00> : vector<8x384xf32>
    %272 = tpu.matmul %268, %256, %cst_95 {dimension_numbers = #tpu.dot_dimension_numbers<[1], [0], [0], [1], [0, 0, 1, 1], [], []>} : vector<8x128xf32>, vector<128x384xf32>, vector<8x384xf32> -> vector<8x384xf32>
    %273 = vector.broadcast %257 : vector<1x384xf32> to vector<8x384xf32>
    %274 = arith.addf %272, %273 : vector<8x384xf32>
    %275 = vector.extract_strided_slice %271 {offsets = [0, 0], sizes = [8, 256], strides = [1, 1]} : vector<8x384xf32> to vector<8x256xf32>
    %276 = vector.extract_strided_slice %274 {offsets = [0, 0], sizes = [8, 256], strides = [1, 1]} : vector<8x384xf32> to vector<8x256xf32>
    %277 = arith.addf %275, %276 : vector<8x256xf32>
    %278 = arith.negf %277 : vector<8x256xf32>
    %279 = math.exp %278 : vector<8x256xf32>
    %cst_96 = arith.constant 1.000000e+00 : f32
    %280 = vector.broadcast %cst_96 : f32 to vector<8x256xf32>
    %281 = arith.addf %280, %279 : vector<8x256xf32>
    %282 = arith.divf %280, %281 : vector<8x256xf32>
    %283 = vector.extract_strided_slice %282 {offsets = [0, 0], sizes = [8, 128], strides = [1, 1]} : vector<8x256xf32> to vector<8x128xf32>
    %284 = vector.extract_strided_slice %282 {offsets = [0, 128], sizes = [8, 128], strides = [1, 1]} : vector<8x256xf32> to vector<8x128xf32>
    %285 = vector.extract_strided_slice %271 {offsets = [0, 256], sizes = [8, 128], strides = [1, 1]} : vector<8x384xf32> to vector<8x128xf32>
    %286 = vector.extract_strided_slice %274 {offsets = [0, 256], sizes = [8, 128], strides = [1, 1]} : vector<8x384xf32> to vector<8x128xf32>
    %287 = arith.mulf %283, %286 : vector<8x128xf32>
    %288 = arith.addf %285, %287 : vector<8x128xf32>
    %289 = math.tanh %288 : vector<8x128xf32>
    %cst_97 = arith.constant 1.000000e+00 : f32
    %290 = vector.broadcast %cst_97 : f32 to vector<8x128xf32>
    %291 = arith.subf %290, %284 : vector<8x128xf32>
    %292 = arith.mulf %291, %289 : vector<8x128xf32>
    %293 = arith.mulf %284, %268 : vector<8x128xf32>
    %294 = arith.addf %292, %293 : vector<8x128xf32>
    %295 = arith.index_cast %c0_i32_92 : i32 to index
    %c0_98 = arith.constant 0 : index
    %c0_99 = arith.constant 0 : index
    %296 = vector.load %arg14[%295, %c0_98, %c0_99] : memref<8x8x128xf32, #tpu.memory_space<vmem>>, vector<1x8x128xf32>
    %297 = vector.shape_cast %296 : vector<1x8x128xf32> to vector<8x128xf32>
    %298 = vector.shape_cast %294 : vector<8x128xf32> to vector<1x8x128xf32>
    tpu.vector_store %arg14[%295, %c0_98, %c0_99], %298 {strides = array<i32>} : memref<8x8x128xf32, #tpu.memory_space<vmem>>, vector<1x8x128xf32>,
    %c1_i32_100 = arith.constant 1 : i32
    %299 = arith.index_cast %c1_i32_100 : i32 to index
    %c0_101 = arith.constant 0 : index
    %c0_102 = arith.constant 0 : index
    %300 = vector.load %arg16[%299, %c0_101, %c0_102] : memref<8x8x384xf32, #tpu.memory_space<vmem>>, vector<1x8x384xf32>
    %301 = vector.shape_cast %300 : vector<1x8x384xf32> to vector<8x384xf32>
    %cst_103 = arith.constant dense<0.000000e+00> : vector<8x384xf32>
    %302 = tpu.matmul %294, %256, %cst_103 {dimension_numbers = #tpu.dot_dimension_numbers<[1], [0], [0], [1], [0, 0, 1, 1], [], []>} : vector<8x128xf32>, vector<128x384xf32>, vector<8x384xf32> -> vector<8x384xf32>
    %303 = vector.broadcast %257 : vector<1x384xf32> to vector<8x384xf32>
    %304 = arith.addf %302, %303 : vector<8x384xf32>
    %305 = vector.extract_strided_slice %301 {offsets = [0, 0], sizes = [8, 256], strides = [1, 1]} : vector<8x384xf32> to vector<8x256xf32>
    %306 = vector.extract_strided_slice %304 {offsets = [0, 0], sizes = [8, 256], strides = [1, 1]} : vector<8x384xf32> to vector<8x256xf32>
    %307 = arith.addf %305, %306 : vector<8x256xf32>
    %308 = arith.negf %307 : vector<8x256xf32>
    %309 = math.exp %308 : vector<8x256xf32>
    %cst_104 = arith.constant 1.000000e+00 : f32
    %310 = vector.broadcast %cst_104 : f32 to vector<8x256xf32>
    %311 = arith.addf %310, %309 : vector<8x256xf32>
    %312 = arith.divf %310, %311 : vector<8x256xf32>
    %313 = vector.extract_strided_slice %312 {offsets = [0, 0], sizes = [8, 128], strides = [1, 1]} : vector<8x256xf32> to vector<8x128xf32>
    %314 = vector.extract_strided_slice %312 {offsets = [0, 128], sizes = [8, 128], strides = [1, 1]} : vector<8x256xf32> to vector<8x128xf32>
    %315 = vector.extract_strided_slice %301 {offsets = [0, 256], sizes = [8, 128], strides = [1, 1]} : vector<8x384xf32> to vector<8x128xf32>
    %316 = vector.extract_strided_slice %304 {offsets = [0, 256], sizes = [8, 128], strides = [1, 1]} : vector<8x384xf32> to vector<8x128xf32>
    %317 = arith.mulf %313, %316 : vector<8x128xf32>
    %318 = arith.addf %315, %317 : vector<8x128xf32>
    %319 = math.tanh %318 : vector<8x128xf32>
    %cst_105 = arith.constant 1.000000e+00 : f32
    %320 = vector.broadcast %cst_105 : f32 to vector<8x128xf32>
    %321 = arith.subf %320, %314 : vector<8x128xf32>
    %322 = arith.mulf %321, %319 : vector<8x128xf32>
    %323 = arith.mulf %314, %294 : vector<8x128xf32>
    %324 = arith.addf %322, %323 : vector<8x128xf32>
    %325 = arith.index_cast %c1_i32_100 : i32 to index
    %c0_106 = arith.constant 0 : index
    %c0_107 = arith.constant 0 : index
    %326 = vector.load %arg14[%325, %c0_106, %c0_107] : memref<8x8x128xf32, #tpu.memory_space<vmem>>, vector<1x8x128xf32>
    %327 = vector.shape_cast %326 : vector<1x8x128xf32> to vector<8x128xf32>
    %328 = vector.shape_cast %324 : vector<8x128xf32> to vector<1x8x128xf32>
    tpu.vector_store %arg14[%325, %c0_106, %c0_107], %328 {strides = array<i32>} : memref<8x8x128xf32, #tpu.memory_space<vmem>>, vector<1x8x128xf32>,
    %c2_i32_108 = arith.constant 2 : i32
    %329 = arith.index_cast %c2_i32_108 : i32 to index
    %c0_109 = arith.constant 0 : index
    %c0_110 = arith.constant 0 : index
    %330 = vector.load %arg16[%329, %c0_109, %c0_110] : memref<8x8x384xf32, #tpu.memory_space<vmem>>, vector<1x8x384xf32>
    %331 = vector.shape_cast %330 : vector<1x8x384xf32> to vector<8x384xf32>
    %cst_111 = arith.constant dense<0.000000e+00> : vector<8x384xf32>
    %332 = tpu.matmul %324, %256, %cst_111 {dimension_numbers = #tpu.dot_dimension_numbers<[1], [0], [0], [1], [0, 0, 1, 1], [], []>} : vector<8x128xf32>, vector<128x384xf32>, vector<8x384xf32> -> vector<8x384xf32>
    %333 = vector.broadcast %257 : vector<1x384xf32> to vector<8x384xf32>
    %334 = arith.addf %332, %333 : vector<8x384xf32>
    %335 = vector.extract_strided_slice %331 {offsets = [0, 0], sizes = [8, 256], strides = [1, 1]} : vector<8x384xf32> to vector<8x256xf32>
    %336 = vector.extract_strided_slice %334 {offsets = [0, 0], sizes = [8, 256], strides = [1, 1]} : vector<8x384xf32> to vector<8x256xf32>
    %337 = arith.addf %335, %336 : vector<8x256xf32>
    %338 = arith.negf %337 : vector<8x256xf32>
    %339 = math.exp %338 : vector<8x256xf32>
    %cst_112 = arith.constant 1.000000e+00 : f32
    %340 = vector.broadcast %cst_112 : f32 to vector<8x256xf32>
    %341 = arith.addf %340, %339 : vector<8x256xf32>
    %342 = arith.divf %340, %341 : vector<8x256xf32>
    %343 = vector.extract_strided_slice %342 {offsets = [0, 0], sizes = [8, 128], strides = [1, 1]} : vector<8x256xf32> to vector<8x128xf32>
    %344 = vector.extract_strided_slice %342 {offsets = [0, 128], sizes = [8, 128], strides = [1, 1]} : vector<8x256xf32> to vector<8x128xf32>
    %345 = vector.extract_strided_slice %331 {offsets = [0, 256], sizes = [8, 128], strides = [1, 1]} : vector<8x384xf32> to vector<8x128xf32>
    %346 = vector.extract_strided_slice %334 {offsets = [0, 256], sizes = [8, 128], strides = [1, 1]} : vector<8x384xf32> to vector<8x128xf32>
    %347 = arith.mulf %343, %346 : vector<8x128xf32>
    %348 = arith.addf %345, %347 : vector<8x128xf32>
    %349 = math.tanh %348 : vector<8x128xf32>
    %cst_113 = arith.constant 1.000000e+00 : f32
    %350 = vector.broadcast %cst_113 : f32 to vector<8x128xf32>
    %351 = arith.subf %350, %344 : vector<8x128xf32>
    %352 = arith.mulf %351, %349 : vector<8x128xf32>
    %353 = arith.mulf %344, %324 : vector<8x128xf32>
    %354 = arith.addf %352, %353 : vector<8x128xf32>
    %355 = arith.index_cast %c2_i32_108 : i32 to index
    %c0_114 = arith.constant 0 : index
    %c0_115 = arith.constant 0 : index
    %356 = vector.load %arg14[%355, %c0_114, %c0_115] : memref<8x8x128xf32, #tpu.memory_space<vmem>>, vector<1x8x128xf32>
    %357 = vector.shape_cast %356 : vector<1x8x128xf32> to vector<8x128xf32>
    %358 = vector.shape_cast %354 : vector<8x128xf32> to vector<1x8x128xf32>
    tpu.vector_store %arg14[%355, %c0_114, %c0_115], %358 {strides = array<i32>} : memref<8x8x128xf32, #tpu.memory_space<vmem>>, vector<1x8x128xf32>,
    %c3_i32_116 = arith.constant 3 : i32
    %359 = arith.index_cast %c3_i32_116 : i32 to index
    %c0_117 = arith.constant 0 : index
    %c0_118 = arith.constant 0 : index
    %360 = vector.load %arg16[%359, %c0_117, %c0_118] : memref<8x8x384xf32, #tpu.memory_space<vmem>>, vector<1x8x384xf32>
    %361 = vector.shape_cast %360 : vector<1x8x384xf32> to vector<8x384xf32>
    %cst_119 = arith.constant dense<0.000000e+00> : vector<8x384xf32>
    %362 = tpu.matmul %354, %256, %cst_119 {dimension_numbers = #tpu.dot_dimension_numbers<[1], [0], [0], [1], [0, 0, 1, 1], [], []>} : vector<8x128xf32>, vector<128x384xf32>, vector<8x384xf32> -> vector<8x384xf32>
    %363 = vector.broadcast %257 : vector<1x384xf32> to vector<8x384xf32>
    %364 = arith.addf %362, %363 : vector<8x384xf32>
    %365 = vector.extract_strided_slice %361 {offsets = [0, 0], sizes = [8, 256], strides = [1, 1]} : vector<8x384xf32> to vector<8x256xf32>
    %366 = vector.extract_strided_slice %364 {offsets = [0, 0], sizes = [8, 256], strides = [1, 1]} : vector<8x384xf32> to vector<8x256xf32>
    %367 = arith.addf %365, %366 : vector<8x256xf32>
    %368 = arith.negf %367 : vector<8x256xf32>
    %369 = math.exp %368 : vector<8x256xf32>
    %cst_120 = arith.constant 1.000000e+00 : f32
    %370 = vector.broadcast %cst_120 : f32 to vector<8x256xf32>
    %371 = arith.addf %370, %369 : vector<8x256xf32>
    %372 = arith.divf %370, %371 : vector<8x256xf32>
    %373 = vector.extract_strided_slice %372 {offsets = [0, 0], sizes = [8, 128], strides = [1, 1]} : vector<8x256xf32> to vector<8x128xf32>
    %374 = vector.extract_strided_slice %372 {offsets = [0, 128], sizes = [8, 128], strides = [1, 1]} : vector<8x256xf32> to vector<8x128xf32>
    %375 = vector.extract_strided_slice %361 {offsets = [0, 256], sizes = [8, 128], strides = [1, 1]} : vector<8x384xf32> to vector<8x128xf32>
    %376 = vector.extract_strided_slice %364 {offsets = [0, 256], sizes = [8, 128], strides = [1, 1]} : vector<8x384xf32> to vector<8x128xf32>
    %377 = arith.mulf %373, %376 : vector<8x128xf32>
    %378 = arith.addf %375, %377 : vector<8x128xf32>
    %379 = math.tanh %378 : vector<8x128xf32>
    %cst_121 = arith.constant 1.000000e+00 : f32
    %380 = vector.broadcast %cst_121 : f32 to vector<8x128xf32>
    %381 = arith.subf %380, %374 : vector<8x128xf32>
    %382 = arith.mulf %381, %379 : vector<8x128xf32>
    %383 = arith.mulf %374, %354 : vector<8x128xf32>
    %384 = arith.addf %382, %383 : vector<8x128xf32>
    %385 = arith.index_cast %c3_i32_116 : i32 to index
    %c0_122 = arith.constant 0 : index
    %c0_123 = arith.constant 0 : index
    %386 = vector.load %arg14[%385, %c0_122, %c0_123] : memref<8x8x128xf32, #tpu.memory_space<vmem>>, vector<1x8x128xf32>
    %387 = vector.shape_cast %386 : vector<1x8x128xf32> to vector<8x128xf32>
    %388 = vector.shape_cast %384 : vector<8x128xf32> to vector<1x8x128xf32>
    tpu.vector_store %arg14[%385, %c0_122, %c0_123], %388 {strides = array<i32>} : memref<8x8x128xf32, #tpu.memory_space<vmem>>, vector<1x8x128xf32>,
    %c4_i32_124 = arith.constant 4 : i32
    %389 = arith.index_cast %c4_i32_124 : i32 to index
    %c0_125 = arith.constant 0 : index
    %c0_126 = arith.constant 0 : index
    %390 = vector.load %arg16[%389, %c0_125, %c0_126] : memref<8x8x384xf32, #tpu.memory_space<vmem>>, vector<1x8x384xf32>
    %391 = vector.shape_cast %390 : vector<1x8x384xf32> to vector<8x384xf32>
    %cst_127 = arith.constant dense<0.000000e+00> : vector<8x384xf32>
    %392 = tpu.matmul %384, %256, %cst_127 {dimension_numbers = #tpu.dot_dimension_numbers<[1], [0], [0], [1], [0, 0, 1, 1], [], []>} : vector<8x128xf32>, vector<128x384xf32>, vector<8x384xf32> -> vector<8x384xf32>
    %393 = vector.broadcast %257 : vector<1x384xf32> to vector<8x384xf32>
    %394 = arith.addf %392, %393 : vector<8x384xf32>
    %395 = vector.extract_strided_slice %391 {offsets = [0, 0], sizes = [8, 256], strides = [1, 1]} : vector<8x384xf32> to vector<8x256xf32>
    %396 = vector.extract_strided_slice %394 {offsets = [0, 0], sizes = [8, 256], strides = [1, 1]} : vector<8x384xf32> to vector<8x256xf32>
    %397 = arith.addf %395, %396 : vector<8x256xf32>
    %398 = arith.negf %397 : vector<8x256xf32>
    %399 = math.exp %398 : vector<8x256xf32>
    %cst_128 = arith.constant 1.000000e+00 : f32
    %400 = vector.broadcast %cst_128 : f32 to vector<8x256xf32>
    %401 = arith.addf %400, %399 : vector<8x256xf32>
    %402 = arith.divf %400, %401 : vector<8x256xf32>
    %403 = vector.extract_strided_slice %402 {offsets = [0, 0], sizes = [8, 128], strides = [1, 1]} : vector<8x256xf32> to vector<8x128xf32>
    %404 = vector.extract_strided_slice %402 {offsets = [0, 128], sizes = [8, 128], strides = [1, 1]} : vector<8x256xf32> to vector<8x128xf32>
    %405 = vector.extract_strided_slice %391 {offsets = [0, 256], sizes = [8, 128], strides = [1, 1]} : vector<8x384xf32> to vector<8x128xf32>
    %406 = vector.extract_strided_slice %394 {offsets = [0, 256], sizes = [8, 128], strides = [1, 1]} : vector<8x384xf32> to vector<8x128xf32>
    %407 = arith.mulf %403, %406 : vector<8x128xf32>
    %408 = arith.addf %405, %407 : vector<8x128xf32>
    %409 = math.tanh %408 : vector<8x128xf32>
    %cst_129 = arith.constant 1.000000e+00 : f32
    %410 = vector.broadcast %cst_129 : f32 to vector<8x128xf32>
    %411 = arith.subf %410, %404 : vector<8x128xf32>
    %412 = arith.mulf %411, %409 : vector<8x128xf32>
    %413 = arith.mulf %404, %384 : vector<8x128xf32>
    %414 = arith.addf %412, %413 : vector<8x128xf32>
    %415 = arith.index_cast %c4_i32_124 : i32 to index
    %c0_130 = arith.constant 0 : index
    %c0_131 = arith.constant 0 : index
    %416 = vector.load %arg14[%415, %c0_130, %c0_131] : memref<8x8x128xf32, #tpu.memory_space<vmem>>, vector<1x8x128xf32>
    %417 = vector.shape_cast %416 : vector<1x8x128xf32> to vector<8x128xf32>
    %418 = vector.shape_cast %414 : vector<8x128xf32> to vector<1x8x128xf32>
    tpu.vector_store %arg14[%415, %c0_130, %c0_131], %418 {strides = array<i32>} : memref<8x8x128xf32, #tpu.memory_space<vmem>>, vector<1x8x128xf32>,
    %c5_i32_132 = arith.constant 5 : i32
    %419 = arith.index_cast %c5_i32_132 : i32 to index
    %c0_133 = arith.constant 0 : index
    %c0_134 = arith.constant 0 : index
    %420 = vector.load %arg16[%419, %c0_133, %c0_134] : memref<8x8x384xf32, #tpu.memory_space<vmem>>, vector<1x8x384xf32>
    %421 = vector.shape_cast %420 : vector<1x8x384xf32> to vector<8x384xf32>
    %cst_135 = arith.constant dense<0.000000e+00> : vector<8x384xf32>
    %422 = tpu.matmul %414, %256, %cst_135 {dimension_numbers = #tpu.dot_dimension_numbers<[1], [0], [0], [1], [0, 0, 1, 1], [], []>} : vector<8x128xf32>, vector<128x384xf32>, vector<8x384xf32> -> vector<8x384xf32>
    %423 = vector.broadcast %257 : vector<1x384xf32> to vector<8x384xf32>
    %424 = arith.addf %422, %423 : vector<8x384xf32>
    %425 = vector.extract_strided_slice %421 {offsets = [0, 0], sizes = [8, 256], strides = [1, 1]} : vector<8x384xf32> to vector<8x256xf32>
    %426 = vector.extract_strided_slice %424 {offsets = [0, 0], sizes = [8, 256], strides = [1, 1]} : vector<8x384xf32> to vector<8x256xf32>
    %427 = arith.addf %425, %426 : vector<8x256xf32>
    %428 = arith.negf %427 : vector<8x256xf32>
    %429 = math.exp %428 : vector<8x256xf32>
    %cst_136 = arith.constant 1.000000e+00 : f32
    %430 = vector.broadcast %cst_136 : f32 to vector<8x256xf32>
    %431 = arith.addf %430, %429 : vector<8x256xf32>
    %432 = arith.divf %430, %431 : vector<8x256xf32>
    %433 = vector.extract_strided_slice %432 {offsets = [0, 0], sizes = [8, 128], strides = [1, 1]} : vector<8x256xf32> to vector<8x128xf32>
    %434 = vector.extract_strided_slice %432 {offsets = [0, 128], sizes = [8, 128], strides = [1, 1]} : vector<8x256xf32> to vector<8x128xf32>
    %435 = vector.extract_strided_slice %421 {offsets = [0, 256], sizes = [8, 128], strides = [1, 1]} : vector<8x384xf32> to vector<8x128xf32>
    %436 = vector.extract_strided_slice %424 {offsets = [0, 256], sizes = [8, 128], strides = [1, 1]} : vector<8x384xf32> to vector<8x128xf32>
    %437 = arith.mulf %433, %436 : vector<8x128xf32>
    %438 = arith.addf %435, %437 : vector<8x128xf32>
    %439 = math.tanh %438 : vector<8x128xf32>
    %cst_137 = arith.constant 1.000000e+00 : f32
    %440 = vector.broadcast %cst_137 : f32 to vector<8x128xf32>
    %441 = arith.subf %440, %434 : vector<8x128xf32>
    %442 = arith.mulf %441, %439 : vector<8x128xf32>
    %443 = arith.mulf %434, %414 : vector<8x128xf32>
    %444 = arith.addf %442, %443 : vector<8x128xf32>
    %445 = arith.index_cast %c5_i32_132 : i32 to index
    %c0_138 = arith.constant 0 : index
    %c0_139 = arith.constant 0 : index
    %446 = vector.load %arg14[%445, %c0_138, %c0_139] : memref<8x8x128xf32, #tpu.memory_space<vmem>>, vector<1x8x128xf32>
    %447 = vector.shape_cast %446 : vector<1x8x128xf32> to vector<8x128xf32>
    %448 = vector.shape_cast %444 : vector<8x128xf32> to vector<1x8x128xf32>
    tpu.vector_store %arg14[%445, %c0_138, %c0_139], %448 {strides = array<i32>} : memref<8x8x128xf32, #tpu.memory_space<vmem>>, vector<1x8x128xf32>,
    %c6_i32_140 = arith.constant 6 : i32
    %449 = arith.index_cast %c6_i32_140 : i32 to index
    %c0_141 = arith.constant 0 : index
    %c0_142 = arith.constant 0 : index
    %450 = vector.load %arg16[%449, %c0_141, %c0_142] : memref<8x8x384xf32, #tpu.memory_space<vmem>>, vector<1x8x384xf32>
    %451 = vector.shape_cast %450 : vector<1x8x384xf32> to vector<8x384xf32>
    %cst_143 = arith.constant dense<0.000000e+00> : vector<8x384xf32>
    %452 = tpu.matmul %444, %256, %cst_143 {dimension_numbers = #tpu.dot_dimension_numbers<[1], [0], [0], [1], [0, 0, 1, 1], [], []>} : vector<8x128xf32>, vector<128x384xf32>, vector<8x384xf32> -> vector<8x384xf32>
    %453 = vector.broadcast %257 : vector<1x384xf32> to vector<8x384xf32>
    %454 = arith.addf %452, %453 : vector<8x384xf32>
    %455 = vector.extract_strided_slice %451 {offsets = [0, 0], sizes = [8, 256], strides = [1, 1]} : vector<8x384xf32> to vector<8x256xf32>
    %456 = vector.extract_strided_slice %454 {offsets = [0, 0], sizes = [8, 256], strides = [1, 1]} : vector<8x384xf32> to vector<8x256xf32>
    %457 = arith.addf %455, %456 : vector<8x256xf32>
    %458 = arith.negf %457 : vector<8x256xf32>
    %459 = math.exp %458 : vector<8x256xf32>
    %cst_144 = arith.constant 1.000000e+00 : f32
    %460 = vector.broadcast %cst_144 : f32 to vector<8x256xf32>
    %461 = arith.addf %460, %459 : vector<8x256xf32>
    %462 = arith.divf %460, %461 : vector<8x256xf32>
    %463 = vector.extract_strided_slice %462 {offsets = [0, 0], sizes = [8, 128], strides = [1, 1]} : vector<8x256xf32> to vector<8x128xf32>
    %464 = vector.extract_strided_slice %462 {offsets = [0, 128], sizes = [8, 128], strides = [1, 1]} : vector<8x256xf32> to vector<8x128xf32>
    %465 = vector.extract_strided_slice %451 {offsets = [0, 256], sizes = [8, 128], strides = [1, 1]} : vector<8x384xf32> to vector<8x128xf32>
    %466 = vector.extract_strided_slice %454 {offsets = [0, 256], sizes = [8, 128], strides = [1, 1]} : vector<8x384xf32> to vector<8x128xf32>
    %467 = arith.mulf %463, %466 : vector<8x128xf32>
    %468 = arith.addf %465, %467 : vector<8x128xf32>
    %469 = math.tanh %468 : vector<8x128xf32>
    %cst_145 = arith.constant 1.000000e+00 : f32
    %470 = vector.broadcast %cst_145 : f32 to vector<8x128xf32>
    %471 = arith.subf %470, %464 : vector<8x128xf32>
    %472 = arith.mulf %471, %469 : vector<8x128xf32>
    %473 = arith.mulf %464, %444 : vector<8x128xf32>
    %474 = arith.addf %472, %473 : vector<8x128xf32>
    %475 = arith.index_cast %c6_i32_140 : i32 to index
    %c0_146 = arith.constant 0 : index
    %c0_147 = arith.constant 0 : index
    %476 = vector.load %arg14[%475, %c0_146, %c0_147] : memref<8x8x128xf32, #tpu.memory_space<vmem>>, vector<1x8x128xf32>
    %477 = vector.shape_cast %476 : vector<1x8x128xf32> to vector<8x128xf32>
    %478 = vector.shape_cast %474 : vector<8x128xf32> to vector<1x8x128xf32>
    tpu.vector_store %arg14[%475, %c0_146, %c0_147], %478 {strides = array<i32>} : memref<8x8x128xf32, #tpu.memory_space<vmem>>, vector<1x8x128xf32>,
    %c7_i32_148 = arith.constant 7 : i32
    %479 = arith.index_cast %c7_i32_148 : i32 to index
    %c0_149 = arith.constant 0 : index
    %c0_150 = arith.constant 0 : index
    %480 = vector.load %arg16[%479, %c0_149, %c0_150] : memref<8x8x384xf32, #tpu.memory_space<vmem>>, vector<1x8x384xf32>
    %481 = vector.shape_cast %480 : vector<1x8x384xf32> to vector<8x384xf32>
    %cst_151 = arith.constant dense<0.000000e+00> : vector<8x384xf32>
    %482 = tpu.matmul %474, %256, %cst_151 {dimension_numbers = #tpu.dot_dimension_numbers<[1], [0], [0], [1], [0, 0, 1, 1], [], []>} : vector<8x128xf32>, vector<128x384xf32>, vector<8x384xf32> -> vector<8x384xf32>
    %483 = vector.broadcast %257 : vector<1x384xf32> to vector<8x384xf32>
    %484 = arith.addf %482, %483 : vector<8x384xf32>
    %485 = vector.extract_strided_slice %481 {offsets = [0, 0], sizes = [8, 256], strides = [1, 1]} : vector<8x384xf32> to vector<8x256xf32>
    %486 = vector.extract_strided_slice %484 {offsets = [0, 0], sizes = [8, 256], strides = [1, 1]} : vector<8x384xf32> to vector<8x256xf32>
    %487 = arith.addf %485, %486 : vector<8x256xf32>
    %488 = arith.negf %487 : vector<8x256xf32>
    %489 = math.exp %488 : vector<8x256xf32>
    %cst_152 = arith.constant 1.000000e+00 : f32
    %490 = vector.broadcast %cst_152 : f32 to vector<8x256xf32>
    %491 = arith.addf %490, %489 : vector<8x256xf32>
    %492 = arith.divf %490, %491 : vector<8x256xf32>
    %493 = vector.extract_strided_slice %492 {offsets = [0, 0], sizes = [8, 128], strides = [1, 1]} : vector<8x256xf32> to vector<8x128xf32>
    %494 = vector.extract_strided_slice %492 {offsets = [0, 128], sizes = [8, 128], strides = [1, 1]} : vector<8x256xf32> to vector<8x128xf32>
    %495 = vector.extract_strided_slice %481 {offsets = [0, 256], sizes = [8, 128], strides = [1, 1]} : vector<8x384xf32> to vector<8x128xf32>
    %496 = vector.extract_strided_slice %484 {offsets = [0, 256], sizes = [8, 128], strides = [1, 1]} : vector<8x384xf32> to vector<8x128xf32>
    %497 = arith.mulf %493, %496 : vector<8x128xf32>
    %498 = arith.addf %495, %497 : vector<8x128xf32>
    %499 = math.tanh %498 : vector<8x128xf32>
    %cst_153 = arith.constant 1.000000e+00 : f32
    %500 = vector.broadcast %cst_153 : f32 to vector<8x128xf32>
    %501 = arith.subf %500, %494 : vector<8x128xf32>
    %502 = arith.mulf %501, %499 : vector<8x128xf32>
    %503 = arith.mulf %494, %474 : vector<8x128xf32>
    %504 = arith.addf %502, %503 : vector<8x128xf32>
    %505 = arith.index_cast %c7_i32_148 : i32 to index
    %c0_154 = arith.constant 0 : index
    %c0_155 = arith.constant 0 : index
    %506 = vector.load %arg14[%505, %c0_154, %c0_155] : memref<8x8x128xf32, #tpu.memory_space<vmem>>, vector<1x8x128xf32>
    %507 = vector.shape_cast %506 : vector<1x8x128xf32> to vector<8x128xf32>
    %508 = vector.shape_cast %504 : vector<8x128xf32> to vector<1x8x128xf32>
    tpu.vector_store %arg14[%505, %c0_154, %c0_155], %508 {strides = array<i32>} : memref<8x8x128xf32, #tpu.memory_space<vmem>>, vector<1x8x128xf32>,
    %c8_i32_156 = arith.constant 8 : i32
    %c1_157 = arith.constant 1 : index
    %c0_158 = arith.constant 0 : index
    %c0_159 = arith.constant 0 : index
    %509 = vector.load %arg15[%c1_157, %c0_158, %c0_159] : memref<3x8x128xf32, #tpu.memory_space<vmem>>, vector<1x8x128xf32>
    %510 = vector.shape_cast %509 : vector<1x8x128xf32> to vector<8x128xf32>
    %511 = vector.shape_cast %504 : vector<8x128xf32> to vector<1x8x128xf32>
    tpu.vector_store %arg15[%c1_157, %c0_158, %c0_159], %511 {strides = array<i32>} : memref<3x8x128xf32, #tpu.memory_space<vmem>>, vector<1x8x128xf32>,
    %c0_160 = arith.constant 0 : index
    %c0_161 = arith.constant 0 : index
    %512 = vector.load %arg11[%c0_160, %c0_161] : memref<128x384xf32, #tpu.memory_space<vmem>>, vector<128x384xf32>
    %c0_162 = arith.constant 0 : index
    %c0_163 = arith.constant 0 : index
    %513 = vector.load %arg13[%c0_162, %c0_163] : memref<1x384xf32, #tpu.memory_space<vmem>>, vector<1x384xf32>
    %c0_164 = arith.constant 0 : index
    %c0_165 = arith.constant 0 : index
    %c0_166 = arith.constant 0 : index
    %514 = vector.load %arg14[%c0_164, %c0_165, %c0_166] : memref<8x8x128xf32, #tpu.memory_space<vmem>>, vector<8x8x128xf32>
    %515 = vector.shape_cast %514 : vector<8x8x128xf32> to vector<64x128xf32>
    %c0_167 = arith.constant 0 : index
    %c0_168 = arith.constant 0 : index
    %516 = vector.load %arg10[%c0_167, %c0_168] : memref<128x384xf32, #tpu.memory_space<vmem>>, vector<128x384xf32>
    %cst_169 = arith.constant dense<0.000000e+00> : vector<64x384xf32>
    %517 = tpu.matmul %515, %516, %cst_169 {dimension_numbers = #tpu.dot_dimension_numbers<[1], [0], [0], [1], [0, 0, 1, 1], [], []>} : vector<64x128xf32>, vector<128x384xf32>, vector<64x384xf32> -> vector<64x384xf32>
    %c0_170 = arith.constant 0 : index
    %c0_171 = arith.constant 0 : index
    %518 = vector.load %arg12[%c0_170, %c0_171] : memref<1x384xf32, #tpu.memory_space<vmem>>, vector<1x384xf32>
    %519 = vector.broadcast %518 : vector<1x384xf32> to vector<64x384xf32>
    %520 = arith.addf %517, %519 : vector<64x384xf32>
    %521 = vector.shape_cast %520 : vector<64x384xf32> to vector<8x8x384xf32>
    %c0_172 = arith.constant 0 : index
    %c0_173 = arith.constant 0 : index
    %c0_174 = arith.constant 0 : index
    %522 = vector.load %arg16[%c0_172, %c0_173, %c0_174] : memref<8x8x384xf32, #tpu.memory_space<vmem>>, vector<8x8x384xf32>
    tpu.vector_store %arg16[%c0_172, %c0_173, %c0_174], %521 {strides = array<i32>} : memref<8x8x384xf32, #tpu.memory_space<vmem>>, vector<8x8x384xf32>,
    %c2 = arith.constant 2 : index
    %c0_175 = arith.constant 0 : index
    %c0_176 = arith.constant 0 : index
    %523 = vector.load %arg1[%c2, %c0_175, %c0_176] : memref<3x8x128xf32, #tpu.memory_space<vmem>>, vector<1x8x128xf32>
    %524 = vector.shape_cast %523 : vector<1x8x128xf32> to vector<8x128xf32>
    %c0_i32_177 = arith.constant 0 : i32
    %525 = arith.index_cast %c0_i32_177 : i32 to index
    %c0_178 = arith.constant 0 : index
    %c0_179 = arith.constant 0 : index
    %526 = vector.load %arg16[%525, %c0_178, %c0_179] : memref<8x8x384xf32, #tpu.memory_space<vmem>>, vector<1x8x384xf32>
    %527 = vector.shape_cast %526 : vector<1x8x384xf32> to vector<8x384xf32>
    %cst_180 = arith.constant dense<0.000000e+00> : vector<8x384xf32>
    %528 = tpu.matmul %524, %512, %cst_180 {dimension_numbers = #tpu.dot_dimension_numbers<[1], [0], [0], [1], [0, 0, 1, 1], [], []>} : vector<8x128xf32>, vector<128x384xf32>, vector<8x384xf32> -> vector<8x384xf32>
    %529 = vector.broadcast %513 : vector<1x384xf32> to vector<8x384xf32>
    %530 = arith.addf %528, %529 : vector<8x384xf32>
    %531 = vector.extract_strided_slice %527 {offsets = [0, 0], sizes = [8, 256], strides = [1, 1]} : vector<8x384xf32> to vector<8x256xf32>
    %532 = vector.extract_strided_slice %530 {offsets = [0, 0], sizes = [8, 256], strides = [1, 1]} : vector<8x384xf32> to vector<8x256xf32>
    %533 = arith.addf %531, %532 : vector<8x256xf32>
    %534 = arith.negf %533 : vector<8x256xf32>
    %535 = math.exp %534 : vector<8x256xf32>
    %cst_181 = arith.constant 1.000000e+00 : f32
    %536 = vector.broadcast %cst_181 : f32 to vector<8x256xf32>
    %537 = arith.addf %536, %535 : vector<8x256xf32>
    %538 = arith.divf %536, %537 : vector<8x256xf32>
    %539 = vector.extract_strided_slice %538 {offsets = [0, 0], sizes = [8, 128], strides = [1, 1]} : vector<8x256xf32> to vector<8x128xf32>
    %540 = vector.extract_strided_slice %538 {offsets = [0, 128], sizes = [8, 128], strides = [1, 1]} : vector<8x256xf32> to vector<8x128xf32>
    %541 = vector.extract_strided_slice %527 {offsets = [0, 256], sizes = [8, 128], strides = [1, 1]} : vector<8x384xf32> to vector<8x128xf32>
    %542 = vector.extract_strided_slice %530 {offsets = [0, 256], sizes = [8, 128], strides = [1, 1]} : vector<8x384xf32> to vector<8x128xf32>
    %543 = arith.mulf %539, %542 : vector<8x128xf32>
    %544 = arith.addf %541, %543 : vector<8x128xf32>
    %545 = math.tanh %544 : vector<8x128xf32>
    %cst_182 = arith.constant 1.000000e+00 : f32
    %546 = vector.broadcast %cst_182 : f32 to vector<8x128xf32>
    %547 = arith.subf %546, %540 : vector<8x128xf32>
    %548 = arith.mulf %547, %545 : vector<8x128xf32>
    %549 = arith.mulf %540, %524 : vector<8x128xf32>
    %550 = arith.addf %548, %549 : vector<8x128xf32>
    %551 = arith.index_cast %c0_i32_177 : i32 to index
    %c0_183 = arith.constant 0 : index
    %c0_184 = arith.constant 0 : index
    %552 = vector.load %arg14[%551, %c0_183, %c0_184] : memref<8x8x128xf32, #tpu.memory_space<vmem>>, vector<1x8x128xf32>
    %553 = vector.shape_cast %552 : vector<1x8x128xf32> to vector<8x128xf32>
    %554 = vector.shape_cast %550 : vector<8x128xf32> to vector<1x8x128xf32>
    tpu.vector_store %arg14[%551, %c0_183, %c0_184], %554 {strides = array<i32>} : memref<8x8x128xf32, #tpu.memory_space<vmem>>, vector<1x8x128xf32>,
    %c1_i32_185 = arith.constant 1 : i32
    %555 = arith.index_cast %c1_i32_185 : i32 to index
    %c0_186 = arith.constant 0 : index
    %c0_187 = arith.constant 0 : index
    %556 = vector.load %arg16[%555, %c0_186, %c0_187] : memref<8x8x384xf32, #tpu.memory_space<vmem>>, vector<1x8x384xf32>
    %557 = vector.shape_cast %556 : vector<1x8x384xf32> to vector<8x384xf32>
    %cst_188 = arith.constant dense<0.000000e+00> : vector<8x384xf32>
    %558 = tpu.matmul %550, %512, %cst_188 {dimension_numbers = #tpu.dot_dimension_numbers<[1], [0], [0], [1], [0, 0, 1, 1], [], []>} : vector<8x128xf32>, vector<128x384xf32>, vector<8x384xf32> -> vector<8x384xf32>
    %559 = vector.broadcast %513 : vector<1x384xf32> to vector<8x384xf32>
    %560 = arith.addf %558, %559 : vector<8x384xf32>
    %561 = vector.extract_strided_slice %557 {offsets = [0, 0], sizes = [8, 256], strides = [1, 1]} : vector<8x384xf32> to vector<8x256xf32>
    %562 = vector.extract_strided_slice %560 {offsets = [0, 0], sizes = [8, 256], strides = [1, 1]} : vector<8x384xf32> to vector<8x256xf32>
    %563 = arith.addf %561, %562 : vector<8x256xf32>
    %564 = arith.negf %563 : vector<8x256xf32>
    %565 = math.exp %564 : vector<8x256xf32>
    %cst_189 = arith.constant 1.000000e+00 : f32
    %566 = vector.broadcast %cst_189 : f32 to vector<8x256xf32>
    %567 = arith.addf %566, %565 : vector<8x256xf32>
    %568 = arith.divf %566, %567 : vector<8x256xf32>
    %569 = vector.extract_strided_slice %568 {offsets = [0, 0], sizes = [8, 128], strides = [1, 1]} : vector<8x256xf32> to vector<8x128xf32>
    %570 = vector.extract_strided_slice %568 {offsets = [0, 128], sizes = [8, 128], strides = [1, 1]} : vector<8x256xf32> to vector<8x128xf32>
    %571 = vector.extract_strided_slice %557 {offsets = [0, 256], sizes = [8, 128], strides = [1, 1]} : vector<8x384xf32> to vector<8x128xf32>
    %572 = vector.extract_strided_slice %560 {offsets = [0, 256], sizes = [8, 128], strides = [1, 1]} : vector<8x384xf32> to vector<8x128xf32>
    %573 = arith.mulf %569, %572 : vector<8x128xf32>
    %574 = arith.addf %571, %573 : vector<8x128xf32>
    %575 = math.tanh %574 : vector<8x128xf32>
    %cst_190 = arith.constant 1.000000e+00 : f32
    %576 = vector.broadcast %cst_190 : f32 to vector<8x128xf32>
    %577 = arith.subf %576, %570 : vector<8x128xf32>
    %578 = arith.mulf %577, %575 : vector<8x128xf32>
    %579 = arith.mulf %570, %550 : vector<8x128xf32>
    %580 = arith.addf %578, %579 : vector<8x128xf32>
    %581 = arith.index_cast %c1_i32_185 : i32 to index
    %c0_191 = arith.constant 0 : index
    %c0_192 = arith.constant 0 : index
    %582 = vector.load %arg14[%581, %c0_191, %c0_192] : memref<8x8x128xf32, #tpu.memory_space<vmem>>, vector<1x8x128xf32>
    %583 = vector.shape_cast %582 : vector<1x8x128xf32> to vector<8x128xf32>
    %584 = vector.shape_cast %580 : vector<8x128xf32> to vector<1x8x128xf32>
    tpu.vector_store %arg14[%581, %c0_191, %c0_192], %584 {strides = array<i32>} : memref<8x8x128xf32, #tpu.memory_space<vmem>>, vector<1x8x128xf32>,
    %c2_i32_193 = arith.constant 2 : i32
    %585 = arith.index_cast %c2_i32_193 : i32 to index
    %c0_194 = arith.constant 0 : index
    %c0_195 = arith.constant 0 : index
    %586 = vector.load %arg16[%585, %c0_194, %c0_195] : memref<8x8x384xf32, #tpu.memory_space<vmem>>, vector<1x8x384xf32>
    %587 = vector.shape_cast %586 : vector<1x8x384xf32> to vector<8x384xf32>
    %cst_196 = arith.constant dense<0.000000e+00> : vector<8x384xf32>
    %588 = tpu.matmul %580, %512, %cst_196 {dimension_numbers = #tpu.dot_dimension_numbers<[1], [0], [0], [1], [0, 0, 1, 1], [], []>} : vector<8x128xf32>, vector<128x384xf32>, vector<8x384xf32> -> vector<8x384xf32>
    %589 = vector.broadcast %513 : vector<1x384xf32> to vector<8x384xf32>
    %590 = arith.addf %588, %589 : vector<8x384xf32>
    %591 = vector.extract_strided_slice %587 {offsets = [0, 0], sizes = [8, 256], strides = [1, 1]} : vector<8x384xf32> to vector<8x256xf32>
    %592 = vector.extract_strided_slice %590 {offsets = [0, 0], sizes = [8, 256], strides = [1, 1]} : vector<8x384xf32> to vector<8x256xf32>
    %593 = arith.addf %591, %592 : vector<8x256xf32>
    %594 = arith.negf %593 : vector<8x256xf32>
    %595 = math.exp %594 : vector<8x256xf32>
    %cst_197 = arith.constant 1.000000e+00 : f32
    %596 = vector.broadcast %cst_197 : f32 to vector<8x256xf32>
    %597 = arith.addf %596, %595 : vector<8x256xf32>
    %598 = arith.divf %596, %597 : vector<8x256xf32>
    %599 = vector.extract_strided_slice %598 {offsets = [0, 0], sizes = [8, 128], strides = [1, 1]} : vector<8x256xf32> to vector<8x128xf32>
    %600 = vector.extract_strided_slice %598 {offsets = [0, 128], sizes = [8, 128], strides = [1, 1]} : vector<8x256xf32> to vector<8x128xf32>
    %601 = vector.extract_strided_slice %587 {offsets = [0, 256], sizes = [8, 128], strides = [1, 1]} : vector<8x384xf32> to vector<8x128xf32>
    %602 = vector.extract_strided_slice %590 {offsets = [0, 256], sizes = [8, 128], strides = [1, 1]} : vector<8x384xf32> to vector<8x128xf32>
    %603 = arith.mulf %599, %602 : vector<8x128xf32>
    %604 = arith.addf %601, %603 : vector<8x128xf32>
    %605 = math.tanh %604 : vector<8x128xf32>
    %cst_198 = arith.constant 1.000000e+00 : f32
    %606 = vector.broadcast %cst_198 : f32 to vector<8x128xf32>
    %607 = arith.subf %606, %600 : vector<8x128xf32>
    %608 = arith.mulf %607, %605 : vector<8x128xf32>
    %609 = arith.mulf %600, %580 : vector<8x128xf32>
    %610 = arith.addf %608, %609 : vector<8x128xf32>
    %611 = arith.index_cast %c2_i32_193 : i32 to index
    %c0_199 = arith.constant 0 : index
    %c0_200 = arith.constant 0 : index
    %612 = vector.load %arg14[%611, %c0_199, %c0_200] : memref<8x8x128xf32, #tpu.memory_space<vmem>>, vector<1x8x128xf32>
    %613 = vector.shape_cast %612 : vector<1x8x128xf32> to vector<8x128xf32>
    %614 = vector.shape_cast %610 : vector<8x128xf32> to vector<1x8x128xf32>
    tpu.vector_store %arg14[%611, %c0_199, %c0_200], %614 {strides = array<i32>} : memref<8x8x128xf32, #tpu.memory_space<vmem>>, vector<1x8x128xf32>,
    %c3_i32_201 = arith.constant 3 : i32
    %615 = arith.index_cast %c3_i32_201 : i32 to index
    %c0_202 = arith.constant 0 : index
    %c0_203 = arith.constant 0 : index
    %616 = vector.load %arg16[%615, %c0_202, %c0_203] : memref<8x8x384xf32, #tpu.memory_space<vmem>>, vector<1x8x384xf32>
    %617 = vector.shape_cast %616 : vector<1x8x384xf32> to vector<8x384xf32>
    %cst_204 = arith.constant dense<0.000000e+00> : vector<8x384xf32>
    %618 = tpu.matmul %610, %512, %cst_204 {dimension_numbers = #tpu.dot_dimension_numbers<[1], [0], [0], [1], [0, 0, 1, 1], [], []>} : vector<8x128xf32>, vector<128x384xf32>, vector<8x384xf32> -> vector<8x384xf32>
    %619 = vector.broadcast %513 : vector<1x384xf32> to vector<8x384xf32>
    %620 = arith.addf %618, %619 : vector<8x384xf32>
    %621 = vector.extract_strided_slice %617 {offsets = [0, 0], sizes = [8, 256], strides = [1, 1]} : vector<8x384xf32> to vector<8x256xf32>
    %622 = vector.extract_strided_slice %620 {offsets = [0, 0], sizes = [8, 256], strides = [1, 1]} : vector<8x384xf32> to vector<8x256xf32>
    %623 = arith.addf %621, %622 : vector<8x256xf32>
    %624 = arith.negf %623 : vector<8x256xf32>
    %625 = math.exp %624 : vector<8x256xf32>
    %cst_205 = arith.constant 1.000000e+00 : f32
    %626 = vector.broadcast %cst_205 : f32 to vector<8x256xf32>
    %627 = arith.addf %626, %625 : vector<8x256xf32>
    %628 = arith.divf %626, %627 : vector<8x256xf32>
    %629 = vector.extract_strided_slice %628 {offsets = [0, 0], sizes = [8, 128], strides = [1, 1]} : vector<8x256xf32> to vector<8x128xf32>
    %630 = vector.extract_strided_slice %628 {offsets = [0, 128], sizes = [8, 128], strides = [1, 1]} : vector<8x256xf32> to vector<8x128xf32>
    %631 = vector.extract_strided_slice %617 {offsets = [0, 256], sizes = [8, 128], strides = [1, 1]} : vector<8x384xf32> to vector<8x128xf32>
    %632 = vector.extract_strided_slice %620 {offsets = [0, 256], sizes = [8, 128], strides = [1, 1]} : vector<8x384xf32> to vector<8x128xf32>
    %633 = arith.mulf %629, %632 : vector<8x128xf32>
    %634 = arith.addf %631, %633 : vector<8x128xf32>
    %635 = math.tanh %634 : vector<8x128xf32>
    %cst_206 = arith.constant 1.000000e+00 : f32
    %636 = vector.broadcast %cst_206 : f32 to vector<8x128xf32>
    %637 = arith.subf %636, %630 : vector<8x128xf32>
    %638 = arith.mulf %637, %635 : vector<8x128xf32>
    %639 = arith.mulf %630, %610 : vector<8x128xf32>
    %640 = arith.addf %638, %639 : vector<8x128xf32>
    %641 = arith.index_cast %c3_i32_201 : i32 to index
    %c0_207 = arith.constant 0 : index
    %c0_208 = arith.constant 0 : index
    %642 = vector.load %arg14[%641, %c0_207, %c0_208] : memref<8x8x128xf32, #tpu.memory_space<vmem>>, vector<1x8x128xf32>
    %643 = vector.shape_cast %642 : vector<1x8x128xf32> to vector<8x128xf32>
    %644 = vector.shape_cast %640 : vector<8x128xf32> to vector<1x8x128xf32>
    tpu.vector_store %arg14[%641, %c0_207, %c0_208], %644 {strides = array<i32>} : memref<8x8x128xf32, #tpu.memory_space<vmem>>, vector<1x8x128xf32>,
    %c4_i32_209 = arith.constant 4 : i32
    %645 = arith.index_cast %c4_i32_209 : i32 to index
    %c0_210 = arith.constant 0 : index
    %c0_211 = arith.constant 0 : index
    %646 = vector.load %arg16[%645, %c0_210, %c0_211] : memref<8x8x384xf32, #tpu.memory_space<vmem>>, vector<1x8x384xf32>
    %647 = vector.shape_cast %646 : vector<1x8x384xf32> to vector<8x384xf32>
    %cst_212 = arith.constant dense<0.000000e+00> : vector<8x384xf32>
    %648 = tpu.matmul %640, %512, %cst_212 {dimension_numbers = #tpu.dot_dimension_numbers<[1], [0], [0], [1], [0, 0, 1, 1], [], []>} : vector<8x128xf32>, vector<128x384xf32>, vector<8x384xf32> -> vector<8x384xf32>
    %649 = vector.broadcast %513 : vector<1x384xf32> to vector<8x384xf32>
    %650 = arith.addf %648, %649 : vector<8x384xf32>
    %651 = vector.extract_strided_slice %647 {offsets = [0, 0], sizes = [8, 256], strides = [1, 1]} : vector<8x384xf32> to vector<8x256xf32>
    %652 = vector.extract_strided_slice %650 {offsets = [0, 0], sizes = [8, 256], strides = [1, 1]} : vector<8x384xf32> to vector<8x256xf32>
    %653 = arith.addf %651, %652 : vector<8x256xf32>
    %654 = arith.negf %653 : vector<8x256xf32>
    %655 = math.exp %654 : vector<8x256xf32>
    %cst_213 = arith.constant 1.000000e+00 : f32
    %656 = vector.broadcast %cst_213 : f32 to vector<8x256xf32>
    %657 = arith.addf %656, %655 : vector<8x256xf32>
    %658 = arith.divf %656, %657 : vector<8x256xf32>
    %659 = vector.extract_strided_slice %658 {offsets = [0, 0], sizes = [8, 128], strides = [1, 1]} : vector<8x256xf32> to vector<8x128xf32>
    %660 = vector.extract_strided_slice %658 {offsets = [0, 128], sizes = [8, 128], strides = [1, 1]} : vector<8x256xf32> to vector<8x128xf32>
    %661 = vector.extract_strided_slice %647 {offsets = [0, 256], sizes = [8, 128], strides = [1, 1]} : vector<8x384xf32> to vector<8x128xf32>
    %662 = vector.extract_strided_slice %650 {offsets = [0, 256], sizes = [8, 128], strides = [1, 1]} : vector<8x384xf32> to vector<8x128xf32>
    %663 = arith.mulf %659, %662 : vector<8x128xf32>
    %664 = arith.addf %661, %663 : vector<8x128xf32>
    %665 = math.tanh %664 : vector<8x128xf32>
    %cst_214 = arith.constant 1.000000e+00 : f32
    %666 = vector.broadcast %cst_214 : f32 to vector<8x128xf32>
    %667 = arith.subf %666, %660 : vector<8x128xf32>
    %668 = arith.mulf %667, %665 : vector<8x128xf32>
    %669 = arith.mulf %660, %640 : vector<8x128xf32>
    %670 = arith.addf %668, %669 : vector<8x128xf32>
    %671 = arith.index_cast %c4_i32_209 : i32 to index
    %c0_215 = arith.constant 0 : index
    %c0_216 = arith.constant 0 : index
    %672 = vector.load %arg14[%671, %c0_215, %c0_216] : memref<8x8x128xf32, #tpu.memory_space<vmem>>, vector<1x8x128xf32>
    %673 = vector.shape_cast %672 : vector<1x8x128xf32> to vector<8x128xf32>
    %674 = vector.shape_cast %670 : vector<8x128xf32> to vector<1x8x128xf32>
    tpu.vector_store %arg14[%671, %c0_215, %c0_216], %674 {strides = array<i32>} : memref<8x8x128xf32, #tpu.memory_space<vmem>>, vector<1x8x128xf32>,
    %c5_i32_217 = arith.constant 5 : i32
    %675 = arith.index_cast %c5_i32_217 : i32 to index
    %c0_218 = arith.constant 0 : index
    %c0_219 = arith.constant 0 : index
    %676 = vector.load %arg16[%675, %c0_218, %c0_219] : memref<8x8x384xf32, #tpu.memory_space<vmem>>, vector<1x8x384xf32>
    %677 = vector.shape_cast %676 : vector<1x8x384xf32> to vector<8x384xf32>
    %cst_220 = arith.constant dense<0.000000e+00> : vector<8x384xf32>
    %678 = tpu.matmul %670, %512, %cst_220 {dimension_numbers = #tpu.dot_dimension_numbers<[1], [0], [0], [1], [0, 0, 1, 1], [], []>} : vector<8x128xf32>, vector<128x384xf32>, vector<8x384xf32> -> vector<8x384xf32>
    %679 = vector.broadcast %513 : vector<1x384xf32> to vector<8x384xf32>
    %680 = arith.addf %678, %679 : vector<8x384xf32>
    %681 = vector.extract_strided_slice %677 {offsets = [0, 0], sizes = [8, 256], strides = [1, 1]} : vector<8x384xf32> to vector<8x256xf32>
    %682 = vector.extract_strided_slice %680 {offsets = [0, 0], sizes = [8, 256], strides = [1, 1]} : vector<8x384xf32> to vector<8x256xf32>
    %683 = arith.addf %681, %682 : vector<8x256xf32>
    %684 = arith.negf %683 : vector<8x256xf32>
    %685 = math.exp %684 : vector<8x256xf32>
    %cst_221 = arith.constant 1.000000e+00 : f32
    %686 = vector.broadcast %cst_221 : f32 to vector<8x256xf32>
    %687 = arith.addf %686, %685 : vector<8x256xf32>
    %688 = arith.divf %686, %687 : vector<8x256xf32>
    %689 = vector.extract_strided_slice %688 {offsets = [0, 0], sizes = [8, 128], strides = [1, 1]} : vector<8x256xf32> to vector<8x128xf32>
    %690 = vector.extract_strided_slice %688 {offsets = [0, 128], sizes = [8, 128], strides = [1, 1]} : vector<8x256xf32> to vector<8x128xf32>
    %691 = vector.extract_strided_slice %677 {offsets = [0, 256], sizes = [8, 128], strides = [1, 1]} : vector<8x384xf32> to vector<8x128xf32>
    %692 = vector.extract_strided_slice %680 {offsets = [0, 256], sizes = [8, 128], strides = [1, 1]} : vector<8x384xf32> to vector<8x128xf32>
    %693 = arith.mulf %689, %692 : vector<8x128xf32>
    %694 = arith.addf %691, %693 : vector<8x128xf32>
    %695 = math.tanh %694 : vector<8x128xf32>
    %cst_222 = arith.constant 1.000000e+00 : f32
    %696 = vector.broadcast %cst_222 : f32 to vector<8x128xf32>
    %697 = arith.subf %696, %690 : vector<8x128xf32>
    %698 = arith.mulf %697, %695 : vector<8x128xf32>
    %699 = arith.mulf %690, %670 : vector<8x128xf32>
    %700 = arith.addf %698, %699 : vector<8x128xf32>
    %701 = arith.index_cast %c5_i32_217 : i32 to index
    %c0_223 = arith.constant 0 : index
    %c0_224 = arith.constant 0 : index
    %702 = vector.load %arg14[%701, %c0_223, %c0_224] : memref<8x8x128xf32, #tpu.memory_space<vmem>>, vector<1x8x128xf32>
    %703 = vector.shape_cast %702 : vector<1x8x128xf32> to vector<8x128xf32>
    %704 = vector.shape_cast %700 : vector<8x128xf32> to vector<1x8x128xf32>
    tpu.vector_store %arg14[%701, %c0_223, %c0_224], %704 {strides = array<i32>} : memref<8x8x128xf32, #tpu.memory_space<vmem>>, vector<1x8x128xf32>,
    %c6_i32_225 = arith.constant 6 : i32
    %705 = arith.index_cast %c6_i32_225 : i32 to index
    %c0_226 = arith.constant 0 : index
    %c0_227 = arith.constant 0 : index
    %706 = vector.load %arg16[%705, %c0_226, %c0_227] : memref<8x8x384xf32, #tpu.memory_space<vmem>>, vector<1x8x384xf32>
    %707 = vector.shape_cast %706 : vector<1x8x384xf32> to vector<8x384xf32>
    %cst_228 = arith.constant dense<0.000000e+00> : vector<8x384xf32>
    %708 = tpu.matmul %700, %512, %cst_228 {dimension_numbers = #tpu.dot_dimension_numbers<[1], [0], [0], [1], [0, 0, 1, 1], [], []>} : vector<8x128xf32>, vector<128x384xf32>, vector<8x384xf32> -> vector<8x384xf32>
    %709 = vector.broadcast %513 : vector<1x384xf32> to vector<8x384xf32>
    %710 = arith.addf %708, %709 : vector<8x384xf32>
    %711 = vector.extract_strided_slice %707 {offsets = [0, 0], sizes = [8, 256], strides = [1, 1]} : vector<8x384xf32> to vector<8x256xf32>
    %712 = vector.extract_strided_slice %710 {offsets = [0, 0], sizes = [8, 256], strides = [1, 1]} : vector<8x384xf32> to vector<8x256xf32>
    %713 = arith.addf %711, %712 : vector<8x256xf32>
    %714 = arith.negf %713 : vector<8x256xf32>
    %715 = math.exp %714 : vector<8x256xf32>
    %cst_229 = arith.constant 1.000000e+00 : f32
    %716 = vector.broadcast %cst_229 : f32 to vector<8x256xf32>
    %717 = arith.addf %716, %715 : vector<8x256xf32>
    %718 = arith.divf %716, %717 : vector<8x256xf32>
    %719 = vector.extract_strided_slice %718 {offsets = [0, 0], sizes = [8, 128], strides = [1, 1]} : vector<8x256xf32> to vector<8x128xf32>
    %720 = vector.extract_strided_slice %718 {offsets = [0, 128], sizes = [8, 128], strides = [1, 1]} : vector<8x256xf32> to vector<8x128xf32>
    %721 = vector.extract_strided_slice %707 {offsets = [0, 256], sizes = [8, 128], strides = [1, 1]} : vector<8x384xf32> to vector<8x128xf32>
    %722 = vector.extract_strided_slice %710 {offsets = [0, 256], sizes = [8, 128], strides = [1, 1]} : vector<8x384xf32> to vector<8x128xf32>
    %723 = arith.mulf %719, %722 : vector<8x128xf32>
    %724 = arith.addf %721, %723 : vector<8x128xf32>
    %725 = math.tanh %724 : vector<8x128xf32>
    %cst_230 = arith.constant 1.000000e+00 : f32
    %726 = vector.broadcast %cst_230 : f32 to vector<8x128xf32>
    %727 = arith.subf %726, %720 : vector<8x128xf32>
    %728 = arith.mulf %727, %725 : vector<8x128xf32>
    %729 = arith.mulf %720, %700 : vector<8x128xf32>
    %730 = arith.addf %728, %729 : vector<8x128xf32>
    %731 = arith.index_cast %c6_i32_225 : i32 to index
    %c0_231 = arith.constant 0 : index
    %c0_232 = arith.constant 0 : index
    %732 = vector.load %arg14[%731, %c0_231, %c0_232] : memref<8x8x128xf32, #tpu.memory_space<vmem>>, vector<1x8x128xf32>
    %733 = vector.shape_cast %732 : vector<1x8x128xf32> to vector<8x128xf32>
    %734 = vector.shape_cast %730 : vector<8x128xf32> to vector<1x8x128xf32>
    tpu.vector_store %arg14[%731, %c0_231, %c0_232], %734 {strides = array<i32>} : memref<8x8x128xf32, #tpu.memory_space<vmem>>, vector<1x8x128xf32>,
    %c7_i32_233 = arith.constant 7 : i32
    %735 = arith.index_cast %c7_i32_233 : i32 to index
    %c0_234 = arith.constant 0 : index
    %c0_235 = arith.constant 0 : index
    %736 = vector.load %arg16[%735, %c0_234, %c0_235] : memref<8x8x384xf32, #tpu.memory_space<vmem>>, vector<1x8x384xf32>
    %737 = vector.shape_cast %736 : vector<1x8x384xf32> to vector<8x384xf32>
    %cst_236 = arith.constant dense<0.000000e+00> : vector<8x384xf32>
    %738 = tpu.matmul %730, %512, %cst_236 {dimension_numbers = #tpu.dot_dimension_numbers<[1], [0], [0], [1], [0, 0, 1, 1], [], []>} : vector<8x128xf32>, vector<128x384xf32>, vector<8x384xf32> -> vector<8x384xf32>
    %739 = vector.broadcast %513 : vector<1x384xf32> to vector<8x384xf32>
    %740 = arith.addf %738, %739 : vector<8x384xf32>
    %741 = vector.extract_strided_slice %737 {offsets = [0, 0], sizes = [8, 256], strides = [1, 1]} : vector<8x384xf32> to vector<8x256xf32>
    %742 = vector.extract_strided_slice %740 {offsets = [0, 0], sizes = [8, 256], strides = [1, 1]} : vector<8x384xf32> to vector<8x256xf32>
    %743 = arith.addf %741, %742 : vector<8x256xf32>
    %744 = arith.negf %743 : vector<8x256xf32>
    %745 = math.exp %744 : vector<8x256xf32>
    %cst_237 = arith.constant 1.000000e+00 : f32
    %746 = vector.broadcast %cst_237 : f32 to vector<8x256xf32>
    %747 = arith.addf %746, %745 : vector<8x256xf32>
    %748 = arith.divf %746, %747 : vector<8x256xf32>
    %749 = vector.extract_strided_slice %748 {offsets = [0, 0], sizes = [8, 128], strides = [1, 1]} : vector<8x256xf32> to vector<8x128xf32>
    %750 = vector.extract_strided_slice %748 {offsets = [0, 128], sizes = [8, 128], strides = [1, 1]} : vector<8x256xf32> to vector<8x128xf32>
    %751 = vector.extract_strided_slice %737 {offsets = [0, 256], sizes = [8, 128], strides = [1, 1]} : vector<8x384xf32> to vector<8x128xf32>
    %752 = vector.extract_strided_slice %740 {offsets = [0, 256], sizes = [8, 128], strides = [1, 1]} : vector<8x384xf32> to vector<8x128xf32>
    %753 = arith.mulf %749, %752 : vector<8x128xf32>
    %754 = arith.addf %751, %753 : vector<8x128xf32>
    %755 = math.tanh %754 : vector<8x128xf32>
    %cst_238 = arith.constant 1.000000e+00 : f32
    %756 = vector.broadcast %cst_238 : f32 to vector<8x128xf32>
    %757 = arith.subf %756, %750 : vector<8x128xf32>
    %758 = arith.mulf %757, %755 : vector<8x128xf32>
    %759 = arith.mulf %750, %730 : vector<8x128xf32>
    %760 = arith.addf %758, %759 : vector<8x128xf32>
    %761 = arith.index_cast %c7_i32_233 : i32 to index
    %c0_239 = arith.constant 0 : index
    %c0_240 = arith.constant 0 : index
    %762 = vector.load %arg14[%761, %c0_239, %c0_240] : memref<8x8x128xf32, #tpu.memory_space<vmem>>, vector<1x8x128xf32>
    %763 = vector.shape_cast %762 : vector<1x8x128xf32> to vector<8x128xf32>
    %764 = vector.shape_cast %760 : vector<8x128xf32> to vector<1x8x128xf32>
    tpu.vector_store %arg14[%761, %c0_239, %c0_240], %764 {strides = array<i32>} : memref<8x8x128xf32, #tpu.memory_space<vmem>>, vector<1x8x128xf32>,
    %c8_i32_241 = arith.constant 8 : i32
    %c2_242 = arith.constant 2 : index
    %c0_243 = arith.constant 0 : index
    %c0_244 = arith.constant 0 : index
    %765 = vector.load %arg15[%c2_242, %c0_243, %c0_244] : memref<3x8x128xf32, #tpu.memory_space<vmem>>, vector<1x8x128xf32>
    %766 = vector.shape_cast %765 : vector<1x8x128xf32> to vector<8x128xf32>
    %767 = vector.shape_cast %760 : vector<8x128xf32> to vector<1x8x128xf32>
    tpu.vector_store %arg15[%c2_242, %c0_243, %c0_244], %767 {strides = array<i32>} : memref<3x8x128xf32, #tpu.memory_space<vmem>>, vector<1x8x128xf32>,
    return
  }
}

</mosaic_0001>

<llo_original>
// kernel: tpu_custom_call.1
$region0: #{tpu_custom_call.1}
  #allocation0 [shape = 'u32[]', space=smem, size = 0x4, offset = 0x4, fixed_abs, tag = 'smem constant byte address 0x4 - core index']
  #allocation1 [shape = 'u32[144,128]{1,0:T(1,128)}', space=vmem, size = 0x12000, scoped, tag = 'internal scratch']
  #allocation2 [shape = 'f32[8,8,384]{2,1,0:T(8,128)}', space=vmem, size = 0x18000, scoped, tag = 'scratch operand']
  %s0 = inlined_call_operand.hbm [shape: f32[8,8,16], index: 0, kind: input, shape index: {}]
  %s1 = inlined_call_operand.hbm [shape: f32[3,8,128], index: 1, kind: input, shape index: {}]
  %s2 = inlined_call_operand.hbm [shape: f32[16,384], index: 2, kind: input, shape index: {}]
  %s3 = inlined_call_operand.hbm [shape: f32[128,384], index: 3, kind: input, shape index: {}]
  %s4 = inlined_call_operand.vmem [shape: f32[1,384], index: 4, kind: input, shape index: {}]
  %s5 = inlined_call_operand.vmem [shape: f32[1,384], index: 5, kind: input, shape index: {}]
  %s6 = inlined_call_operand.hbm [shape: f32[128,384], index: 6, kind: input, shape index: {}]
  %s7 = inlined_call_operand.hbm [shape: f32[128,384], index: 7, kind: input, shape index: {}]
  %s8 = inlined_call_operand.vmem [shape: f32[1,384], index: 8, kind: input, shape index: {}]
  %s9 = inlined_call_operand.vmem [shape: f32[1,384], index: 9, kind: input, shape index: {}]
  %s10 = inlined_call_operand.hbm [shape: f32[128,384], index: 10, kind: input, shape index: {}]
  %s11 = inlined_call_operand.hbm [shape: f32[128,384], index: 11, kind: input, shape index: {}]
  %s12 = inlined_call_operand.vmem [shape: f32[1,384], index: 12, kind: input, shape index: {}]
  %s13 = inlined_call_operand.vmem [shape: f32[1,384], index: 13, kind: input, shape index: {}]
  %s14 = inlined_call_operand.hbm [shape: f32[8,8,128], index: 14, kind: output, shape index: {0}]
  %s15 = inlined_call_operand.hbm [shape: f32[3,8,128], index: 15, kind: output, shape index: {1}]
  %16 = xla_tuple %s14, %s15
  %s17 = sld [smem:[#allocation0]]
  $region106: #{tpu_custom_call.1} parent=0
    _
  %s19 = ssub.s32 1, %s17
  %s20 = scalar_select 0, %s19, %s17
  $region1: #{tpu_custom_call.1} parent=0
    #allocation3 [shape = 'u8[32768]{0}', space=vmem, size = 0x8000, scoped, tag = 'input window, operand 0, single buffered']
    #allocation4 [shape = 's32[1]{0}', space=sflag, size = 0x4, scoped, tag = 'scoped memory for tpu_custom_call.1']
    #allocation5 [shape = 's32[1]{0}', space=sflag, size = 0x4, scoped, tag = 'scoped memory for tpu_custom_call.1']
    #allocation6 [shape = 'u8[12288]{0}', space=vmem, size = 0x3000, scoped, tag = 'input window, operand 1, single buffered']
    #allocation7 [shape = 's32[1]{0}', space=sflag, size = 0x4, scoped, tag = 'scoped memory for tpu_custom_call.1']
    #allocation8 [shape = 'u8[24576]{0}', space=vmem, size = 0x6000, scoped, tag = 'input window, operand 2, single buffered']
    #allocation9 [shape = 'u8[196608]{0}', space=vmem, size = 0x30000, scoped, tag = 'input window, operand 3, single buffered']
    #allocation10 [shape = 's32[1]{0}', space=sflag, size = 0x4, scoped, tag = 'scoped memory for tpu_custom_call.1']
    #allocation11 [shape = 'u8[196608]{0}', space=vmem, size = 0x30000, scoped, tag = 'input window, operand 6, single buffered']
    #allocation12 [shape = 'u8[196608]{0}', space=vmem, size = 0x30000, scoped, tag = 'input window, operand 7, single buffered']
    #allocation13 [shape = 's32[1]{0}', space=sflag, size = 0x4, scoped, tag = 'scoped memory for tpu_custom_call.1']
    #allocation14 [shape = 'u8[196608]{0}', space=vmem, size = 0x30000, scoped, tag = 'input window, operand 10, single buffered']
    #allocation15 [shape = 'u8[196608]{0}', space=vmem, size = 0x30000, scoped, tag = 'input window, operand 11, single buffered']
    #allocation16 [shape = 's32[1]{0}', space=sflag, size = 0x4, scoped, tag = 'scoped memory for tpu_custom_call.1']
    #allocation17 [shape = 'u8[32768]{0}', space=vmem, size = 0x8000, scoped, tag = 'output window, operand 0, single buffered']
    #allocation18 [shape = 'u8[12288]{0}', space=vmem, size = 0x3000, scoped, tag = 'output window, operand 1, single buffered']
    #allocation19 [shape = 's32[1]{0}', space=sflag, size = 0x4, scoped, tag = 'scoped memory for tpu_custom_call.1']
    %21 = vsyncpa [#allocation4], 0
    %22 = vsyncpa [#allocation7], 0
    %23 = vsyncpa [#allocation10], 0
    %24 = vsyncpa [#allocation13], 0
    %25 = vsyncpa [#allocation16], 0
    %26 = vsyncpa [#allocation5], 0
    %27 = vsyncpa [#allocation19], 0
    // Predicated region
    $region2: #{tpu_custom_call.1} parent=1 // pred_check
      _
    $region3: #{tpu_custom_call.1} parent=1 // pred_check_branch
      %29 = sbr.rel (0) target = $region5
    $region4: #{tpu_custom_call.1} parent=1 // pred_region
      %s31 = ssub.s32 1024, 1024
      %32 = vsyncadd [#allocation4], %s31
      %s33 = sshll.u32 [#allocation3], 4
      %s34 = int_to_ptr.vmem [resolvable:$true] %s33
      %39 = dma.hbm_to_vmem [thread:$0]  %s0, 1024, %s34, [#allocation4], 128, 128, 8
    $region5: #{tpu_custom_call.1} parent=1 // pred_fallthru
      _
    // Predicated region
    $region6: #{tpu_custom_call.1} parent=1 // pred_check
      _
    $region7: #{tpu_custom_call.1} parent=1 // pred_check_branch
      %41 = sbr.rel (0) target = $region9
    $region8: #{tpu_custom_call.1} parent=1 // pred_region
      %s43 = ssub.s32 384, 384
      %44 = vsyncadd [#allocation7], %s43
      %s45 = sshll.u32 [#allocation6], 4
      %s46 = int_to_ptr.vmem [resolvable:$true] %s45
      %51 = dma.hbm_to_vmem [thread:$0]  %s1, 384, %s46, [#allocation7], 128, 128, 8
    $region9: #{tpu_custom_call.1} parent=1 // pred_fallthru
      _
    // Predicated region
    $region10: #{tpu_custom_call.1} parent=1 // pred_check
      _
    $region11: #{tpu_custom_call.1} parent=1 // pred_check_branch
      %53 = sbr.rel (0) target = $region13
    $region12: #{tpu_custom_call.1} parent=1 // pred_region
      %s55 = ssub.s32 768, 768
      %56 = vsyncadd [#allocation7], %s55
      %s57 = sshll.u32 [#allocation8], 4
      %s58 = int_to_ptr.vmem [resolvable:$true] %s57
      %63 = dma.hbm_to_vmem [thread:$0]  %s2, 768, %s58, [#allocation7], 384, 384, 24
    $region13: #{tpu_custom_call.1} parent=1 // pred_fallthru
      _
    // Predicated region
    $region14: #{tpu_custom_call.1} parent=1 // pred_check
      _
    $region15: #{tpu_custom_call.1} parent=1 // pred_check_branch
      %65 = sbr.rel (0) target = $region17
    $region16: #{tpu_custom_call.1} parent=1 // pred_region
      %s67 = ssub.s32 6144, 6144
      %68 = vsyncadd [#allocation10], %s67
      %s69 = sshll.u32 [#allocation9], 4
      %s70 = int_to_ptr.vmem [resolvable:$true] %s69
      %75 = dma.hbm_to_vmem [thread:$0]  %s3, 6144, %s70, [#allocation10], 384, 384, 24
    $region17: #{tpu_custom_call.1} parent=1 // pred_fallthru
      _
    // Predicated region
    $region18: #{tpu_custom_call.1} parent=1 // pred_check
      _
    $region19: #{tpu_custom_call.1} parent=1 // pred_check_branch
      %77 = sbr.rel (0) target = $region21
    $region20: #{tpu_custom_call.1} parent=1 // pred_region
      _
    $region21: #{tpu_custom_call.1} parent=1 // pred_fallthru
      _
    // Predicated region
    $region22: #{tpu_custom_call.1} parent=1 // pred_check
      _
    $region23: #{tpu_custom_call.1} parent=1 // pred_check_branch
      %79 = sbr.rel (0) target = $region25
    $region24: #{tpu_custom_call.1} parent=1 // pred_region
      _
    $region25: #{tpu_custom_call.1} parent=1 // pred_fallthru
      _
    // Predicated region
    $region26: #{tpu_custom_call.1} parent=1 // pred_check
      _
    $region27: #{tpu_custom_call.1} parent=1 // pred_check_branch
      %81 = sbr.rel (0) target = $region29
    $region28: #{tpu_custom_call.1} parent=1 // pred_region
      %s83 = ssub.s32 6144, 6144
      %84 = vsyncadd [#allocation10], %s83
      %s85 = sshll.u32 [#allocation11], 4
      %s86 = int_to_ptr.vmem [resolvable:$true] %s85
      %91 = dma.hbm_to_vmem [thread:$0]  %s6, 6144, %s86, [#allocation10], 384, 384, 24
    $region29: #{tpu_custom_call.1} parent=1 // pred_fallthru
      _
    // Predicated region
    $region30: #{tpu_custom_call.1} parent=1 // pred_check
      _
    $region31: #{tpu_custom_call.1} parent=1 // pred_check_branch
      %93 = sbr.rel (0) target = $region33
    $region32: #{tpu_custom_call.1} parent=1 // pred_region
      %s95 = ssub.s32 6144, 6144
      %96 = vsyncadd [#allocation13], %s95
      %s97 = sshll.u32 [#allocation12], 4
      %s98 = int_to_ptr.vmem [resolvable:$true] %s97
      %103 = dma.hbm_to_vmem [thread:$0]  %s7, 6144, %s98, [#allocation13], 384, 384, 24
    $region33: #{tpu_custom_call.1} parent=1 // pred_fallthru
      _
    // Predicated region
    $region34: #{tpu_custom_call.1} parent=1 // pred_check
      _
    $region35: #{tpu_custom_call.1} parent=1 // pred_check_branch
      %105 = sbr.rel (0) target = $region37
    $region36: #{tpu_custom_call.1} parent=1 // pred_region
      _
    $region37: #{tpu_custom_call.1} parent=1 // pred_fallthru
      _
    // Predicated region
    $region38: #{tpu_custom_call.1} parent=1 // pred_check
      _
    $region39: #{tpu_custom_call.1} parent=1 // pred_check_branch
      %107 = sbr.rel (0) target = $region41
    $region40: #{tpu_custom_call.1} parent=1 // pred_region
      _
    $region41: #{tpu_custom_call.1} parent=1 // pred_fallthru
      _
    // Predicated region
    $region42: #{tpu_custom_call.1} parent=1 // pred_check
      _
    $region43: #{tpu_custom_call.1} parent=1 // pred_check_branch
      %109 = sbr.rel (0) target = $region45
    $region44: #{tpu_custom_call.1} parent=1 // pred_region
      %s111 = ssub.s32 6144, 6144
      %112 = vsyncadd [#allocation13], %s111
      %s113 = sshll.u32 [#allocation14], 4
      %s114 = int_to_ptr.vmem [resolvable:$true] %s113
      %119 = dma.hbm_to_vmem [thread:$0]  %s10, 6144, %s114, [#allocation13], 384, 384, 24
    $region45: #{tpu_custom_call.1} parent=1 // pred_fallthru
      _
    // Predicated region
    $region46: #{tpu_custom_call.1} parent=1 // pred_check
      _
    $region47: #{tpu_custom_call.1} parent=1 // pred_check_branch
      %121 = sbr.rel (0) target = $region49
    $region48: #{tpu_custom_call.1} parent=1 // pred_region
      %s123 = ssub.s32 6144, 6144
      %124 = vsyncadd [#allocation16], %s123
      %s125 = sshll.u32 [#allocation15], 4
      %s126 = int_to_ptr.vmem [resolvable:$true] %s125
      %131 = dma.hbm_to_vmem [thread:$0]  %s11, 6144, %s126, [#allocation16], 384, 384, 24
    $region49: #{tpu_custom_call.1} parent=1 // pred_fallthru
      _
    // Predicated region
    $region50: #{tpu_custom_call.1} parent=1 // pred_check
      _
    $region51: #{tpu_custom_call.1} parent=1 // pred_check_branch
      %133 = sbr.rel (0) target = $region53
    $region52: #{tpu_custom_call.1} parent=1 // pred_region
      _
    $region53: #{tpu_custom_call.1} parent=1 // pred_fallthru
      _
    // Predicated region
    $region54: #{tpu_custom_call.1} parent=1 // pred_check
      _
    $region55: #{tpu_custom_call.1} parent=1 // pred_check_branch
      %135 = sbr.rel (0) target = $region57
    $region56: #{tpu_custom_call.1} parent=1 // pred_region
      _
    $region57: #{tpu_custom_call.1} parent=1 // pred_fallthru
      _
    // Predicated region
    $region58: #{tpu_custom_call.1} parent=1 // pred_check
      _
    $region59: #{tpu_custom_call.1} parent=1 // pred_check_branch
      %137 = sbr.rel (0) target = $region61
    $region60: #{tpu_custom_call.1} parent=1 // pred_region
      %138 = dma.done [#allocation4], 1024
    $region61: #{tpu_custom_call.1} parent=1 // pred_fallthru
      _
    // Predicated region
    $region62: #{tpu_custom_call.1} parent=1 // pred_check
      _
    $region63: #{tpu_custom_call.1} parent=1 // pred_check_branch
      %140 = sbr.rel (0) target = $region65
    $region64: #{tpu_custom_call.1} parent=1 // pred_region
      %141 = dma.done [#allocation7], 384
    $region65: #{tpu_custom_call.1} parent=1 // pred_fallthru
      _
    // Predicated region
    $region66: #{tpu_custom_call.1} parent=1 // pred_check
      _
    $region67: #{tpu_custom_call.1} parent=1 // pred_check_branch
      %143 = sbr.rel (0) target = $region69
    $region68: #{tpu_custom_call.1} parent=1 // pred_region
      %144 = dma.done [#allocation7], 768
    $region69: #{tpu_custom_call.1} parent=1 // pred_fallthru
      _
    // Predicated region
    $region70: #{tpu_custom_call.1} parent=1 // pred_check
      _
    $region71: #{tpu_custom_call.1} parent=1 // pred_check_branch
      %146 = sbr.rel (0) target = $region73
    $region72: #{tpu_custom_call.1} parent=1 // pred_region
      %147 = dma.done [#allocation10], 6144
    $region73: #{tpu_custom_call.1} parent=1 // pred_fallthru
      _
    // Predicated region
    $region74: #{tpu_custom_call.1} parent=1 // pred_check
      _
    $region75: #{tpu_custom_call.1} parent=1 // pred_check_branch
      %149 = sbr.rel (0) target = $region77
    $region76: #{tpu_custom_call.1} parent=1 // pred_region
      %150 = dma.done [#allocation10], 6144
    $region77: #{tpu_custom_call.1} parent=1 // pred_fallthru
      _
    // Predicated region
    $region78: #{tpu_custom_call.1} parent=1 // pred_check
      _
    $region79: #{tpu_custom_call.1} parent=1 // pred_check_branch
      %152 = sbr.rel (0) target = $region81
    $region80: #{tpu_custom_call.1} parent=1 // pred_region
      %153 = dma.done [#allocation13], 6144
    $region81: #{tpu_custom_call.1} parent=1 // pred_fallthru
      _
    // Predicated region
    $region82: #{tpu_custom_call.1} parent=1 // pred_check
      _
    $region83: #{tpu_custom_call.1} parent=1 // pred_check_branch
      %155 = sbr.rel (0) target = $region85
    $region84: #{tpu_custom_call.1} parent=1 // pred_region
      %156 = dma.done [#allocation13], 6144
    $region85: #{tpu_custom_call.1} parent=1 // pred_fallthru
      _
    // Predicated region
    $region86: #{tpu_custom_call.1} parent=1 // pred_check
      _
    $region87: #{tpu_custom_call.1} parent=1 // pred_check_branch
      %158 = sbr.rel (0) target = $region89
    $region88: #{tpu_custom_call.1} parent=1 // pred_region
      %159 = dma.done [#allocation16], 6144
    $region89: #{tpu_custom_call.1} parent=1 // pred_fallthru
      _
    %v160 = vld [vmem:[#allocation9] sm:$0xff]
    %v161 = vld [vmem:[#allocation9 + $0x8] sm:$0xff]
    %v162 = vld [vmem:[#allocation9 + $0x10] sm:$0xff]
    %v163 = vld [vmem:[#allocation9 + $0x18] sm:$0xff]
    %v164 = vld [vmem:[#allocation9 + $0x20] sm:$0xff]
    %v165 = vld [vmem:[#allocation9 + $0x28] sm:$0xff]
    %v166 = vld [vmem:[#allocation9 + $0x30] sm:$0xff]
    %v167 = vld [vmem:[#allocation9 + $0x38] sm:$0xff]
    %v168 = vld [vmem:[#allocation9 + $0x40] sm:$0xff]
    %v169 = vld [vmem:[#allocation9 + $0x48] sm:$0xff]
    %v170 = vld [vmem:[#allocation9 + $0x50] sm:$0xff]
    %v171 = vld [vmem:[#allocation9 + $0x58] sm:$0xff]
    %v172 = vld [vmem:[#allocation9 + $0x60] sm:$0xff]
    %v173 = vld [vmem:[#allocation9 + $0x68] sm:$0xff]
    %v174 = vld [vmem:[#allocation9 + $0x70] sm:$0xff]
    %v175 = vld [vmem:[#allocation9 + $0x78] sm:$0xff]
    %v176 = vld [vmem:[#allocation9 + $0x80] sm:$0xff]
    %v177 = vld [vmem:[#allocation9 + $0x88] sm:$0xff]
    %v178 = vld [vmem:[#allocation9 + $0x90] sm:$0xff]
    %v179 = vld [vmem:[#allocation9 + $0x98] sm:$0xff]
    %v180 = vld [vmem:[#allocation9 + $0xa0] sm:$0xff]
    %v181 = vld [vmem:[#allocation9 + $0xa8] sm:$0xff]
    %v182 = vld [vmem:[#allocation9 + $0xb0] sm:$0xff]
    %v183 = vld [vmem:[#allocation9 + $0xb8] sm:$0xff]
    %v184 = vld [vmem:[#allocation9 + $0xc0] sm:$0xff]
    %v185 = vld [vmem:[#allocation9 + $0xc8] sm:$0xff]
    %v186 = vld [vmem:[#allocation9 + $0xd0] sm:$0xff]
    %v187 = vld [vmem:[#allocation9 + $0xd8] sm:$0xff]
    %v188 = vld [vmem:[#allocation9 + $0xe0] sm:$0xff]
    %v189 = vld [vmem:[#allocation9 + $0xe8] sm:$0xff]
    %v190 = vld [vmem:[#allocation9 + $0xf0] sm:$0xff]
    %v191 = vld [vmem:[#allocation9 + $0xf8] sm:$0xff]
    %v192 = vld [vmem:[#allocation9 + $0x100] sm:$0xff]
    %v193 = vld [vmem:[#allocation9 + $0x108] sm:$0xff]
    %v194 = vld [vmem:[#allocation9 + $0x110] sm:$0xff]
    %v195 = vld [vmem:[#allocation9 + $0x118] sm:$0xff]
    %v196 = vld [vmem:[#allocation9 + $0x120] sm:$0xff]
    %v197 = vld [vmem:[#allocation9 + $0x128] sm:$0xff]
    %v198 = vld [vmem:[#allocation9 + $0x130] sm:$0xff]
    %v199 = vld [vmem:[#allocation9 + $0x138] sm:$0xff]
    %v200 = vld [vmem:[#allocation9 + $0x140] sm:$0xff]
    %v201 = vld [vmem:[#allocation9 + $0x148] sm:$0xff]
    %v202 = vld [vmem:[#allocation9 + $0x150] sm:$0xff]
    %v203 = vld [vmem:[#allocation9 + $0x158] sm:$0xff]
    %v204 = vld [vmem:[#allocation9 + $0x160] sm:$0xff]
    %v205 = vld [vmem:[#allocation9 + $0x168] sm:$0xff]
    %v206 = vld [vmem:[#allocation9 + $0x170] sm:$0xff]
    %v207 = vld [vmem:[#allocation9 + $0x178] sm:$0xff]
    %v208 = vld [vmem:[%s5] sm:$0x7]
    %v209 = vld [vmem:[#allocation3] sm:$0xff]
    %v210 = vld [vmem:[#allocation3 + $0x8] sm:$0xff]
    %v211 = vld [vmem:[#allocation3 + $0x10] sm:$0xff]
    %v212 = vld [vmem:[#allocation3 + $0x18] sm:$0xff]
    %v213 = vld [vmem:[#allocation3 + $0x20] sm:$0xff]
    %v214 = vld [vmem:[#allocation3 + $0x28] sm:$0xff]
    %v215 = vld [vmem:[#allocation3 + $0x30] sm:$0xff]
    %v216 = vld [vmem:[#allocation3 + $0x38] sm:$0xff]
    %v217 = vld [vmem:[#allocation8] sm:$0xff]
    %v218 = vld [vmem:[#allocation8 + $0x8] sm:$0xff]
    %v219 = vld [vmem:[#allocation8 + $0x10] sm:$0xff]
    %v220 = vld [vmem:[#allocation8 + $0x18] sm:$0xff]
    %v221 = vld [vmem:[#allocation8 + $0x20] sm:$0xff]
    %v222 = vld [vmem:[#allocation8 + $0x28] sm:$0xff]
    %v223 = vld [vmem:[%s4] sm:$0x7]
    %v225 = vlaneseq
    %v226 = vshrl.u32 %v225, 7
    %v227 = vsub.s32 0, %v226
    %v228 = vrot.slane %v223, %v227
    %v229 = vlaneseq
    %v230 = vshrl.u32 %v229, 7
    %v231 = vsub.s32 1, %v230
    %v232 = vrot.slane %v223, %v231
    %v233 = vlaneseq
    %v234 = vshrl.u32 %v233, 7
    %v235 = vsub.s32 2, %v234
    %v236 = vrot.slane %v223, %v235
    %vm240 = vcmask 130048
    %v242 = vsel %vm240, %v209, 0
    %v245 = vsel %vm240, %v210, 0
    %v248 = vsel %vm240, %v211, 0
    %v251 = vsel %vm240, %v212, 0
    %v254 = vsel %vm240, %v213, 0
    %v257 = vsel %vm240, %v214, 0
    %v260 = vsel %vm240, %v215, 0
    %v263 = vsel %vm240, %v216, 0
    %265 = vmatprep.subr.mxu0 %v218
    %266 = vmatpush1.msra.mxu0 %v217
    %267 = vmatprep.subr.mxu0 %v221
    %268 = vmatpush1.msra.mxu0 %v220
    %269 = vmatprep.subr.mxu0 0.0
    %270 = vmatpush1.msra.mxu0 0.0
    %271 = vmatprep.subr.mxu0 0.0
    %272 = vmatpush1.msra.mxu0 0.0
    %273 = vmatprep.subr.mxu0 0.0
    %274 = vmatpush1.msra.mxu0 0.0
    %275 = vmatprep.subr.mxu0 0.0
    %276 = vmatpush1.msra.mxu0 0.0
    %277 = vmatprep.subr.mxu0 0.0
    %278 = vmatpush1.msra.mxu0 0.0
    %279 = vmatprep.subr.mxu0 0.0
    %280 = vmatpush1.msra.mxu0 0.0
    %281 = vmatprep.subr.mxu0 0.0
    %282 = vmatpush1.msra.mxu0 0.0
    %283 = vmatprep.subr.mxu0 0.0
    %284 = vmatpush1.msra.mxu0 0.0
    %285 = vmatprep.subr.mxu0 0.0
    %286 = vmatpush1.msra.mxu0 0.0
    %287 = vmatprep.subr.mxu0 0.0
    %288 = vmatpush1.msra.mxu0 0.0
    %289 = vmatprep.subr.mxu0 0.0
    %290 = vmatpush1.msra.mxu0 0.0
    %291 = vmatprep.subr.mxu0 0.0
    %292 = vmatpush1.msra.mxu0 0.0
    %293 = vmatprep.subr.mxu0 0.0
    %294 = vmatpush1.msra.mxu0 0.0
    %295 = vmatprep.subr.mxu0 0.0
    %296 = vmatpush1.msra.mxu0 0.0
    %297 = vmatprep.subr.mxu0 0.0
    %298 = vmatpush1.msra.mxu0 0.0
    %299 = vmatprep.subr.mxu0 0.0
    %300 = vmatpush1.msra.mxu0 0.0
    %301 = vmatprep.subr.mxu0 0.0
    %302 = vmatpush1.msra.mxu0 0.0
    %303 = vmatprep.subr.mxu0 0.0
    %304 = vmatpush1.msra.mxu0 0.0
    %305 = vmatprep.subr.mxu0 0.0
    %306 = vmatpush1.msra.mxu0 0.0
    %307 = vmatprep.subr.mxu0 0.0
    %308 = vmatpush1.msra.mxu0 0.0
    %309 = vmatprep.subr.mxu0 0.0
    %310 = vmatpush1.msra.mxu0 0.0
    %311 = vmatprep.subr.mxu0 0.0
    %312 = vmatpush1.msra.mxu0 0.0
    %313 = vmatprep.subr.mxu0 0.0
    %314 = vmatpush1.msra.mxu0 0.0
    %315 = vmatprep.subr.mxu0 0.0
    %316 = vmatpush1.msra.mxu0 0.0
    %317 = vmatprep.subr.mxu0 0.0
    %318 = vmatpush1.msra.mxu0 0.0
    %319 = vmatprep.subr.mxu0 0.0
    %320 = vmatpush1.msra.mxu0 0.0
    %321 = vmatprep.subr.mxu0 0.0
    %322 = vmatpush1.msra.mxu0 0.0
    %323 = vmatprep.subr.mxu0 0.0
    %324 = vmatpush1.msra.mxu0 0.0
    %325 = vmatprep.subr.mxu0 0.0
    %326 = vmatpush1.msra.mxu0 0.0
    %327 = vmatprep.subr.mxu0 0.0
    %328 = vmatpush1.msra.mxu0 0.0
    %329 = vmatprep.mubr.f32.mxu0 0.0
    %330 = vmatmul.mubr.f32.gmra.mrb[0].mxu0 %v242
    %v331 = vpop.f32.mrb[0].mxu0
    %v332 = vadd.f32 %v228, %v331
    %v333 = vpop.f32.mrb[0].mxu0
    %v334 = vadd.f32 %v232, %v333
    %335 = vmatprep.mubr.f32.mxu0 0.0
    %336 = vmatmul.mubr.f32.gmra.mrb[0].mxu0 %v245
    %v337 = vpop.f32.mrb[0].mxu0
    %v338 = vadd.f32 %v228, %v337
    %v339 = vpop.f32.mrb[0].mxu0
    %v340 = vadd.f32 %v232, %v339
    %341 = vmatprep.mubr.f32.mxu0 0.0
    %342 = vmatmul.mubr.f32.gmra.mrb[0].mxu0 %v248
    %v343 = vpop.f32.mrb[0].mxu0
    %v344 = vadd.f32 %v228, %v343
    %v345 = vpop.f32.mrb[0].mxu0
    %v346 = vadd.f32 %v232, %v345
    %347 = vmatprep.mubr.f32.mxu0 0.0
    %348 = vmatmul.mubr.f32.gmra.mrb[0].mxu0 %v251
    %v349 = vpop.f32.mrb[0].mxu0
    %v350 = vadd.f32 %v228, %v349
    %v351 = vpop.f32.mrb[0].mxu0
    %v352 = vadd.f32 %v232, %v351
    %353 = vmatprep.mubr.f32.mxu0 0.0
    %354 = vmatmul.mubr.f32.gmra.mrb[0].mxu0 %v254
    %v355 = vpop.f32.mrb[0].mxu0
    %v356 = vadd.f32 %v228, %v355
    %v357 = vpop.f32.mrb[0].mxu0
    %v358 = vadd.f32 %v232, %v357
    %359 = vmatprep.mubr.f32.mxu0 0.0
    %360 = vmatmul.mubr.f32.gmra.mrb[0].mxu0 %v257
    %v361 = vpop.f32.mrb[0].mxu0
    %v362 = vadd.f32 %v228, %v361
    %v363 = vpop.f32.mrb[0].mxu0
    %v364 = vadd.f32 %v232, %v363
    %365 = vmatprep.mubr.f32.mxu0 0.0
    %366 = vmatmul.mubr.f32.gmra.mrb[0].mxu0 %v260
    %v367 = vpop.f32.mrb[0].mxu0
    %v368 = vadd.f32 %v228, %v367
    %v369 = vpop.f32.mrb[0].mxu0
    %v370 = vadd.f32 %v232, %v369
    %371 = vmatprep.mubr.f32.mxu0 0.0
    %372 = vmatmul.mubr.f32.gmra.mrb[0].mxu0 %v263
    %v373 = vpop.f32.mrb[0].mxu0
    %v374 = vadd.f32 %v228, %v373
    %v375 = vpop.f32.mrb[0].mxu0
    %v376 = vadd.f32 %v232, %v375
    %377 = vdwg.mxu0
    %378 = vmatprep.subr.mxu0 0.0
    %379 = vmatpush1.msra.mxu0 %v219
    %380 = vmatprep.subr.mxu0 0.0
    %381 = vmatpush1.msra.mxu0 %v222
    %382 = vmatprep.subr.mxu0 0.0
    %383 = vmatpush1.msra.mxu0 0.0
    %384 = vmatprep.subr.mxu0 0.0
    %385 = vmatpush1.msra.mxu0 0.0
    %386 = vmatprep.subr.mxu0 0.0
    %387 = vmatpush1.msra.mxu0 0.0
    %388 = vmatprep.subr.mxu0 0.0
    %389 = vmatpush1.msra.mxu0 0.0
    %390 = vmatprep.subr.mxu0 0.0
    %391 = vmatpush1.msra.mxu0 0.0
    %392 = vmatprep.subr.mxu0 0.0
    %393 = vmatpush1.msra.mxu0 0.0
    %394 = vmatprep.subr.mxu0 0.0
    %395 = vmatpush1.msra.mxu0 0.0
    %396 = vmatprep.subr.mxu0 0.0
    %397 = vmatpush1.msra.mxu0 0.0
    %398 = vmatprep.subr.mxu0 0.0
    %399 = vmatpush1.msra.mxu0 0.0
    %400 = vmatprep.subr.mxu0 0.0
    %401 = vmatpush1.msra.mxu0 0.0
    %402 = vmatprep.subr.mxu0 0.0
    %403 = vmatpush1.msra.mxu0 0.0
    %404 = vmatprep.subr.mxu0 0.0
    %405 = vmatpush1.msra.mxu0 0.0
    %406 = vmatprep.subr.mxu0 0.0
    %407 = vmatpush1.msra.mxu0 0.0
    %408 = vmatprep.subr.mxu0 0.0
    %409 = vmatpush1.msra.mxu0 0.0
    %410 = vmatprep.subr.mxu0 0.0
    %411 = vmatpush1.msra.mxu0 0.0
    %412 = vmatprep.subr.mxu0 0.0
    %413 = vmatpush1.msra.mxu0 0.0
    %414 = vmatprep.subr.mxu0 0.0
    %415 = vmatpush1.msra.mxu0 0.0
    %416 = vmatprep.subr.mxu0 0.0
    %417 = vmatpush1.msra.mxu0 0.0
    %418 = vmatprep.subr.mxu0 0.0
    %419 = vmatpush1.msra.mxu0 0.0
    %420 = vmatprep.subr.mxu0 0.0
    %421 = vmatpush1.msra.mxu0 0.0
    %422 = vmatprep.subr.mxu0 0.0
    %423 = vmatpush1.msra.mxu0 0.0
    %424 = vmatprep.subr.mxu0 0.0
    %425 = vmatpush1.msra.mxu0 0.0
    %426 = vmatprep.subr.mxu0 0.0
    %427 = vmatpush1.msra.mxu0 0.0
    %428 = vmatprep.subr.mxu0 0.0
    %429 = vmatpush1.msra.mxu0 0.0
    %430 = vmatprep.subr.mxu0 0.0
    %431 = vmatpush1.msra.mxu0 0.0
    %432 = vmatprep.subr.mxu0 0.0
    %433 = vmatpush1.msra.mxu0 0.0
    %434 = vmatprep.subr.mxu0 0.0
    %435 = vmatpush1.msra.mxu0 0.0
    %436 = vmatprep.subr.mxu0 0.0
    %437 = vmatpush1.msra.mxu0 0.0
    %438 = vmatprep.subr.mxu0 0.0
    %439 = vmatpush1.msra.mxu0 0.0
    %440 = vmatprep.subr.mxu0 0.0
    %441 = vmatpush1.msra.mxu0 0.0
    %442 = vmatprep.mubr.f32.mxu0 0.0
    %443 = vmatmul.mubr.f32.gmra.mrb[0].mxu0 %v242
    %v444 = vpop.f32.mrb[0].mxu0
    %v445 = vadd.f32 %v236, %v444
    %v446 = vpop.f32.mrb[0].mxu0
    %447 = vmatprep.mubr.f32.mxu0 0.0
    %448 = vmatmul.mubr.f32.gmra.mrb[0].mxu0 %v245
    %v449 = vpop.f32.mrb[0].mxu0
    %v450 = vadd.f32 %v236, %v449
    %v451 = vpop.f32.mrb[0].mxu0
    %452 = vmatprep.mubr.f32.mxu0 0.0
    %453 = vmatmul.mubr.f32.gmra.mrb[0].mxu0 %v248
    %v454 = vpop.f32.mrb[0].mxu0
    %v455 = vadd.f32 %v236, %v454
    %v456 = vpop.f32.mrb[0].mxu0
    %457 = vmatprep.mubr.f32.mxu0 0.0
    %458 = vmatmul.mubr.f32.gmra.mrb[0].mxu0 %v251
    %v459 = vpop.f32.mrb[0].mxu0
    %v460 = vadd.f32 %v236, %v459
    %v461 = vpop.f32.mrb[0].mxu0
    %462 = vmatprep.mubr.f32.mxu0 0.0
    %463 = vmatmul.mubr.f32.gmra.mrb[0].mxu0 %v254
    %v464 = vpop.f32.mrb[0].mxu0
    %v465 = vadd.f32 %v236, %v464
    %v466 = vpop.f32.mrb[0].mxu0
    %467 = vmatprep.mubr.f32.mxu0 0.0
    %468 = vmatmul.mubr.f32.gmra.mrb[0].mxu0 %v257
    %v469 = vpop.f32.mrb[0].mxu0
    %v470 = vadd.f32 %v236, %v469
    %v471 = vpop.f32.mrb[0].mxu0
    %472 = vmatprep.mubr.f32.mxu0 0.0
    %473 = vmatmul.mubr.f32.gmra.mrb[0].mxu0 %v260
    %v474 = vpop.f32.mrb[0].mxu0
    %v475 = vadd.f32 %v236, %v474
    %v476 = vpop.f32.mrb[0].mxu0
    %477 = vmatprep.mubr.f32.mxu0 0.0
    %478 = vmatmul.mubr.f32.gmra.mrb[0].mxu0 %v263
    %v479 = vpop.f32.mrb[0].mxu0
    %v480 = vadd.f32 %v236, %v479
    %v481 = vpop.f32.mrb[0].mxu0
    %482 = vdwg.mxu0
    %483 = vst [vmem:[#allocation2] sm:$0xff] %v332
    %484 = vst [vmem:[#allocation2 + $0x8] sm:$0xff] %v334
    %485 = vst [vmem:[#allocation2 + $0x10] sm:$0xff] %v445
    %486 = vst [vmem:[#allocation2 + $0x18] sm:$0xff] %v338
    %487 = vst [vmem:[#allocation2 + $0x20] sm:$0xff] %v340
    %488 = vst [vmem:[#allocation2 + $0x28] sm:$0xff] %v450
    %489 = vst [vmem:[#allocation2 + $0x30] sm:$0xff] %v344
    %490 = vst [vmem:[#allocation2 + $0x38] sm:$0xff] %v346
    %491 = vst [vmem:[#allocation2 + $0x40] sm:$0xff] %v455
    %492 = vst [vmem:[#allocation2 + $0x48] sm:$0xff] %v350
    %493 = vst [vmem:[#allocation2 + $0x50] sm:$0xff] %v352
    %494 = vst [vmem:[#allocation2 + $0x58] sm:$0xff] %v460
    %495 = vst [vmem:[#allocation2 + $0x60] sm:$0xff] %v356
    %496 = vst [vmem:[#allocation2 + $0x68] sm:$0xff] %v358
    %497 = vst [vmem:[#allocation2 + $0x70] sm:$0xff] %v465
    %498 = vst [vmem:[#allocation2 + $0x78] sm:$0xff] %v362
    %499 = vst [vmem:[#allocation2 + $0x80] sm:$0xff] %v364
    %500 = vst [vmem:[#allocation2 + $0x88] sm:$0xff] %v470
    %501 = vst [vmem:[#allocation2 + $0x90] sm:$0xff] %v368
    %502 = vst [vmem:[#allocation2 + $0x98] sm:$0xff] %v370
    %503 = vst [vmem:[#allocation2 + $0xa0] sm:$0xff] %v475
    %504 = vst [vmem:[#allocation2 + $0xa8] sm:$0xff] %v374
    %505 = vst [vmem:[#allocation2 + $0xb0] sm:$0xff] %v376
    %506 = vst [vmem:[#allocation2 + $0xb8] sm:$0xff] %v480
    %v507 = vld [vmem:[#allocation6] sm:$0xff]
    %v508 = vld [vmem:[#allocation2] sm:$0xff]
    %v509 = vld [vmem:[#allocation2 + $0x8] sm:$0xff]
    %v510 = vld [vmem:[#allocation2 + $0x10] sm:$0xff]
    %v512 = vlaneseq
    %v513 = vshrl.u32 %v512, 7
    %v514 = vsub.s32 0, %v513
    %v515 = vrot.slane %v208, %v514
    %v516 = vlaneseq
    %v517 = vshrl.u32 %v516, 7
    %v518 = vsub.s32 1, %v517
    %v519 = vrot.slane %v208, %v518
    %v520 = vlaneseq
    %v521 = vshrl.u32 %v520, 7
    %v522 = vsub.s32 2, %v521
    %v523 = vrot.slane %v208, %v522
    %527 = vmatprep.subr.mxu0 %v161
    %528 = vmatpush1.msra.mxu0 %v160
    %529 = vmatprep.subr.mxu0 %v164
    %530 = vmatpush1.msra.mxu0 %v163
    %531 = vmatprep.subr.mxu0 %v167
    %532 = vmatpush1.msra.mxu0 %v166
    %533 = vmatprep.subr.mxu0 %v170
    %534 = vmatpush1.msra.mxu0 %v169
    %535 = vmatprep.subr.mxu0 %v173
    %536 = vmatpush1.msra.mxu0 %v172
    %537 = vmatprep.subr.mxu0 %v176
    %538 = vmatpush1.msra.mxu0 %v175
    %539 = vmatprep.subr.mxu0 %v179
    %540 = vmatpush1.msra.mxu0 %v178
    %541 = vmatprep.subr.mxu0 %v182
    %542 = vmatpush1.msra.mxu0 %v181
    %543 = vmatprep.subr.mxu0 %v185
    %544 = vmatpush1.msra.mxu0 %v184
    %545 = vmatprep.subr.mxu0 %v188
    %546 = vmatpush1.msra.mxu0 %v187
    %547 = vmatprep.subr.mxu0 %v191
    %548 = vmatpush1.msra.mxu0 %v190
    %549 = vmatprep.subr.mxu0 %v194
    %550 = vmatpush1.msra.mxu0 %v193
    %551 = vmatprep.subr.mxu0 %v197
    %552 = vmatpush1.msra.mxu0 %v196
    %553 = vmatprep.subr.mxu0 %v200
    %554 = vmatpush1.msra.mxu0 %v199
    %555 = vmatprep.subr.mxu0 %v203
    %556 = vmatpush1.msra.mxu0 %v202
    %557 = vmatprep.subr.mxu0 %v206
    %558 = vmatpush1.msra.mxu0 %v205
    %559 = vmatprep.subr.mxu0 0.0
    %560 = vmatpush1.msra.mxu0 0.0
    %561 = vmatprep.subr.mxu0 0.0
    %562 = vmatpush1.msra.mxu0 0.0
    %563 = vmatprep.subr.mxu0 0.0
    %564 = vmatpush1.msra.mxu0 0.0
    %565 = vmatprep.subr.mxu0 0.0
    %566 = vmatpush1.msra.mxu0 0.0
    %567 = vmatprep.subr.mxu0 0.0
    %568 = vmatpush1.msra.mxu0 0.0
    %569 = vmatprep.subr.mxu0 0.0
    %570 = vmatpush1.msra.mxu0 0.0
    %571 = vmatprep.subr.mxu0 0.0
    %572 = vmatpush1.msra.mxu0 0.0
    %573 = vmatprep.subr.mxu0 0.0
    %574 = vmatpush1.msra.mxu0 0.0
    %575 = vmatprep.subr.mxu0 0.0
    %576 = vmatpush1.msra.mxu0 0.0
    %577 = vmatprep.subr.mxu0 0.0
    %578 = vmatpush1.msra.mxu0 0.0
    %579 = vmatprep.subr.mxu0 0.0
    %580 = vmatpush1.msra.mxu0 0.0
    %581 = vmatprep.subr.mxu0 0.0
    %582 = vmatpush1.msra.mxu0 0.0
    %583 = vmatprep.subr.mxu0 0.0
    %584 = vmatpush1.msra.mxu0 0.0
    %585 = vmatprep.subr.mxu0 0.0
    %586 = vmatpush1.msra.mxu0 0.0
    %587 = vmatprep.subr.mxu0 0.0
    %588 = vmatpush1.msra.mxu0 0.0
    %589 = vmatprep.subr.mxu0 0.0
    %590 = vmatpush1.msra.mxu0 0.0
    %591 = vmatprep.mubr.f32.mxu0 0.0
    %592 = vmatmul.mubr.f32.gmra.mrb[0].mxu0 %v507
    %v593 = vpop.f32.mrb[0].mxu0
    %v594 = vadd.f32 %v515, %v593
    %v595 = vpop.f32.mrb[0].mxu0
    %v596 = vadd.f32 %v519, %v595
    %597 = vdwg.mxu0
    %598 = vmatprep.subr.mxu0 0.0
    %599 = vmatpush1.msra.mxu0 %v162
    %600 = vmatprep.subr.mxu0 0.0
    %601 = vmatpush1.msra.mxu0 %v165
    %602 = vmatprep.subr.mxu0 0.0
    %603 = vmatpush1.msra.mxu0 %v168
    %604 = vmatprep.subr.mxu0 0.0
    %605 = vmatpush1.msra.mxu0 %v171
    %606 = vmatprep.subr.mxu0 0.0
    %607 = vmatpush1.msra.mxu0 %v174
    %608 = vmatprep.subr.mxu0 0.0
    %609 = vmatpush1.msra.mxu0 %v177
    %610 = vmatprep.subr.mxu0 0.0
    %611 = vmatpush1.msra.mxu0 %v180
    %612 = vmatprep.subr.mxu0 0.0
    %613 = vmatpush1.msra.mxu0 %v183
    %614 = vmatprep.subr.mxu0 0.0
    %615 = vmatpush1.msra.mxu0 %v186
    %616 = vmatprep.subr.mxu0 0.0
    %617 = vmatpush1.msra.mxu0 %v189
    %618 = vmatprep.subr.mxu0 0.0
    %619 = vmatpush1.msra.mxu0 %v192
    %620 = vmatprep.subr.mxu0 0.0
    %621 = vmatpush1.msra.mxu0 %v195
    %622 = vmatprep.subr.mxu0 0.0
    %623 = vmatpush1.msra.mxu0 %v198
    %624 = vmatprep.subr.mxu0 0.0
    %625 = vmatpush1.msra.mxu0 %v201
    %626 = vmatprep.subr.mxu0 0.0
    %627 = vmatpush1.msra.mxu0 %v204
    %628 = vmatprep.subr.mxu0 0.0
    %629 = vmatpush1.msra.mxu0 %v207
    %630 = vmatprep.subr.mxu0 0.0
    %631 = vmatpush1.msra.mxu0 0.0
    %632 = vmatprep.subr.mxu0 0.0
    %633 = vmatpush1.msra.mxu0 0.0
    %634 = vmatprep.subr.mxu0 0.0
    %635 = vmatpush1.msra.mxu0 0.0
    %636 = vmatprep.subr.mxu0 0.0
    %637 = vmatpush1.msra.mxu0 0.0
    %638 = vmatprep.subr.mxu0 0.0
    %639 = vmatpush1.msra.mxu0 0.0
    %640 = vmatprep.subr.mxu0 0.0
    %641 = vmatpush1.msra.mxu0 0.0
    %642 = vmatprep.subr.mxu0 0.0
    %643 = vmatpush1.msra.mxu0 0.0
    %644 = vmatprep.subr.mxu0 0.0
    %645 = vmatpush1.msra.mxu0 0.0
    %646 = vmatprep.subr.mxu0 0.0
    %647 = vmatpush1.msra.mxu0 0.0
    %648 = vmatprep.subr.mxu0 0.0
    %649 = vmatpush1.msra.mxu0 0.0
    %650 = vmatprep.subr.mxu0 0.0
    %651 = vmatpush1.msra.mxu0 0.0
    %652 = vmatprep.subr.mxu0 0.0
    %653 = vmatpush1.msra.mxu0 0.0
    %654 = vmatprep.subr.mxu0 0.0
    %655 = vmatpush1.msra.mxu0 0.0
    %656 = vmatprep.subr.mxu0 0.0
    %657 = vmatpush1.msra.mxu0 0.0
    %658 = vmatprep.subr.mxu0 0.0
    %659 = vmatpush1.msra.mxu0 0.0
    %660 = vmatprep.subr.mxu0 0.0
    %661 = vmatpush1.msra.mxu0 0.0
    %662 = vmatprep.mubr.f32.mxu0 0.0
    %663 = vmatmul.mubr.f32.gmra.mrb[0].mxu0 %v507
    %v664 = vpop.f32.mrb[0].mxu0
    %v665 = vadd.f32 %v523, %v664
    %v666 = vpop.f32.mrb[0].mxu0
    %667 = vdwg.mxu0
    %v668 = vadd.f32 %v508, %v594
    %v669 = vadd.f32 %v509, %v596
    %v670 = vxor.u32 %v668, 2147483648
    %v671 = vxor.u32 %v669, 2147483648
    %v672 = vmul.f32 %v670, 1.442695
    %v673 = vpow.pop %v672
    %v674 = vmul.f32 %v671, 1.442695
    %v675 = vpow.pop %v674
    %v676 = vadd.f32 %v673, 1.0
    %v677 = vadd.f32 %v675, 1.0
    %v678 = vrcp.pop %v676
    %v679 = vmul.f32 1.0, %v678
    %v680 = vrcp.pop %v677
    %v681 = vmul.f32 1.0, %v680
    %v682 = vmul.f32 %v679, %v665
    %v683 = vadd.f32 %v510, %v682
    %v684 = vtanh.pop %v683
    %v685 = vsub.f32 1.0, %v681
    %v686 = vmul.f32 %v685, %v684
    %v687 = vmul.f32 %v681, %v507
    %v688 = vadd.f32 %v686, %v687
    %689 = vst [vmem:[#allocation17] sm:$0xff] %v688
    %s690 = scalar_lea.vmem [#allocation2], 24
    %v691 = vld [vmem:[%s690] sm:$0xff]
    %v692 = vld [vmem:[%s690 + $0x8] sm:$0xff]
    %v693 = vld [vmem:[%s690 + $0x10] sm:$0xff]
    %694 = vmatprep.subr.mxu0 %v161
    %695 = vmatpush1.msra.mxu0 %v160
    %696 = vmatprep.subr.mxu0 %v164
    %697 = vmatpush1.msra.mxu0 %v163
    %698 = vmatprep.subr.mxu0 %v167
    %699 = vmatpush1.msra.mxu0 %v166
    %700 = vmatprep.subr.mxu0 %v170
    %701 = vmatpush1.msra.mxu0 %v169
    %702 = vmatprep.subr.mxu0 %v173
    %703 = vmatpush1.msra.mxu0 %v172
    %704 = vmatprep.subr.mxu0 %v176
    %705 = vmatpush1.msra.mxu0 %v175
    %706 = vmatprep.subr.mxu0 %v179
    %707 = vmatpush1.msra.mxu0 %v178
    %708 = vmatprep.subr.mxu0 %v182
    %709 = vmatpush1.msra.mxu0 %v181
    %710 = vmatprep.subr.mxu0 %v185
    %711 = vmatpush1.msra.mxu0 %v184
    %712 = vmatprep.subr.mxu0 %v188
    %713 = vmatpush1.msra.mxu0 %v187
    %714 = vmatprep.subr.mxu0 %v191
    %715 = vmatpush1.msra.mxu0 %v190
    %716 = vmatprep.subr.mxu0 %v194
    %717 = vmatpush1.msra.mxu0 %v193
    %718 = vmatprep.subr.mxu0 %v197
    %719 = vmatpush1.msra.mxu0 %v196
    %720 = vmatprep.subr.mxu0 %v200
    %721 = vmatpush1.msra.mxu0 %v199
    %722 = vmatprep.subr.mxu0 %v203
    %723 = vmatpush1.msra.mxu0 %v202
    %724 = vmatprep.subr.mxu0 %v206
    %725 = vmatpush1.msra.mxu0 %v205
    %726 = vmatprep.subr.mxu0 0.0
    %727 = vmatpush1.msra.mxu0 0.0
    %728 = vmatprep.subr.mxu0 0.0
    %729 = vmatpush1.msra.mxu0 0.0
    %730 = vmatprep.subr.mxu0 0.0
    %731 = vmatpush1.msra.mxu0 0.0
    %732 = vmatprep.subr.mxu0 0.0
    %733 = vmatpush1.msra.mxu0 0.0
    %734 = vmatprep.subr.mxu0 0.0
    %735 = vmatpush1.msra.mxu0 0.0
    %736 = vmatprep.subr.mxu0 0.0
    %737 = vmatpush1.msra.mxu0 0.0
    %738 = vmatprep.subr.mxu0 0.0
    %739 = vmatpush1.msra.mxu0 0.0
    %740 = vmatprep.subr.mxu0 0.0
    %741 = vmatpush1.msra.mxu0 0.0
    %742 = vmatprep.subr.mxu0 0.0
    %743 = vmatpush1.msra.mxu0 0.0
    %744 = vmatprep.subr.mxu0 0.0
    %745 = vmatpush1.msra.mxu0 0.0
    %746 = vmatprep.subr.mxu0 0.0
    %747 = vmatpush1.msra.mxu0 0.0
    %748 = vmatprep.subr.mxu0 0.0
    %749 = vmatpush1.msra.mxu0 0.0
    %750 = vmatprep.subr.mxu0 0.0
    %751 = vmatpush1.msra.mxu0 0.0
    %752 = vmatprep.subr.mxu0 0.0
    %753 = vmatpush1.msra.mxu0 0.0
    %754 = vmatprep.subr.mxu0 0.0
    %755 = vmatpush1.msra.mxu0 0.0
    %756 = vmatprep.subr.mxu0 0.0
    %757 = vmatpush1.msra.mxu0 0.0
    %758 = vmatprep.mubr.f32.mxu0 0.0
    %759 = vmatmul.mubr.f32.gmra.mrb[0].mxu0 %v688
    %v760 = vpop.f32.mrb[0].mxu0
    %v761 = vadd.f32 %v515, %v760
    %v762 = vpop.f32.mrb[0].mxu0
    %v763 = vadd.f32 %v519, %v762
    %764 = vdwg.mxu0
    %765 = vmatprep.subr.mxu0 0.0
    %766 = vmatpush1.msra.mxu0 %v162
    %767 = vmatprep.subr.mxu0 0.0
    %768 = vmatpush1.msra.mxu0 %v165
    %769 = vmatprep.subr.mxu0 0.0
    %770 = vmatpush1.msra.mxu0 %v168
    %771 = vmatprep.subr.mxu0 0.0
    %772 = vmatpush1.msra.mxu0 %v171
    %773 = vmatprep.subr.mxu0 0.0
    %774 = vmatpush1.msra.mxu0 %v174
    %775 = vmatprep.subr.mxu0 0.0
    %776 = vmatpush1.msra.mxu0 %v177
    %777 = vmatprep.subr.mxu0 0.0
    %778 = vmatpush1.msra.mxu0 %v180
    %779 = vmatprep.subr.mxu0 0.0
    %780 = vmatpush1.msra.mxu0 %v183
    %781 = vmatprep.subr.mxu0 0.0
    %782 = vmatpush1.msra.mxu0 %v186
    %783 = vmatprep.subr.mxu0 0.0
    %784 = vmatpush1.msra.mxu0 %v189
    %785 = vmatprep.subr.mxu0 0.0
    %786 = vmatpush1.msra.mxu0 %v192
    %787 = vmatprep.subr.mxu0 0.0
    %788 = vmatpush1.msra.mxu0 %v195
    %789 = vmatprep.subr.mxu0 0.0
    %790 = vmatpush1.msra.mxu0 %v198
    %791 = vmatprep.subr.mxu0 0.0
    %792 = vmatpush1.msra.mxu0 %v201
    %793 = vmatprep.subr.mxu0 0.0
    %794 = vmatpush1.msra.mxu0 %v204
    %795 = vmatprep.subr.mxu0 0.0
    %796 = vmatpush1.msra.mxu0 %v207
    %797 = vmatprep.subr.mxu0 0.0
    %798 = vmatpush1.msra.mxu0 0.0
    %799 = vmatprep.subr.mxu0 0.0
    %800 = vmatpush1.msra.mxu0 0.0
    %801 = vmatprep.subr.mxu0 0.0
    %802 = vmatpush1.msra.mxu0 0.0
    %803 = vmatprep.subr.mxu0 0.0
    %804 = vmatpush1.msra.mxu0 0.0
    %805 = vmatprep.subr.mxu0 0.0
    %806 = vmatpush1.msra.mxu0 0.0
    %807 = vmatprep.subr.mxu0 0.0
    %808 = vmatpush1.msra.mxu0 0.0
    %809 = vmatprep.subr.mxu0 0.0
    %810 = vmatpush1.msra.mxu0 0.0
    %811 = vmatprep.subr.mxu0 0.0
    %812 = vmatpush1.msra.mxu0 0.0
    %813 = vmatprep.subr.mxu0 0.0
    %814 = vmatpush1.msra.mxu0 0.0
    %815 = vmatprep.subr.mxu0 0.0
    %816 = vmatpush1.msra.mxu0 0.0
    %817 = vmatprep.subr.mxu0 0.0
    %818 = vmatpush1.msra.mxu0 0.0
    %819 = vmatprep.subr.mxu0 0.0
    %820 = vmatpush1.msra.mxu0 0.0
    %821 = vmatprep.subr.mxu0 0.0
    %822 = vmatpush1.msra.mxu0 0.0
    %823 = vmatprep.subr.mxu0 0.0
    %824 = vmatpush1.msra.mxu0 0.0
    %825 = vmatprep.subr.mxu0 0.0
    %826 = vmatpush1.msra.mxu0 0.0
    %827 = vmatprep.subr.mxu0 0.0
    %828 = vmatpush1.msra.mxu0 0.0
    %829 = vmatprep.mubr.f32.mxu0 0.0
    %830 = vmatmul.mubr.f32.gmra.mrb[0].mxu0 %v688
    %v831 = vpop.f32.mrb[0].mxu0
    %v832 = vadd.f32 %v523, %v831
    %v833 = vpop.f32.mrb[0].mxu0
    %834 = vdwg.mxu0
    %v835 = vadd.f32 %v691, %v761
    %v836 = vadd.f32 %v692, %v763
    %v837 = vxor.u32 %v835, 2147483648
    %v838 = vxor.u32 %v836, 2147483648
    %v839 = vmul.f32 %v837, 1.442695
    %v840 = vpow.pop %v839
    %v841 = vmul.f32 %v838, 1.442695
    %v842 = vpow.pop %v841
    %v843 = vadd.f32 %v840, 1.0
    %v844 = vadd.f32 %v842, 1.0
    %v845 = vrcp.pop %v843
    %v846 = vmul.f32 1.0, %v845
    %v847 = vrcp.pop %v844
    %v848 = vmul.f32 1.0, %v847
    %v849 = vmul.f32 %v846, %v832
    %v850 = vadd.f32 %v693, %v849
    %v851 = vtanh.pop %v850
    %v852 = vsub.f32 1.0, %v848
    %v853 = vmul.f32 %v852, %v851
    %v854 = vmul.f32 %v848, %v688
    %v855 = vadd.f32 %v853, %v854
    %s856 = scalar_lea.vmem [#allocation17], 8
    %857 = vst [vmem:[%s856] sm:$0xff] %v855
    %s858 = scalar_lea.vmem [#allocation2], 48
    %v859 = vld [vmem:[%s858] sm:$0xff]
    %v860 = vld [vmem:[%s858 + $0x8] sm:$0xff]
    %v861 = vld [vmem:[%s858 + $0x10] sm:$0xff]
    %862 = vmatprep.subr.mxu0 %v161
    %863 = vmatpush1.msra.mxu0 %v160
    %864 = vmatprep.subr.mxu0 %v164
    %865 = vmatpush1.msra.mxu0 %v163
    %866 = vmatprep.subr.mxu0 %v167
    %867 = vmatpush1.msra.mxu0 %v166
    %868 = vmatprep.subr.mxu0 %v170
    %869 = vmatpush1.msra.mxu0 %v169
    %870 = vmatprep.subr.mxu0 %v173
    %871 = vmatpush1.msra.mxu0 %v172
    %872 = vmatprep.subr.mxu0 %v176
    %873 = vmatpush1.msra.mxu0 %v175
    %874 = vmatprep.subr.mxu0 %v179
    %875 = vmatpush1.msra.mxu0 %v178
    %876 = vmatprep.subr.mxu0 %v182
    %877 = vmatpush1.msra.mxu0 %v181
    %878 = vmatprep.subr.mxu0 %v185
    %879 = vmatpush1.msra.mxu0 %v184
    %880 = vmatprep.subr.mxu0 %v188
    %881 = vmatpush1.msra.mxu0 %v187
    %882 = vmatprep.subr.mxu0 %v191
    %883 = vmatpush1.msra.mxu0 %v190
    %884 = vmatprep.subr.mxu0 %v194
    %885 = vmatpush1.msra.mxu0 %v193
    %886 = vmatprep.subr.mxu0 %v197
    %887 = vmatpush1.msra.mxu0 %v196
    %888 = vmatprep.subr.mxu0 %v200
    %889 = vmatpush1.msra.mxu0 %v199
    %890 = vmatprep.subr.mxu0 %v203
    %891 = vmatpush1.msra.mxu0 %v202
    %892 = vmatprep.subr.mxu0 %v206
    %893 = vmatpush1.msra.mxu0 %v205
    %894 = vmatprep.subr.mxu0 0.0
    %895 = vmatpush1.msra.mxu0 0.0
    %896 = vmatprep.subr.mxu0 0.0
    %897 = vmatpush1.msra.mxu0 0.0
    %898 = vmatprep.subr.mxu0 0.0
    %899 = vmatpush1.msra.mxu0 0.0
    %900 = vmatprep.subr.mxu0 0.0
    %901 = vmatpush1.msra.mxu0 0.0
    %902 = vmatprep.subr.mxu0 0.0
    %903 = vmatpush1.msra.mxu0 0.0
    %904 = vmatprep.subr.mxu0 0.0
    %905 = vmatpush1.msra.mxu0 0.0
    %906 = vmatprep.subr.mxu0 0.0
    %907 = vmatpush1.msra.mxu0 0.0
    %908 = vmatprep.subr.mxu0 0.0
    %909 = vmatpush1.msra.mxu0 0.0
    %910 = vmatprep.subr.mxu0 0.0
    %911 = vmatpush1.msra.mxu0 0.0
    %912 = vmatprep.subr.mxu0 0.0
    %913 = vmatpush1.msra.mxu0 0.0
    %914 = vmatprep.subr.mxu0 0.0
    %915 = vmatpush1.msra.mxu0 0.0
    %916 = vmatprep.subr.mxu0 0.0
    %917 = vmatpush1.msra.mxu0 0.0
    %918 = vmatprep.subr.mxu0 0.0
    %919 = vmatpush1.msra.mxu0 0.0
    %920 = vmatprep.subr.mxu0 0.0
    %921 = vmatpush1.msra.mxu0 0.0
    %922 = vmatprep.subr.mxu0 0.0
    %923 = vmatpush1.msra.mxu0 0.0
    %924 = vmatprep.subr.mxu0 0.0
    %925 = vmatpush1.msra.mxu0 0.0
    %926 = vmatprep.mubr.f32.mxu0 0.0
    %927 = vmatmul.mubr.f32.gmra.mrb[0].mxu0 %v855
    %v928 = vpop.f32.mrb[0].mxu0
    %v929 = vadd.f32 %v515, %v928
    %v930 = vpop.f32.mrb[0].mxu0
    %v931 = vadd.f32 %v519, %v930
    %932 = vdwg.mxu0
    %933 = vmatprep.subr.mxu0 0.0
    %934 = vmatpush1.msra.mxu0 %v162
    %935 = vmatprep.subr.mxu0 0.0
    %936 = vmatpush1.msra.mxu0 %v165
    %937 = vmatprep.subr.mxu0 0.0
    %938 = vmatpush1.msra.mxu0 %v168
    %939 = vmatprep.subr.mxu0 0.0
    %940 = vmatpush1.msra.mxu0 %v171
    %941 = vmatprep.subr.mxu0 0.0
    %942 = vmatpush1.msra.mxu0 %v174
    %943 = vmatprep.subr.mxu0 0.0
    %944 = vmatpush1.msra.mxu0 %v177
    %945 = vmatprep.subr.mxu0 0.0
    %946 = vmatpush1.msra.mxu0 %v180
    %947 = vmatprep.subr.mxu0 0.0
    %948 = vmatpush1.msra.mxu0 %v183
    %949 = vmatprep.subr.mxu0 0.0
    %950 = vmatpush1.msra.mxu0 %v186
    %951 = vmatprep.subr.mxu0 0.0
    %952 = vmatpush1.msra.mxu0 %v189
    %953 = vmatprep.subr.mxu0 0.0
    %954 = vmatpush1.msra.mxu0 %v192
    %955 = vmatprep.subr.mxu0 0.0
    %956 = vmatpush1.msra.mxu0 %v195
    %957 = vmatprep.subr.mxu0 0.0
    %958 = vmatpush1.msra.mxu0 %v198
    %959 = vmatprep.subr.mxu0 0.0
    %960 = vmatpush1.msra.mxu0 %v201
    %961 = vmatprep.subr.mxu0 0.0
    %962 = vmatpush1.msra.mxu0 %v204
    %963 = vmatprep.subr.mxu0 0.0
    %964 = vmatpush1.msra.mxu0 %v207
    %965 = vmatprep.subr.mxu0 0.0
    %966 = vmatpush1.msra.mxu0 0.0
    %967 = vmatprep.subr.mxu0 0.0
    %968 = vmatpush1.msra.mxu0 0.0
    %969 = vmatprep.subr.mxu0 0.0
    %970 = vmatpush1.msra.mxu0 0.0
    %971 = vmatprep.subr.mxu0 0.0
    %972 = vmatpush1.msra.mxu0 0.0
    %973 = vmatprep.subr.mxu0 0.0
    %974 = vmatpush1.msra.mxu0 0.0
    %975 = vmatprep.subr.mxu0 0.0
    %976 = vmatpush1.msra.mxu0 0.0
    %977 = vmatprep.subr.mxu0 0.0
    %978 = vmatpush1.msra.mxu0 0.0
    %979 = vmatprep.subr.mxu0 0.0
    %980 = vmatpush1.msra.mxu0 0.0
    %981 = vmatprep.subr.mxu0 0.0
    %982 = vmatpush1.msra.mxu0 0.0
    %983 = vmatprep.subr.mxu0 0.0
    %984 = vmatpush1.msra.mxu0 0.0
    %985 = vmatprep.subr.mxu0 0.0
    %986 = vmatpush1.msra.mxu0 0.0
    %987 = vmatprep.subr.mxu0 0.0
    %988 = vmatpush1.msra.mxu0 0.0
    %989 = vmatprep.subr.mxu0 0.0
    %990 = vmatpush1.msra.mxu0 0.0
    %991 = vmatprep.subr.mxu0 0.0
    %992 = vmatpush1.msra.mxu0 0.0
    %993 = vmatprep.subr.mxu0 0.0
    %994 = vmatpush1.msra.mxu0 0.0
    %995 = vmatprep.subr.mxu0 0.0
    %996 = vmatpush1.msra.mxu0 0.0
    %997 = vmatprep.mubr.f32.mxu0 0.0
    %998 = vmatmul.mubr.f32.gmra.mrb[0].mxu0 %v855
    %v999 = vpop.f32.mrb[0].mxu0
    %v1000 = vadd.f32 %v523, %v999
    %v1001 = vpop.f32.mrb[0].mxu0
    %1002 = vdwg.mxu0
    %v1003 = vadd.f32 %v859, %v929
    %v1004 = vadd.f32 %v860, %v931
    %v1005 = vxor.u32 %v1003, 2147483648
    %v1006 = vxor.u32 %v1004, 2147483648
    %v1007 = vmul.f32 %v1005, 1.442695
    %v1008 = vpow.pop %v1007
    %v1009 = vmul.f32 %v1006, 1.442695
    %v1010 = vpow.pop %v1009
    %v1011 = vadd.f32 %v1008, 1.0
    %v1012 = vadd.f32 %v1010, 1.0
    %v1013 = vrcp.pop %v1011
    %v1014 = vmul.f32 1.0, %v1013
    %v1015 = vrcp.pop %v1012
    %v1016 = vmul.f32 1.0, %v1015
    %v1017 = vmul.f32 %v1014, %v1000
    %v1018 = vadd.f32 %v861, %v1017
    %v1019 = vtanh.pop %v1018
    %v1020 = vsub.f32 1.0, %v1016
    %v1021 = vmul.f32 %v1020, %v1019
    %v1022 = vmul.f32 %v1016, %v855
    %v1023 = vadd.f32 %v1021, %v1022
    %s1024 = scalar_lea.vmem [#allocation17], 16
    %1025 = vst [vmem:[%s1024] sm:$0xff] %v1023
    %s1026 = scalar_lea.vmem [#allocation2], 72
    %v1027 = vld [vmem:[%s1026] sm:$0xff]
    %v1028 = vld [vmem:[%s1026 + $0x8] sm:$0xff]
    %v1029 = vld [vmem:[%s1026 + $0x10] sm:$0xff]
    %1030 = vmatprep.subr.mxu0 %v161
    %1031 = vmatpush1.msra.mxu0 %v160
    %1032 = vmatprep.subr.mxu0 %v164
    %1033 = vmatpush1.msra.mxu0 %v163
    %1034 = vmatprep.subr.mxu0 %v167
    %1035 = vmatpush1.msra.mxu0 %v166
    %1036 = vmatprep.subr.mxu0 %v170
    %1037 = vmatpush1.msra.mxu0 %v169
    %1038 = vmatprep.subr.mxu0 %v173
    %1039 = vmatpush1.msra.mxu0 %v172
    %1040 = vmatprep.subr.mxu0 %v176
    %1041 = vmatpush1.msra.mxu0 %v175
    %1042 = vmatprep.subr.mxu0 %v179
    %1043 = vmatpush1.msra.mxu0 %v178
    %1044 = vmatprep.subr.mxu0 %v182
    %1045 = vmatpush1.msra.mxu0 %v181
    %1046 = vmatprep.subr.mxu0 %v185
    %1047 = vmatpush1.msra.mxu0 %v184
    %1048 = vmatprep.subr.mxu0 %v188
    %1049 = vmatpush1.msra.mxu0 %v187
    %1050 = vmatprep.subr.mxu0 %v191
    %1051 = vmatpush1.msra.mxu0 %v190
    %1052 = vmatprep.subr.mxu0 %v194
    %1053 = vmatpush1.msra.mxu0 %v193
    %1054 = vmatprep.subr.mxu0 %v197
    %1055 = vmatpush1.msra.mxu0 %v196
    %1056 = vmatprep.subr.mxu0 %v200
    %1057 = vmatpush1.msra.mxu0 %v199
    %1058 = vmatprep.subr.mxu0 %v203
    %1059 = vmatpush1.msra.mxu0 %v202
    %1060 = vmatprep.subr.mxu0 %v206
    %1061 = vmatpush1.msra.mxu0 %v205
    %1062 = vmatprep.subr.mxu0 0.0
    %1063 = vmatpush1.msra.mxu0 0.0
    %1064 = vmatprep.subr.mxu0 0.0
    %1065 = vmatpush1.msra.mxu0 0.0
    %1066 = vmatprep.subr.mxu0 0.0
    %1067 = vmatpush1.msra.mxu0 0.0
    %1068 = vmatprep.subr.mxu0 0.0
    %1069 = vmatpush1.msra.mxu0 0.0
    %1070 = vmatprep.subr.mxu0 0.0
    %1071 = vmatpush1.msra.mxu0 0.0
    %1072 = vmatprep.subr.mxu0 0.0
    %1073 = vmatpush1.msra.mxu0 0.0
    %1074 = vmatprep.subr.mxu0 0.0
    %1075 = vmatpush1.msra.mxu0 0.0
    %1076 = vmatprep.subr.mxu0 0.0
    %1077 = vmatpush1.msra.mxu0 0.0
    %1078 = vmatprep.subr.mxu0 0.0
    %1079 = vmatpush1.msra.mxu0 0.0
    %1080 = vmatprep.subr.mxu0 0.0
    %1081 = vmatpush1.msra.mxu0 0.0
    %1082 = vmatprep.subr.mxu0 0.0
    %1083 = vmatpush1.msra.mxu0 0.0
    %1084 = vmatprep.subr.mxu0 0.0
    %1085 = vmatpush1.msra.mxu0 0.0
    %1086 = vmatprep.subr.mxu0 0.0
    %1087 = vmatpush1.msra.mxu0 0.0
    %1088 = vmatprep.subr.mxu0 0.0
    %1089 = vmatpush1.msra.mxu0 0.0
    %1090 = vmatprep.subr.mxu0 0.0
    %1091 = vmatpush1.msra.mxu0 0.0
    %1092 = vmatprep.subr.mxu0 0.0
    %1093 = vmatpush1.msra.mxu0 0.0
    %1094 = vmatprep.mubr.f32.mxu0 0.0
    %1095 = vmatmul.mubr.f32.gmra.mrb[0].mxu0 %v1023
    %v1096 = vpop.f32.mrb[0].mxu0
    %v1097 = vadd.f32 %v515, %v1096
    %v1098 = vpop.f32.mrb[0].mxu0
    %v1099 = vadd.f32 %v519, %v1098
    %1100 = vdwg.mxu0
    %1101 = vmatprep.subr.mxu0 0.0
    %1102 = vmatpush1.msra.mxu0 %v162
    %1103 = vmatprep.subr.mxu0 0.0
    %1104 = vmatpush1.msra.mxu0 %v165
    %1105 = vmatprep.subr.mxu0 0.0
    %1106 = vmatpush1.msra.mxu0 %v168
    %1107 = vmatprep.subr.mxu0 0.0
    %1108 = vmatpush1.msra.mxu0 %v171
    %1109 = vmatprep.subr.mxu0 0.0
    %1110 = vmatpush1.msra.mxu0 %v174
    %1111 = vmatprep.subr.mxu0 0.0
    %1112 = vmatpush1.msra.mxu0 %v177
    %1113 = vmatprep.subr.mxu0 0.0
    %1114 = vmatpush1.msra.mxu0 %v180
    %1115 = vmatprep.subr.mxu0 0.0
    %1116 = vmatpush1.msra.mxu0 %v183
    %1117 = vmatprep.subr.mxu0 0.0
    %1118 = vmatpush1.msra.mxu0 %v186
    %1119 = vmatprep.subr.mxu0 0.0
    %1120 = vmatpush1.msra.mxu0 %v189
    %1121 = vmatprep.subr.mxu0 0.0
    %1122 = vmatpush1.msra.mxu0 %v192
    %1123 = vmatprep.subr.mxu0 0.0
    %1124 = vmatpush1.msra.mxu0 %v195
    %1125 = vmatprep.subr.mxu0 0.0
    %1126 = vmatpush1.msra.mxu0 %v198
    %1127 = vmatprep.subr.mxu0 0.0
    %1128 = vmatpush1.msra.mxu0 %v201
    %1129 = vmatprep.subr.mxu0 0.0
    %1130 = vmatpush1.msra.mxu0 %v204
    %1131 = vmatprep.subr.mxu0 0.0
    %1132 = vmatpush1.msra.mxu0 %v207
    %1133 = vmatprep.subr.mxu0 0.0
    %1134 = vmatpush1.msra.mxu0 0.0
    %1135 = vmatprep.subr.mxu0 0.0
    %1136 = vmatpush1.msra.mxu0 0.0
    %1137 = vmatprep.subr.mxu0 0.0
    %1138 = vmatpush1.msra.mxu0 0.0
    %1139 = vmatprep.subr.mxu0 0.0
    %1140 = vmatpush1.msra.mxu0 0.0
    %1141 = vmatprep.subr.mxu0 0.0
    %1142 = vmatpush1.msra.mxu0 0.0
    %1143 = vmatprep.subr.mxu0 0.0
    %1144 = vmatpush1.msra.mxu0 0.0
    %1145 = vmatprep.subr.mxu0 0.0
    %1146 = vmatpush1.msra.mxu0 0.0
    %1147 = vmatprep.subr.mxu0 0.0
    %1148 = vmatpush1.msra.mxu0 0.0
    %1149 = vmatprep.subr.mxu0 0.0
    %1150 = vmatpush1.msra.mxu0 0.0
    %1151 = vmatprep.subr.mxu0 0.0
    %1152 = vmatpush1.msra.mxu0 0.0
    %1153 = vmatprep.subr.mxu0 0.0
    %1154 = vmatpush1.msra.mxu0 0.0
    %1155 = vmatprep.subr.mxu0 0.0
    %1156 = vmatpush1.msra.mxu0 0.0
    %1157 = vmatprep.subr.mxu0 0.0
    %1158 = vmatpush1.msra.mxu0 0.0
    %1159 = vmatprep.subr.mxu0 0.0
    %1160 = vmatpush1.msra.mxu0 0.0
    %1161 = vmatprep.subr.mxu0 0.0
    %1162 = vmatpush1.msra.mxu0 0.0
    %1163 = vmatprep.subr.mxu0 0.0
    %1164 = vmatpush1.msra.mxu0 0.0
    %1165 = vmatprep.mubr.f32.mxu0 0.0
    %1166 = vmatmul.mubr.f32.gmra.mrb[0].mxu0 %v1023
    %v1167 = vpop.f32.mrb[0].mxu0
    %v1168 = vadd.f32 %v523, %v1167
    %v1169 = vpop.f32.mrb[0].mxu0
    %1170 = vdwg.mxu0
    %v1171 = vadd.f32 %v1027, %v1097
    %v1172 = vadd.f32 %v1028, %v1099
    %v1173 = vxor.u32 %v1171, 2147483648
    %v1174 = vxor.u32 %v1172, 2147483648
    %v1175 = vmul.f32 %v1173, 1.442695
    %v1176 = vpow.pop %v1175
    %v1177 = vmul.f32 %v1174, 1.442695
    %v1178 = vpow.pop %v1177
    %v1179 = vadd.f32 %v1176, 1.0
    %v1180 = vadd.f32 %v1178, 1.0
    %v1181 = vrcp.pop %v1179
    %v1182 = vmul.f32 1.0, %v1181
    %v1183 = vrcp.pop %v1180
    %v1184 = vmul.f32 1.0, %v1183
    %v1185 = vmul.f32 %v1182, %v1168
    %v1186 = vadd.f32 %v1029, %v1185
    %v1187 = vtanh.pop %v1186
    %v1188 = vsub.f32 1.0, %v1184
    %v1189 = vmul.f32 %v1188, %v1187
    %v1190 = vmul.f32 %v1184, %v1023
    %v1191 = vadd.f32 %v1189, %v1190
    %s1192 = scalar_lea.vmem [#allocation17], 24
    %1193 = vst [vmem:[%s1192] sm:$0xff] %v1191
    %s1194 = scalar_lea.vmem [#allocation2], 96
    %v1195 = vld [vmem:[%s1194] sm:$0xff]
    %v1196 = vld [vmem:[%s1194 + $0x8] sm:$0xff]
    %v1197 = vld [vmem:[%s1194 + $0x10] sm:$0xff]
    %1198 = vmatprep.subr.mxu0 %v161
    %1199 = vmatpush1.msra.mxu0 %v160
    %1200 = vmatprep.subr.mxu0 %v164
    %1201 = vmatpush1.msra.mxu0 %v163
    %1202 = vmatprep.subr.mxu0 %v167
    %1203 = vmatpush1.msra.mxu0 %v166
    %1204 = vmatprep.subr.mxu0 %v170
    %1205 = vmatpush1.msra.mxu0 %v169
    %1206 = vmatprep.subr.mxu0 %v173
    %1207 = vmatpush1.msra.mxu0 %v172
    %1208 = vmatprep.subr.mxu0 %v176
    %1209 = vmatpush1.msra.mxu0 %v175
    %1210 = vmatprep.subr.mxu0 %v179
    %1211 = vmatpush1.msra.mxu0 %v178
    %1212 = vmatprep.subr.mxu0 %v182
    %1213 = vmatpush1.msra.mxu0 %v181
    %1214 = vmatprep.subr.mxu0 %v185
    %1215 = vmatpush1.msra.mxu0 %v184
    %1216 = vmatprep.subr.mxu0 %v188
    %1217 = vmatpush1.msra.mxu0 %v187
    %1218 = vmatprep.subr.mxu0 %v191
    %1219 = vmatpush1.msra.mxu0 %v190
    %1220 = vmatprep.subr.mxu0 %v194
    %1221 = vmatpush1.msra.mxu0 %v193
    %1222 = vmatprep.subr.mxu0 %v197
    %1223 = vmatpush1.msra.mxu0 %v196
    %1224 = vmatprep.subr.mxu0 %v200
    %1225 = vmatpush1.msra.mxu0 %v199
    %1226 = vmatprep.subr.mxu0 %v203
    %1227 = vmatpush1.msra.mxu0 %v202
    %1228 = vmatprep.subr.mxu0 %v206
    %1229 = vmatpush1.msra.mxu0 %v205
    %1230 = vmatprep.subr.mxu0 0.0
    %1231 = vmatpush1.msra.mxu0 0.0
    %1232 = vmatprep.subr.mxu0 0.0
    %1233 = vmatpush1.msra.mxu0 0.0
    %1234 = vmatprep.subr.mxu0 0.0
    %1235 = vmatpush1.msra.mxu0 0.0
    %1236 = vmatprep.subr.mxu0 0.0
    %1237 = vmatpush1.msra.mxu0 0.0
    %1238 = vmatprep.subr.mxu0 0.0
    %1239 = vmatpush1.msra.mxu0 0.0
    %1240 = vmatprep.subr.mxu0 0.0
    %1241 = vmatpush1.msra.mxu0 0.0
    %1242 = vmatprep.subr.mxu0 0.0
    %1243 = vmatpush1.msra.mxu0 0.0
    %1244 = vmatprep.subr.mxu0 0.0
    %1245 = vmatpush1.msra.mxu0 0.0
    %1246 = vmatprep.subr.mxu0 0.0
    %1247 = vmatpush1.msra.mxu0 0.0
    %1248 = vmatprep.subr.mxu0 0.0
    %1249 = vmatpush1.msra.mxu0 0.0
    %1250 = vmatprep.subr.mxu0 0.0
    %1251 = vmatpush1.msra.mxu0 0.0
    %1252 = vmatprep.subr.mxu0 0.0
    %1253 = vmatpush1.msra.mxu0 0.0
    %1254 = vmatprep.subr.mxu0 0.0
    %1255 = vmatpush1.msra.mxu0 0.0
    %1256 = vmatprep.subr.mxu0 0.0
    %1257 = vmatpush1.msra.mxu0 0.0
    %1258 = vmatprep.subr.mxu0 0.0
    %1259 = vmatpush1.msra.mxu0 0.0
    %1260 = vmatprep.subr.mxu0 0.0
    %1261 = vmatpush1.msra.mxu0 0.0
    %1262 = vmatprep.mubr.f32.mxu0 0.0
    %1263 = vmatmul.mubr.f32.gmra.mrb[0].mxu0 %v1191
    %v1264 = vpop.f32.mrb[0].mxu0
    %v1265 = vadd.f32 %v515, %v1264
    %v1266 = vpop.f32.mrb[0].mxu0
    %v1267 = vadd.f32 %v519, %v1266
    %1268 = vdwg.mxu0
    %1269 = vmatprep.subr.mxu0 0.0
    %1270 = vmatpush1.msra.mxu0 %v162
    %1271 = vmatprep.subr.mxu0 0.0
    %1272 = vmatpush1.msra.mxu0 %v165
    %1273 = vmatprep.subr.mxu0 0.0
    %1274 = vmatpush1.msra.mxu0 %v168
    %1275 = vmatprep.subr.mxu0 0.0
    %1276 = vmatpush1.msra.mxu0 %v171
    %1277 = vmatprep.subr.mxu0 0.0
    %1278 = vmatpush1.msra.mxu0 %v174
    %1279 = vmatprep.subr.mxu0 0.0
    %1280 = vmatpush1.msra.mxu0 %v177
    %1281 = vmatprep.subr.mxu0 0.0
    %1282 = vmatpush1.msra.mxu0 %v180
    %1283 = vmatprep.subr.mxu0 0.0
    %1284 = vmatpush1.msra.mxu0 %v183
    %1285 = vmatprep.subr.mxu0 0.0
    %1286 = vmatpush1.msra.mxu0 %v186
    %1287 = vmatprep.subr.mxu0 0.0
    %1288 = vmatpush1.msra.mxu0 %v189
    %1289 = vmatprep.subr.mxu0 0.0
    %1290 = vmatpush1.msra.mxu0 %v192
    %1291 = vmatprep.subr.mxu0 0.0
    %1292 = vmatpush1.msra.mxu0 %v195
    %1293 = vmatprep.subr.mxu0 0.0
    %1294 = vmatpush1.msra.mxu0 %v198
    %1295 = vmatprep.subr.mxu0 0.0
    %1296 = vmatpush1.msra.mxu0 %v201
    %1297 = vmatprep.subr.mxu0 0.0
    %1298 = vmatpush1.msra.mxu0 %v204
    %1299 = vmatprep.subr.mxu0 0.0
    %1300 = vmatpush1.msra.mxu0 %v207
    %1301 = vmatprep.subr.mxu0 0.0
    %1302 = vmatpush1.msra.mxu0 0.0
    %1303 = vmatprep.subr.mxu0 0.0
    %1304 = vmatpush1.msra.mxu0 0.0
    %1305 = vmatprep.subr.mxu0 0.0
    %1306 = vmatpush1.msra.mxu0 0.0
    %1307 = vmatprep.subr.mxu0 0.0
    %1308 = vmatpush1.msra.mxu0 0.0
    %1309 = vmatprep.subr.mxu0 0.0
    %1310 = vmatpush1.msra.mxu0 0.0
    %1311 = vmatprep.subr.mxu0 0.0
    %1312 = vmatpush1.msra.mxu0 0.0
    %1313 = vmatprep.subr.mxu0 0.0
    %1314 = vmatpush1.msra.mxu0 0.0
    %1315 = vmatprep.subr.mxu0 0.0
    %1316 = vmatpush1.msra.mxu0 0.0
    %1317 = vmatprep.subr.mxu0 0.0
    %1318 = vmatpush1.msra.mxu0 0.0
    %1319 = vmatprep.subr.mxu0 0.0
    %1320 = vmatpush1.msra.mxu0 0.0
    %1321 = vmatprep.subr.mxu0 0.0
    %1322 = vmatpush1.msra.mxu0 0.0
    %1323 = vmatprep.subr.mxu0 0.0
    %1324 = vmatpush1.msra.mxu0 0.0
    %1325 = vmatprep.subr.mxu0 0.0
    %1326 = vmatpush1.msra.mxu0 0.0
    %1327 = vmatprep.subr.mxu0 0.0
    %1328 = vmatpush1.msra.mxu0 0.0
    %1329 = vmatprep.subr.mxu0 0.0
    %1330 = vmatpush1.msra.mxu0 0.0
    %1331 = vmatprep.subr.mxu0 0.0
    %1332 = vmatpush1.msra.mxu0 0.0
    %1333 = vmatprep.mubr.f32.mxu0 0.0
    %1334 = vmatmul.mubr.f32.gmra.mrb[0].mxu0 %v1191
    %v1335 = vpop.f32.mrb[0].mxu0
    %v1336 = vadd.f32 %v523, %v1335
    %v1337 = vpop.f32.mrb[0].mxu0
    %1338 = vdwg.mxu0
    %v1339 = vadd.f32 %v1195, %v1265
    %v1340 = vadd.f32 %v1196, %v1267
    %v1341 = vxor.u32 %v1339, 2147483648
    %v1342 = vxor.u32 %v1340, 2147483648
    %v1343 = vmul.f32 %v1341, 1.442695
    %v1344 = vpow.pop %v1343
    %v1345 = vmul.f32 %v1342, 1.442695
    %v1346 = vpow.pop %v1345
    %v1347 = vadd.f32 %v1344, 1.0
    %v1348 = vadd.f32 %v1346, 1.0
    %v1349 = vrcp.pop %v1347
    %v1350 = vmul.f32 1.0, %v1349
    %v1351 = vrcp.pop %v1348
    %v1352 = vmul.f32 1.0, %v1351
    %v1353 = vmul.f32 %v1350, %v1336
    %v1354 = vadd.f32 %v1197, %v1353
    %v1355 = vtanh.pop %v1354
    %v1356 = vsub.f32 1.0, %v1352
    %v1357 = vmul.f32 %v1356, %v1355
    %v1358 = vmul.f32 %v1352, %v1191
    %v1359 = vadd.f32 %v1357, %v1358
    %s1360 = scalar_lea.vmem [#allocation17], 32
    %1361 = vst [vmem:[%s1360] sm:$0xff] %v1359
    %s1362 = scalar_lea.vmem [#allocation2], 120
    %v1363 = vld [vmem:[%s1362] sm:$0xff]
    %v1364 = vld [vmem:[%s1362 + $0x8] sm:$0xff]
    %v1365 = vld [vmem:[%s1362 + $0x10] sm:$0xff]
    %1366 = vmatprep.subr.mxu0 %v161
    %1367 = vmatpush1.msra.mxu0 %v160
    %1368 = vmatprep.subr.mxu0 %v164
    %1369 = vmatpush1.msra.mxu0 %v163
    %1370 = vmatprep.subr.mxu0 %v167
    %1371 = vmatpush1.msra.mxu0 %v166
    %1372 = vmatprep.subr.mxu0 %v170
    %1373 = vmatpush1.msra.mxu0 %v169
    %1374 = vmatprep.subr.mxu0 %v173
    %1375 = vmatpush1.msra.mxu0 %v172
    %1376 = vmatprep.subr.mxu0 %v176
    %1377 = vmatpush1.msra.mxu0 %v175
    %1378 = vmatprep.subr.mxu0 %v179
    %1379 = vmatpush1.msra.mxu0 %v178
    %1380 = vmatprep.subr.mxu0 %v182
    %1381 = vmatpush1.msra.mxu0 %v181
    %1382 = vmatprep.subr.mxu0 %v185
    %1383 = vmatpush1.msra.mxu0 %v184
    %1384 = vmatprep.subr.mxu0 %v188
    %1385 = vmatpush1.msra.mxu0 %v187
    %1386 = vmatprep.subr.mxu0 %v191
    %1387 = vmatpush1.msra.mxu0 %v190
    %1388 = vmatprep.subr.mxu0 %v194
    %1389 = vmatpush1.msra.mxu0 %v193
    %1390 = vmatprep.subr.mxu0 %v197
    %1391 = vmatpush1.msra.mxu0 %v196
    %1392 = vmatprep.subr.mxu0 %v200
    %1393 = vmatpush1.msra.mxu0 %v199
    %1394 = vmatprep.subr.mxu0 %v203
    %1395 = vmatpush1.msra.mxu0 %v202
    %1396 = vmatprep.subr.mxu0 %v206
    %1397 = vmatpush1.msra.mxu0 %v205
    %1398 = vmatprep.subr.mxu0 0.0
    %1399 = vmatpush1.msra.mxu0 0.0
    %1400 = vmatprep.subr.mxu0 0.0
    %1401 = vmatpush1.msra.mxu0 0.0
    %1402 = vmatprep.subr.mxu0 0.0
    %1403 = vmatpush1.msra.mxu0 0.0
    %1404 = vmatprep.subr.mxu0 0.0
    %1405 = vmatpush1.msra.mxu0 0.0
    %1406 = vmatprep.subr.mxu0 0.0
    %1407 = vmatpush1.msra.mxu0 0.0
    %1408 = vmatprep.subr.mxu0 0.0
    %1409 = vmatpush1.msra.mxu0 0.0
    %1410 = vmatprep.subr.mxu0 0.0
    %1411 = vmatpush1.msra.mxu0 0.0
    %1412 = vmatprep.subr.mxu0 0.0
    %1413 = vmatpush1.msra.mxu0 0.0
    %1414 = vmatprep.subr.mxu0 0.0
    %1415 = vmatpush1.msra.mxu0 0.0
    %1416 = vmatprep.subr.mxu0 0.0
    %1417 = vmatpush1.msra.mxu0 0.0
    %1418 = vmatprep.subr.mxu0 0.0
    %1419 = vmatpush1.msra.mxu0 0.0
    %1420 = vmatprep.subr.mxu0 0.0
    %1421 = vmatpush1.msra.mxu0 0.0
    %1422 = vmatprep.subr.mxu0 0.0
    %1423 = vmatpush1.msra.mxu0 0.0
    %1424 = vmatprep.subr.mxu0 0.0
    %1425 = vmatpush1.msra.mxu0 0.0
    %1426 = vmatprep.subr.mxu0 0.0
    %1427 = vmatpush1.msra.mxu0 0.0
    %1428 = vmatprep.subr.mxu0 0.0
    %1429 = vmatpush1.msra.mxu0 0.0
    %1430 = vmatprep.mubr.f32.mxu0 0.0
    %1431 = vmatmul.mubr.f32.gmra.mrb[0].mxu0 %v1359
    %v1432 = vpop.f32.mrb[0].mxu0
    %v1433 = vadd.f32 %v515, %v1432
    %v1434 = vpop.f32.mrb[0].mxu0
    %v1435 = vadd.f32 %v519, %v1434
    %1436 = vdwg.mxu0
    %1437 = vmatprep.subr.mxu0 0.0
    %1438 = vmatpush1.msra.mxu0 %v162
    %1439 = vmatprep.subr.mxu0 0.0
    %1440 = vmatpush1.msra.mxu0 %v165
    %1441 = vmatprep.subr.mxu0 0.0
    %1442 = vmatpush1.msra.mxu0 %v168
    %1443 = vmatprep.subr.mxu0 0.0
    %1444 = vmatpush1.msra.mxu0 %v171
    %1445 = vmatprep.subr.mxu0 0.0
    %1446 = vmatpush1.msra.mxu0 %v174
    %1447 = vmatprep.subr.mxu0 0.0
    %1448 = vmatpush1.msra.mxu0 %v177
    %1449 = vmatprep.subr.mxu0 0.0
    %1450 = vmatpush1.msra.mxu0 %v180
    %1451 = vmatprep.subr.mxu0 0.0
    %1452 = vmatpush1.msra.mxu0 %v183
    %1453 = vmatprep.subr.mxu0 0.0
    %1454 = vmatpush1.msra.mxu0 %v186
    %1455 = vmatprep.subr.mxu0 0.0
    %1456 = vmatpush1.msra.mxu0 %v189
    %1457 = vmatprep.subr.mxu0 0.0
    %1458 = vmatpush1.msra.mxu0 %v192
    %1459 = vmatprep.subr.mxu0 0.0
    %1460 = vmatpush1.msra.mxu0 %v195
    %1461 = vmatprep.subr.mxu0 0.0
    %1462 = vmatpush1.msra.mxu0 %v198
    %1463 = vmatprep.subr.mxu0 0.0
    %1464 = vmatpush1.msra.mxu0 %v201
    %1465 = vmatprep.subr.mxu0 0.0
    %1466 = vmatpush1.msra.mxu0 %v204
    %1467 = vmatprep.subr.mxu0 0.0
    %1468 = vmatpush1.msra.mxu0 %v207
    %1469 = vmatprep.subr.mxu0 0.0
    %1470 = vmatpush1.msra.mxu0 0.0
    %1471 = vmatprep.subr.mxu0 0.0
    %1472 = vmatpush1.msra.mxu0 0.0
    %1473 = vmatprep.subr.mxu0 0.0
    %1474 = vmatpush1.msra.mxu0 0.0
    %1475 = vmatprep.subr.mxu0 0.0
    %1476 = vmatpush1.msra.mxu0 0.0
    %1477 = vmatprep.subr.mxu0 0.0
    %1478 = vmatpush1.msra.mxu0 0.0
    %1479 = vmatprep.subr.mxu0 0.0
    %1480 = vmatpush1.msra.mxu0 0.0
    %1481 = vmatprep.subr.mxu0 0.0
    %1482 = vmatpush1.msra.mxu0 0.0
    %1483 = vmatprep.subr.mxu0 0.0
    %1484 = vmatpush1.msra.mxu0 0.0
    %1485 = vmatprep.subr.mxu0 0.0
    %1486 = vmatpush1.msra.mxu0 0.0
    %1487 = vmatprep.subr.mxu0 0.0
    %1488 = vmatpush1.msra.mxu0 0.0
    %1489 = vmatprep.subr.mxu0 0.0
    %1490 = vmatpush1.msra.mxu0 0.0
    %1491 = vmatprep.subr.mxu0 0.0
    %1492 = vmatpush1.msra.mxu0 0.0
    %1493 = vmatprep.subr.mxu0 0.0
    %1494 = vmatpush1.msra.mxu0 0.0
    %1495 = vmatprep.subr.mxu0 0.0
    %1496 = vmatpush1.msra.mxu0 0.0
    %1497 = vmatprep.subr.mxu0 0.0
    %1498 = vmatpush1.msra.mxu0 0.0
    %1499 = vmatprep.subr.mxu0 0.0
    %1500 = vmatpush1.msra.mxu0 0.0
    %1501 = vmatprep.mubr.f32.mxu0 0.0
    %1502 = vmatmul.mubr.f32.gmra.mrb[0].mxu0 %v1359
    %v1503 = vpop.f32.mrb[0].mxu0
    %v1504 = vadd.f32 %v523, %v1503
    %v1505 = vpop.f32.mrb[0].mxu0
    %1506 = vdwg.mxu0
    %v1507 = vadd.f32 %v1363, %v1433
    %v1508 = vadd.f32 %v1364, %v1435
    %v1509 = vxor.u32 %v1507, 2147483648
    %v1510 = vxor.u32 %v1508, 2147483648
    %v1511 = vmul.f32 %v1509, 1.442695
    %v1512 = vpow.pop %v1511
    %v1513 = vmul.f32 %v1510, 1.442695
    %v1514 = vpow.pop %v1513
    %v1515 = vadd.f32 %v1512, 1.0
    %v1516 = vadd.f32 %v1514, 1.0
    %v1517 = vrcp.pop %v1515
    %v1518 = vmul.f32 1.0, %v1517
    %v1519 = vrcp.pop %v1516
    %v1520 = vmul.f32 1.0, %v1519
    %v1521 = vmul.f32 %v1518, %v1504
    %v1522 = vadd.f32 %v1365, %v1521
    %v1523 = vtanh.pop %v1522
    %v1524 = vsub.f32 1.0, %v1520
    %v1525 = vmul.f32 %v1524, %v1523
    %v1526 = vmul.f32 %v1520, %v1359
    %v1527 = vadd.f32 %v1525, %v1526
    %s1528 = scalar_lea.vmem [#allocation17], 40
    %1529 = vst [vmem:[%s1528] sm:$0xff] %v1527
    %s1530 = scalar_lea.vmem [#allocation2], 144
    %v1531 = vld [vmem:[%s1530] sm:$0xff]
    %v1532 = vld [vmem:[%s1530 + $0x8] sm:$0xff]
    %v1533 = vld [vmem:[%s1530 + $0x10] sm:$0xff]
    %1534 = vmatprep.subr.mxu0 %v161
    %1535 = vmatpush1.msra.mxu0 %v160
    %1536 = vmatprep.subr.mxu0 %v164
    %1537 = vmatpush1.msra.mxu0 %v163
    %1538 = vmatprep.subr.mxu0 %v167
    %1539 = vmatpush1.msra.mxu0 %v166
    %1540 = vmatprep.subr.mxu0 %v170
    %1541 = vmatpush1.msra.mxu0 %v169
    %1542 = vmatprep.subr.mxu0 %v173
    %1543 = vmatpush1.msra.mxu0 %v172
    %1544 = vmatprep.subr.mxu0 %v176
    %1545 = vmatpush1.msra.mxu0 %v175
    %1546 = vmatprep.subr.mxu0 %v179
    %1547 = vmatpush1.msra.mxu0 %v178
    %1548 = vmatprep.subr.mxu0 %v182
    %1549 = vmatpush1.msra.mxu0 %v181
    %1550 = vmatprep.subr.mxu0 %v185
    %1551 = vmatpush1.msra.mxu0 %v184
    %1552 = vmatprep.subr.mxu0 %v188
    %1553 = vmatpush1.msra.mxu0 %v187
    %1554 = vmatprep.subr.mxu0 %v191
    %1555 = vmatpush1.msra.mxu0 %v190
    %1556 = vmatprep.subr.mxu0 %v194
    %1557 = vmatpush1.msra.mxu0 %v193
    %1558 = vmatprep.subr.mxu0 %v197
    %1559 = vmatpush1.msra.mxu0 %v196
    %1560 = vmatprep.subr.mxu0 %v200
    %1561 = vmatpush1.msra.mxu0 %v199
    %1562 = vmatprep.subr.mxu0 %v203
    %1563 = vmatpush1.msra.mxu0 %v202
    %1564 = vmatprep.subr.mxu0 %v206
    %1565 = vmatpush1.msra.mxu0 %v205
    %1566 = vmatprep.subr.mxu0 0.0
    %1567 = vmatpush1.msra.mxu0 0.0
    %1568 = vmatprep.subr.mxu0 0.0
    %1569 = vmatpush1.msra.mxu0 0.0
    %1570 = vmatprep.subr.mxu0 0.0
    %1571 = vmatpush1.msra.mxu0 0.0
    %1572 = vmatprep.subr.mxu0 0.0
    %1573 = vmatpush1.msra.mxu0 0.0
    %1574 = vmatprep.subr.mxu0 0.0
    %1575 = vmatpush1.msra.mxu0 0.0
    %1576 = vmatprep.subr.mxu0 0.0
    %1577 = vmatpush1.msra.mxu0 0.0
    %1578 = vmatprep.subr.mxu0 0.0
    %1579 = vmatpush1.msra.mxu0 0.0
    %1580 = vmatprep.subr.mxu0 0.0
    %1581 = vmatpush1.msra.mxu0 0.0
    %1582 = vmatprep.subr.mxu0 0.0
    %1583 = vmatpush1.msra.mxu0 0.0
    %1584 = vmatprep.subr.mxu0 0.0
    %1585 = vmatpush1.msra.mxu0 0.0
    %1586 = vmatprep.subr.mxu0 0.0
    %1587 = vmatpush1.msra.mxu0 0.0
    %1588 = vmatprep.subr.mxu0 0.0
    %1589 = vmatpush1.msra.mxu0 0.0
    %1590 = vmatprep.subr.mxu0 0.0
    %1591 = vmatpush1.msra.mxu0 0.0
    %1592 = vmatprep.subr.mxu0 0.0
    %1593 = vmatpush1.msra.mxu0 0.0
    %1594 = vmatprep.subr.mxu0 0.0
    %1595 = vmatpush1.msra.mxu0 0.0
    %1596 = vmatprep.subr.mxu0 0.0
    %1597 = vmatpush1.msra.mxu0 0.0
    %1598 = vmatprep.mubr.f32.mxu0 0.0
    %1599 = vmatmul.mubr.f32.gmra.mrb[0].mxu0 %v1527
    %v1600 = vpop.f32.mrb[0].mxu0
    %v1601 = vadd.f32 %v515, %v1600
    %v1602 = vpop.f32.mrb[0].mxu0
    %v1603 = vadd.f32 %v519, %v1602
    %1604 = vdwg.mxu0
    %1605 = vmatprep.subr.mxu0 0.0
    %1606 = vmatpush1.msra.mxu0 %v162
    %1607 = vmatprep.subr.mxu0 0.0
    %1608 = vmatpush1.msra.mxu0 %v165
    %1609 = vmatprep.subr.mxu0 0.0
    %1610 = vmatpush1.msra.mxu0 %v168
    %1611 = vmatprep.subr.mxu0 0.0
    %1612 = vmatpush1.msra.mxu0 %v171
    %1613 = vmatprep.subr.mxu0 0.0
    %1614 = vmatpush1.msra.mxu0 %v174
    %1615 = vmatprep.subr.mxu0 0.0
    %1616 = vmatpush1.msra.mxu0 %v177
    %1617 = vmatprep.subr.mxu0 0.0
    %1618 = vmatpush1.msra.mxu0 %v180
    %1619 = vmatprep.subr.mxu0 0.0
    %1620 = vmatpush1.msra.mxu0 %v183
    %1621 = vmatprep.subr.mxu0 0.0
    %1622 = vmatpush1.msra.mxu0 %v186
    %1623 = vmatprep.subr.mxu0 0.0
    %1624 = vmatpush1.msra.mxu0 %v189
    %1625 = vmatprep.subr.mxu0 0.0
    %1626 = vmatpush1.msra.mxu0 %v192
    %1627 = vmatprep.subr.mxu0 0.0
    %1628 = vmatpush1.msra.mxu0 %v195
    %1629 = vmatprep.subr.mxu0 0.0
    %1630 = vmatpush1.msra.mxu0 %v198
    %1631 = vmatprep.subr.mxu0 0.0
    %1632 = vmatpush1.msra.mxu0 %v201
    %1633 = vmatprep.subr.mxu0 0.0
    %1634 = vmatpush1.msra.mxu0 %v204
    %1635 = vmatprep.subr.mxu0 0.0
    %1636 = vmatpush1.msra.mxu0 %v207
    %1637 = vmatprep.subr.mxu0 0.0
    %1638 = vmatpush1.msra.mxu0 0.0
    %1639 = vmatprep.subr.mxu0 0.0
    %1640 = vmatpush1.msra.mxu0 0.0
    %1641 = vmatprep.subr.mxu0 0.0
    %1642 = vmatpush1.msra.mxu0 0.0
    %1643 = vmatprep.subr.mxu0 0.0
    %1644 = vmatpush1.msra.mxu0 0.0
    %1645 = vmatprep.subr.mxu0 0.0
    %1646 = vmatpush1.msra.mxu0 0.0
    %1647 = vmatprep.subr.mxu0 0.0
    %1648 = vmatpush1.msra.mxu0 0.0
    %1649 = vmatprep.subr.mxu0 0.0
    %1650 = vmatpush1.msra.mxu0 0.0
    %1651 = vmatprep.subr.mxu0 0.0
    %1652 = vmatpush1.msra.mxu0 0.0
    %1653 = vmatprep.subr.mxu0 0.0
    %1654 = vmatpush1.msra.mxu0 0.0
    %1655 = vmatprep.subr.mxu0 0.0
    %1656 = vmatpush1.msra.mxu0 0.0
    %1657 = vmatprep.subr.mxu0 0.0
    %1658 = vmatpush1.msra.mxu0 0.0
    %1659 = vmatprep.subr.mxu0 0.0
    %1660 = vmatpush1.msra.mxu0 0.0
    %1661 = vmatprep.subr.mxu0 0.0
    %1662 = vmatpush1.msra.mxu0 0.0
    %1663 = vmatprep.subr.mxu0 0.0
    %1664 = vmatpush1.msra.mxu0 0.0
    %1665 = vmatprep.subr.mxu0 0.0
    %1666 = vmatpush1.msra.mxu0 0.0
    %1667 = vmatprep.subr.mxu0 0.0
    %1668 = vmatpush1.msra.mxu0 0.0
    %1669 = vmatprep.mubr.f32.mxu0 0.0
    %1670 = vmatmul.mubr.f32.gmra.mrb[0].mxu0 %v1527
    %v1671 = vpop.f32.mrb[0].mxu0
    %v1672 = vadd.f32 %v523, %v1671
    %v1673 = vpop.f32.mrb[0].mxu0
    %1674 = vdwg.mxu0
    %v1675 = vadd.f32 %v1531, %v1601
    %v1676 = vadd.f32 %v1532, %v1603
    %v1677 = vxor.u32 %v1675, 2147483648
    %v1678 = vxor.u32 %v1676, 2147483648
    %v1679 = vmul.f32 %v1677, 1.442695
    %v1680 = vpow.pop %v1679
    %v1681 = vmul.f32 %v1678, 1.442695
    %v1682 = vpow.pop %v1681
    %v1683 = vadd.f32 %v1680, 1.0
    %v1684 = vadd.f32 %v1682, 1.0
    %v1685 = vrcp.pop %v1683
    %v1686 = vmul.f32 1.0, %v1685
    %v1687 = vrcp.pop %v1684
    %v1688 = vmul.f32 1.0, %v1687
    %v1689 = vmul.f32 %v1686, %v1672
    %v1690 = vadd.f32 %v1533, %v1689
    %v1691 = vtanh.pop %v1690
    %v1692 = vsub.f32 1.0, %v1688
    %v1693 = vmul.f32 %v1692, %v1691
    %v1694 = vmul.f32 %v1688, %v1527
    %v1695 = vadd.f32 %v1693, %v1694
    %s1696 = scalar_lea.vmem [#allocation17], 48
    %1697 = vst [vmem:[%s1696] sm:$0xff] %v1695
    %s1698 = scalar_lea.vmem [#allocation2], 168
    %v1699 = vld [vmem:[%s1698] sm:$0xff]
    %v1700 = vld [vmem:[%s1698 + $0x8] sm:$0xff]
    %v1701 = vld [vmem:[%s1698 + $0x10] sm:$0xff]
    %1702 = vmatprep.subr.mxu0 %v161
    %1703 = vmatpush1.msra.mxu0 %v160
    %1704 = vmatprep.subr.mxu0 %v164
    %1705 = vmatpush1.msra.mxu0 %v163
    %1706 = vmatprep.subr.mxu0 %v167
    %1707 = vmatpush1.msra.mxu0 %v166
    %1708 = vmatprep.subr.mxu0 %v170
    %1709 = vmatpush1.msra.mxu0 %v169
    %1710 = vmatprep.subr.mxu0 %v173
    %1711 = vmatpush1.msra.mxu0 %v172
    %1712 = vmatprep.subr.mxu0 %v176
    %1713 = vmatpush1.msra.mxu0 %v175
    %1714 = vmatprep.subr.mxu0 %v179
    %1715 = vmatpush1.msra.mxu0 %v178
    %1716 = vmatprep.subr.mxu0 %v182
    %1717 = vmatpush1.msra.mxu0 %v181
    %1718 = vmatprep.subr.mxu0 %v185
    %1719 = vmatpush1.msra.mxu0 %v184
    %1720 = vmatprep.subr.mxu0 %v188
    %1721 = vmatpush1.msra.mxu0 %v187
    %1722 = vmatprep.subr.mxu0 %v191
    %1723 = vmatpush1.msra.mxu0 %v190
    %1724 = vmatprep.subr.mxu0 %v194
    %1725 = vmatpush1.msra.mxu0 %v193
    %1726 = vmatprep.subr.mxu0 %v197
    %1727 = vmatpush1.msra.mxu0 %v196
    %1728 = vmatprep.subr.mxu0 %v200
    %1729 = vmatpush1.msra.mxu0 %v199
    %1730 = vmatprep.subr.mxu0 %v203
    %1731 = vmatpush1.msra.mxu0 %v202
    %1732 = vmatprep.subr.mxu0 %v206
    %1733 = vmatpush1.msra.mxu0 %v205
    %1734 = vmatprep.subr.mxu0 0.0
    %1735 = vmatpush1.msra.mxu0 0.0
    %1736 = vmatprep.subr.mxu0 0.0
    %1737 = vmatpush1.msra.mxu0 0.0
    %1738 = vmatprep.subr.mxu0 0.0
    %1739 = vmatpush1.msra.mxu0 0.0
    %1740 = vmatprep.subr.mxu0 0.0
    %1741 = vmatpush1.msra.mxu0 0.0
    %1742 = vmatprep.subr.mxu0 0.0
    %1743 = vmatpush1.msra.mxu0 0.0
    %1744 = vmatprep.subr.mxu0 0.0
    %1745 = vmatpush1.msra.mxu0 0.0
    %1746 = vmatprep.subr.mxu0 0.0
    %1747 = vmatpush1.msra.mxu0 0.0
    %1748 = vmatprep.subr.mxu0 0.0
    %1749 = vmatpush1.msra.mxu0 0.0
    %1750 = vmatprep.subr.mxu0 0.0
    %1751 = vmatpush1.msra.mxu0 0.0
    %1752 = vmatprep.subr.mxu0 0.0
    %1753 = vmatpush1.msra.mxu0 0.0
    %1754 = vmatprep.subr.mxu0 0.0
    %1755 = vmatpush1.msra.mxu0 0.0
    %1756 = vmatprep.subr.mxu0 0.0
    %1757 = vmatpush1.msra.mxu0 0.0
    %1758 = vmatprep.subr.mxu0 0.0
    %1759 = vmatpush1.msra.mxu0 0.0
    %1760 = vmatprep.subr.mxu0 0.0
    %1761 = vmatpush1.msra.mxu0 0.0
    %1762 = vmatprep.subr.mxu0 0.0
    %1763 = vmatpush1.msra.mxu0 0.0
    %1764 = vmatprep.subr.mxu0 0.0
    %1765 = vmatpush1.msra.mxu0 0.0
    %1766 = vmatprep.mubr.f32.mxu0 0.0
    %1767 = vmatmul.mubr.f32.gmra.mrb[0].mxu0 %v1695
    %v1768 = vpop.f32.mrb[0].mxu0
    %v1769 = vadd.f32 %v515, %v1768
    %v1770 = vpop.f32.mrb[0].mxu0
    %v1771 = vadd.f32 %v519, %v1770
    %1772 = vdwg.mxu0
    %1773 = vmatprep.subr.mxu0 0.0
    %1774 = vmatpush1.msra.mxu0 %v162
    %1775 = vmatprep.subr.mxu0 0.0
    %1776 = vmatpush1.msra.mxu0 %v165
    %1777 = vmatprep.subr.mxu0 0.0
    %1778 = vmatpush1.msra.mxu0 %v168
    %1779 = vmatprep.subr.mxu0 0.0
    %1780 = vmatpush1.msra.mxu0 %v171
    %1781 = vmatprep.subr.mxu0 0.0
    %1782 = vmatpush1.msra.mxu0 %v174
    %1783 = vmatprep.subr.mxu0 0.0
    %1784 = vmatpush1.msra.mxu0 %v177
    %1785 = vmatprep.subr.mxu0 0.0
    %1786 = vmatpush1.msra.mxu0 %v180
    %1787 = vmatprep.subr.mxu0 0.0
    %1788 = vmatpush1.msra.mxu0 %v183
    %1789 = vmatprep.subr.mxu0 0.0
    %1790 = vmatpush1.msra.mxu0 %v186
    %1791 = vmatprep.subr.mxu0 0.0
    %1792 = vmatpush1.msra.mxu0 %v189
    %1793 = vmatprep.subr.mxu0 0.0
    %1794 = vmatpush1.msra.mxu0 %v192
    %1795 = vmatprep.subr.mxu0 0.0
    %1796 = vmatpush1.msra.mxu0 %v195
    %1797 = vmatprep.subr.mxu0 0.0
    %1798 = vmatpush1.msra.mxu0 %v198
    %1799 = vmatprep.subr.mxu0 0.0
    %1800 = vmatpush1.msra.mxu0 %v201
    %1801 = vmatprep.subr.mxu0 0.0
    %1802 = vmatpush1.msra.mxu0 %v204
    %1803 = vmatprep.subr.mxu0 0.0
    %1804 = vmatpush1.msra.mxu0 %v207
    %1805 = vmatprep.subr.mxu0 0.0
    %1806 = vmatpush1.msra.mxu0 0.0
    %1807 = vmatprep.subr.mxu0 0.0
    %1808 = vmatpush1.msra.mxu0 0.0
    %1809 = vmatprep.subr.mxu0 0.0
    %1810 = vmatpush1.msra.mxu0 0.0
    %1811 = vmatprep.subr.mxu0 0.0
    %1812 = vmatpush1.msra.mxu0 0.0
    %1813 = vmatprep.subr.mxu0 0.0
    %1814 = vmatpush1.msra.mxu0 0.0
    %1815 = vmatprep.subr.mxu0 0.0
    %1816 = vmatpush1.msra.mxu0 0.0
    %1817 = vmatprep.subr.mxu0 0.0
    %1818 = vmatpush1.msra.mxu0 0.0
    %1819 = vmatprep.subr.mxu0 0.0
    %1820 = vmatpush1.msra.mxu0 0.0
    %1821 = vmatprep.subr.mxu0 0.0
    %1822 = vmatpush1.msra.mxu0 0.0
    %1823 = vmatprep.subr.mxu0 0.0
    %1824 = vmatpush1.msra.mxu0 0.0
    %1825 = vmatprep.subr.mxu0 0.0
    %1826 = vmatpush1.msra.mxu0 0.0
    %1827 = vmatprep.subr.mxu0 0.0
    %1828 = vmatpush1.msra.mxu0 0.0
    %1829 = vmatprep.subr.mxu0 0.0
    %1830 = vmatpush1.msra.mxu0 0.0
    %1831 = vmatprep.subr.mxu0 0.0
    %1832 = vmatpush1.msra.mxu0 0.0
    %1833 = vmatprep.subr.mxu0 0.0
    %1834 = vmatpush1.msra.mxu0 0.0
    %1835 = vmatprep.subr.mxu0 0.0
    %1836 = vmatpush1.msra.mxu0 0.0
    %1837 = vmatprep.mubr.f32.mxu0 0.0
    %1838 = vmatmul.mubr.f32.gmra.mrb[0].mxu0 %v1695
    %v1839 = vpop.f32.mrb[0].mxu0
    %v1840 = vadd.f32 %v523, %v1839
    %v1841 = vpop.f32.mrb[0].mxu0
    %1842 = vdwg.mxu0
    %v1843 = vadd.f32 %v1699, %v1769
    %v1844 = vadd.f32 %v1700, %v1771
    %v1845 = vxor.u32 %v1843, 2147483648
    %v1846 = vxor.u32 %v1844, 2147483648
    %v1847 = vmul.f32 %v1845, 1.442695
    %v1848 = vpow.pop %v1847
    %v1849 = vmul.f32 %v1846, 1.442695
    %v1850 = vpow.pop %v1849
    %v1851 = vadd.f32 %v1848, 1.0
    %v1852 = vadd.f32 %v1850, 1.0
    %v1853 = vrcp.pop %v1851
    %v1854 = vmul.f32 1.0, %v1853
    %v1855 = vrcp.pop %v1852
    %v1856 = vmul.f32 1.0, %v1855
    %v1857 = vmul.f32 %v1854, %v1840
    %v1858 = vadd.f32 %v1701, %v1857
    %v1859 = vtanh.pop %v1858
    %v1860 = vsub.f32 1.0, %v1856
    %v1861 = vmul.f32 %v1860, %v1859
    %v1862 = vmul.f32 %v1856, %v1695
    %v1863 = vadd.f32 %v1861, %v1862
    %s1864 = scalar_lea.vmem [#allocation17], 56
    %1865 = vst [vmem:[%s1864] sm:$0xff] %v1863
    %1866 = vst [vmem:[#allocation18] sm:$0xff] %v1863
    %v1867 = vld [vmem:[#allocation12] sm:$0xff]
    %v1868 = vld [vmem:[#allocation12 + $0x8] sm:$0xff]
    %v1869 = vld [vmem:[#allocation12 + $0x10] sm:$0xff]
    %v1870 = vld [vmem:[#allocation12 + $0x18] sm:$0xff]
    %v1871 = vld [vmem:[#allocation12 + $0x20] sm:$0xff]
    %v1872 = vld [vmem:[#allocation12 + $0x28] sm:$0xff]
    %v1873 = vld [vmem:[#allocation12 + $0x30] sm:$0xff]
    %v1874 = vld [vmem:[#allocation12 + $0x38] sm:$0xff]
    %v1875 = vld [vmem:[#allocation12 + $0x40] sm:$0xff]
    %v1876 = vld [vmem:[#allocation12 + $0x48] sm:$0xff]
    %v1877 = vld [vmem:[#allocation12 + $0x50] sm:$0xff]
    %v1878 = vld [vmem:[#allocation12 + $0x58] sm:$0xff]
    %v1879 = vld [vmem:[#allocation12 + $0x60] sm:$0xff]
    %v1880 = vld [vmem:[#allocation12 + $0x68] sm:$0xff]
    %v1881 = vld [vmem:[#allocation12 + $0x70] sm:$0xff]
    %v1882 = vld [vmem:[#allocation12 + $0x78] sm:$0xff]
    %v1883 = vld [vmem:[#allocation12 + $0x80] sm:$0xff]
    %v1884 = vld [vmem:[#allocation12 + $0x88] sm:$0xff]
    %v1885 = vld [vmem:[#allocation12 + $0x90] sm:$0xff]
    %v1886 = vld [vmem:[#allocation12 + $0x98] sm:$0xff]
    %v1887 = vld [vmem:[#allocation12 + $0xa0] sm:$0xff]
    %v1888 = vld [vmem:[#allocation12 + $0xa8] sm:$0xff]
    %v1889 = vld [vmem:[#allocation12 + $0xb0] sm:$0xff]
    %v1890 = vld [vmem:[#allocation12 + $0xb8] sm:$0xff]
    %v1891 = vld [vmem:[#allocation12 + $0xc0] sm:$0xff]
    %v1892 = vld [vmem:[#allocation12 + $0xc8] sm:$0xff]
    %v1893 = vld [vmem:[#allocation12 + $0xd0] sm:$0xff]
    %v1894 = vld [vmem:[#allocation12 + $0xd8] sm:$0xff]
    %v1895 = vld [vmem:[#allocation12 + $0xe0] sm:$0xff]
    %v1896 = vld [vmem:[#allocation12 + $0xe8] sm:$0xff]
    %v1897 = vld [vmem:[#allocation12 + $0xf0] sm:$0xff]
    %v1898 = vld [vmem:[#allocation12 + $0xf8] sm:$0xff]
    %v1899 = vld [vmem:[#allocation12 + $0x100] sm:$0xff]
    %v1900 = vld [vmem:[#allocation12 + $0x108] sm:$0xff]
    %v1901 = vld [vmem:[#allocation12 + $0x110] sm:$0xff]
    %v1902 = vld [vmem:[#allocation12 + $0x118] sm:$0xff]
    %v1903 = vld [vmem:[#allocation12 + $0x120] sm:$0xff]
    %v1904 = vld [vmem:[#allocation12 + $0x128] sm:$0xff]
    %v1905 = vld [vmem:[#allocation12 + $0x130] sm:$0xff]
    %v1906 = vld [vmem:[#allocation12 + $0x138] sm:$0xff]
    %v1907 = vld [vmem:[#allocation12 + $0x140] sm:$0xff]
    %v1908 = vld [vmem:[#allocation12 + $0x148] sm:$0xff]
    %v1909 = vld [vmem:[#allocation12 + $0x150] sm:$0xff]
    %v1910 = vld [vmem:[#allocation12 + $0x158] sm:$0xff]
    %v1911 = vld [vmem:[#allocation12 + $0x160] sm:$0xff]
    %v1912 = vld [vmem:[#allocation12 + $0x168] sm:$0xff]
    %v1913 = vld [vmem:[#allocation12 + $0x170] sm:$0xff]
    %v1914 = vld [vmem:[#allocation12 + $0x178] sm:$0xff]
    %v1915 = vld [vmem:[%s9] sm:$0x7]
    %v1916 = vld [vmem:[#allocation17] sm:$0xff]
    %v1917 = vld [vmem:[#allocation17 + $0x8] sm:$0xff]
    %v1918 = vld [vmem:[#allocation17 + $0x10] sm:$0xff]
    %v1919 = vld [vmem:[#allocation17 + $0x18] sm:$0xff]
    %v1920 = vld [vmem:[#allocation17 + $0x20] sm:$0xff]
    %v1921 = vld [vmem:[#allocation17 + $0x28] sm:$0xff]
    %v1922 = vld [vmem:[#allocation17 + $0x30] sm:$0xff]
    %v1923 = vld [vmem:[#allocation17 + $0x38] sm:$0xff]
    %v1924 = vld [vmem:[#allocation11] sm:$0xff]
    %v1925 = vld [vmem:[#allocation11 + $0x8] sm:$0xff]
    %v1926 = vld [vmem:[#allocation11 + $0x10] sm:$0xff]
    %v1927 = vld [vmem:[#allocation11 + $0x18] sm:$0xff]
    %v1928 = vld [vmem:[#allocation11 + $0x20] sm:$0xff]
    %v1929 = vld [vmem:[#allocation11 + $0x28] sm:$0xff]
    %v1930 = vld [vmem:[#allocation11 + $0x30] sm:$0xff]
    %v1931 = vld [vmem:[#allocation11 + $0x38] sm:$0xff]
    %v1932 = vld [vmem:[#allocation11 + $0x40] sm:$0xff]
    %v1933 = vld [vmem:[#allocation11 + $0x48] sm:$0xff]
    %v1934 = vld [vmem:[#allocation11 + $0x50] sm:$0xff]
    %v1935 = vld [vmem:[#allocation11 + $0x58] sm:$0xff]
    %v1936 = vld [vmem:[#allocation11 + $0x60] sm:$0xff]
    %v1937 = vld [vmem:[#allocation11 + $0x68] sm:$0xff]
    %v1938 = vld [vmem:[#allocation11 + $0x70] sm:$0xff]
    %v1939 = vld [vmem:[#allocation11 + $0x78] sm:$0xff]
    %v1940 = vld [vmem:[#allocation11 + $0x80] sm:$0xff]
    %v1941 = vld [vmem:[#allocation11 + $0x88] sm:$0xff]
    %v1942 = vld [vmem:[#allocation11 + $0x90] sm:$0xff]
    %v1943 = vld [vmem:[#allocation11 + $0x98] sm:$0xff]
    %v1944 = vld [vmem:[#allocation11 + $0xa0] sm:$0xff]
    %v1945 = vld [vmem:[#allocation11 + $0xa8] sm:$0xff]
    %v1946 = vld [vmem:[#allocation11 + $0xb0] sm:$0xff]
    %v1947 = vld [vmem:[#allocation11 + $0xb8] sm:$0xff]
    %v1948 = vld [vmem:[#allocation11 + $0xc0] sm:$0xff]
    %v1949 = vld [vmem:[#allocation11 + $0xc8] sm:$0xff]
    %v1950 = vld [vmem:[#allocation11 + $0xd0] sm:$0xff]
    %v1951 = vld [vmem:[#allocation11 + $0xd8] sm:$0xff]
    %v1952 = vld [vmem:[#allocation11 + $0xe0] sm:$0xff]
    %v1953 = vld [vmem:[#allocation11 + $0xe8] sm:$0xff]
    %v1954 = vld [vmem:[#allocation11 + $0xf0] sm:$0xff]
    %v1955 = vld [vmem:[#allocation11 + $0xf8] sm:$0xff]
    %v1956 = vld [vmem:[#allocation11 + $0x100] sm:$0xff]
    %v1957 = vld [vmem:[#allocation11 + $0x108] sm:$0xff]
    %v1958 = vld [vmem:[#allocation11 + $0x110] sm:$0xff]
    %v1959 = vld [vmem:[#allocation11 + $0x118] sm:$0xff]
    %v1960 = vld [vmem:[#allocation11 + $0x120] sm:$0xff]
    %v1961 = vld [vmem:[#allocation11 + $0x128] sm:$0xff]
    %v1962 = vld [vmem:[#allocation11 + $0x130] sm:$0xff]
    %v1963 = vld [vmem:[#allocation11 + $0x138] sm:$0xff]
    %v1964 = vld [vmem:[#allocation11 + $0x140] sm:$0xff]
    %v1965 = vld [vmem:[#allocation11 + $0x148] sm:$0xff]
    %v1966 = vld [vmem:[#allocation11 + $0x150] sm:$0xff]
    %v1967 = vld [vmem:[#allocation11 + $0x158] sm:$0xff]
    %v1968 = vld [vmem:[#allocation11 + $0x160] sm:$0xff]
    %v1969 = vld [vmem:[#allocation11 + $0x168] sm:$0xff]
    %v1970 = vld [vmem:[#allocation11 + $0x170] sm:$0xff]
    %v1971 = vld [vmem:[#allocation11 + $0x178] sm:$0xff]
    %v1972 = vld [vmem:[%s8] sm:$0x7]
    %v1974 = vlaneseq
    %v1975 = vshrl.u32 %v1974, 7
    %v1976 = vsub.s32 0, %v1975
    %v1977 = vrot.slane %v1972, %v1976
    %v1978 = vlaneseq
    %v1979 = vshrl.u32 %v1978, 7
    %v1980 = vsub.s32 1, %v1979
    %v1981 = vrot.slane %v1972, %v1980
    %v1982 = vlaneseq
    %v1983 = vshrl.u32 %v1982, 7
    %v1984 = vsub.s32 2, %v1983
    %v1985 = vrot.slane %v1972, %v1984
    %1989 = vmatprep.subr.mxu0 %v1925
    %1990 = vmatpush1.msra.mxu0 %v1924
    %1991 = vmatprep.subr.mxu0 %v1928
    %1992 = vmatpush1.msra.mxu0 %v1927
    %1993 = vmatprep.subr.mxu0 %v1931
    %1994 = vmatpush1.msra.mxu0 %v1930
    %1995 = vmatprep.subr.mxu0 %v1934
    %1996 = vmatpush1.msra.mxu0 %v1933
    %1997 = vmatprep.subr.mxu0 %v1937
    %1998 = vmatpush1.msra.mxu0 %v1936
    %1999 = vmatprep.subr.mxu0 %v1940
    %2000 = vmatpush1.msra.mxu0 %v1939
    %2001 = vmatprep.subr.mxu0 %v1943
    %2002 = vmatpush1.msra.mxu0 %v1942
    %2003 = vmatprep.subr.mxu0 %v1946
    %2004 = vmatpush1.msra.mxu0 %v1945
    %2005 = vmatprep.subr.mxu0 %v1949
    %2006 = vmatpush1.msra.mxu0 %v1948
    %2007 = vmatprep.subr.mxu0 %v1952
    %2008 = vmatpush1.msra.mxu0 %v1951
    %2009 = vmatprep.subr.mxu0 %v1955
    %2010 = vmatpush1.msra.mxu0 %v1954
    %2011 = vmatprep.subr.mxu0 %v1958
    %2012 = vmatpush1.msra.mxu0 %v1957
    %2013 = vmatprep.subr.mxu0 %v1961
    %2014 = vmatpush1.msra.mxu0 %v1960
    %2015 = vmatprep.subr.mxu0 %v1964
    %2016 = vmatpush1.msra.mxu0 %v1963
    %2017 = vmatprep.subr.mxu0 %v1967
    %2018 = vmatpush1.msra.mxu0 %v1966
    %2019 = vmatprep.subr.mxu0 %v1970
    %2020 = vmatpush1.msra.mxu0 %v1969
    %2021 = vmatprep.subr.mxu0 0.0
    %2022 = vmatpush1.msra.mxu0 0.0
    %2023 = vmatprep.subr.mxu0 0.0
    %2024 = vmatpush1.msra.mxu0 0.0
    %2025 = vmatprep.subr.mxu0 0.0
    %2026 = vmatpush1.msra.mxu0 0.0
    %2027 = vmatprep.subr.mxu0 0.0
    %2028 = vmatpush1.msra.mxu0 0.0
    %2029 = vmatprep.subr.mxu0 0.0
    %2030 = vmatpush1.msra.mxu0 0.0
    %2031 = vmatprep.subr.mxu0 0.0
    %2032 = vmatpush1.msra.mxu0 0.0
    %2033 = vmatprep.subr.mxu0 0.0
    %2034 = vmatpush1.msra.mxu0 0.0
    %2035 = vmatprep.subr.mxu0 0.0
    %2036 = vmatpush1.msra.mxu0 0.0
    %2037 = vmatprep.subr.mxu0 0.0
    %2038 = vmatpush1.msra.mxu0 0.0
    %2039 = vmatprep.subr.mxu0 0.0
    %2040 = vmatpush1.msra.mxu0 0.0
    %2041 = vmatprep.subr.mxu0 0.0
    %2042 = vmatpush1.msra.mxu0 0.0
    %2043 = vmatprep.subr.mxu0 0.0
    %2044 = vmatpush1.msra.mxu0 0.0
    %2045 = vmatprep.subr.mxu0 0.0
    %2046 = vmatpush1.msra.mxu0 0.0
    %2047 = vmatprep.subr.mxu0 0.0
    %2048 = vmatpush1.msra.mxu0 0.0
    %2049 = vmatprep.subr.mxu0 0.0
    %2050 = vmatpush1.msra.mxu0 0.0
    %2051 = vmatprep.subr.mxu0 0.0
    %2052 = vmatpush1.msra.mxu0 0.0
    %2053 = vmatprep.mubr.f32.mxu0 0.0
    %2054 = vmatmul.mubr.f32.gmra.mrb[0].mxu0 %v1916
    %v2055 = vpop.f32.mrb[0].mxu0
    %v2056 = vadd.f32 %v1977, %v2055
    %v2057 = vpop.f32.mrb[0].mxu0
    %v2058 = vadd.f32 %v1981, %v2057
    %2059 = vmatprep.mubr.f32.mxu0 0.0
    %2060 = vmatmul.mubr.f32.gmra.mrb[0].mxu0 %v1917
    %v2061 = vpop.f32.mrb[0].mxu0
    %v2062 = vadd.f32 %v1977, %v2061
    %v2063 = vpop.f32.mrb[0].mxu0
    %v2064 = vadd.f32 %v1981, %v2063
    %2065 = vmatprep.mubr.f32.mxu0 0.0
    %2066 = vmatmul.mubr.f32.gmra.mrb[0].mxu0 %v1918
    %v2067 = vpop.f32.mrb[0].mxu0
    %v2068 = vadd.f32 %v1977, %v2067
    %v2069 = vpop.f32.mrb[0].mxu0
    %v2070 = vadd.f32 %v1981, %v2069
    %2071 = vmatprep.mubr.f32.mxu0 0.0
    %2072 = vmatmul.mubr.f32.gmra.mrb[0].mxu0 %v1919
    %v2073 = vpop.f32.mrb[0].mxu0
    %v2074 = vadd.f32 %v1977, %v2073
    %v2075 = vpop.f32.mrb[0].mxu0
    %v2076 = vadd.f32 %v1981, %v2075
    %2077 = vmatprep.mubr.f32.mxu0 0.0
    %2078 = vmatmul.mubr.f32.gmra.mrb[0].mxu0 %v1920
    %v2079 = vpop.f32.mrb[0].mxu0
    %v2080 = vadd.f32 %v1977, %v2079
    %v2081 = vpop.f32.mrb[0].mxu0
    %v2082 = vadd.f32 %v1981, %v2081
    %2083 = vmatprep.mubr.f32.mxu0 0.0
    %2084 = vmatmul.mubr.f32.gmra.mrb[0].mxu0 %v1921
    %v2085 = vpop.f32.mrb[0].mxu0
    %v2086 = vadd.f32 %v1977, %v2085
    %v2087 = vpop.f32.mrb[0].mxu0
    %v2088 = vadd.f32 %v1981, %v2087
    %2089 = vmatprep.mubr.f32.mxu0 0.0
    %2090 = vmatmul.mubr.f32.gmra.mrb[0].mxu0 %v1922
    %v2091 = vpop.f32.mrb[0].mxu0
    %v2092 = vadd.f32 %v1977, %v2091
    %v2093 = vpop.f32.mrb[0].mxu0
    %v2094 = vadd.f32 %v1981, %v2093
    %2095 = vmatprep.mubr.f32.mxu0 0.0
    %2096 = vmatmul.mubr.f32.gmra.mrb[0].mxu0 %v1923
    %v2097 = vpop.f32.mrb[0].mxu0
    %v2098 = vadd.f32 %v1977, %v2097
    %v2099 = vpop.f32.mrb[0].mxu0
    %v2100 = vadd.f32 %v1981, %v2099
    %2101 = vdwg.mxu0
    %2102 = vmatprep.subr.mxu0 0.0
    %2103 = vmatpush1.msra.mxu0 %v1926
    %2104 = vmatprep.subr.mxu0 0.0
    %2105 = vmatpush1.msra.mxu0 %v1929
    %2106 = vmatprep.subr.mxu0 0.0
    %2107 = vmatpush1.msra.mxu0 %v1932
    %2108 = vmatprep.subr.mxu0 0.0
    %2109 = vmatpush1.msra.mxu0 %v1935
    %2110 = vmatprep.subr.mxu0 0.0
    %2111 = vmatpush1.msra.mxu0 %v1938
    %2112 = vmatprep.subr.mxu0 0.0
    %2113 = vmatpush1.msra.mxu0 %v1941
    %2114 = vmatprep.subr.mxu0 0.0
    %2115 = vmatpush1.msra.mxu0 %v1944
    %2116 = vmatprep.subr.mxu0 0.0
    %2117 = vmatpush1.msra.mxu0 %v1947
    %2118 = vmatprep.subr.mxu0 0.0
    %2119 = vmatpush1.msra.mxu0 %v1950
    %2120 = vmatprep.subr.mxu0 0.0
    %2121 = vmatpush1.msra.mxu0 %v1953
    %2122 = vmatprep.subr.mxu0 0.0
    %2123 = vmatpush1.msra.mxu0 %v1956
    %2124 = vmatprep.subr.mxu0 0.0
    %2125 = vmatpush1.msra.mxu0 %v1959
    %2126 = vmatprep.subr.mxu0 0.0
    %2127 = vmatpush1.msra.mxu0 %v1962
    %2128 = vmatprep.subr.mxu0 0.0
    %2129 = vmatpush1.msra.mxu0 %v1965
    %2130 = vmatprep.subr.mxu0 0.0
    %2131 = vmatpush1.msra.mxu0 %v1968
    %2132 = vmatprep.subr.mxu0 0.0
    %2133 = vmatpush1.msra.mxu0 %v1971
    %2134 = vmatprep.subr.mxu0 0.0
    %2135 = vmatpush1.msra.mxu0 0.0
    %2136 = vmatprep.subr.mxu0 0.0
    %2137 = vmatpush1.msra.mxu0 0.0
    %2138 = vmatprep.subr.mxu0 0.0
    %2139 = vmatpush1.msra.mxu0 0.0
    %2140 = vmatprep.subr.mxu0 0.0
    %2141 = vmatpush1.msra.mxu0 0.0
    %2142 = vmatprep.subr.mxu0 0.0
    %2143 = vmatpush1.msra.mxu0 0.0
    %2144 = vmatprep.subr.mxu0 0.0
    %2145 = vmatpush1.msra.mxu0 0.0
    %2146 = vmatprep.subr.mxu0 0.0
    %2147 = vmatpush1.msra.mxu0 0.0
    %2148 = vmatprep.subr.mxu0 0.0
    %2149 = vmatpush1.msra.mxu0 0.0
    %2150 = vmatprep.subr.mxu0 0.0
    %2151 = vmatpush1.msra.mxu0 0.0
    %2152 = vmatprep.subr.mxu0 0.0
    %2153 = vmatpush1.msra.mxu0 0.0
    %2154 = vmatprep.subr.mxu0 0.0
    %2155 = vmatpush1.msra.mxu0 0.0
    %2156 = vmatprep.subr.mxu0 0.0
    %2157 = vmatpush1.msra.mxu0 0.0
    %2158 = vmatprep.subr.mxu0 0.0
    %2159 = vmatpush1.msra.mxu0 0.0
    %2160 = vmatprep.subr.mxu0 0.0
    %2161 = vmatpush1.msra.mxu0 0.0
    %2162 = vmatprep.subr.mxu0 0.0
    %2163 = vmatpush1.msra.mxu0 0.0
    %2164 = vmatprep.subr.mxu0 0.0
    %2165 = vmatpush1.msra.mxu0 0.0
    %2166 = vmatprep.mubr.f32.mxu0 0.0
    %2167 = vmatmul.mubr.f32.gmra.mrb[0].mxu0 %v1916
    %v2168 = vpop.f32.mrb[0].mxu0
    %v2169 = vadd.f32 %v1985, %v2168
    %v2170 = vpop.f32.mrb[0].mxu0
    %2171 = vmatprep.mubr.f32.mxu0 0.0
    %2172 = vmatmul.mubr.f32.gmra.mrb[0].mxu0 %v1917
    %v2173 = vpop.f32.mrb[0].mxu0
    %v2174 = vadd.f32 %v1985, %v2173
    %v2175 = vpop.f32.mrb[0].mxu0
    %2176 = vmatprep.mubr.f32.mxu0 0.0
    %2177 = vmatmul.mubr.f32.gmra.mrb[0].mxu0 %v1918
    %v2178 = vpop.f32.mrb[0].mxu0
    %v2179 = vadd.f32 %v1985, %v2178
    %v2180 = vpop.f32.mrb[0].mxu0
    %2181 = vmatprep.mubr.f32.mxu0 0.0
    %2182 = vmatmul.mubr.f32.gmra.mrb[0].mxu0 %v1919
    %v2183 = vpop.f32.mrb[0].mxu0
    %v2184 = vadd.f32 %v1985, %v2183
    %v2185 = vpop.f32.mrb[0].mxu0
    %2186 = vmatprep.mubr.f32.mxu0 0.0
    %2187 = vmatmul.mubr.f32.gmra.mrb[0].mxu0 %v1920
    %v2188 = vpop.f32.mrb[0].mxu0
    %v2189 = vadd.f32 %v1985, %v2188
    %v2190 = vpop.f32.mrb[0].mxu0
    %2191 = vmatprep.mubr.f32.mxu0 0.0
    %2192 = vmatmul.mubr.f32.gmra.mrb[0].mxu0 %v1921
    %v2193 = vpop.f32.mrb[0].mxu0
    %v2194 = vadd.f32 %v1985, %v2193
    %v2195 = vpop.f32.mrb[0].mxu0
    %2196 = vmatprep.mubr.f32.mxu0 0.0
    %2197 = vmatmul.mubr.f32.gmra.mrb[0].mxu0 %v1922
    %v2198 = vpop.f32.mrb[0].mxu0
    %v2199 = vadd.f32 %v1985, %v2198
    %v2200 = vpop.f32.mrb[0].mxu0
    %2201 = vmatprep.mubr.f32.mxu0 0.0
    %2202 = vmatmul.mubr.f32.gmra.mrb[0].mxu0 %v1923
    %v2203 = vpop.f32.mrb[0].mxu0
    %v2204 = vadd.f32 %v1985, %v2203
    %v2205 = vpop.f32.mrb[0].mxu0
    %2206 = vdwg.mxu0
    %2207 = vst [vmem:[#allocation2] sm:$0xff] %v2056
    %2208 = vst [vmem:[#allocation2 + $0x8] sm:$0xff] %v2058
    %2209 = vst [vmem:[#allocation2 + $0x10] sm:$0xff] %v2169
    %2210 = vst [vmem:[#allocation2 + $0x18] sm:$0xff] %v2062
    %2211 = vst [vmem:[#allocation2 + $0x20] sm:$0xff] %v2064
    %2212 = vst [vmem:[#allocation2 + $0x28] sm:$0xff] %v2174
    %2213 = vst [vmem:[#allocation2 + $0x30] sm:$0xff] %v2068
    %2214 = vst [vmem:[#allocation2 + $0x38] sm:$0xff] %v2070
    %2215 = vst [vmem:[#allocation2 + $0x40] sm:$0xff] %v2179
    %2216 = vst [vmem:[#allocation2 + $0x48] sm:$0xff] %v2074
    %2217 = vst [vmem:[#allocation2 + $0x50] sm:$0xff] %v2076
    %2218 = vst [vmem:[#allocation2 + $0x58] sm:$0xff] %v2184
    %2219 = vst [vmem:[#allocation2 + $0x60] sm:$0xff] %v2080
    %2220 = vst [vmem:[#allocation2 + $0x68] sm:$0xff] %v2082
    %2221 = vst [vmem:[#allocation2 + $0x70] sm:$0xff] %v2189
    %2222 = vst [vmem:[#allocation2 + $0x78] sm:$0xff] %v2086
    %2223 = vst [vmem:[#allocation2 + $0x80] sm:$0xff] %v2088
    %2224 = vst [vmem:[#allocation2 + $0x88] sm:$0xff] %v2194
    %2225 = vst [vmem:[#allocation2 + $0x90] sm:$0xff] %v2092
    %2226 = vst [vmem:[#allocation2 + $0x98] sm:$0xff] %v2094
    %2227 = vst [vmem:[#allocation2 + $0xa0] sm:$0xff] %v2199
    %2228 = vst [vmem:[#allocation2 + $0xa8] sm:$0xff] %v2098
    %2229 = vst [vmem:[#allocation2 + $0xb0] sm:$0xff] %v2100
    %2230 = vst [vmem:[#allocation2 + $0xb8] sm:$0xff] %v2204
    %s2231 = scalar_lea.vmem [#allocation6], 8
    %v2232 = vld [vmem:[%s2231] sm:$0xff]
    %v2233 = vld [vmem:[#allocation2] sm:$0xff]
    %v2234 = vld [vmem:[#allocation2 + $0x8] sm:$0xff]
    %v2235 = vld [vmem:[#allocation2 + $0x10] sm:$0xff]
    %v2237 = vlaneseq
    %v2238 = vshrl.u32 %v2237, 7
    %v2239 = vsub.s32 0, %v2238
    %v2240 = vrot.slane %v1915, %v2239
    %v2241 = vlaneseq
    %v2242 = vshrl.u32 %v2241, 7
    %v2243 = vsub.s32 1, %v2242
    %v2244 = vrot.slane %v1915, %v2243
    %v2245 = vlaneseq
    %v2246 = vshrl.u32 %v2245, 7
    %v2247 = vsub.s32 2, %v2246
    %v2248 = vrot.slane %v1915, %v2247
    %2252 = vmatprep.subr.mxu0 %v1868
    %2253 = vmatpush1.msra.mxu0 %v1867
    %2254 = vmatprep.subr.mxu0 %v1871
    %2255 = vmatpush1.msra.mxu0 %v1870
    %2256 = vmatprep.subr.mxu0 %v1874
    %2257 = vmatpush1.msra.mxu0 %v1873
    %2258 = vmatprep.subr.mxu0 %v1877
    %2259 = vmatpush1.msra.mxu0 %v1876
    %2260 = vmatprep.subr.mxu0 %v1880
    %2261 = vmatpush1.msra.mxu0 %v1879
    %2262 = vmatprep.subr.mxu0 %v1883
    %2263 = vmatpush1.msra.mxu0 %v1882
    %2264 = vmatprep.subr.mxu0 %v1886
    %2265 = vmatpush1.msra.mxu0 %v1885
    %2266 = vmatprep.subr.mxu0 %v1889
    %2267 = vmatpush1.msra.mxu0 %v1888
    %2268 = vmatprep.subr.mxu0 %v1892
    %2269 = vmatpush1.msra.mxu0 %v1891
    %2270 = vmatprep.subr.mxu0 %v1895
    %2271 = vmatpush1.msra.mxu0 %v1894
    %2272 = vmatprep.subr.mxu0 %v1898
    %2273 = vmatpush1.msra.mxu0 %v1897
    %2274 = vmatprep.subr.mxu0 %v1901
    %2275 = vmatpush1.msra.mxu0 %v1900
    %2276 = vmatprep.subr.mxu0 %v1904
    %2277 = vmatpush1.msra.mxu0 %v1903
    %2278 = vmatprep.subr.mxu0 %v1907
    %2279 = vmatpush1.msra.mxu0 %v1906
    %2280 = vmatprep.subr.mxu0 %v1910
    %2281 = vmatpush1.msra.mxu0 %v1909
    %2282 = vmatprep.subr.mxu0 %v1913
    %2283 = vmatpush1.msra.mxu0 %v1912
    %2284 = vmatprep.subr.mxu0 0.0
    %2285 = vmatpush1.msra.mxu0 0.0
    %2286 = vmatprep.subr.mxu0 0.0
    %2287 = vmatpush1.msra.mxu0 0.0
    %2288 = vmatprep.subr.mxu0 0.0
    %2289 = vmatpush1.msra.mxu0 0.0
    %2290 = vmatprep.subr.mxu0 0.0
    %2291 = vmatpush1.msra.mxu0 0.0
    %2292 = vmatprep.subr.mxu0 0.0
    %2293 = vmatpush1.msra.mxu0 0.0
    %2294 = vmatprep.subr.mxu0 0.0
    %2295 = vmatpush1.msra.mxu0 0.0
    %2296 = vmatprep.subr.mxu0 0.0
    %2297 = vmatpush1.msra.mxu0 0.0
    %2298 = vmatprep.subr.mxu0 0.0
    %2299 = vmatpush1.msra.mxu0 0.0
    %2300 = vmatprep.subr.mxu0 0.0
    %2301 = vmatpush1.msra.mxu0 0.0
    %2302 = vmatprep.subr.mxu0 0.0
    %2303 = vmatpush1.msra.mxu0 0.0
    %2304 = vmatprep.subr.mxu0 0.0
    %2305 = vmatpush1.msra.mxu0 0.0
    %2306 = vmatprep.subr.mxu0 0.0
    %2307 = vmatpush1.msra.mxu0 0.0
    %2308 = vmatprep.subr.mxu0 0.0
    %2309 = vmatpush1.msra.mxu0 0.0
    %2310 = vmatprep.subr.mxu0 0.0
    %2311 = vmatpush1.msra.mxu0 0.0
    %2312 = vmatprep.subr.mxu0 0.0
    %2313 = vmatpush1.msra.mxu0 0.0
    %2314 = vmatprep.subr.mxu0 0.0
    %2315 = vmatpush1.msra.mxu0 0.0
    %2316 = vmatprep.mubr.f32.mxu0 0.0
    %2317 = vmatmul.mubr.f32.gmra.mrb[0].mxu0 %v2232
    %v2318 = vpop.f32.mrb[0].mxu0
    %v2319 = vadd.f32 %v2240, %v2318
    %v2320 = vpop.f32.mrb[0].mxu0
    %v2321 = vadd.f32 %v2244, %v2320
    %2322 = vdwg.mxu0
    %2323 = vmatprep.subr.mxu0 0.0
    %2324 = vmatpush1.msra.mxu0 %v1869
    %2325 = vmatprep.subr.mxu0 0.0
    %2326 = vmatpush1.msra.mxu0 %v1872
    %2327 = vmatprep.subr.mxu0 0.0
    %2328 = vmatpush1.msra.mxu0 %v1875
    %2329 = vmatprep.subr.mxu0 0.0
    %2330 = vmatpush1.msra.mxu0 %v1878
    %2331 = vmatprep.subr.mxu0 0.0
    %2332 = vmatpush1.msra.mxu0 %v1881
    %2333 = vmatprep.subr.mxu0 0.0
    %2334 = vmatpush1.msra.mxu0 %v1884
    %2335 = vmatprep.subr.mxu0 0.0
    %2336 = vmatpush1.msra.mxu0 %v1887
    %2337 = vmatprep.subr.mxu0 0.0
    %2338 = vmatpush1.msra.mxu0 %v1890
    %2339 = vmatprep.subr.mxu0 0.0
    %2340 = vmatpush1.msra.mxu0 %v1893
    %2341 = vmatprep.subr.mxu0 0.0
    %2342 = vmatpush1.msra.mxu0 %v1896
    %2343 = vmatprep.subr.mxu0 0.0
    %2344 = vmatpush1.msra.mxu0 %v1899
    %2345 = vmatprep.subr.mxu0 0.0
    %2346 = vmatpush1.msra.mxu0 %v1902
    %2347 = vmatprep.subr.mxu0 0.0
    %2348 = vmatpush1.msra.mxu0 %v1905
    %2349 = vmatprep.subr.mxu0 0.0
    %2350 = vmatpush1.msra.mxu0 %v1908
    %2351 = vmatprep.subr.mxu0 0.0
    %2352 = vmatpush1.msra.mxu0 %v1911
    %2353 = vmatprep.subr.mxu0 0.0
    %2354 = vmatpush1.msra.mxu0 %v1914
    %2355 = vmatprep.subr.mxu0 0.0
    %2356 = vmatpush1.msra.mxu0 0.0
    %2357 = vmatprep.subr.mxu0 0.0
    %2358 = vmatpush1.msra.mxu0 0.0
    %2359 = vmatprep.subr.mxu0 0.0
    %2360 = vmatpush1.msra.mxu0 0.0
    %2361 = vmatprep.subr.mxu0 0.0
    %2362 = vmatpush1.msra.mxu0 0.0
    %2363 = vmatprep.subr.mxu0 0.0
    %2364 = vmatpush1.msra.mxu0 0.0
    %2365 = vmatprep.subr.mxu0 0.0
    %2366 = vmatpush1.msra.mxu0 0.0
    %2367 = vmatprep.subr.mxu0 0.0
    %2368 = vmatpush1.msra.mxu0 0.0
    %2369 = vmatprep.subr.mxu0 0.0
    %2370 = vmatpush1.msra.mxu0 0.0
    %2371 = vmatprep.subr.mxu0 0.0
    %2372 = vmatpush1.msra.mxu0 0.0
    %2373 = vmatprep.subr.mxu0 0.0
    %2374 = vmatpush1.msra.mxu0 0.0
    %2375 = vmatprep.subr.mxu0 0.0
    %2376 = vmatpush1.msra.mxu0 0.0
    %2377 = vmatprep.subr.mxu0 0.0
    %2378 = vmatpush1.msra.mxu0 0.0
    %2379 = vmatprep.subr.mxu0 0.0
    %2380 = vmatpush1.msra.mxu0 0.0
    %2381 = vmatprep.subr.mxu0 0.0
    %2382 = vmatpush1.msra.mxu0 0.0
    %2383 = vmatprep.subr.mxu0 0.0
    %2384 = vmatpush1.msra.mxu0 0.0
    %2385 = vmatprep.subr.mxu0 0.0
    %2386 = vmatpush1.msra.mxu0 0.0
    %2387 = vmatprep.mubr.f32.mxu0 0.0
    %2388 = vmatmul.mubr.f32.gmra.mrb[0].mxu0 %v2232
    %v2389 = vpop.f32.mrb[0].mxu0
    %v2390 = vadd.f32 %v2248, %v2389
    %v2391 = vpop.f32.mrb[0].mxu0
    %2392 = vdwg.mxu0
    %v2393 = vadd.f32 %v2233, %v2319
    %v2394 = vadd.f32 %v2234, %v2321
    %v2395 = vxor.u32 %v2393, 2147483648
    %v2396 = vxor.u32 %v2394, 2147483648
    %v2397 = vmul.f32 %v2395, 1.442695
    %v2398 = vpow.pop %v2397
    %v2399 = vmul.f32 %v2396, 1.442695
    %v2400 = vpow.pop %v2399
    %v2401 = vadd.f32 %v2398, 1.0
    %v2402 = vadd.f32 %v2400, 1.0
    %v2403 = vrcp.pop %v2401
    %v2404 = vmul.f32 1.0, %v2403
    %v2405 = vrcp.pop %v2402
    %v2406 = vmul.f32 1.0, %v2405
    %v2407 = vmul.f32 %v2404, %v2390
    %v2408 = vadd.f32 %v2235, %v2407
    %v2409 = vtanh.pop %v2408
    %v2410 = vsub.f32 1.0, %v2406
    %v2411 = vmul.f32 %v2410, %v2409
    %v2412 = vmul.f32 %v2406, %v2232
    %v2413 = vadd.f32 %v2411, %v2412
    %2414 = vst [vmem:[#allocation17] sm:$0xff] %v2413
    %v2415 = vld [vmem:[%s690] sm:$0xff]
    %v2416 = vld [vmem:[%s690 + $0x8] sm:$0xff]
    %v2417 = vld [vmem:[%s690 + $0x10] sm:$0xff]
    %2418 = vmatprep.subr.mxu0 %v1868
    %2419 = vmatpush1.msra.mxu0 %v1867
    %2420 = vmatprep.subr.mxu0 %v1871
    %2421 = vmatpush1.msra.mxu0 %v1870
    %2422 = vmatprep.subr.mxu0 %v1874
    %2423 = vmatpush1.msra.mxu0 %v1873
    %2424 = vmatprep.subr.mxu0 %v1877
    %2425 = vmatpush1.msra.mxu0 %v1876
    %2426 = vmatprep.subr.mxu0 %v1880
    %2427 = vmatpush1.msra.mxu0 %v1879
    %2428 = vmatprep.subr.mxu0 %v1883
    %2429 = vmatpush1.msra.mxu0 %v1882
    %2430 = vmatprep.subr.mxu0 %v1886
    %2431 = vmatpush1.msra.mxu0 %v1885
    %2432 = vmatprep.subr.mxu0 %v1889
    %2433 = vmatpush1.msra.mxu0 %v1888
    %2434 = vmatprep.subr.mxu0 %v1892
    %2435 = vmatpush1.msra.mxu0 %v1891
    %2436 = vmatprep.subr.mxu0 %v1895
    %2437 = vmatpush1.msra.mxu0 %v1894
    %2438 = vmatprep.subr.mxu0 %v1898
    %2439 = vmatpush1.msra.mxu0 %v1897
    %2440 = vmatprep.subr.mxu0 %v1901
    %2441 = vmatpush1.msra.mxu0 %v1900
    %2442 = vmatprep.subr.mxu0 %v1904
    %2443 = vmatpush1.msra.mxu0 %v1903
    %2444 = vmatprep.subr.mxu0 %v1907
    %2445 = vmatpush1.msra.mxu0 %v1906
    %2446 = vmatprep.subr.mxu0 %v1910
    %2447 = vmatpush1.msra.mxu0 %v1909
    %2448 = vmatprep.subr.mxu0 %v1913
    %2449 = vmatpush1.msra.mxu0 %v1912
    %2450 = vmatprep.subr.mxu0 0.0
    %2451 = vmatpush1.msra.mxu0 0.0
    %2452 = vmatprep.subr.mxu0 0.0
    %2453 = vmatpush1.msra.mxu0 0.0
    %2454 = vmatprep.subr.mxu0 0.0
    %2455 = vmatpush1.msra.mxu0 0.0
    %2456 = vmatprep.subr.mxu0 0.0
    %2457 = vmatpush1.msra.mxu0 0.0
    %2458 = vmatprep.subr.mxu0 0.0
    %2459 = vmatpush1.msra.mxu0 0.0
    %2460 = vmatprep.subr.mxu0 0.0
    %2461 = vmatpush1.msra.mxu0 0.0
    %2462 = vmatprep.subr.mxu0 0.0
    %2463 = vmatpush1.msra.mxu0 0.0
    %2464 = vmatprep.subr.mxu0 0.0
    %2465 = vmatpush1.msra.mxu0 0.0
    %2466 = vmatprep.subr.mxu0 0.0
    %2467 = vmatpush1.msra.mxu0 0.0
    %2468 = vmatprep.subr.mxu0 0.0
    %2469 = vmatpush1.msra.mxu0 0.0
    %2470 = vmatprep.subr.mxu0 0.0
    %2471 = vmatpush1.msra.mxu0 0.0
    %2472 = vmatprep.subr.mxu0 0.0
    %2473 = vmatpush1.msra.mxu0 0.0
    %2474 = vmatprep.subr.mxu0 0.0
    %2475 = vmatpush1.msra.mxu0 0.0
    %2476 = vmatprep.subr.mxu0 0.0
    %2477 = vmatpush1.msra.mxu0 0.0
    %2478 = vmatprep.subr.mxu0 0.0
    %2479 = vmatpush1.msra.mxu0 0.0
    %2480 = vmatprep.subr.mxu0 0.0
    %2481 = vmatpush1.msra.mxu0 0.0
    %2482 = vmatprep.mubr.f32.mxu0 0.0
    %2483 = vmatmul.mubr.f32.gmra.mrb[0].mxu0 %v2413
    %v2484 = vpop.f32.mrb[0].mxu0
    %v2485 = vadd.f32 %v2240, %v2484
    %v2486 = vpop.f32.mrb[0].mxu0
    %v2487 = vadd.f32 %v2244, %v2486
    %2488 = vdwg.mxu0
    %2489 = vmatprep.subr.mxu0 0.0
    %2490 = vmatpush1.msra.mxu0 %v1869
    %2491 = vmatprep.subr.mxu0 0.0
    %2492 = vmatpush1.msra.mxu0 %v1872
    %2493 = vmatprep.subr.mxu0 0.0
    %2494 = vmatpush1.msra.mxu0 %v1875
    %2495 = vmatprep.subr.mxu0 0.0
    %2496 = vmatpush1.msra.mxu0 %v1878
    %2497 = vmatprep.subr.mxu0 0.0
    %2498 = vmatpush1.msra.mxu0 %v1881
    %2499 = vmatprep.subr.mxu0 0.0
    %2500 = vmatpush1.msra.mxu0 %v1884
    %2501 = vmatprep.subr.mxu0 0.0
    %2502 = vmatpush1.msra.mxu0 %v1887
    %2503 = vmatprep.subr.mxu0 0.0
    %2504 = vmatpush1.msra.mxu0 %v1890
    %2505 = vmatprep.subr.mxu0 0.0
    %2506 = vmatpush1.msra.mxu0 %v1893
    %2507 = vmatprep.subr.mxu0 0.0
    %2508 = vmatpush1.msra.mxu0 %v1896
    %2509 = vmatprep.subr.mxu0 0.0
    %2510 = vmatpush1.msra.mxu0 %v1899
    %2511 = vmatprep.subr.mxu0 0.0
    %2512 = vmatpush1.msra.mxu0 %v1902
    %2513 = vmatprep.subr.mxu0 0.0
    %2514 = vmatpush1.msra.mxu0 %v1905
    %2515 = vmatprep.subr.mxu0 0.0
    %2516 = vmatpush1.msra.mxu0 %v1908
    %2517 = vmatprep.subr.mxu0 0.0
    %2518 = vmatpush1.msra.mxu0 %v1911
    %2519 = vmatprep.subr.mxu0 0.0
    %2520 = vmatpush1.msra.mxu0 %v1914
    %2521 = vmatprep.subr.mxu0 0.0
    %2522 = vmatpush1.msra.mxu0 0.0
    %2523 = vmatprep.subr.mxu0 0.0
    %2524 = vmatpush1.msra.mxu0 0.0
    %2525 = vmatprep.subr.mxu0 0.0
    %2526 = vmatpush1.msra.mxu0 0.0
    %2527 = vmatprep.subr.mxu0 0.0
    %2528 = vmatpush1.msra.mxu0 0.0
    %2529 = vmatprep.subr.mxu0 0.0
    %2530 = vmatpush1.msra.mxu0 0.0
    %2531 = vmatprep.subr.mxu0 0.0
    %2532 = vmatpush1.msra.mxu0 0.0
    %2533 = vmatprep.subr.mxu0 0.0
    %2534 = vmatpush1.msra.mxu0 0.0
    %2535 = vmatprep.subr.mxu0 0.0
    %2536 = vmatpush1.msra.mxu0 0.0
    %2537 = vmatprep.subr.mxu0 0.0
    %2538 = vmatpush1.msra.mxu0 0.0
    %2539 = vmatprep.subr.mxu0 0.0
    %2540 = vmatpush1.msra.mxu0 0.0
    %2541 = vmatprep.subr.mxu0 0.0
    %2542 = vmatpush1.msra.mxu0 0.0
    %2543 = vmatprep.subr.mxu0 0.0
    %2544 = vmatpush1.msra.mxu0 0.0
    %2545 = vmatprep.subr.mxu0 0.0
    %2546 = vmatpush1.msra.mxu0 0.0
    %2547 = vmatprep.subr.mxu0 0.0
    %2548 = vmatpush1.msra.mxu0 0.0
    %2549 = vmatprep.subr.mxu0 0.0
    %2550 = vmatpush1.msra.mxu0 0.0
    %2551 = vmatprep.subr.mxu0 0.0
    %2552 = vmatpush1.msra.mxu0 0.0
    %2553 = vmatprep.mubr.f32.mxu0 0.0
    %2554 = vmatmul.mubr.f32.gmra.mrb[0].mxu0 %v2413
    %v2555 = vpop.f32.mrb[0].mxu0
    %v2556 = vadd.f32 %v2248, %v2555
    %v2557 = vpop.f32.mrb[0].mxu0
    %2558 = vdwg.mxu0
    %v2559 = vadd.f32 %v2415, %v2485
    %v2560 = vadd.f32 %v2416, %v2487
    %v2561 = vxor.u32 %v2559, 2147483648
    %v2562 = vxor.u32 %v2560, 2147483648
    %v2563 = vmul.f32 %v2561, 1.442695
    %v2564 = vpow.pop %v2563
    %v2565 = vmul.f32 %v2562, 1.442695
    %v2566 = vpow.pop %v2565
    %v2567 = vadd.f32 %v2564, 1.0
    %v2568 = vadd.f32 %v2566, 1.0
    %v2569 = vrcp.pop %v2567
    %v2570 = vmul.f32 1.0, %v2569
    %v2571 = vrcp.pop %v2568
    %v2572 = vmul.f32 1.0, %v2571
    %v2573 = vmul.f32 %v2570, %v2556
    %v2574 = vadd.f32 %v2417, %v2573
    %v2575 = vtanh.pop %v2574
    %v2576 = vsub.f32 1.0, %v2572
    %v2577 = vmul.f32 %v2576, %v2575
    %v2578 = vmul.f32 %v2572, %v2413
    %v2579 = vadd.f32 %v2577, %v2578
    %2580 = vst [vmem:[%s856] sm:$0xff] %v2579
    %v2581 = vld [vmem:[%s858] sm:$0xff]
    %v2582 = vld [vmem:[%s858 + $0x8] sm:$0xff]
    %v2583 = vld [vmem:[%s858 + $0x10] sm:$0xff]
    %2584 = vmatprep.subr.mxu0 %v1868
    %2585 = vmatpush1.msra.mxu0 %v1867
    %2586 = vmatprep.subr.mxu0 %v1871
    %2587 = vmatpush1.msra.mxu0 %v1870
    %2588 = vmatprep.subr.mxu0 %v1874
    %2589 = vmatpush1.msra.mxu0 %v1873
    %2590 = vmatprep.subr.mxu0 %v1877
    %2591 = vmatpush1.msra.mxu0 %v1876
    %2592 = vmatprep.subr.mxu0 %v1880
    %2593 = vmatpush1.msra.mxu0 %v1879
    %2594 = vmatprep.subr.mxu0 %v1883
    %2595 = vmatpush1.msra.mxu0 %v1882
    %2596 = vmatprep.subr.mxu0 %v1886
    %2597 = vmatpush1.msra.mxu0 %v1885
    %2598 = vmatprep.subr.mxu0 %v1889
    %2599 = vmatpush1.msra.mxu0 %v1888
    %2600 = vmatprep.subr.mxu0 %v1892
    %2601 = vmatpush1.msra.mxu0 %v1891
    %2602 = vmatprep.subr.mxu0 %v1895
    %2603 = vmatpush1.msra.mxu0 %v1894
    %2604 = vmatprep.subr.mxu0 %v1898
    %2605 = vmatpush1.msra.mxu0 %v1897
    %2606 = vmatprep.subr.mxu0 %v1901
    %2607 = vmatpush1.msra.mxu0 %v1900
    %2608 = vmatprep.subr.mxu0 %v1904
    %2609 = vmatpush1.msra.mxu0 %v1903
    %2610 = vmatprep.subr.mxu0 %v1907
    %2611 = vmatpush1.msra.mxu0 %v1906
    %2612 = vmatprep.subr.mxu0 %v1910
    %2613 = vmatpush1.msra.mxu0 %v1909
    %2614 = vmatprep.subr.mxu0 %v1913
    %2615 = vmatpush1.msra.mxu0 %v1912
    %2616 = vmatprep.subr.mxu0 0.0
    %2617 = vmatpush1.msra.mxu0 0.0
    %2618 = vmatprep.subr.mxu0 0.0
    %2619 = vmatpush1.msra.mxu0 0.0
    %2620 = vmatprep.subr.mxu0 0.0
    %2621 = vmatpush1.msra.mxu0 0.0
    %2622 = vmatprep.subr.mxu0 0.0
    %2623 = vmatpush1.msra.mxu0 0.0
    %2624 = vmatprep.subr.mxu0 0.0
    %2625 = vmatpush1.msra.mxu0 0.0
    %2626 = vmatprep.subr.mxu0 0.0
    %2627 = vmatpush1.msra.mxu0 0.0
    %2628 = vmatprep.subr.mxu0 0.0
    %2629 = vmatpush1.msra.mxu0 0.0
    %2630 = vmatprep.subr.mxu0 0.0
    %2631 = vmatpush1.msra.mxu0 0.0
    %2632 = vmatprep.subr.mxu0 0.0
    %2633 = vmatpush1.msra.mxu0 0.0
    %2634 = vmatprep.subr.mxu0 0.0
    %2635 = vmatpush1.msra.mxu0 0.0
    %2636 = vmatprep.subr.mxu0 0.0
    %2637 = vmatpush1.msra.mxu0 0.0
    %2638 = vmatprep.subr.mxu0 0.0
    %2639 = vmatpush1.msra.mxu0 0.0
    %2640 = vmatprep.subr.mxu0 0.0
    %2641 = vmatpush1.msra.mxu0 0.0
    %2642 = vmatprep.subr.mxu0 0.0
    %2643 = vmatpush1.msra.mxu0 0.0
    %2644 = vmatprep.subr.mxu0 0.0
    %2645 = vmatpush1.msra.mxu0 0.0
    %2646 = vmatprep.subr.mxu0 0.0
    %2647 = vmatpush1.msra.mxu0 0.0
    %2648 = vmatprep.mubr.f32.mxu0 0.0
    %2649 = vmatmul.mubr.f32.gmra.mrb[0].mxu0 %v2579
    %v2650 = vpop.f32.mrb[0].mxu0
    %v2651 = vadd.f32 %v2240, %v2650
    %v2652 = vpop.f32.mrb[0].mxu0
    %v2653 = vadd.f32 %v2244, %v2652
    %2654 = vdwg.mxu0
    %2655 = vmatprep.subr.mxu0 0.0
    %2656 = vmatpush1.msra.mxu0 %v1869
    %2657 = vmatprep.subr.mxu0 0.0
    %2658 = vmatpush1.msra.mxu0 %v1872
    %2659 = vmatprep.subr.mxu0 0.0
    %2660 = vmatpush1.msra.mxu0 %v1875
    %2661 = vmatprep.subr.mxu0 0.0
    %2662 = vmatpush1.msra.mxu0 %v1878
    %2663 = vmatprep.subr.mxu0 0.0
    %2664 = vmatpush1.msra.mxu0 %v1881
    %2665 = vmatprep.subr.mxu0 0.0
    %2666 = vmatpush1.msra.mxu0 %v1884
    %2667 = vmatprep.subr.mxu0 0.0
    %2668 = vmatpush1.msra.mxu0 %v1887
    %2669 = vmatprep.subr.mxu0 0.0
    %2670 = vmatpush1.msra.mxu0 %v1890
    %2671 = vmatprep.subr.mxu0 0.0
    %2672 = vmatpush1.msra.mxu0 %v1893
    %2673 = vmatprep.subr.mxu0 0.0
    %2674 = vmatpush1.msra.mxu0 %v1896
    %2675 = vmatprep.subr.mxu0 0.0
    %2676 = vmatpush1.msra.mxu0 %v1899
    %2677 = vmatprep.subr.mxu0 0.0
    %2678 = vmatpush1.msra.mxu0 %v1902
    %2679 = vmatprep.subr.mxu0 0.0
    %2680 = vmatpush1.msra.mxu0 %v1905
    %2681 = vmatprep.subr.mxu0 0.0
    %2682 = vmatpush1.msra.mxu0 %v1908
    %2683 = vmatprep.subr.mxu0 0.0
    %2684 = vmatpush1.msra.mxu0 %v1911
    %2685 = vmatprep.subr.mxu0 0.0
    %2686 = vmatpush1.msra.mxu0 %v1914
    %2687 = vmatprep.subr.mxu0 0.0
    %2688 = vmatpush1.msra.mxu0 0.0
    %2689 = vmatprep.subr.mxu0 0.0
    %2690 = vmatpush1.msra.mxu0 0.0
    %2691 = vmatprep.subr.mxu0 0.0
    %2692 = vmatpush1.msra.mxu0 0.0
    %2693 = vmatprep.subr.mxu0 0.0
    %2694 = vmatpush1.msra.mxu0 0.0
    %2695 = vmatprep.subr.mxu0 0.0
    %2696 = vmatpush1.msra.mxu0 0.0
    %2697 = vmatprep.subr.mxu0 0.0
    %2698 = vmatpush1.msra.mxu0 0.0
    %2699 = vmatprep.subr.mxu0 0.0
    %2700 = vmatpush1.msra.mxu0 0.0
    %2701 = vmatprep.subr.mxu0 0.0
    %2702 = vmatpush1.msra.mxu0 0.0
    %2703 = vmatprep.subr.mxu0 0.0
    %2704 = vmatpush1.msra.mxu0 0.0
    %2705 = vmatprep.subr.mxu0 0.0
    %2706 = vmatpush1.msra.mxu0 0.0
    %2707 = vmatprep.subr.mxu0 0.0
    %2708 = vmatpush1.msra.mxu0 0.0
    %2709 = vmatprep.subr.mxu0 0.0
    %2710 = vmatpush1.msra.mxu0 0.0
    %2711 = vmatprep.subr.mxu0 0.0
    %2712 = vmatpush1.msra.mxu0 0.0
    %2713 = vmatprep.subr.mxu0 0.0
    %2714 = vmatpush1.msra.mxu0 0.0
    %2715 = vmatprep.subr.mxu0 0.0
    %2716 = vmatpush1.msra.mxu0 0.0
    %2717 = vmatprep.subr.mxu0 0.0
    %2718 = vmatpush1.msra.mxu0 0.0
    %2719 = vmatprep.mubr.f32.mxu0 0.0
    %2720 = vmatmul.mubr.f32.gmra.mrb[0].mxu0 %v2579
    %v2721 = vpop.f32.mrb[0].mxu0
    %v2722 = vadd.f32 %v2248, %v2721
    %v2723 = vpop.f32.mrb[0].mxu0
    %2724 = vdwg.mxu0
    %v2725 = vadd.f32 %v2581, %v2651
    %v2726 = vadd.f32 %v2582, %v2653
    %v2727 = vxor.u32 %v2725, 2147483648
    %v2728 = vxor.u32 %v2726, 2147483648
    %v2729 = vmul.f32 %v2727, 1.442695
    %v2730 = vpow.pop %v2729
    %v2731 = vmul.f32 %v2728, 1.442695
    %v2732 = vpow.pop %v2731
    %v2733 = vadd.f32 %v2730, 1.0
    %v2734 = vadd.f32 %v2732, 1.0
    %v2735 = vrcp.pop %v2733
    %v2736 = vmul.f32 1.0, %v2735
    %v2737 = vrcp.pop %v2734
    %v2738 = vmul.f32 1.0, %v2737
    %v2739 = vmul.f32 %v2736, %v2722
    %v2740 = vadd.f32 %v2583, %v2739
    %v2741 = vtanh.pop %v2740
    %v2742 = vsub.f32 1.0, %v2738
    %v2743 = vmul.f32 %v2742, %v2741
    %v2744 = vmul.f32 %v2738, %v2579
    %v2745 = vadd.f32 %v2743, %v2744
    %2746 = vst [vmem:[%s1024] sm:$0xff] %v2745
    %v2747 = vld [vmem:[%s1026] sm:$0xff]
    %v2748 = vld [vmem:[%s1026 + $0x8] sm:$0xff]
    %v2749 = vld [vmem:[%s1026 + $0x10] sm:$0xff]
    %2750 = vmatprep.subr.mxu0 %v1868
    %2751 = vmatpush1.msra.mxu0 %v1867
    %2752 = vmatprep.subr.mxu0 %v1871
    %2753 = vmatpush1.msra.mxu0 %v1870
    %2754 = vmatprep.subr.mxu0 %v1874
    %2755 = vmatpush1.msra.mxu0 %v1873
    %2756 = vmatprep.subr.mxu0 %v1877
    %2757 = vmatpush1.msra.mxu0 %v1876
    %2758 = vmatprep.subr.mxu0 %v1880
    %2759 = vmatpush1.msra.mxu0 %v1879
    %2760 = vmatprep.subr.mxu0 %v1883
    %2761 = vmatpush1.msra.mxu0 %v1882
    %2762 = vmatprep.subr.mxu0 %v1886
    %2763 = vmatpush1.msra.mxu0 %v1885
    %2764 = vmatprep.subr.mxu0 %v1889
    %2765 = vmatpush1.msra.mxu0 %v1888
    %2766 = vmatprep.subr.mxu0 %v1892
    %2767 = vmatpush1.msra.mxu0 %v1891
    %2768 = vmatprep.subr.mxu0 %v1895
    %2769 = vmatpush1.msra.mxu0 %v1894
    %2770 = vmatprep.subr.mxu0 %v1898
    %2771 = vmatpush1.msra.mxu0 %v1897
    %2772 = vmatprep.subr.mxu0 %v1901
    %2773 = vmatpush1.msra.mxu0 %v1900
    %2774 = vmatprep.subr.mxu0 %v1904
    %2775 = vmatpush1.msra.mxu0 %v1903
    %2776 = vmatprep.subr.mxu0 %v1907
    %2777 = vmatpush1.msra.mxu0 %v1906
    %2778 = vmatprep.subr.mxu0 %v1910
    %2779 = vmatpush1.msra.mxu0 %v1909
    %2780 = vmatprep.subr.mxu0 %v1913
    %2781 = vmatpush1.msra.mxu0 %v1912
    %2782 = vmatprep.subr.mxu0 0.0
    %2783 = vmatpush1.msra.mxu0 0.0
    %2784 = vmatprep.subr.mxu0 0.0
    %2785 = vmatpush1.msra.mxu0 0.0
    %2786 = vmatprep.subr.mxu0 0.0
    %2787 = vmatpush1.msra.mxu0 0.0
    %2788 = vmatprep.subr.mxu0 0.0
    %2789 = vmatpush1.msra.mxu0 0.0
    %2790 = vmatprep.subr.mxu0 0.0
    %2791 = vmatpush1.msra.mxu0 0.0
    %2792 = vmatprep.subr.mxu0 0.0
    %2793 = vmatpush1.msra.mxu0 0.0
    %2794 = vmatprep.subr.mxu0 0.0
    %2795 = vmatpush1.msra.mxu0 0.0
    %2796 = vmatprep.subr.mxu0 0.0
    %2797 = vmatpush1.msra.mxu0 0.0
    %2798 = vmatprep.subr.mxu0 0.0
    %2799 = vmatpush1.msra.mxu0 0.0
    %2800 = vmatprep.subr.mxu0 0.0
    %2801 = vmatpush1.msra.mxu0 0.0
    %2802 = vmatprep.subr.mxu0 0.0
    %2803 = vmatpush1.msra.mxu0 0.0
    %2804 = vmatprep.subr.mxu0 0.0
    %2805 = vmatpush1.msra.mxu0 0.0
    %2806 = vmatprep.subr.mxu0 0.0
    %2807 = vmatpush1.msra.mxu0 0.0
    %2808 = vmatprep.subr.mxu0 0.0
    %2809 = vmatpush1.msra.mxu0 0.0
    %2810 = vmatprep.subr.mxu0 0.0
    %2811 = vmatpush1.msra.mxu0 0.0
    %2812 = vmatprep.subr.mxu0 0.0
    %2813 = vmatpush1.msra.mxu0 0.0
    %2814 = vmatprep.mubr.f32.mxu0 0.0
    %2815 = vmatmul.mubr.f32.gmra.mrb[0].mxu0 %v2745
    %v2816 = vpop.f32.mrb[0].mxu0
    %v2817 = vadd.f32 %v2240, %v2816
    %v2818 = vpop.f32.mrb[0].mxu0
    %v2819 = vadd.f32 %v2244, %v2818
    %2820 = vdwg.mxu0
    %2821 = vmatprep.subr.mxu0 0.0
    %2822 = vmatpush1.msra.mxu0 %v1869
    %2823 = vmatprep.subr.mxu0 0.0
    %2824 = vmatpush1.msra.mxu0 %v1872
    %2825 = vmatprep.subr.mxu0 0.0
    %2826 = vmatpush1.msra.mxu0 %v1875
    %2827 = vmatprep.subr.mxu0 0.0
    %2828 = vmatpush1.msra.mxu0 %v1878
    %2829 = vmatprep.subr.mxu0 0.0
    %2830 = vmatpush1.msra.mxu0 %v1881
    %2831 = vmatprep.subr.mxu0 0.0
    %2832 = vmatpush1.msra.mxu0 %v1884
    %2833 = vmatprep.subr.mxu0 0.0
    %2834 = vmatpush1.msra.mxu0 %v1887
    %2835 = vmatprep.subr.mxu0 0.0
    %2836 = vmatpush1.msra.mxu0 %v1890
    %2837 = vmatprep.subr.mxu0 0.0
    %2838 = vmatpush1.msra.mxu0 %v1893
    %2839 = vmatprep.subr.mxu0 0.0
    %2840 = vmatpush1.msra.mxu0 %v1896
    %2841 = vmatprep.subr.mxu0 0.0
    %2842 = vmatpush1.msra.mxu0 %v1899
    %2843 = vmatprep.subr.mxu0 0.0
    %2844 = vmatpush1.msra.mxu0 %v1902
    %2845 = vmatprep.subr.mxu0 0.0
    %2846 = vmatpush1.msra.mxu0 %v1905
    %2847 = vmatprep.subr.mxu0 0.0
    %2848 = vmatpush1.msra.mxu0 %v1908
    %2849 = vmatprep.subr.mxu0 0.0
    %2850 = vmatpush1.msra.mxu0 %v1911
    %2851 = vmatprep.subr.mxu0 0.0
    %2852 = vmatpush1.msra.mxu0 %v1914
    %2853 = vmatprep.subr.mxu0 0.0
    %2854 = vmatpush1.msra.mxu0 0.0
    %2855 = vmatprep.subr.mxu0 0.0
    %2856 = vmatpush1.msra.mxu0 0.0
    %2857 = vmatprep.subr.mxu0 0.0
    %2858 = vmatpush1.msra.mxu0 0.0
    %2859 = vmatprep.subr.mxu0 0.0
    %2860 = vmatpush1.msra.mxu0 0.0
    %2861 = vmatprep.subr.mxu0 0.0
    %2862 = vmatpush1.msra.mxu0 0.0
    %2863 = vmatprep.subr.mxu0 0.0
    %2864 = vmatpush1.msra.mxu0 0.0
    %2865 = vmatprep.subr.mxu0 0.0
    %2866 = vmatpush1.msra.mxu0 0.0
    %2867 = vmatprep.subr.mxu0 0.0
    %2868 = vmatpush1.msra.mxu0 0.0
    %2869 = vmatprep.subr.mxu0 0.0
    %2870 = vmatpush1.msra.mxu0 0.0
    %2871 = vmatprep.subr.mxu0 0.0
    %2872 = vmatpush1.msra.mxu0 0.0
    %2873 = vmatprep.subr.mxu0 0.0
    %2874 = vmatpush1.msra.mxu0 0.0
    %2875 = vmatprep.subr.mxu0 0.0
    %2876 = vmatpush1.msra.mxu0 0.0
    %2877 = vmatprep.subr.mxu0 0.0
    %2878 = vmatpush1.msra.mxu0 0.0
    %2879 = vmatprep.subr.mxu0 0.0
    %2880 = vmatpush1.msra.mxu0 0.0
    %2881 = vmatprep.subr.mxu0 0.0
    %2882 = vmatpush1.msra.mxu0 0.0
    %2883 = vmatprep.subr.mxu0 0.0
    %2884 = vmatpush1.msra.mxu0 0.0
    %2885 = vmatprep.mubr.f32.mxu0 0.0
    %2886 = vmatmul.mubr.f32.gmra.mrb[0].mxu0 %v2745
    %v2887 = vpop.f32.mrb[0].mxu0
    %v2888 = vadd.f32 %v2248, %v2887
    %v2889 = vpop.f32.mrb[0].mxu0
    %2890 = vdwg.mxu0
    %v2891 = vadd.f32 %v2747, %v2817
    %v2892 = vadd.f32 %v2748, %v2819
    %v2893 = vxor.u32 %v2891, 2147483648
    %v2894 = vxor.u32 %v2892, 2147483648
    %v2895 = vmul.f32 %v2893, 1.442695
    %v2896 = vpow.pop %v2895
    %v2897 = vmul.f32 %v2894, 1.442695
    %v2898 = vpow.pop %v2897
    %v2899 = vadd.f32 %v2896, 1.0
    %v2900 = vadd.f32 %v2898, 1.0
    %v2901 = vrcp.pop %v2899
    %v2902 = vmul.f32 1.0, %v2901
    %v2903 = vrcp.pop %v2900
    %v2904 = vmul.f32 1.0, %v2903
    %v2905 = vmul.f32 %v2902, %v2888
    %v2906 = vadd.f32 %v2749, %v2905
    %v2907 = vtanh.pop %v2906
    %v2908 = vsub.f32 1.0, %v2904
    %v2909 = vmul.f32 %v2908, %v2907
    %v2910 = vmul.f32 %v2904, %v2745
    %v2911 = vadd.f32 %v2909, %v2910
    %2912 = vst [vmem:[%s1192] sm:$0xff] %v2911
    %v2913 = vld [vmem:[%s1194] sm:$0xff]
    %v2914 = vld [vmem:[%s1194 + $0x8] sm:$0xff]
    %v2915 = vld [vmem:[%s1194 + $0x10] sm:$0xff]
    %2916 = vmatprep.subr.mxu0 %v1868
    %2917 = vmatpush1.msra.mxu0 %v1867
    %2918 = vmatprep.subr.mxu0 %v1871
    %2919 = vmatpush1.msra.mxu0 %v1870
    %2920 = vmatprep.subr.mxu0 %v1874
    %2921 = vmatpush1.msra.mxu0 %v1873
    %2922 = vmatprep.subr.mxu0 %v1877
    %2923 = vmatpush1.msra.mxu0 %v1876
    %2924 = vmatprep.subr.mxu0 %v1880
    %2925 = vmatpush1.msra.mxu0 %v1879
    %2926 = vmatprep.subr.mxu0 %v1883
    %2927 = vmatpush1.msra.mxu0 %v1882
    %2928 = vmatprep.subr.mxu0 %v1886
    %2929 = vmatpush1.msra.mxu0 %v1885
    %2930 = vmatprep.subr.mxu0 %v1889
    %2931 = vmatpush1.msra.mxu0 %v1888
    %2932 = vmatprep.subr.mxu0 %v1892
    %2933 = vmatpush1.msra.mxu0 %v1891
    %2934 = vmatprep.subr.mxu0 %v1895
    %2935 = vmatpush1.msra.mxu0 %v1894
    %2936 = vmatprep.subr.mxu0 %v1898
    %2937 = vmatpush1.msra.mxu0 %v1897
    %2938 = vmatprep.subr.mxu0 %v1901
    %2939 = vmatpush1.msra.mxu0 %v1900
    %2940 = vmatprep.subr.mxu0 %v1904
    %2941 = vmatpush1.msra.mxu0 %v1903
    %2942 = vmatprep.subr.mxu0 %v1907
    %2943 = vmatpush1.msra.mxu0 %v1906
    %2944 = vmatprep.subr.mxu0 %v1910
    %2945 = vmatpush1.msra.mxu0 %v1909
    %2946 = vmatprep.subr.mxu0 %v1913
    %2947 = vmatpush1.msra.mxu0 %v1912
    %2948 = vmatprep.subr.mxu0 0.0
    %2949 = vmatpush1.msra.mxu0 0.0
    %2950 = vmatprep.subr.mxu0 0.0
    %2951 = vmatpush1.msra.mxu0 0.0
    %2952 = vmatprep.subr.mxu0 0.0
    %2953 = vmatpush1.msra.mxu0 0.0
    %2954 = vmatprep.subr.mxu0 0.0
    %2955 = vmatpush1.msra.mxu0 0.0
    %2956 = vmatprep.subr.mxu0 0.0
    %2957 = vmatpush1.msra.mxu0 0.0
    %2958 = vmatprep.subr.mxu0 0.0
    %2959 = vmatpush1.msra.mxu0 0.0
    %2960 = vmatprep.subr.mxu0 0.0
    %2961 = vmatpush1.msra.mxu0 0.0
    %2962 = vmatprep.subr.mxu0 0.0
    %2963 = vmatpush1.msra.mxu0 0.0
    %2964 = vmatprep.subr.mxu0 0.0
    %2965 = vmatpush1.msra.mxu0 0.0
    %2966 = vmatprep.subr.mxu0 0.0
    %2967 = vmatpush1.msra.mxu0 0.0
    %2968 = vmatprep.subr.mxu0 0.0
    %2969 = vmatpush1.msra.mxu0 0.0
    %2970 = vmatprep.subr.mxu0 0.0
    %2971 = vmatpush1.msra.mxu0 0.0
    %2972 = vmatprep.subr.mxu0 0.0
    %2973 = vmatpush1.msra.mxu0 0.0
    %2974 = vmatprep.subr.mxu0 0.0
    %2975 = vmatpush1.msra.mxu0 0.0
    %2976 = vmatprep.subr.mxu0 0.0
    %2977 = vmatpush1.msra.mxu0 0.0
    %2978 = vmatprep.subr.mxu0 0.0
    %2979 = vmatpush1.msra.mxu0 0.0
    %2980 = vmatprep.mubr.f32.mxu0 0.0
    %2981 = vmatmul.mubr.f32.gmra.mrb[0].mxu0 %v2911
    %v2982 = vpop.f32.mrb[0].mxu0
    %v2983 = vadd.f32 %v2240, %v2982
    %v2984 = vpop.f32.mrb[0].mxu0
    %v2985 = vadd.f32 %v2244, %v2984
    %2986 = vdwg.mxu0
    %2987 = vmatprep.subr.mxu0 0.0
    %2988 = vmatpush1.msra.mxu0 %v1869
    %2989 = vmatprep.subr.mxu0 0.0
    %2990 = vmatpush1.msra.mxu0 %v1872
    %2991 = vmatprep.subr.mxu0 0.0
    %2992 = vmatpush1.msra.mxu0 %v1875
    %2993 = vmatprep.subr.mxu0 0.0
    %2994 = vmatpush1.msra.mxu0 %v1878
    %2995 = vmatprep.subr.mxu0 0.0
    %2996 = vmatpush1.msra.mxu0 %v1881
    %2997 = vmatprep.subr.mxu0 0.0
    %2998 = vmatpush1.msra.mxu0 %v1884
    %2999 = vmatprep.subr.mxu0 0.0
    %3000 = vmatpush1.msra.mxu0 %v1887
    %3001 = vmatprep.subr.mxu0 0.0
    %3002 = vmatpush1.msra.mxu0 %v1890
    %3003 = vmatprep.subr.mxu0 0.0
    %3004 = vmatpush1.msra.mxu0 %v1893
    %3005 = vmatprep.subr.mxu0 0.0
    %3006 = vmatpush1.msra.mxu0 %v1896
    %3007 = vmatprep.subr.mxu0 0.0
    %3008 = vmatpush1.msra.mxu0 %v1899
    %3009 = vmatprep.subr.mxu0 0.0
    %3010 = vmatpush1.msra.mxu0 %v1902
    %3011 = vmatprep.subr.mxu0 0.0
    %3012 = vmatpush1.msra.mxu0 %v1905
    %3013 = vmatprep.subr.mxu0 0.0
    %3014 = vmatpush1.msra.mxu0 %v1908
    %3015 = vmatprep.subr.mxu0 0.0
    %3016 = vmatpush1.msra.mxu0 %v1911
    %3017 = vmatprep.subr.mxu0 0.0
    %3018 = vmatpush1.msra.mxu0 %v1914
    %3019 = vmatprep.subr.mxu0 0.0
    %3020 = vmatpush1.msra.mxu0 0.0
    %3021 = vmatprep.subr.mxu0 0.0
    %3022 = vmatpush1.msra.mxu0 0.0
    %3023 = vmatprep.subr.mxu0 0.0
    %3024 = vmatpush1.msra.mxu0 0.0
    %3025 = vmatprep.subr.mxu0 0.0
    %3026 = vmatpush1.msra.mxu0 0.0
    %3027 = vmatprep.subr.mxu0 0.0
    %3028 = vmatpush1.msra.mxu0 0.0
    %3029 = vmatprep.subr.mxu0 0.0
    %3030 = vmatpush1.msra.mxu0 0.0
    %3031 = vmatprep.subr.mxu0 0.0
    %3032 = vmatpush1.msra.mxu0 0.0
    %3033 = vmatprep.subr.mxu0 0.0
    %3034 = vmatpush1.msra.mxu0 0.0
    %3035 = vmatprep.subr.mxu0 0.0
    %3036 = vmatpush1.msra.mxu0 0.0
    %3037 = vmatprep.subr.mxu0 0.0
    %3038 = vmatpush1.msra.mxu0 0.0
    %3039 = vmatprep.subr.mxu0 0.0
    %3040 = vmatpush1.msra.mxu0 0.0
    %3041 = vmatprep.subr.mxu0 0.0
    %3042 = vmatpush1.msra.mxu0 0.0
    %3043 = vmatprep.subr.mxu0 0.0
    %3044 = vmatpush1.msra.mxu0 0.0
    %3045 = vmatprep.subr.mxu0 0.0
    %3046 = vmatpush1.msra.mxu0 0.0
    %3047 = vmatprep.subr.mxu0 0.0
    %3048 = vmatpush1.msra.mxu0 0.0
    %3049 = vmatprep.subr.mxu0 0.0
    %3050 = vmatpush1.msra.mxu0 0.0
    %3051 = vmatprep.mubr.f32.mxu0 0.0
    %3052 = vmatmul.mubr.f32.gmra.mrb[0].mxu0 %v2911
    %v3053 = vpop.f32.mrb[0].mxu0
    %v3054 = vadd.f32 %v2248, %v3053
    %v3055 = vpop.f32.mrb[0].mxu0
    %3056 = vdwg.mxu0
    %v3057 = vadd.f32 %v2913, %v2983
    %v3058 = vadd.f32 %v2914, %v2985
    %v3059 = vxor.u32 %v3057, 2147483648
    %v3060 = vxor.u32 %v3058, 2147483648
    %v3061 = vmul.f32 %v3059, 1.442695
    %v3062 = vpow.pop %v3061
    %v3063 = vmul.f32 %v3060, 1.442695
    %v3064 = vpow.pop %v3063
    %v3065 = vadd.f32 %v3062, 1.0
    %v3066 = vadd.f32 %v3064, 1.0
    %v3067 = vrcp.pop %v3065
    %v3068 = vmul.f32 1.0, %v3067
    %v3069 = vrcp.pop %v3066
    %v3070 = vmul.f32 1.0, %v3069
    %v3071 = vmul.f32 %v3068, %v3054
    %v3072 = vadd.f32 %v2915, %v3071
    %v3073 = vtanh.pop %v3072
    %v3074 = vsub.f32 1.0, %v3070
    %v3075 = vmul.f32 %v3074, %v3073
    %v3076 = vmul.f32 %v3070, %v2911
    %v3077 = vadd.f32 %v3075, %v3076
    %3078 = vst [vmem:[%s1360] sm:$0xff] %v3077
    %v3079 = vld [vmem:[%s1362] sm:$0xff]
    %v3080 = vld [vmem:[%s1362 + $0x8] sm:$0xff]
    %v3081 = vld [vmem:[%s1362 + $0x10] sm:$0xff]
    %3082 = vmatprep.subr.mxu0 %v1868
    %3083 = vmatpush1.msra.mxu0 %v1867
    %3084 = vmatprep.subr.mxu0 %v1871
    %3085 = vmatpush1.msra.mxu0 %v1870
    %3086 = vmatprep.subr.mxu0 %v1874
    %3087 = vmatpush1.msra.mxu0 %v1873
    %3088 = vmatprep.subr.mxu0 %v1877
    %3089 = vmatpush1.msra.mxu0 %v1876
    %3090 = vmatprep.subr.mxu0 %v1880
    %3091 = vmatpush1.msra.mxu0 %v1879
    %3092 = vmatprep.subr.mxu0 %v1883
    %3093 = vmatpush1.msra.mxu0 %v1882
    %3094 = vmatprep.subr.mxu0 %v1886
    %3095 = vmatpush1.msra.mxu0 %v1885
    %3096 = vmatprep.subr.mxu0 %v1889
    %3097 = vmatpush1.msra.mxu0 %v1888
    %3098 = vmatprep.subr.mxu0 %v1892
    %3099 = vmatpush1.msra.mxu0 %v1891
    %3100 = vmatprep.subr.mxu0 %v1895
    %3101 = vmatpush1.msra.mxu0 %v1894
    %3102 = vmatprep.subr.mxu0 %v1898
    %3103 = vmatpush1.msra.mxu0 %v1897
    %3104 = vmatprep.subr.mxu0 %v1901
    %3105 = vmatpush1.msra.mxu0 %v1900
    %3106 = vmatprep.subr.mxu0 %v1904
    %3107 = vmatpush1.msra.mxu0 %v1903
    %3108 = vmatprep.subr.mxu0 %v1907
    %3109 = vmatpush1.msra.mxu0 %v1906
    %3110 = vmatprep.subr.mxu0 %v1910
    %3111 = vmatpush1.msra.mxu0 %v1909
    %3112 = vmatprep.subr.mxu0 %v1913
    %3113 = vmatpush1.msra.mxu0 %v1912
    %3114 = vmatprep.subr.mxu0 0.0
    %3115 = vmatpush1.msra.mxu0 0.0
    %3116 = vmatprep.subr.mxu0 0.0
    %3117 = vmatpush1.msra.mxu0 0.0
    %3118 = vmatprep.subr.mxu0 0.0
    %3119 = vmatpush1.msra.mxu0 0.0
    %3120 = vmatprep.subr.mxu0 0.0
    %3121 = vmatpush1.msra.mxu0 0.0
    %3122 = vmatprep.subr.mxu0 0.0
    %3123 = vmatpush1.msra.mxu0 0.0
    %3124 = vmatprep.subr.mxu0 0.0
    %3125 = vmatpush1.msra.mxu0 0.0
    %3126 = vmatprep.subr.mxu0 0.0
    %3127 = vmatpush1.msra.mxu0 0.0
    %3128 = vmatprep.subr.mxu0 0.0
    %3129 = vmatpush1.msra.mxu0 0.0
    %3130 = vmatprep.subr.mxu0 0.0
    %3131 = vmatpush1.msra.mxu0 0.0
    %3132 = vmatprep.subr.mxu0 0.0
    %3133 = vmatpush1.msra.mxu0 0.0
    %3134 = vmatprep.subr.mxu0 0.0
    %3135 = vmatpush1.msra.mxu0 0.0
    %3136 = vmatprep.subr.mxu0 0.0
    %3137 = vmatpush1.msra.mxu0 0.0
    %3138 = vmatprep.subr.mxu0 0.0
    %3139 = vmatpush1.msra.mxu0 0.0
    %3140 = vmatprep.subr.mxu0 0.0
    %3141 = vmatpush1.msra.mxu0 0.0
    %3142 = vmatprep.subr.mxu0 0.0
    %3143 = vmatpush1.msra.mxu0 0.0
    %3144 = vmatprep.subr.mxu0 0.0
    %3145 = vmatpush1.msra.mxu0 0.0
    %3146 = vmatprep.mubr.f32.mxu0 0.0
    %3147 = vmatmul.mubr.f32.gmra.mrb[0].mxu0 %v3077
    %v3148 = vpop.f32.mrb[0].mxu0
    %v3149 = vadd.f32 %v2240, %v3148
    %v3150 = vpop.f32.mrb[0].mxu0
    %v3151 = vadd.f32 %v2244, %v3150
    %3152 = vdwg.mxu0
    %3153 = vmatprep.subr.mxu0 0.0
    %3154 = vmatpush1.msra.mxu0 %v1869
    %3155 = vmatprep.subr.mxu0 0.0
    %3156 = vmatpush1.msra.mxu0 %v1872
    %3157 = vmatprep.subr.mxu0 0.0
    %3158 = vmatpush1.msra.mxu0 %v1875
    %3159 = vmatprep.subr.mxu0 0.0
    %3160 = vmatpush1.msra.mxu0 %v1878
    %3161 = vmatprep.subr.mxu0 0.0
    %3162 = vmatpush1.msra.mxu0 %v1881
    %3163 = vmatprep.subr.mxu0 0.0
    %3164 = vmatpush1.msra.mxu0 %v1884
    %3165 = vmatprep.subr.mxu0 0.0
    %3166 = vmatpush1.msra.mxu0 %v1887
    %3167 = vmatprep.subr.mxu0 0.0
    %3168 = vmatpush1.msra.mxu0 %v1890
    %3169 = vmatprep.subr.mxu0 0.0
    %3170 = vmatpush1.msra.mxu0 %v1893
    %3171 = vmatprep.subr.mxu0 0.0
    %3172 = vmatpush1.msra.mxu0 %v1896
    %3173 = vmatprep.subr.mxu0 0.0
    %3174 = vmatpush1.msra.mxu0 %v1899
    %3175 = vmatprep.subr.mxu0 0.0
    %3176 = vmatpush1.msra.mxu0 %v1902
    %3177 = vmatprep.subr.mxu0 0.0
    %3178 = vmatpush1.msra.mxu0 %v1905
    %3179 = vmatprep.subr.mxu0 0.0
    %3180 = vmatpush1.msra.mxu0 %v1908
    %3181 = vmatprep.subr.mxu0 0.0
    %3182 = vmatpush1.msra.mxu0 %v1911
    %3183 = vmatprep.subr.mxu0 0.0
    %3184 = vmatpush1.msra.mxu0 %v1914
    %3185 = vmatprep.subr.mxu0 0.0
    %3186 = vmatpush1.msra.mxu0 0.0
    %3187 = vmatprep.subr.mxu0 0.0
    %3188 = vmatpush1.msra.mxu0 0.0
    %3189 = vmatprep.subr.mxu0 0.0
    %3190 = vmatpush1.msra.mxu0 0.0
    %3191 = vmatprep.subr.mxu0 0.0
    %3192 = vmatpush1.msra.mxu0 0.0
    %3193 = vmatprep.subr.mxu0 0.0
    %3194 = vmatpush1.msra.mxu0 0.0
    %3195 = vmatprep.subr.mxu0 0.0
    %3196 = vmatpush1.msra.mxu0 0.0
    %3197 = vmatprep.subr.mxu0 0.0
    %3198 = vmatpush1.msra.mxu0 0.0
    %3199 = vmatprep.subr.mxu0 0.0
    %3200 = vmatpush1.msra.mxu0 0.0
    %3201 = vmatprep.subr.mxu0 0.0
    %3202 = vmatpush1.msra.mxu0 0.0
    %3203 = vmatprep.subr.mxu0 0.0
    %3204 = vmatpush1.msra.mxu0 0.0
    %3205 = vmatprep.subr.mxu0 0.0
    %3206 = vmatpush1.msra.mxu0 0.0
    %3207 = vmatprep.subr.mxu0 0.0
    %3208 = vmatpush1.msra.mxu0 0.0
    %3209 = vmatprep.subr.mxu0 0.0
    %3210 = vmatpush1.msra.mxu0 0.0
    %3211 = vmatprep.subr.mxu0 0.0
    %3212 = vmatpush1.msra.mxu0 0.0
    %3213 = vmatprep.subr.mxu0 0.0
    %3214 = vmatpush1.msra.mxu0 0.0
    %3215 = vmatprep.subr.mxu0 0.0
    %3216 = vmatpush1.msra.mxu0 0.0
    %3217 = vmatprep.mubr.f32.mxu0 0.0
    %3218 = vmatmul.mubr.f32.gmra.mrb[0].mxu0 %v3077
    %v3219 = vpop.f32.mrb[0].mxu0
    %v3220 = vadd.f32 %v2248, %v3219
    %v3221 = vpop.f32.mrb[0].mxu0
    %3222 = vdwg.mxu0
    %v3223 = vadd.f32 %v3079, %v3149
    %v3224 = vadd.f32 %v3080, %v3151
    %v3225 = vxor.u32 %v3223, 2147483648
    %v3226 = vxor.u32 %v3224, 2147483648
    %v3227 = vmul.f32 %v3225, 1.442695
    %v3228 = vpow.pop %v3227
    %v3229 = vmul.f32 %v3226, 1.442695
    %v3230 = vpow.pop %v3229
    %v3231 = vadd.f32 %v3228, 1.0
    %v3232 = vadd.f32 %v3230, 1.0
    %v3233 = vrcp.pop %v3231
    %v3234 = vmul.f32 1.0, %v3233
    %v3235 = vrcp.pop %v3232
    %v3236 = vmul.f32 1.0, %v3235
    %v3237 = vmul.f32 %v3234, %v3220
    %v3238 = vadd.f32 %v3081, %v3237
    %v3239 = vtanh.pop %v3238
    %v3240 = vsub.f32 1.0, %v3236
    %v3241 = vmul.f32 %v3240, %v3239
    %v3242 = vmul.f32 %v3236, %v3077
    %v3243 = vadd.f32 %v3241, %v3242
    %3244 = vst [vmem:[%s1528] sm:$0xff] %v3243
    %v3245 = vld [vmem:[%s1530] sm:$0xff]
    %v3246 = vld [vmem:[%s1530 + $0x8] sm:$0xff]
    %v3247 = vld [vmem:[%s1530 + $0x10] sm:$0xff]
    %3248 = vmatprep.subr.mxu0 %v1868
    %3249 = vmatpush1.msra.mxu0 %v1867
    %3250 = vmatprep.subr.mxu0 %v1871
    %3251 = vmatpush1.msra.mxu0 %v1870
    %3252 = vmatprep.subr.mxu0 %v1874
    %3253 = vmatpush1.msra.mxu0 %v1873
    %3254 = vmatprep.subr.mxu0 %v1877
    %3255 = vmatpush1.msra.mxu0 %v1876
    %3256 = vmatprep.subr.mxu0 %v1880
    %3257 = vmatpush1.msra.mxu0 %v1879
    %3258 = vmatprep.subr.mxu0 %v1883
    %3259 = vmatpush1.msra.mxu0 %v1882
    %3260 = vmatprep.subr.mxu0 %v1886
    %3261 = vmatpush1.msra.mxu0 %v1885
    %3262 = vmatprep.subr.mxu0 %v1889
    %3263 = vmatpush1.msra.mxu0 %v1888
    %3264 = vmatprep.subr.mxu0 %v1892
    %3265 = vmatpush1.msra.mxu0 %v1891
    %3266 = vmatprep.subr.mxu0 %v1895
    %3267 = vmatpush1.msra.mxu0 %v1894
    %3268 = vmatprep.subr.mxu0 %v1898
    %3269 = vmatpush1.msra.mxu0 %v1897
    %3270 = vmatprep.subr.mxu0 %v1901
    %3271 = vmatpush1.msra.mxu0 %v1900
    %3272 = vmatprep.subr.mxu0 %v1904
    %3273 = vmatpush1.msra.mxu0 %v1903
    %3274 = vmatprep.subr.mxu0 %v1907
    %3275 = vmatpush1.msra.mxu0 %v1906
    %3276 = vmatprep.subr.mxu0 %v1910
    %3277 = vmatpush1.msra.mxu0 %v1909
    %3278 = vmatprep.subr.mxu0 %v1913
    %3279 = vmatpush1.msra.mxu0 %v1912
    %3280 = vmatprep.subr.mxu0 0.0
    %3281 = vmatpush1.msra.mxu0 0.0
    %3282 = vmatprep.subr.mxu0 0.0
    %3283 = vmatpush1.msra.mxu0 0.0
    %3284 = vmatprep.subr.mxu0 0.0
    %3285 = vmatpush1.msra.mxu0 0.0
    %3286 = vmatprep.subr.mxu0 0.0
    %3287 = vmatpush1.msra.mxu0 0.0
    %3288 = vmatprep.subr.mxu0 0.0
    %3289 = vmatpush1.msra.mxu0 0.0
    %3290 = vmatprep.subr.mxu0 0.0
    %3291 = vmatpush1.msra.mxu0 0.0
    %3292 = vmatprep.subr.mxu0 0.0
    %3293 = vmatpush1.msra.mxu0 0.0
    %3294 = vmatprep.subr.mxu0 0.0
    %3295 = vmatpush1.msra.mxu0 0.0
    %3296 = vmatprep.subr.mxu0 0.0
    %3297 = vmatpush1.msra.mxu0 0.0
    %3298 = vmatprep.subr.mxu0 0.0
    %3299 = vmatpush1.msra.mxu0 0.0
    %3300 = vmatprep.subr.mxu0 0.0
    %3301 = vmatpush1.msra.mxu0 0.0
    %3302 = vmatprep.subr.mxu0 0.0
    %3303 = vmatpush1.msra.mxu0 0.0
    %3304 = vmatprep.subr.mxu0 0.0
    %3305 = vmatpush1.msra.mxu0 0.0
    %3306 = vmatprep.subr.mxu0 0.0
    %3307 = vmatpush1.msra.mxu0 0.0
    %3308 = vmatprep.subr.mxu0 0.0
    %3309 = vmatpush1.msra.mxu0 0.0
    %3310 = vmatprep.subr.mxu0 0.0
    %3311 = vmatpush1.msra.mxu0 0.0
    %3312 = vmatprep.mubr.f32.mxu0 0.0
    %3313 = vmatmul.mubr.f32.gmra.mrb[0].mxu0 %v3243
    %v3314 = vpop.f32.mrb[0].mxu0
    %v3315 = vadd.f32 %v2240, %v3314
    %v3316 = vpop.f32.mrb[0].mxu0
    %v3317 = vadd.f32 %v2244, %v3316
    %3318 = vdwg.mxu0
    %3319 = vmatprep.subr.mxu0 0.0
    %3320 = vmatpush1.msra.mxu0 %v1869
    %3321 = vmatprep.subr.mxu0 0.0
    %3322 = vmatpush1.msra.mxu0 %v1872
    %3323 = vmatprep.subr.mxu0 0.0
    %3324 = vmatpush1.msra.mxu0 %v1875
    %3325 = vmatprep.subr.mxu0 0.0
    %3326 = vmatpush1.msra.mxu0 %v1878
    %3327 = vmatprep.subr.mxu0 0.0
    %3328 = vmatpush1.msra.mxu0 %v1881
    %3329 = vmatprep.subr.mxu0 0.0
    %3330 = vmatpush1.msra.mxu0 %v1884
    %3331 = vmatprep.subr.mxu0 0.0
    %3332 = vmatpush1.msra.mxu0 %v1887
    %3333 = vmatprep.subr.mxu0 0.0
    %3334 = vmatpush1.msra.mxu0 %v1890
    %3335 = vmatprep.subr.mxu0 0.0
    %3336 = vmatpush1.msra.mxu0 %v1893
    %3337 = vmatprep.subr.mxu0 0.0
    %3338 = vmatpush1.msra.mxu0 %v1896
    %3339 = vmatprep.subr.mxu0 0.0
    %3340 = vmatpush1.msra.mxu0 %v1899
    %3341 = vmatprep.subr.mxu0 0.0
    %3342 = vmatpush1.msra.mxu0 %v1902
    %3343 = vmatprep.subr.mxu0 0.0
    %3344 = vmatpush1.msra.mxu0 %v1905
    %3345 = vmatprep.subr.mxu0 0.0
    %3346 = vmatpush1.msra.mxu0 %v1908
    %3347 = vmatprep.subr.mxu0 0.0
    %3348 = vmatpush1.msra.mxu0 %v1911
    %3349 = vmatprep.subr.mxu0 0.0
    %3350 = vmatpush1.msra.mxu0 %v1914
    %3351 = vmatprep.subr.mxu0 0.0
    %3352 = vmatpush1.msra.mxu0 0.0
    %3353 = vmatprep.subr.mxu0 0.0
    %3354 = vmatpush1.msra.mxu0 0.0
    %3355 = vmatprep.subr.mxu0 0.0
    %3356 = vmatpush1.msra.mxu0 0.0
    %3357 = vmatprep.subr.mxu0 0.0
    %3358 = vmatpush1.msra.mxu0 0.0
    %3359 = vmatprep.subr.mxu0 0.0
    %3360 = vmatpush1.msra.mxu0 0.0
    %3361 = vmatprep.subr.mxu0 0.0
    %3362 = vmatpush1.msra.mxu0 0.0
    %3363 = vmatprep.subr.mxu0 0.0
    %3364 = vmatpush1.msra.mxu0 0.0
    %3365 = vmatprep.subr.mxu0 0.0
    %3366 = vmatpush1.msra.mxu0 0.0
    %3367 = vmatprep.subr.mxu0 0.0
    %3368 = vmatpush1.msra.mxu0 0.0
    %3369 = vmatprep.subr.mxu0 0.0
    %3370 = vmatpush1.msra.mxu0 0.0
    %3371 = vmatprep.subr.mxu0 0.0
    %3372 = vmatpush1.msra.mxu0 0.0
    %3373 = vmatprep.subr.mxu0 0.0
    %3374 = vmatpush1.msra.mxu0 0.0
    %3375 = vmatprep.subr.mxu0 0.0
    %3376 = vmatpush1.msra.mxu0 0.0
    %3377 = vmatprep.subr.mxu0 0.0
    %3378 = vmatpush1.msra.mxu0 0.0
    %3379 = vmatprep.subr.mxu0 0.0
    %3380 = vmatpush1.msra.mxu0 0.0
    %3381 = vmatprep.subr.mxu0 0.0
    %3382 = vmatpush1.msra.mxu0 0.0
    %3383 = vmatprep.mubr.f32.mxu0 0.0
    %3384 = vmatmul.mubr.f32.gmra.mrb[0].mxu0 %v3243
    %v3385 = vpop.f32.mrb[0].mxu0
    %v3386 = vadd.f32 %v2248, %v3385
    %v3387 = vpop.f32.mrb[0].mxu0
    %3388 = vdwg.mxu0
    %v3389 = vadd.f32 %v3245, %v3315
    %v3390 = vadd.f32 %v3246, %v3317
    %v3391 = vxor.u32 %v3389, 2147483648
    %v3392 = vxor.u32 %v3390, 2147483648
    %v3393 = vmul.f32 %v3391, 1.442695
    %v3394 = vpow.pop %v3393
    %v3395 = vmul.f32 %v3392, 1.442695
    %v3396 = vpow.pop %v3395
    %v3397 = vadd.f32 %v3394, 1.0
    %v3398 = vadd.f32 %v3396, 1.0
    %v3399 = vrcp.pop %v3397
    %v3400 = vmul.f32 1.0, %v3399
    %v3401 = vrcp.pop %v3398
    %v3402 = vmul.f32 1.0, %v3401
    %v3403 = vmul.f32 %v3400, %v3386
    %v3404 = vadd.f32 %v3247, %v3403
    %v3405 = vtanh.pop %v3404
    %v3406 = vsub.f32 1.0, %v3402
    %v3407 = vmul.f32 %v3406, %v3405
    %v3408 = vmul.f32 %v3402, %v3243
    %v3409 = vadd.f32 %v3407, %v3408
    %3410 = vst [vmem:[%s1696] sm:$0xff] %v3409
    %v3411 = vld [vmem:[%s1698] sm:$0xff]
    %v3412 = vld [vmem:[%s1698 + $0x8] sm:$0xff]
    %v3413 = vld [vmem:[%s1698 + $0x10] sm:$0xff]
    %3414 = vmatprep.subr.mxu0 %v1868
    %3415 = vmatpush1.msra.mxu0 %v1867
    %3416 = vmatprep.subr.mxu0 %v1871
    %3417 = vmatpush1.msra.mxu0 %v1870
    %3418 = vmatprep.subr.mxu0 %v1874
    %3419 = vmatpush1.msra.mxu0 %v1873
    %3420 = vmatprep.subr.mxu0 %v1877
    %3421 = vmatpush1.msra.mxu0 %v1876
    %3422 = vmatprep.subr.mxu0 %v1880
    %3423 = vmatpush1.msra.mxu0 %v1879
    %3424 = vmatprep.subr.mxu0 %v1883
    %3425 = vmatpush1.msra.mxu0 %v1882
    %3426 = vmatprep.subr.mxu0 %v1886
    %3427 = vmatpush1.msra.mxu0 %v1885
    %3428 = vmatprep.subr.mxu0 %v1889
    %3429 = vmatpush1.msra.mxu0 %v1888
    %3430 = vmatprep.subr.mxu0 %v1892
    %3431 = vmatpush1.msra.mxu0 %v1891
    %3432 = vmatprep.subr.mxu0 %v1895
    %3433 = vmatpush1.msra.mxu0 %v1894
    %3434 = vmatprep.subr.mxu0 %v1898
    %3435 = vmatpush1.msra.mxu0 %v1897
    %3436 = vmatprep.subr.mxu0 %v1901
    %3437 = vmatpush1.msra.mxu0 %v1900
    %3438 = vmatprep.subr.mxu0 %v1904
    %3439 = vmatpush1.msra.mxu0 %v1903
    %3440 = vmatprep.subr.mxu0 %v1907
    %3441 = vmatpush1.msra.mxu0 %v1906
    %3442 = vmatprep.subr.mxu0 %v1910
    %3443 = vmatpush1.msra.mxu0 %v1909
    %3444 = vmatprep.subr.mxu0 %v1913
    %3445 = vmatpush1.msra.mxu0 %v1912
    %3446 = vmatprep.subr.mxu0 0.0
    %3447 = vmatpush1.msra.mxu0 0.0
    %3448 = vmatprep.subr.mxu0 0.0
    %3449 = vmatpush1.msra.mxu0 0.0
    %3450 = vmatprep.subr.mxu0 0.0
    %3451 = vmatpush1.msra.mxu0 0.0
    %3452 = vmatprep.subr.mxu0 0.0
    %3453 = vmatpush1.msra.mxu0 0.0
    %3454 = vmatprep.subr.mxu0 0.0
    %3455 = vmatpush1.msra.mxu0 0.0
    %3456 = vmatprep.subr.mxu0 0.0
    %3457 = vmatpush1.msra.mxu0 0.0
    %3458 = vmatprep.subr.mxu0 0.0
    %3459 = vmatpush1.msra.mxu0 0.0
    %3460 = vmatprep.subr.mxu0 0.0
    %3461 = vmatpush1.msra.mxu0 0.0
    %3462 = vmatprep.subr.mxu0 0.0
    %3463 = vmatpush1.msra.mxu0 0.0
    %3464 = vmatprep.subr.mxu0 0.0
    %3465 = vmatpush1.msra.mxu0 0.0
    %3466 = vmatprep.subr.mxu0 0.0
    %3467 = vmatpush1.msra.mxu0 0.0
    %3468 = vmatprep.subr.mxu0 0.0
    %3469 = vmatpush1.msra.mxu0 0.0
    %3470 = vmatprep.subr.mxu0 0.0
    %3471 = vmatpush1.msra.mxu0 0.0
    %3472 = vmatprep.subr.mxu0 0.0
    %3473 = vmatpush1.msra.mxu0 0.0
    %3474 = vmatprep.subr.mxu0 0.0
    %3475 = vmatpush1.msra.mxu0 0.0
    %3476 = vmatprep.subr.mxu0 0.0
    %3477 = vmatpush1.msra.mxu0 0.0
    %3478 = vmatprep.mubr.f32.mxu0 0.0
    %3479 = vmatmul.mubr.f32.gmra.mrb[0].mxu0 %v3409
    %v3480 = vpop.f32.mrb[0].mxu0
    %v3481 = vadd.f32 %v2240, %v3480
    %v3482 = vpop.f32.mrb[0].mxu0
    %v3483 = vadd.f32 %v2244, %v3482
    %3484 = vdwg.mxu0
    %3485 = vmatprep.subr.mxu0 0.0
    %3486 = vmatpush1.msra.mxu0 %v1869
    %3487 = vmatprep.subr.mxu0 0.0
    %3488 = vmatpush1.msra.mxu0 %v1872
    %3489 = vmatprep.subr.mxu0 0.0
    %3490 = vmatpush1.msra.mxu0 %v1875
    %3491 = vmatprep.subr.mxu0 0.0
    %3492 = vmatpush1.msra.mxu0 %v1878
    %3493 = vmatprep.subr.mxu0 0.0
    %3494 = vmatpush1.msra.mxu0 %v1881
    %3495 = vmatprep.subr.mxu0 0.0
    %3496 = vmatpush1.msra.mxu0 %v1884
    %3497 = vmatprep.subr.mxu0 0.0
    %3498 = vmatpush1.msra.mxu0 %v1887
    %3499 = vmatprep.subr.mxu0 0.0
    %3500 = vmatpush1.msra.mxu0 %v1890
    %3501 = vmatprep.subr.mxu0 0.0
    %3502 = vmatpush1.msra.mxu0 %v1893
    %3503 = vmatprep.subr.mxu0 0.0
    %3504 = vmatpush1.msra.mxu0 %v1896
    %3505 = vmatprep.subr.mxu0 0.0
    %3506 = vmatpush1.msra.mxu0 %v1899
    %3507 = vmatprep.subr.mxu0 0.0
    %3508 = vmatpush1.msra.mxu0 %v1902
    %3509 = vmatprep.subr.mxu0 0.0
    %3510 = vmatpush1.msra.mxu0 %v1905
    %3511 = vmatprep.subr.mxu0 0.0
    %3512 = vmatpush1.msra.mxu0 %v1908
    %3513 = vmatprep.subr.mxu0 0.0
    %3514 = vmatpush1.msra.mxu0 %v1911
    %3515 = vmatprep.subr.mxu0 0.0
    %3516 = vmatpush1.msra.mxu0 %v1914
    %3517 = vmatprep.subr.mxu0 0.0
    %3518 = vmatpush1.msra.mxu0 0.0
    %3519 = vmatprep.subr.mxu0 0.0
    %3520 = vmatpush1.msra.mxu0 0.0
    %3521 = vmatprep.subr.mxu0 0.0
    %3522 = vmatpush1.msra.mxu0 0.0
    %3523 = vmatprep.subr.mxu0 0.0
    %3524 = vmatpush1.msra.mxu0 0.0
    %3525 = vmatprep.subr.mxu0 0.0
    %3526 = vmatpush1.msra.mxu0 0.0
    %3527 = vmatprep.subr.mxu0 0.0
    %3528 = vmatpush1.msra.mxu0 0.0
    %3529 = vmatprep.subr.mxu0 0.0
    %3530 = vmatpush1.msra.mxu0 0.0
    %3531 = vmatprep.subr.mxu0 0.0
    %3532 = vmatpush1.msra.mxu0 0.0
    %3533 = vmatprep.subr.mxu0 0.0
    %3534 = vmatpush1.msra.mxu0 0.0
    %3535 = vmatprep.subr.mxu0 0.0
    %3536 = vmatpush1.msra.mxu0 0.0
    %3537 = vmatprep.subr.mxu0 0.0
    %3538 = vmatpush1.msra.mxu0 0.0
    %3539 = vmatprep.subr.mxu0 0.0
    %3540 = vmatpush1.msra.mxu0 0.0
    %3541 = vmatprep.subr.mxu0 0.0
    %3542 = vmatpush1.msra.mxu0 0.0
    %3543 = vmatprep.subr.mxu0 0.0
    %3544 = vmatpush1.msra.mxu0 0.0
    %3545 = vmatprep.subr.mxu0 0.0
    %3546 = vmatpush1.msra.mxu0 0.0
    %3547 = vmatprep.subr.mxu0 0.0
    %3548 = vmatpush1.msra.mxu0 0.0
    %3549 = vmatprep.mubr.f32.mxu0 0.0
    %3550 = vmatmul.mubr.f32.gmra.mrb[0].mxu0 %v3409
    %v3551 = vpop.f32.mrb[0].mxu0
    %v3552 = vadd.f32 %v2248, %v3551
    %v3553 = vpop.f32.mrb[0].mxu0
    %3554 = vdwg.mxu0
    %v3555 = vadd.f32 %v3411, %v3481
    %v3556 = vadd.f32 %v3412, %v3483
    %v3557 = vxor.u32 %v3555, 2147483648
    %v3558 = vxor.u32 %v3556, 2147483648
    %v3559 = vmul.f32 %v3557, 1.442695
    %v3560 = vpow.pop %v3559
    %v3561 = vmul.f32 %v3558, 1.442695
    %v3562 = vpow.pop %v3561
    %v3563 = vadd.f32 %v3560, 1.0
    %v3564 = vadd.f32 %v3562, 1.0
    %v3565 = vrcp.pop %v3563
    %v3566 = vmul.f32 1.0, %v3565
    %v3567 = vrcp.pop %v3564
    %v3568 = vmul.f32 1.0, %v3567
    %v3569 = vmul.f32 %v3566, %v3552
    %v3570 = vadd.f32 %v3413, %v3569
    %v3571 = vtanh.pop %v3570
    %v3572 = vsub.f32 1.0, %v3568
    %v3573 = vmul.f32 %v3572, %v3571
    %v3574 = vmul.f32 %v3568, %v3409
    %v3575 = vadd.f32 %v3573, %v3574
    %3576 = vst [vmem:[%s1864] sm:$0xff] %v3575
    %s3577 = scalar_lea.vmem [#allocation18], 8
    %3578 = vst [vmem:[%s3577] sm:$0xff] %v3575
    %v3579 = vld [vmem:[#allocation15] sm:$0xff]
    %v3580 = vld [vmem:[#allocation15 + $0x8] sm:$0xff]
    %v3581 = vld [vmem:[#allocation15 + $0x10] sm:$0xff]
    %v3582 = vld [vmem:[#allocation15 + $0x18] sm:$0xff]
    %v3583 = vld [vmem:[#allocation15 + $0x20] sm:$0xff]
    %v3584 = vld [vmem:[#allocation15 + $0x28] sm:$0xff]
    %v3585 = vld [vmem:[#allocation15 + $0x30] sm:$0xff]
    %v3586 = vld [vmem:[#allocation15 + $0x38] sm:$0xff]
    %v3587 = vld [vmem:[#allocation15 + $0x40] sm:$0xff]
    %v3588 = vld [vmem:[#allocation15 + $0x48] sm:$0xff]
    %v3589 = vld [vmem:[#allocation15 + $0x50] sm:$0xff]
    %v3590 = vld [vmem:[#allocation15 + $0x58] sm:$0xff]
    %v3591 = vld [vmem:[#allocation15 + $0x60] sm:$0xff]
    %v3592 = vld [vmem:[#allocation15 + $0x68] sm:$0xff]
    %v3593 = vld [vmem:[#allocation15 + $0x70] sm:$0xff]
    %v3594 = vld [vmem:[#allocation15 + $0x78] sm:$0xff]
    %v3595 = vld [vmem:[#allocation15 + $0x80] sm:$0xff]
    %v3596 = vld [vmem:[#allocation15 + $0x88] sm:$0xff]
    %v3597 = vld [vmem:[#allocation15 + $0x90] sm:$0xff]
    %v3598 = vld [vmem:[#allocation15 + $0x98] sm:$0xff]
    %v3599 = vld [vmem:[#allocation15 + $0xa0] sm:$0xff]
    %v3600 = vld [vmem:[#allocation15 + $0xa8] sm:$0xff]
    %v3601 = vld [vmem:[#allocation15 + $0xb0] sm:$0xff]
    %v3602 = vld [vmem:[#allocation15 + $0xb8] sm:$0xff]
    %v3603 = vld [vmem:[#allocation15 + $0xc0] sm:$0xff]
    %v3604 = vld [vmem:[#allocation15 + $0xc8] sm:$0xff]
    %v3605 = vld [vmem:[#allocation15 + $0xd0] sm:$0xff]
    %v3606 = vld [vmem:[#allocation15 + $0xd8] sm:$0xff]
    %v3607 = vld [vmem:[#allocation15 + $0xe0] sm:$0xff]
    %v3608 = vld [vmem:[#allocation15 + $0xe8] sm:$0xff]
    %v3609 = vld [vmem:[#allocation15 + $0xf0] sm:$0xff]
    %v3610 = vld [vmem:[#allocation15 + $0xf8] sm:$0xff]
    %v3611 = vld [vmem:[#allocation15 + $0x100] sm:$0xff]
    %v3612 = vld [vmem:[#allocation15 + $0x108] sm:$0xff]
    %v3613 = vld [vmem:[#allocation15 + $0x110] sm:$0xff]
    %v3614 = vld [vmem:[#allocation15 + $0x118] sm:$0xff]
    %v3615 = vld [vmem:[#allocation15 + $0x120] sm:$0xff]
    %v3616 = vld [vmem:[#allocation15 + $0x128] sm:$0xff]
    %v3617 = vld [vmem:[#allocation15 + $0x130] sm:$0xff]
    %v3618 = vld [vmem:[#allocation15 + $0x138] sm:$0xff]
    %v3619 = vld [vmem:[#allocation15 + $0x140] sm:$0xff]
    %v3620 = vld [vmem:[#allocation15 + $0x148] sm:$0xff]
    %v3621 = vld [vmem:[#allocation15 + $0x150] sm:$0xff]
    %v3622 = vld [vmem:[#allocation15 + $0x158] sm:$0xff]
    %v3623 = vld [vmem:[#allocation15 + $0x160] sm:$0xff]
    %v3624 = vld [vmem:[#allocation15 + $0x168] sm:$0xff]
    %v3625 = vld [vmem:[#allocation15 + $0x170] sm:$0xff]
    %v3626 = vld [vmem:[#allocation15 + $0x178] sm:$0xff]
    %v3627 = vld [vmem:[%s13] sm:$0x7]
    %v3628 = vld [vmem:[#allocation17] sm:$0xff]
    %v3629 = vld [vmem:[#allocation17 + $0x8] sm:$0xff]
    %v3630 = vld [vmem:[#allocation17 + $0x10] sm:$0xff]
    %v3631 = vld [vmem:[#allocation17 + $0x18] sm:$0xff]
    %v3632 = vld [vmem:[#allocation17 + $0x20] sm:$0xff]
    %v3633 = vld [vmem:[#allocation17 + $0x28] sm:$0xff]
    %v3634 = vld [vmem:[#allocation17 + $0x30] sm:$0xff]
    %v3635 = vld [vmem:[#allocation17 + $0x38] sm:$0xff]
    %v3636 = vld [vmem:[#allocation14] sm:$0xff]
    %v3637 = vld [vmem:[#allocation14 + $0x8] sm:$0xff]
    %v3638 = vld [vmem:[#allocation14 + $0x10] sm:$0xff]
    %v3639 = vld [vmem:[#allocation14 + $0x18] sm:$0xff]
    %v3640 = vld [vmem:[#allocation14 + $0x20] sm:$0xff]
    %v3641 = vld [vmem:[#allocation14 + $0x28] sm:$0xff]
    %v3642 = vld [vmem:[#allocation14 + $0x30] sm:$0xff]
    %v3643 = vld [vmem:[#allocation14 + $0x38] sm:$0xff]
    %v3644 = vld [vmem:[#allocation14 + $0x40] sm:$0xff]
    %v3645 = vld [vmem:[#allocation14 + $0x48] sm:$0xff]
    %v3646 = vld [vmem:[#allocation14 + $0x50] sm:$0xff]
    %v3647 = vld [vmem:[#allocation14 + $0x58] sm:$0xff]
    %v3648 = vld [vmem:[#allocation14 + $0x60] sm:$0xff]
    %v3649 = vld [vmem:[#allocation14 + $0x68] sm:$0xff]
    %v3650 = vld [vmem:[#allocation14 + $0x70] sm:$0xff]
    %v3651 = vld [vmem:[#allocation14 + $0x78] sm:$0xff]
    %v3652 = vld [vmem:[#allocation14 + $0x80] sm:$0xff]
    %v3653 = vld [vmem:[#allocation14 + $0x88] sm:$0xff]
    %v3654 = vld [vmem:[#allocation14 + $0x90] sm:$0xff]
    %v3655 = vld [vmem:[#allocation14 + $0x98] sm:$0xff]
    %v3656 = vld [vmem:[#allocation14 + $0xa0] sm:$0xff]
    %v3657 = vld [vmem:[#allocation14 + $0xa8] sm:$0xff]
    %v3658 = vld [vmem:[#allocation14 + $0xb0] sm:$0xff]
    %v3659 = vld [vmem:[#allocation14 + $0xb8] sm:$0xff]
    %v3660 = vld [vmem:[#allocation14 + $0xc0] sm:$0xff]
    %v3661 = vld [vmem:[#allocation14 + $0xc8] sm:$0xff]
    %v3662 = vld [vmem:[#allocation14 + $0xd0] sm:$0xff]
    %v3663 = vld [vmem:[#allocation14 + $0xd8] sm:$0xff]
    %v3664 = vld [vmem:[#allocation14 + $0xe0] sm:$0xff]
    %v3665 = vld [vmem:[#allocation14 + $0xe8] sm:$0xff]
    %v3666 = vld [vmem:[#allocation14 + $0xf0] sm:$0xff]
    %v3667 = vld [vmem:[#allocation14 + $0xf8] sm:$0xff]
    %v3668 = vld [vmem:[#allocation14 + $0x100] sm:$0xff]
    %v3669 = vld [vmem:[#allocation14 + $0x108] sm:$0xff]
    %v3670 = vld [vmem:[#allocation14 + $0x110] sm:$0xff]
    %v3671 = vld [vmem:[#allocation14 + $0x118] sm:$0xff]
    %v3672 = vld [vmem:[#allocation14 + $0x120] sm:$0xff]
    %v3673 = vld [vmem:[#allocation14 + $0x128] sm:$0xff]
    %v3674 = vld [vmem:[#allocation14 + $0x130] sm:$0xff]
    %v3675 = vld [vmem:[#allocation14 + $0x138] sm:$0xff]
    %v3676 = vld [vmem:[#allocation14 + $0x140] sm:$0xff]
    %v3677 = vld [vmem:[#allocation14 + $0x148] sm:$0xff]
    %v3678 = vld [vmem:[#allocation14 + $0x150] sm:$0xff]
    %v3679 = vld [vmem:[#allocation14 + $0x158] sm:$0xff]
    %v3680 = vld [vmem:[#allocation14 + $0x160] sm:$0xff]
    %v3681 = vld [vmem:[#allocation14 + $0x168] sm:$0xff]
    %v3682 = vld [vmem:[#allocation14 + $0x170] sm:$0xff]
    %v3683 = vld [vmem:[#allocation14 + $0x178] sm:$0xff]
    %v3684 = vld [vmem:[%s12] sm:$0x7]
    %v3686 = vlaneseq
    %v3687 = vshrl.u32 %v3686, 7
    %v3688 = vsub.s32 0, %v3687
    %v3689 = vrot.slane %v3684, %v3688
    %v3690 = vlaneseq
    %v3691 = vshrl.u32 %v3690, 7
    %v3692 = vsub.s32 1, %v3691
    %v3693 = vrot.slane %v3684, %v3692
    %v3694 = vlaneseq
    %v3695 = vshrl.u32 %v3694, 7
    %v3696 = vsub.s32 2, %v3695
    %v3697 = vrot.slane %v3684, %v3696
    %3701 = vmatprep.subr.mxu0 %v3637
    %3702 = vmatpush1.msra.mxu0 %v3636
    %3703 = vmatprep.subr.mxu0 %v3640
    %3704 = vmatpush1.msra.mxu0 %v3639
    %3705 = vmatprep.subr.mxu0 %v3643
    %3706 = vmatpush1.msra.mxu0 %v3642
    %3707 = vmatprep.subr.mxu0 %v3646
    %3708 = vmatpush1.msra.mxu0 %v3645
    %3709 = vmatprep.subr.mxu0 %v3649
    %3710 = vmatpush1.msra.mxu0 %v3648
    %3711 = vmatprep.subr.mxu0 %v3652
    %3712 = vmatpush1.msra.mxu0 %v3651
    %3713 = vmatprep.subr.mxu0 %v3655
    %3714 = vmatpush1.msra.mxu0 %v3654
    %3715 = vmatprep.subr.mxu0 %v3658
    %3716 = vmatpush1.msra.mxu0 %v3657
    %3717 = vmatprep.subr.mxu0 %v3661
    %3718 = vmatpush1.msra.mxu0 %v3660
    %3719 = vmatprep.subr.mxu0 %v3664
    %3720 = vmatpush1.msra.mxu0 %v3663
    %3721 = vmatprep.subr.mxu0 %v3667
    %3722 = vmatpush1.msra.mxu0 %v3666
    %3723 = vmatprep.subr.mxu0 %v3670
    %3724 = vmatpush1.msra.mxu0 %v3669
    %3725 = vmatprep.subr.mxu0 %v3673
    %3726 = vmatpush1.msra.mxu0 %v3672
    %3727 = vmatprep.subr.mxu0 %v3676
    %3728 = vmatpush1.msra.mxu0 %v3675
    %3729 = vmatprep.subr.mxu0 %v3679
    %3730 = vmatpush1.msra.mxu0 %v3678
    %3731 = vmatprep.subr.mxu0 %v3682
    %3732 = vmatpush1.msra.mxu0 %v3681
    %3733 = vmatprep.subr.mxu0 0.0
    %3734 = vmatpush1.msra.mxu0 0.0
    %3735 = vmatprep.subr.mxu0 0.0
    %3736 = vmatpush1.msra.mxu0 0.0
    %3737 = vmatprep.subr.mxu0 0.0
    %3738 = vmatpush1.msra.mxu0 0.0
    %3739 = vmatprep.subr.mxu0 0.0
    %3740 = vmatpush1.msra.mxu0 0.0
    %3741 = vmatprep.subr.mxu0 0.0
    %3742 = vmatpush1.msra.mxu0 0.0
    %3743 = vmatprep.subr.mxu0 0.0
    %3744 = vmatpush1.msra.mxu0 0.0
    %3745 = vmatprep.subr.mxu0 0.0
    %3746 = vmatpush1.msra.mxu0 0.0
    %3747 = vmatprep.subr.mxu0 0.0
    %3748 = vmatpush1.msra.mxu0 0.0
    %3749 = vmatprep.subr.mxu0 0.0
    %3750 = vmatpush1.msra.mxu0 0.0
    %3751 = vmatprep.subr.mxu0 0.0
    %3752 = vmatpush1.msra.mxu0 0.0
    %3753 = vmatprep.subr.mxu0 0.0
    %3754 = vmatpush1.msra.mxu0 0.0
    %3755 = vmatprep.subr.mxu0 0.0
    %3756 = vmatpush1.msra.mxu0 0.0
    %3757 = vmatprep.subr.mxu0 0.0
    %3758 = vmatpush1.msra.mxu0 0.0
    %3759 = vmatprep.subr.mxu0 0.0
    %3760 = vmatpush1.msra.mxu0 0.0
    %3761 = vmatprep.subr.mxu0 0.0
    %3762 = vmatpush1.msra.mxu0 0.0
    %3763 = vmatprep.subr.mxu0 0.0
    %3764 = vmatpush1.msra.mxu0 0.0
    %3765 = vmatprep.mubr.f32.mxu0 0.0
    %3766 = vmatmul.mubr.f32.gmra.mrb[0].mxu0 %v3628
    %v3767 = vpop.f32.mrb[0].mxu0
    %v3768 = vadd.f32 %v3689, %v3767
    %v3769 = vpop.f32.mrb[0].mxu0
    %v3770 = vadd.f32 %v3693, %v3769
    %3771 = vmatprep.mubr.f32.mxu0 0.0
    %3772 = vmatmul.mubr.f32.gmra.mrb[0].mxu0 %v3629
    %v3773 = vpop.f32.mrb[0].mxu0
    %v3774 = vadd.f32 %v3689, %v3773
    %v3775 = vpop.f32.mrb[0].mxu0
    %v3776 = vadd.f32 %v3693, %v3775
    %3777 = vmatprep.mubr.f32.mxu0 0.0
    %3778 = vmatmul.mubr.f32.gmra.mrb[0].mxu0 %v3630
    %v3779 = vpop.f32.mrb[0].mxu0
    %v3780 = vadd.f32 %v3689, %v3779
    %v3781 = vpop.f32.mrb[0].mxu0
    %v3782 = vadd.f32 %v3693, %v3781
    %3783 = vmatprep.mubr.f32.mxu0 0.0
    %3784 = vmatmul.mubr.f32.gmra.mrb[0].mxu0 %v3631
    %v3785 = vpop.f32.mrb[0].mxu0
    %v3786 = vadd.f32 %v3689, %v3785
    %v3787 = vpop.f32.mrb[0].mxu0
    %v3788 = vadd.f32 %v3693, %v3787
    %3789 = vmatprep.mubr.f32.mxu0 0.0
    %3790 = vmatmul.mubr.f32.gmra.mrb[0].mxu0 %v3632
    %v3791 = vpop.f32.mrb[0].mxu0
    %v3792 = vadd.f32 %v3689, %v3791
    %v3793 = vpop.f32.mrb[0].mxu0
    %v3794 = vadd.f32 %v3693, %v3793
    %3795 = vmatprep.mubr.f32.mxu0 0.0
    %3796 = vmatmul.mubr.f32.gmra.mrb[0].mxu0 %v3633
    %v3797 = vpop.f32.mrb[0].mxu0
    %v3798 = vadd.f32 %v3689, %v3797
    %v3799 = vpop.f32.mrb[0].mxu0
    %v3800 = vadd.f32 %v3693, %v3799
    %3801 = vmatprep.mubr.f32.mxu0 0.0
    %3802 = vmatmul.mubr.f32.gmra.mrb[0].mxu0 %v3634
    %v3803 = vpop.f32.mrb[0].mxu0
    %v3804 = vadd.f32 %v3689, %v3803
    %v3805 = vpop.f32.mrb[0].mxu0
    %v3806 = vadd.f32 %v3693, %v3805
    %3807 = vmatprep.mubr.f32.mxu0 0.0
    %3808 = vmatmul.mubr.f32.gmra.mrb[0].mxu0 %v3635
    %v3809 = vpop.f32.mrb[0].mxu0
    %v3810 = vadd.f32 %v3689, %v3809
    %v3811 = vpop.f32.mrb[0].mxu0
    %v3812 = vadd.f32 %v3693, %v3811
    %3813 = vdwg.mxu0
    %3814 = vmatprep.subr.mxu0 0.0
    %3815 = vmatpush1.msra.mxu0 %v3638
    %3816 = vmatprep.subr.mxu0 0.0
    %3817 = vmatpush1.msra.mxu0 %v3641
    %3818 = vmatprep.subr.mxu0 0.0
    %3819 = vmatpush1.msra.mxu0 %v3644
    %3820 = vmatprep.subr.mxu0 0.0
    %3821 = vmatpush1.msra.mxu0 %v3647
    %3822 = vmatprep.subr.mxu0 0.0
    %3823 = vmatpush1.msra.mxu0 %v3650
    %3824 = vmatprep.subr.mxu0 0.0
    %3825 = vmatpush1.msra.mxu0 %v3653
    %3826 = vmatprep.subr.mxu0 0.0
    %3827 = vmatpush1.msra.mxu0 %v3656
    %3828 = vmatprep.subr.mxu0 0.0
    %3829 = vmatpush1.msra.mxu0 %v3659
    %3830 = vmatprep.subr.mxu0 0.0
    %3831 = vmatpush1.msra.mxu0 %v3662
    %3832 = vmatprep.subr.mxu0 0.0
    %3833 = vmatpush1.msra.mxu0 %v3665
    %3834 = vmatprep.subr.mxu0 0.0
    %3835 = vmatpush1.msra.mxu0 %v3668
    %3836 = vmatprep.subr.mxu0 0.0
    %3837 = vmatpush1.msra.mxu0 %v3671
    %3838 = vmatprep.subr.mxu0 0.0
    %3839 = vmatpush1.msra.mxu0 %v3674
    %3840 = vmatprep.subr.mxu0 0.0
    %3841 = vmatpush1.msra.mxu0 %v3677
    %3842 = vmatprep.subr.mxu0 0.0
    %3843 = vmatpush1.msra.mxu0 %v3680
    %3844 = vmatprep.subr.mxu0 0.0
    %3845 = vmatpush1.msra.mxu0 %v3683
    %3846 = vmatprep.subr.mxu0 0.0
    %3847 = vmatpush1.msra.mxu0 0.0
    %3848 = vmatprep.subr.mxu0 0.0
    %3849 = vmatpush1.msra.mxu0 0.0
    %3850 = vmatprep.subr.mxu0 0.0
    %3851 = vmatpush1.msra.mxu0 0.0
    %3852 = vmatprep.subr.mxu0 0.0
    %3853 = vmatpush1.msra.mxu0 0.0
    %3854 = vmatprep.subr.mxu0 0.0
    %3855 = vmatpush1.msra.mxu0 0.0
    %3856 = vmatprep.subr.mxu0 0.0
    %3857 = vmatpush1.msra.mxu0 0.0
    %3858 = vmatprep.subr.mxu0 0.0
    %3859 = vmatpush1.msra.mxu0 0.0
    %3860 = vmatprep.subr.mxu0 0.0
    %3861 = vmatpush1.msra.mxu0 0.0
    %3862 = vmatprep.subr.mxu0 0.0
    %3863 = vmatpush1.msra.mxu0 0.0
    %3864 = vmatprep.subr.mxu0 0.0
    %3865 = vmatpush1.msra.mxu0 0.0
    %3866 = vmatprep.subr.mxu0 0.0
    %3867 = vmatpush1.msra.mxu0 0.0
    %3868 = vmatprep.subr.mxu0 0.0
    %3869 = vmatpush1.msra.mxu0 0.0
    %3870 = vmatprep.subr.mxu0 0.0
    %3871 = vmatpush1.msra.mxu0 0.0
    %3872 = vmatprep.subr.mxu0 0.0
    %3873 = vmatpush1.msra.mxu0 0.0
    %3874 = vmatprep.subr.mxu0 0.0
    %3875 = vmatpush1.msra.mxu0 0.0
    %3876 = vmatprep.subr.mxu0 0.0
    %3877 = vmatpush1.msra.mxu0 0.0
    %3878 = vmatprep.mubr.f32.mxu0 0.0
    %3879 = vmatmul.mubr.f32.gmra.mrb[0].mxu0 %v3628
    %v3880 = vpop.f32.mrb[0].mxu0
    %v3881 = vadd.f32 %v3697, %v3880
    %v3882 = vpop.f32.mrb[0].mxu0
    %3883 = vmatprep.mubr.f32.mxu0 0.0
    %3884 = vmatmul.mubr.f32.gmra.mrb[0].mxu0 %v3629
    %v3885 = vpop.f32.mrb[0].mxu0
    %v3886 = vadd.f32 %v3697, %v3885
    %v3887 = vpop.f32.mrb[0].mxu0
    %3888 = vmatprep.mubr.f32.mxu0 0.0
    %3889 = vmatmul.mubr.f32.gmra.mrb[0].mxu0 %v3630
    %v3890 = vpop.f32.mrb[0].mxu0
    %v3891 = vadd.f32 %v3697, %v3890
    %v3892 = vpop.f32.mrb[0].mxu0
    %3893 = vmatprep.mubr.f32.mxu0 0.0
    %3894 = vmatmul.mubr.f32.gmra.mrb[0].mxu0 %v3631
    %v3895 = vpop.f32.mrb[0].mxu0
    %v3896 = vadd.f32 %v3697, %v3895
    %v3897 = vpop.f32.mrb[0].mxu0
    %3898 = vmatprep.mubr.f32.mxu0 0.0
    %3899 = vmatmul.mubr.f32.gmra.mrb[0].mxu0 %v3632
    %v3900 = vpop.f32.mrb[0].mxu0
    %v3901 = vadd.f32 %v3697, %v3900
    %v3902 = vpop.f32.mrb[0].mxu0
    %3903 = vmatprep.mubr.f32.mxu0 0.0
    %3904 = vmatmul.mubr.f32.gmra.mrb[0].mxu0 %v3633
    %v3905 = vpop.f32.mrb[0].mxu0
    %v3906 = vadd.f32 %v3697, %v3905
    %v3907 = vpop.f32.mrb[0].mxu0
    %3908 = vmatprep.mubr.f32.mxu0 0.0
    %3909 = vmatmul.mubr.f32.gmra.mrb[0].mxu0 %v3634
    %v3910 = vpop.f32.mrb[0].mxu0
    %v3911 = vadd.f32 %v3697, %v3910
    %v3912 = vpop.f32.mrb[0].mxu0
    %3913 = vmatprep.mubr.f32.mxu0 0.0
    %3914 = vmatmul.mubr.f32.gmra.mrb[0].mxu0 %v3635
    %v3915 = vpop.f32.mrb[0].mxu0
    %v3916 = vadd.f32 %v3697, %v3915
    %v3917 = vpop.f32.mrb[0].mxu0
    %3918 = vdwg.mxu0
    %3919 = vst [vmem:[#allocation2] sm:$0xff] %v3768
    %3920 = vst [vmem:[#allocation2 + $0x8] sm:$0xff] %v3770
    %3921 = vst [vmem:[#allocation2 + $0x10] sm:$0xff] %v3881
    %3922 = vst [vmem:[#allocation2 + $0x18] sm:$0xff] %v3774
    %3923 = vst [vmem:[#allocation2 + $0x20] sm:$0xff] %v3776
    %3924 = vst [vmem:[#allocation2 + $0x28] sm:$0xff] %v3886
    %3925 = vst [vmem:[#allocation2 + $0x30] sm:$0xff] %v3780
    %3926 = vst [vmem:[#allocation2 + $0x38] sm:$0xff] %v3782
    %3927 = vst [vmem:[#allocation2 + $0x40] sm:$0xff] %v3891
    %3928 = vst [vmem:[#allocation2 + $0x48] sm:$0xff] %v3786
    %3929 = vst [vmem:[#allocation2 + $0x50] sm:$0xff] %v3788
    %3930 = vst [vmem:[#allocation2 + $0x58] sm:$0xff] %v3896
    %3931 = vst [vmem:[#allocation2 + $0x60] sm:$0xff] %v3792
    %3932 = vst [vmem:[#allocation2 + $0x68] sm:$0xff] %v3794
    %3933 = vst [vmem:[#allocation2 + $0x70] sm:$0xff] %v3901
    %3934 = vst [vmem:[#allocation2 + $0x78] sm:$0xff] %v3798
    %3935 = vst [vmem:[#allocation2 + $0x80] sm:$0xff] %v3800
    %3936 = vst [vmem:[#allocation2 + $0x88] sm:$0xff] %v3906
    %3937 = vst [vmem:[#allocation2 + $0x90] sm:$0xff] %v3804
    %3938 = vst [vmem:[#allocation2 + $0x98] sm:$0xff] %v3806
    %3939 = vst [vmem:[#allocation2 + $0xa0] sm:$0xff] %v3911
    %3940 = vst [vmem:[#allocation2 + $0xa8] sm:$0xff] %v3810
    %3941 = vst [vmem:[#allocation2 + $0xb0] sm:$0xff] %v3812
    %3942 = vst [vmem:[#allocation2 + $0xb8] sm:$0xff] %v3916
    %s3943 = scalar_lea.vmem [#allocation6], 16
    %v3944 = vld [vmem:[%s3943] sm:$0xff]
    %v3945 = vld [vmem:[#allocation2] sm:$0xff]
    %v3946 = vld [vmem:[#allocation2 + $0x8] sm:$0xff]
    %v3947 = vld [vmem:[#allocation2 + $0x10] sm:$0xff]
    %v3949 = vlaneseq
    %v3950 = vshrl.u32 %v3949, 7
    %v3951 = vsub.s32 0, %v3950
    %v3952 = vrot.slane %v3627, %v3951
    %v3953 = vlaneseq
    %v3954 = vshrl.u32 %v3953, 7
    %v3955 = vsub.s32 1, %v3954
    %v3956 = vrot.slane %v3627, %v3955
    %v3957 = vlaneseq
    %v3958 = vshrl.u32 %v3957, 7
    %v3959 = vsub.s32 2, %v3958
    %v3960 = vrot.slane %v3627, %v3959
    %3964 = vmatprep.subr.mxu0 %v3580
    %3965 = vmatpush1.msra.mxu0 %v3579
    %3966 = vmatprep.subr.mxu0 %v3583
    %3967 = vmatpush1.msra.mxu0 %v3582
    %3968 = vmatprep.subr.mxu0 %v3586
    %3969 = vmatpush1.msra.mxu0 %v3585
    %3970 = vmatprep.subr.mxu0 %v3589
    %3971 = vmatpush1.msra.mxu0 %v3588
    %3972 = vmatprep.subr.mxu0 %v3592
    %3973 = vmatpush1.msra.mxu0 %v3591
    %3974 = vmatprep.subr.mxu0 %v3595
    %3975 = vmatpush1.msra.mxu0 %v3594
    %3976 = vmatprep.subr.mxu0 %v3598
    %3977 = vmatpush1.msra.mxu0 %v3597
    %3978 = vmatprep.subr.mxu0 %v3601
    %3979 = vmatpush1.msra.mxu0 %v3600
    %3980 = vmatprep.subr.mxu0 %v3604
    %3981 = vmatpush1.msra.mxu0 %v3603
    %3982 = vmatprep.subr.mxu0 %v3607
    %3983 = vmatpush1.msra.mxu0 %v3606
    %3984 = vmatprep.subr.mxu0 %v3610
    %3985 = vmatpush1.msra.mxu0 %v3609
    %3986 = vmatprep.subr.mxu0 %v3613
    %3987 = vmatpush1.msra.mxu0 %v3612
    %3988 = vmatprep.subr.mxu0 %v3616
    %3989 = vmatpush1.msra.mxu0 %v3615
    %3990 = vmatprep.subr.mxu0 %v3619
    %3991 = vmatpush1.msra.mxu0 %v3618
    %3992 = vmatprep.subr.mxu0 %v3622
    %3993 = vmatpush1.msra.mxu0 %v3621
    %3994 = vmatprep.subr.mxu0 %v3625
    %3995 = vmatpush1.msra.mxu0 %v3624
    %3996 = vmatprep.subr.mxu0 0.0
    %3997 = vmatpush1.msra.mxu0 0.0
    %3998 = vmatprep.subr.mxu0 0.0
    %3999 = vmatpush1.msra.mxu0 0.0
    %4000 = vmatprep.subr.mxu0 0.0
    %4001 = vmatpush1.msra.mxu0 0.0
    %4002 = vmatprep.subr.mxu0 0.0
    %4003 = vmatpush1.msra.mxu0 0.0
    %4004 = vmatprep.subr.mxu0 0.0
    %4005 = vmatpush1.msra.mxu0 0.0
    %4006 = vmatprep.subr.mxu0 0.0
    %4007 = vmatpush1.msra.mxu0 0.0
    %4008 = vmatprep.subr.mxu0 0.0
    %4009 = vmatpush1.msra.mxu0 0.0
    %4010 = vmatprep.subr.mxu0 0.0
    %4011 = vmatpush1.msra.mxu0 0.0
    %4012 = vmatprep.subr.mxu0 0.0
    %4013 = vmatpush1.msra.mxu0 0.0
    %4014 = vmatprep.subr.mxu0 0.0
    %4015 = vmatpush1.msra.mxu0 0.0
    %4016 = vmatprep.subr.mxu0 0.0
    %4017 = vmatpush1.msra.mxu0 0.0
    %4018 = vmatprep.subr.mxu0 0.0
    %4019 = vmatpush1.msra.mxu0 0.0
    %4020 = vmatprep.subr.mxu0 0.0
    %4021 = vmatpush1.msra.mxu0 0.0
    %4022 = vmatprep.subr.mxu0 0.0
    %4023 = vmatpush1.msra.mxu0 0.0
    %4024 = vmatprep.subr.mxu0 0.0
    %4025 = vmatpush1.msra.mxu0 0.0
    %4026 = vmatprep.subr.mxu0 0.0
    %4027 = vmatpush1.msra.mxu0 0.0
    %4028 = vmatprep.mubr.f32.mxu0 0.0
    %4029 = vmatmul.mubr.f32.gmra.mrb[0].mxu0 %v3944
    %v4030 = vpop.f32.mrb[0].mxu0
    %v4031 = vadd.f32 %v3952, %v4030
    %v4032 = vpop.f32.mrb[0].mxu0
    %v4033 = vadd.f32 %v3956, %v4032
    %4034 = vdwg.mxu0
    %4035 = vmatprep.subr.mxu0 0.0
    %4036 = vmatpush1.msra.mxu0 %v3581
    %4037 = vmatprep.subr.mxu0 0.0
    %4038 = vmatpush1.msra.mxu0 %v3584
    %4039 = vmatprep.subr.mxu0 0.0
    %4040 = vmatpush1.msra.mxu0 %v3587
    %4041 = vmatprep.subr.mxu0 0.0
    %4042 = vmatpush1.msra.mxu0 %v3590
    %4043 = vmatprep.subr.mxu0 0.0
    %4044 = vmatpush1.msra.mxu0 %v3593
    %4045 = vmatprep.subr.mxu0 0.0
    %4046 = vmatpush1.msra.mxu0 %v3596
    %4047 = vmatprep.subr.mxu0 0.0
    %4048 = vmatpush1.msra.mxu0 %v3599
    %4049 = vmatprep.subr.mxu0 0.0
    %4050 = vmatpush1.msra.mxu0 %v3602
    %4051 = vmatprep.subr.mxu0 0.0
    %4052 = vmatpush1.msra.mxu0 %v3605
    %4053 = vmatprep.subr.mxu0 0.0
    %4054 = vmatpush1.msra.mxu0 %v3608
    %4055 = vmatprep.subr.mxu0 0.0
    %4056 = vmatpush1.msra.mxu0 %v3611
    %4057 = vmatprep.subr.mxu0 0.0
    %4058 = vmatpush1.msra.mxu0 %v3614
    %4059 = vmatprep.subr.mxu0 0.0
    %4060 = vmatpush1.msra.mxu0 %v3617
    %4061 = vmatprep.subr.mxu0 0.0
    %4062 = vmatpush1.msra.mxu0 %v3620
    %4063 = vmatprep.subr.mxu0 0.0
    %4064 = vmatpush1.msra.mxu0 %v3623
    %4065 = vmatprep.subr.mxu0 0.0
    %4066 = vmatpush1.msra.mxu0 %v3626
    %4067 = vmatprep.subr.mxu0 0.0
    %4068 = vmatpush1.msra.mxu0 0.0
    %4069 = vmatprep.subr.mxu0 0.0
    %4070 = vmatpush1.msra.mxu0 0.0
    %4071 = vmatprep.subr.mxu0 0.0
    %4072 = vmatpush1.msra.mxu0 0.0
    %4073 = vmatprep.subr.mxu0 0.0
    %4074 = vmatpush1.msra.mxu0 0.0
    %4075 = vmatprep.subr.mxu0 0.0
    %4076 = vmatpush1.msra.mxu0 0.0
    %4077 = vmatprep.subr.mxu0 0.0
    %4078 = vmatpush1.msra.mxu0 0.0
    %4079 = vmatprep.subr.mxu0 0.0
    %4080 = vmatpush1.msra.mxu0 0.0
    %4081 = vmatprep.subr.mxu0 0.0
    %4082 = vmatpush1.msra.mxu0 0.0
    %4083 = vmatprep.subr.mxu0 0.0
    %4084 = vmatpush1.msra.mxu0 0.0
    %4085 = vmatprep.subr.mxu0 0.0
    %4086 = vmatpush1.msra.mxu0 0.0
    %4087 = vmatprep.subr.mxu0 0.0
    %4088 = vmatpush1.msra.mxu0 0.0
    %4089 = vmatprep.subr.mxu0 0.0
    %4090 = vmatpush1.msra.mxu0 0.0
    %4091 = vmatprep.subr.mxu0 0.0
    %4092 = vmatpush1.msra.mxu0 0.0
    %4093 = vmatprep.subr.mxu0 0.0
    %4094 = vmatpush1.msra.mxu0 0.0
    %4095 = vmatprep.subr.mxu0 0.0
    %4096 = vmatpush1.msra.mxu0 0.0
    %4097 = vmatprep.subr.mxu0 0.0
    %4098 = vmatpush1.msra.mxu0 0.0
    %4099 = vmatprep.mubr.f32.mxu0 0.0
    %4100 = vmatmul.mubr.f32.gmra.mrb[0].mxu0 %v3944
    %v4101 = vpop.f32.mrb[0].mxu0
    %v4102 = vadd.f32 %v3960, %v4101
    %v4103 = vpop.f32.mrb[0].mxu0
    %4104 = vdwg.mxu0
    %v4105 = vadd.f32 %v3945, %v4031
    %v4106 = vadd.f32 %v3946, %v4033
    %v4107 = vxor.u32 %v4105, 2147483648
    %v4108 = vxor.u32 %v4106, 2147483648
    %v4109 = vmul.f32 %v4107, 1.442695
    %v4110 = vpow.pop %v4109
    %v4111 = vmul.f32 %v4108, 1.442695
    %v4112 = vpow.pop %v4111
    %v4113 = vadd.f32 %v4110, 1.0
    %v4114 = vadd.f32 %v4112, 1.0
    %v4115 = vrcp.pop %v4113
    %v4116 = vmul.f32 1.0, %v4115
    %v4117 = vrcp.pop %v4114
    %v4118 = vmul.f32 1.0, %v4117
    %v4119 = vmul.f32 %v4116, %v4102
    %v4120 = vadd.f32 %v3947, %v4119
    %v4121 = vtanh.pop %v4120
    %v4122 = vsub.f32 1.0, %v4118
    %v4123 = vmul.f32 %v4122, %v4121
    %v4124 = vmul.f32 %v4118, %v3944
    %v4125 = vadd.f32 %v4123, %v4124
    %4126 = vst [vmem:[#allocation17] sm:$0xff] %v4125
    %v4127 = vld [vmem:[%s690] sm:$0xff]
    %v4128 = vld [vmem:[%s690 + $0x8] sm:$0xff]
    %v4129 = vld [vmem:[%s690 + $0x10] sm:$0xff]
    %4130 = vmatprep.subr.mxu0 %v3580
    %4131 = vmatpush1.msra.mxu0 %v3579
    %4132 = vmatprep.subr.mxu0 %v3583
    %4133 = vmatpush1.msra.mxu0 %v3582
    %4134 = vmatprep.subr.mxu0 %v3586
    %4135 = vmatpush1.msra.mxu0 %v3585
    %4136 = vmatprep.subr.mxu0 %v3589
    %4137 = vmatpush1.msra.mxu0 %v3588
    %4138 = vmatprep.subr.mxu0 %v3592
    %4139 = vmatpush1.msra.mxu0 %v3591
    %4140 = vmatprep.subr.mxu0 %v3595
    %4141 = vmatpush1.msra.mxu0 %v3594
    %4142 = vmatprep.subr.mxu0 %v3598
    %4143 = vmatpush1.msra.mxu0 %v3597
    %4144 = vmatprep.subr.mxu0 %v3601
    %4145 = vmatpush1.msra.mxu0 %v3600
    %4146 = vmatprep.subr.mxu0 %v3604
    %4147 = vmatpush1.msra.mxu0 %v3603
    %4148 = vmatprep.subr.mxu0 %v3607
    %4149 = vmatpush1.msra.mxu0 %v3606
    %4150 = vmatprep.subr.mxu0 %v3610
    %4151 = vmatpush1.msra.mxu0 %v3609
    %4152 = vmatprep.subr.mxu0 %v3613
    %4153 = vmatpush1.msra.mxu0 %v3612
    %4154 = vmatprep.subr.mxu0 %v3616
    %4155 = vmatpush1.msra.mxu0 %v3615
    %4156 = vmatprep.subr.mxu0 %v3619
    %4157 = vmatpush1.msra.mxu0 %v3618
    %4158 = vmatprep.subr.mxu0 %v3622
    %4159 = vmatpush1.msra.mxu0 %v3621
    %4160 = vmatprep.subr.mxu0 %v3625
    %4161 = vmatpush1.msra.mxu0 %v3624
    %4162 = vmatprep.subr.mxu0 0.0
    %4163 = vmatpush1.msra.mxu0 0.0
    %4164 = vmatprep.subr.mxu0 0.0
    %4165 = vmatpush1.msra.mxu0 0.0
    %4166 = vmatprep.subr.mxu0 0.0
    %4167 = vmatpush1.msra.mxu0 0.0
    %4168 = vmatprep.subr.mxu0 0.0
    %4169 = vmatpush1.msra.mxu0 0.0
    %4170 = vmatprep.subr.mxu0 0.0
    %4171 = vmatpush1.msra.mxu0 0.0
    %4172 = vmatprep.subr.mxu0 0.0
    %4173 = vmatpush1.msra.mxu0 0.0
    %4174 = vmatprep.subr.mxu0 0.0
    %4175 = vmatpush1.msra.mxu0 0.0
    %4176 = vmatprep.subr.mxu0 0.0
    %4177 = vmatpush1.msra.mxu0 0.0
    %4178 = vmatprep.subr.mxu0 0.0
    %4179 = vmatpush1.msra.mxu0 0.0
    %4180 = vmatprep.subr.mxu0 0.0
    %4181 = vmatpush1.msra.mxu0 0.0
    %4182 = vmatprep.subr.mxu0 0.0
    %4183 = vmatpush1.msra.mxu0 0.0
    %4184 = vmatprep.subr.mxu0 0.0
    %4185 = vmatpush1.msra.mxu0 0.0
    %4186 = vmatprep.subr.mxu0 0.0
    %4187 = vmatpush1.msra.mxu0 0.0
    %4188 = vmatprep.subr.mxu0 0.0
    %4189 = vmatpush1.msra.mxu0 0.0
    %4190 = vmatprep.subr.mxu0 0.0
    %4191 = vmatpush1.msra.mxu0 0.0
    %4192 = vmatprep.subr.mxu0 0.0
    %4193 = vmatpush1.msra.mxu0 0.0
    %4194 = vmatprep.mubr.f32.mxu0 0.0
    %4195 = vmatmul.mubr.f32.gmra.mrb[0].mxu0 %v4125
    %v4196 = vpop.f32.mrb[0].mxu0
    %v4197 = vadd.f32 %v3952, %v4196
    %v4198 = vpop.f32.mrb[0].mxu0
    %v4199 = vadd.f32 %v3956, %v4198
    %4200 = vdwg.mxu0
    %4201 = vmatprep.subr.mxu0 0.0
    %4202 = vmatpush1.msra.mxu0 %v3581
    %4203 = vmatprep.subr.mxu0 0.0
    %4204 = vmatpush1.msra.mxu0 %v3584
    %4205 = vmatprep.subr.mxu0 0.0
    %4206 = vmatpush1.msra.mxu0 %v3587
    %4207 = vmatprep.subr.mxu0 0.0
    %4208 = vmatpush1.msra.mxu0 %v3590
    %4209 = vmatprep.subr.mxu0 0.0
    %4210 = vmatpush1.msra.mxu0 %v3593
    %4211 = vmatprep.subr.mxu0 0.0
    %4212 = vmatpush1.msra.mxu0 %v3596
    %4213 = vmatprep.subr.mxu0 0.0
    %4214 = vmatpush1.msra.mxu0 %v3599
    %4215 = vmatprep.subr.mxu0 0.0
    %4216 = vmatpush1.msra.mxu0 %v3602
    %4217 = vmatprep.subr.mxu0 0.0
    %4218 = vmatpush1.msra.mxu0 %v3605
    %4219 = vmatprep.subr.mxu0 0.0
    %4220 = vmatpush1.msra.mxu0 %v3608
    %4221 = vmatprep.subr.mxu0 0.0
    %4222 = vmatpush1.msra.mxu0 %v3611
    %4223 = vmatprep.subr.mxu0 0.0
    %4224 = vmatpush1.msra.mxu0 %v3614
    %4225 = vmatprep.subr.mxu0 0.0
    %4226 = vmatpush1.msra.mxu0 %v3617
    %4227 = vmatprep.subr.mxu0 0.0
    %4228 = vmatpush1.msra.mxu0 %v3620
    %4229 = vmatprep.subr.mxu0 0.0
    %4230 = vmatpush1.msra.mxu0 %v3623
    %4231 = vmatprep.subr.mxu0 0.0
    %4232 = vmatpush1.msra.mxu0 %v3626
    %4233 = vmatprep.subr.mxu0 0.0
    %4234 = vmatpush1.msra.mxu0 0.0
    %4235 = vmatprep.subr.mxu0 0.0
    %4236 = vmatpush1.msra.mxu0 0.0
    %4237 = vmatprep.subr.mxu0 0.0
    %4238 = vmatpush1.msra.mxu0 0.0
    %4239 = vmatprep.subr.mxu0 0.0
    %4240 = vmatpush1.msra.mxu0 0.0
    %4241 = vmatprep.subr.mxu0 0.0
    %4242 = vmatpush1.msra.mxu0 0.0
    %4243 = vmatprep.subr.mxu0 0.0
    %4244 = vmatpush1.msra.mxu0 0.0
    %4245 = vmatprep.subr.mxu0 0.0
    %4246 = vmatpush1.msra.mxu0 0.0
    %4247 = vmatprep.subr.mxu0 0.0
    %4248 = vmatpush1.msra.mxu0 0.0
    %4249 = vmatprep.subr.mxu0 0.0
    %4250 = vmatpush1.msra.mxu0 0.0
    %4251 = vmatprep.subr.mxu0 0.0
    %4252 = vmatpush1.msra.mxu0 0.0
    %4253 = vmatprep.subr.mxu0 0.0
    %4254 = vmatpush1.msra.mxu0 0.0
    %4255 = vmatprep.subr.mxu0 0.0
    %4256 = vmatpush1.msra.mxu0 0.0
    %4257 = vmatprep.subr.mxu0 0.0
    %4258 = vmatpush1.msra.mxu0 0.0
    %4259 = vmatprep.subr.mxu0 0.0
    %4260 = vmatpush1.msra.mxu0 0.0
    %4261 = vmatprep.subr.mxu0 0.0
    %4262 = vmatpush1.msra.mxu0 0.0
    %4263 = vmatprep.subr.mxu0 0.0
    %4264 = vmatpush1.msra.mxu0 0.0
    %4265 = vmatprep.mubr.f32.mxu0 0.0
    %4266 = vmatmul.mubr.f32.gmra.mrb[0].mxu0 %v4125
    %v4267 = vpop.f32.mrb[0].mxu0
    %v4268 = vadd.f32 %v3960, %v4267
    %v4269 = vpop.f32.mrb[0].mxu0
    %4270 = vdwg.mxu0
    %v4271 = vadd.f32 %v4127, %v4197
    %v4272 = vadd.f32 %v4128, %v4199
    %v4273 = vxor.u32 %v4271, 2147483648
    %v4274 = vxor.u32 %v4272, 2147483648
    %v4275 = vmul.f32 %v4273, 1.442695
    %v4276 = vpow.pop %v4275
    %v4277 = vmul.f32 %v4274, 1.442695
    %v4278 = vpow.pop %v4277
    %v4279 = vadd.f32 %v4276, 1.0
    %v4280 = vadd.f32 %v4278, 1.0
    %v4281 = vrcp.pop %v4279
    %v4282 = vmul.f32 1.0, %v4281
    %v4283 = vrcp.pop %v4280
    %v4284 = vmul.f32 1.0, %v4283
    %v4285 = vmul.f32 %v4282, %v4268
    %v4286 = vadd.f32 %v4129, %v4285
    %v4287 = vtanh.pop %v4286
    %v4288 = vsub.f32 1.0, %v4284
    %v4289 = vmul.f32 %v4288, %v4287
    %v4290 = vmul.f32 %v4284, %v4125
    %v4291 = vadd.f32 %v4289, %v4290
    %4292 = vst [vmem:[%s856] sm:$0xff] %v4291
    %v4293 = vld [vmem:[%s858] sm:$0xff]
    %v4294 = vld [vmem:[%s858 + $0x8] sm:$0xff]
    %v4295 = vld [vmem:[%s858 + $0x10] sm:$0xff]
    %4296 = vmatprep.subr.mxu0 %v3580
    %4297 = vmatpush1.msra.mxu0 %v3579
    %4298 = vmatprep.subr.mxu0 %v3583
    %4299 = vmatpush1.msra.mxu0 %v3582
    %4300 = vmatprep.subr.mxu0 %v3586
    %4301 = vmatpush1.msra.mxu0 %v3585
    %4302 = vmatprep.subr.mxu0 %v3589
    %4303 = vmatpush1.msra.mxu0 %v3588
    %4304 = vmatprep.subr.mxu0 %v3592
    %4305 = vmatpush1.msra.mxu0 %v3591
    %4306 = vmatprep.subr.mxu0 %v3595
    %4307 = vmatpush1.msra.mxu0 %v3594
    %4308 = vmatprep.subr.mxu0 %v3598
    %4309 = vmatpush1.msra.mxu0 %v3597
    %4310 = vmatprep.subr.mxu0 %v3601
    %4311 = vmatpush1.msra.mxu0 %v3600
    %4312 = vmatprep.subr.mxu0 %v3604
    %4313 = vmatpush1.msra.mxu0 %v3603
    %4314 = vmatprep.subr.mxu0 %v3607
    %4315 = vmatpush1.msra.mxu0 %v3606
    %4316 = vmatprep.subr.mxu0 %v3610
    %4317 = vmatpush1.msra.mxu0 %v3609
    %4318 = vmatprep.subr.mxu0 %v3613
    %4319 = vmatpush1.msra.mxu0 %v3612
    %4320 = vmatprep.subr.mxu0 %v3616
    %4321 = vmatpush1.msra.mxu0 %v3615
    %4322 = vmatprep.subr.mxu0 %v3619
    %4323 = vmatpush1.msra.mxu0 %v3618
    %4324 = vmatprep.subr.mxu0 %v3622
    %4325 = vmatpush1.msra.mxu0 %v3621
    %4326 = vmatprep.subr.mxu0 %v3625
    %4327 = vmatpush1.msra.mxu0 %v3624
    %4328 = vmatprep.subr.mxu0 0.0
    %4329 = vmatpush1.msra.mxu0 0.0
    %4330 = vmatprep.subr.mxu0 0.0
    %4331 = vmatpush1.msra.mxu0 0.0
    %4332 = vmatprep.subr.mxu0 0.0
    %4333 = vmatpush1.msra.mxu0 0.0
    %4334 = vmatprep.subr.mxu0 0.0
    %4335 = vmatpush1.msra.mxu0 0.0
    %4336 = vmatprep.subr.mxu0 0.0
    %4337 = vmatpush1.msra.mxu0 0.0
    %4338 = vmatprep.subr.mxu0 0.0
    %4339 = vmatpush1.msra.mxu0 0.0
    %4340 = vmatprep.subr.mxu0 0.0
    %4341 = vmatpush1.msra.mxu0 0.0
    %4342 = vmatprep.subr.mxu0 0.0
    %4343 = vmatpush1.msra.mxu0 0.0
    %4344 = vmatprep.subr.mxu0 0.0
    %4345 = vmatpush1.msra.mxu0 0.0
    %4346 = vmatprep.subr.mxu0 0.0
    %4347 = vmatpush1.msra.mxu0 0.0
    %4348 = vmatprep.subr.mxu0 0.0
    %4349 = vmatpush1.msra.mxu0 0.0
    %4350 = vmatprep.subr.mxu0 0.0
    %4351 = vmatpush1.msra.mxu0 0.0
    %4352 = vmatprep.subr.mxu0 0.0
    %4353 = vmatpush1.msra.mxu0 0.0
    %4354 = vmatprep.subr.mxu0 0.0
    %4355 = vmatpush1.msra.mxu0 0.0
    %4356 = vmatprep.subr.mxu0 0.0
    %4357 = vmatpush1.msra.mxu0 0.0
    %4358 = vmatprep.subr.mxu0 0.0
    %4359 = vmatpush1.msra.mxu0 0.0
    %4360 = vmatprep.mubr.f32.mxu0 0.0
    %4361 = vmatmul.mubr.f32.gmra.mrb[0].mxu0 %v4291
    %v4362 = vpop.f32.mrb[0].mxu0
    %v4363 = vadd.f32 %v3952, %v4362
    %v4364 = vpop.f32.mrb[0].mxu0
    %v4365 = vadd.f32 %v3956, %v4364
    %4366 = vdwg.mxu0
    %4367 = vmatprep.subr.mxu0 0.0
    %4368 = vmatpush1.msra.mxu0 %v3581
    %4369 = vmatprep.subr.mxu0 0.0
    %4370 = vmatpush1.msra.mxu0 %v3584
    %4371 = vmatprep.subr.mxu0 0.0
    %4372 = vmatpush1.msra.mxu0 %v3587
    %4373 = vmatprep.subr.mxu0 0.0
    %4374 = vmatpush1.msra.mxu0 %v3590
    %4375 = vmatprep.subr.mxu0 0.0
    %4376 = vmatpush1.msra.mxu0 %v3593
    %4377 = vmatprep.subr.mxu0 0.0
    %4378 = vmatpush1.msra.mxu0 %v3596
    %4379 = vmatprep.subr.mxu0 0.0
    %4380 = vmatpush1.msra.mxu0 %v3599
    %4381 = vmatprep.subr.mxu0 0.0
    %4382 = vmatpush1.msra.mxu0 %v3602
    %4383 = vmatprep.subr.mxu0 0.0
    %4384 = vmatpush1.msra.mxu0 %v3605
    %4385 = vmatprep.subr.mxu0 0.0
    %4386 = vmatpush1.msra.mxu0 %v3608
    %4387 = vmatprep.subr.mxu0 0.0
    %4388 = vmatpush1.msra.mxu0 %v3611
    %4389 = vmatprep.subr.mxu0 0.0
    %4390 = vmatpush1.msra.mxu0 %v3614
    %4391 = vmatprep.subr.mxu0 0.0
    %4392 = vmatpush1.msra.mxu0 %v3617
    %4393 = vmatprep.subr.mxu0 0.0
    %4394 = vmatpush1.msra.mxu0 %v3620
    %4395 = vmatprep.subr.mxu0 0.0
    %4396 = vmatpush1.msra.mxu0 %v3623
    %4397 = vmatprep.subr.mxu0 0.0
    %4398 = vmatpush1.msra.mxu0 %v3626
    %4399 = vmatprep.subr.mxu0 0.0
    %4400 = vmatpush1.msra.mxu0 0.0
    %4401 = vmatprep.subr.mxu0 0.0
    %4402 = vmatpush1.msra.mxu0 0.0
    %4403 = vmatprep.subr.mxu0 0.0
    %4404 = vmatpush1.msra.mxu0 0.0
    %4405 = vmatprep.subr.mxu0 0.0
    %4406 = vmatpush1.msra.mxu0 0.0
    %4407 = vmatprep.subr.mxu0 0.0
    %4408 = vmatpush1.msra.mxu0 0.0
    %4409 = vmatprep.subr.mxu0 0.0
    %4410 = vmatpush1.msra.mxu0 0.0
    %4411 = vmatprep.subr.mxu0 0.0
    %4412 = vmatpush1.msra.mxu0 0.0
    %4413 = vmatprep.subr.mxu0 0.0
    %4414 = vmatpush1.msra.mxu0 0.0
    %4415 = vmatprep.subr.mxu0 0.0
    %4416 = vmatpush1.msra.mxu0 0.0
    %4417 = vmatprep.subr.mxu0 0.0
    %4418 = vmatpush1.msra.mxu0 0.0
    %4419 = vmatprep.subr.mxu0 0.0
    %4420 = vmatpush1.msra.mxu0 0.0
    %4421 = vmatprep.subr.mxu0 0.0
    %4422 = vmatpush1.msra.mxu0 0.0
    %4423 = vmatprep.subr.mxu0 0.0
    %4424 = vmatpush1.msra.mxu0 0.0
    %4425 = vmatprep.subr.mxu0 0.0
    %4426 = vmatpush1.msra.mxu0 0.0
    %4427 = vmatprep.subr.mxu0 0.0
    %4428 = vmatpush1.msra.mxu0 0.0
    %4429 = vmatprep.subr.mxu0 0.0
    %4430 = vmatpush1.msra.mxu0 0.0
    %4431 = vmatprep.mubr.f32.mxu0 0.0
    %4432 = vmatmul.mubr.f32.gmra.mrb[0].mxu0 %v4291
    %v4433 = vpop.f32.mrb[0].mxu0
    %v4434 = vadd.f32 %v3960, %v4433
    %v4435 = vpop.f32.mrb[0].mxu0
    %4436 = vdwg.mxu0
    %v4437 = vadd.f32 %v4293, %v4363
    %v4438 = vadd.f32 %v4294, %v4365
    %v4439 = vxor.u32 %v4437, 2147483648
    %v4440 = vxor.u32 %v4438, 2147483648
    %v4441 = vmul.f32 %v4439, 1.442695
    %v4442 = vpow.pop %v4441
    %v4443 = vmul.f32 %v4440, 1.442695
    %v4444 = vpow.pop %v4443
    %v4445 = vadd.f32 %v4442, 1.0
    %v4446 = vadd.f32 %v4444, 1.0
    %v4447 = vrcp.pop %v4445
    %v4448 = vmul.f32 1.0, %v4447
    %v4449 = vrcp.pop %v4446
    %v4450 = vmul.f32 1.0, %v4449
    %v4451 = vmul.f32 %v4448, %v4434
    %v4452 = vadd.f32 %v4295, %v4451
    %v4453 = vtanh.pop %v4452
    %v4454 = vsub.f32 1.0, %v4450
    %v4455 = vmul.f32 %v4454, %v4453
    %v4456 = vmul.f32 %v4450, %v4291
    %v4457 = vadd.f32 %v4455, %v4456
    %4458 = vst [vmem:[%s1024] sm:$0xff] %v4457
    %v4459 = vld [vmem:[%s1026] sm:$0xff]
    %v4460 = vld [vmem:[%s1026 + $0x8] sm:$0xff]
    %v4461 = vld [vmem:[%s1026 + $0x10] sm:$0xff]
    %4462 = vmatprep.subr.mxu0 %v3580
    %4463 = vmatpush1.msra.mxu0 %v3579
    %4464 = vmatprep.subr.mxu0 %v3583
    %4465 = vmatpush1.msra.mxu0 %v3582
    %4466 = vmatprep.subr.mxu0 %v3586
    %4467 = vmatpush1.msra.mxu0 %v3585
    %4468 = vmatprep.subr.mxu0 %v3589
    %4469 = vmatpush1.msra.mxu0 %v3588
    %4470 = vmatprep.subr.mxu0 %v3592
    %4471 = vmatpush1.msra.mxu0 %v3591
    %4472 = vmatprep.subr.mxu0 %v3595
    %4473 = vmatpush1.msra.mxu0 %v3594
    %4474 = vmatprep.subr.mxu0 %v3598
    %4475 = vmatpush1.msra.mxu0 %v3597
    %4476 = vmatprep.subr.mxu0 %v3601
    %4477 = vmatpush1.msra.mxu0 %v3600
    %4478 = vmatprep.subr.mxu0 %v3604
    %4479 = vmatpush1.msra.mxu0 %v3603
    %4480 = vmatprep.subr.mxu0 %v3607
    %4481 = vmatpush1.msra.mxu0 %v3606
    %4482 = vmatprep.subr.mxu0 %v3610
    %4483 = vmatpush1.msra.mxu0 %v3609
    %4484 = vmatprep.subr.mxu0 %v3613
    %4485 = vmatpush1.msra.mxu0 %v3612
    %4486 = vmatprep.subr.mxu0 %v3616
    %4487 = vmatpush1.msra.mxu0 %v3615
    %4488 = vmatprep.subr.mxu0 %v3619
    %4489 = vmatpush1.msra.mxu0 %v3618
    %4490 = vmatprep.subr.mxu0 %v3622
    %4491 = vmatpush1.msra.mxu0 %v3621
    %4492 = vmatprep.subr.mxu0 %v3625
    %4493 = vmatpush1.msra.mxu0 %v3624
    %4494 = vmatprep.subr.mxu0 0.0
    %4495 = vmatpush1.msra.mxu0 0.0
    %4496 = vmatprep.subr.mxu0 0.0
    %4497 = vmatpush1.msra.mxu0 0.0
    %4498 = vmatprep.subr.mxu0 0.0
    %4499 = vmatpush1.msra.mxu0 0.0
    %4500 = vmatprep.subr.mxu0 0.0
    %4501 = vmatpush1.msra.mxu0 0.0
    %4502 = vmatprep.subr.mxu0 0.0
    %4503 = vmatpush1.msra.mxu0 0.0
    %4504 = vmatprep.subr.mxu0 0.0
    %4505 = vmatpush1.msra.mxu0 0.0
    %4506 = vmatprep.subr.mxu0 0.0
    %4507 = vmatpush1.msra.mxu0 0.0
    %4508 = vmatprep.subr.mxu0 0.0
    %4509 = vmatpush1.msra.mxu0 0.0
    %4510 = vmatprep.subr.mxu0 0.0
    %4511 = vmatpush1.msra.mxu0 0.0
    %4512 = vmatprep.subr.mxu0 0.0
    %4513 = vmatpush1.msra.mxu0 0.0
    %4514 = vmatprep.subr.mxu0 0.0
    %4515 = vmatpush1.msra.mxu0 0.0
    %4516 = vmatprep.subr.mxu0 0.0
    %4517 = vmatpush1.msra.mxu0 0.0
    %4518 = vmatprep.subr.mxu0 0.0
    %4519 = vmatpush1.msra.mxu0 0.0
    %4520 = vmatprep.subr.mxu0 0.0
    %4521 = vmatpush1.msra.mxu0 0.0
    %4522 = vmatprep.subr.mxu0 0.0
    %4523 = vmatpush1.msra.mxu0 0.0
    %4524 = vmatprep.subr.mxu0 0.0
    %4525 = vmatpush1.msra.mxu0 0.0
    %4526 = vmatprep.mubr.f32.mxu0 0.0
    %4527 = vmatmul.mubr.f32.gmra.mrb[0].mxu0 %v4457
    %v4528 = vpop.f32.mrb[0].mxu0
    %v4529 = vadd.f32 %v3952, %v4528
    %v4530 = vpop.f32.mrb[0].mxu0
    %v4531 = vadd.f32 %v3956, %v4530
    %4532 = vdwg.mxu0
    %4533 = vmatprep.subr.mxu0 0.0
    %4534 = vmatpush1.msra.mxu0 %v3581
    %4535 = vmatprep.subr.mxu0 0.0
    %4536 = vmatpush1.msra.mxu0 %v3584
    %4537 = vmatprep.subr.mxu0 0.0
    %4538 = vmatpush1.msra.mxu0 %v3587
    %4539 = vmatprep.subr.mxu0 0.0
    %4540 = vmatpush1.msra.mxu0 %v3590
    %4541 = vmatprep.subr.mxu0 0.0
    %4542 = vmatpush1.msra.mxu0 %v3593
    %4543 = vmatprep.subr.mxu0 0.0
    %4544 = vmatpush1.msra.mxu0 %v3596
    %4545 = vmatprep.subr.mxu0 0.0
    %4546 = vmatpush1.msra.mxu0 %v3599
    %4547 = vmatprep.subr.mxu0 0.0
    %4548 = vmatpush1.msra.mxu0 %v3602
    %4549 = vmatprep.subr.mxu0 0.0
    %4550 = vmatpush1.msra.mxu0 %v3605
    %4551 = vmatprep.subr.mxu0 0.0
    %4552 = vmatpush1.msra.mxu0 %v3608
    %4553 = vmatprep.subr.mxu0 0.0
    %4554 = vmatpush1.msra.mxu0 %v3611
    %4555 = vmatprep.subr.mxu0 0.0
    %4556 = vmatpush1.msra.mxu0 %v3614
    %4557 = vmatprep.subr.mxu0 0.0
    %4558 = vmatpush1.msra.mxu0 %v3617
    %4559 = vmatprep.subr.mxu0 0.0
    %4560 = vmatpush1.msra.mxu0 %v3620
    %4561 = vmatprep.subr.mxu0 0.0
    %4562 = vmatpush1.msra.mxu0 %v3623
    %4563 = vmatprep.subr.mxu0 0.0
    %4564 = vmatpush1.msra.mxu0 %v3626
    %4565 = vmatprep.subr.mxu0 0.0
    %4566 = vmatpush1.msra.mxu0 0.0
    %4567 = vmatprep.subr.mxu0 0.0
    %4568 = vmatpush1.msra.mxu0 0.0
    %4569 = vmatprep.subr.mxu0 0.0
    %4570 = vmatpush1.msra.mxu0 0.0
    %4571 = vmatprep.subr.mxu0 0.0
    %4572 = vmatpush1.msra.mxu0 0.0
    %4573 = vmatprep.subr.mxu0 0.0
    %4574 = vmatpush1.msra.mxu0 0.0
    %4575 = vmatprep.subr.mxu0 0.0
    %4576 = vmatpush1.msra.mxu0 0.0
    %4577 = vmatprep.subr.mxu0 0.0
    %4578 = vmatpush1.msra.mxu0 0.0
    %4579 = vmatprep.subr.mxu0 0.0
    %4580 = vmatpush1.msra.mxu0 0.0
    %4581 = vmatprep.subr.mxu0 0.0
    %4582 = vmatpush1.msra.mxu0 0.0
    %4583 = vmatprep.subr.mxu0 0.0
    %4584 = vmatpush1.msra.mxu0 0.0
    %4585 = vmatprep.subr.mxu0 0.0
    %4586 = vmatpush1.msra.mxu0 0.0
    %4587 = vmatprep.subr.mxu0 0.0
    %4588 = vmatpush1.msra.mxu0 0.0
    %4589 = vmatprep.subr.mxu0 0.0
    %4590 = vmatpush1.msra.mxu0 0.0
    %4591 = vmatprep.subr.mxu0 0.0
    %4592 = vmatpush1.msra.mxu0 0.0
    %4593 = vmatprep.subr.mxu0 0.0
    %4594 = vmatpush1.msra.mxu0 0.0
    %4595 = vmatprep.subr.mxu0 0.0
    %4596 = vmatpush1.msra.mxu0 0.0
    %4597 = vmatprep.mubr.f32.mxu0 0.0
    %4598 = vmatmul.mubr.f32.gmra.mrb[0].mxu0 %v4457
    %v4599 = vpop.f32.mrb[0].mxu0
    %v4600 = vadd.f32 %v3960, %v4599
    %v4601 = vpop.f32.mrb[0].mxu0
    %4602 = vdwg.mxu0
    %v4603 = vadd.f32 %v4459, %v4529
    %v4604 = vadd.f32 %v4460, %v4531
    %v4605 = vxor.u32 %v4603, 2147483648
    %v4606 = vxor.u32 %v4604, 2147483648
    %v4607 = vmul.f32 %v4605, 1.442695
    %v4608 = vpow.pop %v4607
    %v4609 = vmul.f32 %v4606, 1.442695
    %v4610 = vpow.pop %v4609
    %v4611 = vadd.f32 %v4608, 1.0
    %v4612 = vadd.f32 %v4610, 1.0
    %v4613 = vrcp.pop %v4611
    %v4614 = vmul.f32 1.0, %v4613
    %v4615 = vrcp.pop %v4612
    %v4616 = vmul.f32 1.0, %v4615
    %v4617 = vmul.f32 %v4614, %v4600
    %v4618 = vadd.f32 %v4461, %v4617
    %v4619 = vtanh.pop %v4618
    %v4620 = vsub.f32 1.0, %v4616
    %v4621 = vmul.f32 %v4620, %v4619
    %v4622 = vmul.f32 %v4616, %v4457
    %v4623 = vadd.f32 %v4621, %v4622
    %4624 = vst [vmem:[%s1192] sm:$0xff] %v4623
    %v4625 = vld [vmem:[%s1194] sm:$0xff]
    %v4626 = vld [vmem:[%s1194 + $0x8] sm:$0xff]
    %v4627 = vld [vmem:[%s1194 + $0x10] sm:$0xff]
    %4628 = vmatprep.subr.mxu0 %v3580
    %4629 = vmatpush1.msra.mxu0 %v3579
    %4630 = vmatprep.subr.mxu0 %v3583
    %4631 = vmatpush1.msra.mxu0 %v3582
    %4632 = vmatprep.subr.mxu0 %v3586
    %4633 = vmatpush1.msra.mxu0 %v3585
    %4634 = vmatprep.subr.mxu0 %v3589
    %4635 = vmatpush1.msra.mxu0 %v3588
    %4636 = vmatprep.subr.mxu0 %v3592
    %4637 = vmatpush1.msra.mxu0 %v3591
    %4638 = vmatprep.subr.mxu0 %v3595
    %4639 = vmatpush1.msra.mxu0 %v3594
    %4640 = vmatprep.subr.mxu0 %v3598
    %4641 = vmatpush1.msra.mxu0 %v3597
    %4642 = vmatprep.subr.mxu0 %v3601
    %4643 = vmatpush1.msra.mxu0 %v3600
    %4644 = vmatprep.subr.mxu0 %v3604
    %4645 = vmatpush1.msra.mxu0 %v3603
    %4646 = vmatprep.subr.mxu0 %v3607
    %4647 = vmatpush1.msra.mxu0 %v3606
    %4648 = vmatprep.subr.mxu0 %v3610
    %4649 = vmatpush1.msra.mxu0 %v3609
    %4650 = vmatprep.subr.mxu0 %v3613
    %4651 = vmatpush1.msra.mxu0 %v3612
    %4652 = vmatprep.subr.mxu0 %v3616
    %4653 = vmatpush1.msra.mxu0 %v3615
    %4654 = vmatprep.subr.mxu0 %v3619
    %4655 = vmatpush1.msra.mxu0 %v3618
    %4656 = vmatprep.subr.mxu0 %v3622
    %4657 = vmatpush1.msra.mxu0 %v3621
    %4658 = vmatprep.subr.mxu0 %v3625
    %4659 = vmatpush1.msra.mxu0 %v3624
    %4660 = vmatprep.subr.mxu0 0.0
    %4661 = vmatpush1.msra.mxu0 0.0
    %4662 = vmatprep.subr.mxu0 0.0
    %4663 = vmatpush1.msra.mxu0 0.0
    %4664 = vmatprep.subr.mxu0 0.0
    %4665 = vmatpush1.msra.mxu0 0.0
    %4666 = vmatprep.subr.mxu0 0.0
    %4667 = vmatpush1.msra.mxu0 0.0
    %4668 = vmatprep.subr.mxu0 0.0
    %4669 = vmatpush1.msra.mxu0 0.0
    %4670 = vmatprep.subr.mxu0 0.0
    %4671 = vmatpush1.msra.mxu0 0.0
    %4672 = vmatprep.subr.mxu0 0.0
    %4673 = vmatpush1.msra.mxu0 0.0
    %4674 = vmatprep.subr.mxu0 0.0
    %4675 = vmatpush1.msra.mxu0 0.0
    %4676 = vmatprep.subr.mxu0 0.0
    %4677 = vmatpush1.msra.mxu0 0.0
    %4678 = vmatprep.subr.mxu0 0.0
    %4679 = vmatpush1.msra.mxu0 0.0
    %4680 = vmatprep.subr.mxu0 0.0
    %4681 = vmatpush1.msra.mxu0 0.0
    %4682 = vmatprep.subr.mxu0 0.0
    %4683 = vmatpush1.msra.mxu0 0.0
    %4684 = vmatprep.subr.mxu0 0.0
    %4685 = vmatpush1.msra.mxu0 0.0
    %4686 = vmatprep.subr.mxu0 0.0
    %4687 = vmatpush1.msra.mxu0 0.0
    %4688 = vmatprep.subr.mxu0 0.0
    %4689 = vmatpush1.msra.mxu0 0.0
    %4690 = vmatprep.subr.mxu0 0.0
    %4691 = vmatpush1.msra.mxu0 0.0
    %4692 = vmatprep.mubr.f32.mxu0 0.0
    %4693 = vmatmul.mubr.f32.gmra.mrb[0].mxu0 %v4623
    %v4694 = vpop.f32.mrb[0].mxu0
    %v4695 = vadd.f32 %v3952, %v4694
    %v4696 = vpop.f32.mrb[0].mxu0
    %v4697 = vadd.f32 %v3956, %v4696
    %4698 = vdwg.mxu0
    %4699 = vmatprep.subr.mxu0 0.0
    %4700 = vmatpush1.msra.mxu0 %v3581
    %4701 = vmatprep.subr.mxu0 0.0
    %4702 = vmatpush1.msra.mxu0 %v3584
    %4703 = vmatprep.subr.mxu0 0.0
    %4704 = vmatpush1.msra.mxu0 %v3587
    %4705 = vmatprep.subr.mxu0 0.0
    %4706 = vmatpush1.msra.mxu0 %v3590
    %4707 = vmatprep.subr.mxu0 0.0
    %4708 = vmatpush1.msra.mxu0 %v3593
    %4709 = vmatprep.subr.mxu0 0.0
    %4710 = vmatpush1.msra.mxu0 %v3596
    %4711 = vmatprep.subr.mxu0 0.0
    %4712 = vmatpush1.msra.mxu0 %v3599
    %4713 = vmatprep.subr.mxu0 0.0
    %4714 = vmatpush1.msra.mxu0 %v3602
    %4715 = vmatprep.subr.mxu0 0.0
    %4716 = vmatpush1.msra.mxu0 %v3605
    %4717 = vmatprep.subr.mxu0 0.0
    %4718 = vmatpush1.msra.mxu0 %v3608
    %4719 = vmatprep.subr.mxu0 0.0
    %4720 = vmatpush1.msra.mxu0 %v3611
    %4721 = vmatprep.subr.mxu0 0.0
    %4722 = vmatpush1.msra.mxu0 %v3614
    %4723 = vmatprep.subr.mxu0 0.0
    %4724 = vmatpush1.msra.mxu0 %v3617
    %4725 = vmatprep.subr.mxu0 0.0
    %4726 = vmatpush1.msra.mxu0 %v3620
    %4727 = vmatprep.subr.mxu0 0.0
    %4728 = vmatpush1.msra.mxu0 %v3623
    %4729 = vmatprep.subr.mxu0 0.0
    %4730 = vmatpush1.msra.mxu0 %v3626
    %4731 = vmatprep.subr.mxu0 0.0
    %4732 = vmatpush1.msra.mxu0 0.0
    %4733 = vmatprep.subr.mxu0 0.0
    %4734 = vmatpush1.msra.mxu0 0.0
    %4735 = vmatprep.subr.mxu0 0.0
    %4736 = vmatpush1.msra.mxu0 0.0
    %4737 = vmatprep.subr.mxu0 0.0
    %4738 = vmatpush1.msra.mxu0 0.0
    %4739 = vmatprep.subr.mxu0 0.0
    %4740 = vmatpush1.msra.mxu0 0.0
    %4741 = vmatprep.subr.mxu0 0.0
    %4742 = vmatpush1.msra.mxu0 0.0
    %4743 = vmatprep.subr.mxu0 0.0
    %4744 = vmatpush1.msra.mxu0 0.0
    %4745 = vmatprep.subr.mxu0 0.0
    %4746 = vmatpush1.msra.mxu0 0.0
    %4747 = vmatprep.subr.mxu0 0.0
    %4748 = vmatpush1.msra.mxu0 0.0
    %4749 = vmatprep.subr.mxu0 0.0
    %4750 = vmatpush1.msra.mxu0 0.0
    %4751 = vmatprep.subr.mxu0 0.0
    %4752 = vmatpush1.msra.mxu0 0.0
    %4753 = vmatprep.subr.mxu0 0.0
    %4754 = vmatpush1.msra.mxu0 0.0
    %4755 = vmatprep.subr.mxu0 0.0
    %4756 = vmatpush1.msra.mxu0 0.0
    %4757 = vmatprep.subr.mxu0 0.0
    %4758 = vmatpush1.msra.mxu0 0.0
    %4759 = vmatprep.subr.mxu0 0.0
    %4760 = vmatpush1.msra.mxu0 0.0
    %4761 = vmatprep.subr.mxu0 0.0
    %4762 = vmatpush1.msra.mxu0 0.0
    %4763 = vmatprep.mubr.f32.mxu0 0.0
    %4764 = vmatmul.mubr.f32.gmra.mrb[0].mxu0 %v4623
    %v4765 = vpop.f32.mrb[0].mxu0
    %v4766 = vadd.f32 %v3960, %v4765
    %v4767 = vpop.f32.mrb[0].mxu0
    %4768 = vdwg.mxu0
    %v4769 = vadd.f32 %v4625, %v4695
    %v4770 = vadd.f32 %v4626, %v4697
    %v4771 = vxor.u32 %v4769, 2147483648
    %v4772 = vxor.u32 %v4770, 2147483648
    %v4773 = vmul.f32 %v4771, 1.442695
    %v4774 = vpow.pop %v4773
    %v4775 = vmul.f32 %v4772, 1.442695
    %v4776 = vpow.pop %v4775
    %v4777 = vadd.f32 %v4774, 1.0
    %v4778 = vadd.f32 %v4776, 1.0
    %v4779 = vrcp.pop %v4777
    %v4780 = vmul.f32 1.0, %v4779
    %v4781 = vrcp.pop %v4778
    %v4782 = vmul.f32 1.0, %v4781
    %v4783 = vmul.f32 %v4780, %v4766
    %v4784 = vadd.f32 %v4627, %v4783
    %v4785 = vtanh.pop %v4784
    %v4786 = vsub.f32 1.0, %v4782
    %v4787 = vmul.f32 %v4786, %v4785
    %v4788 = vmul.f32 %v4782, %v4623
    %v4789 = vadd.f32 %v4787, %v4788
    %4790 = vst [vmem:[%s1360] sm:$0xff] %v4789
    %v4791 = vld [vmem:[%s1362] sm:$0xff]
    %v4792 = vld [vmem:[%s1362 + $0x8] sm:$0xff]
    %v4793 = vld [vmem:[%s1362 + $0x10] sm:$0xff]
    %4794 = vmatprep.subr.mxu0 %v3580
    %4795 = vmatpush1.msra.mxu0 %v3579
    %4796 = vmatprep.subr.mxu0 %v3583
    %4797 = vmatpush1.msra.mxu0 %v3582
    %4798 = vmatprep.subr.mxu0 %v3586
    %4799 = vmatpush1.msra.mxu0 %v3585
    %4800 = vmatprep.subr.mxu0 %v3589
    %4801 = vmatpush1.msra.mxu0 %v3588
    %4802 = vmatprep.subr.mxu0 %v3592
    %4803 = vmatpush1.msra.mxu0 %v3591
    %4804 = vmatprep.subr.mxu0 %v3595
    %4805 = vmatpush1.msra.mxu0 %v3594
    %4806 = vmatprep.subr.mxu0 %v3598
    %4807 = vmatpush1.msra.mxu0 %v3597
    %4808 = vmatprep.subr.mxu0 %v3601
    %4809 = vmatpush1.msra.mxu0 %v3600
    %4810 = vmatprep.subr.mxu0 %v3604
    %4811 = vmatpush1.msra.mxu0 %v3603
    %4812 = vmatprep.subr.mxu0 %v3607
    %4813 = vmatpush1.msra.mxu0 %v3606
    %4814 = vmatprep.subr.mxu0 %v3610
    %4815 = vmatpush1.msra.mxu0 %v3609
    %4816 = vmatprep.subr.mxu0 %v3613
    %4817 = vmatpush1.msra.mxu0 %v3612
    %4818 = vmatprep.subr.mxu0 %v3616
    %4819 = vmatpush1.msra.mxu0 %v3615
    %4820 = vmatprep.subr.mxu0 %v3619
    %4821 = vmatpush1.msra.mxu0 %v3618
    %4822 = vmatprep.subr.mxu0 %v3622
    %4823 = vmatpush1.msra.mxu0 %v3621
    %4824 = vmatprep.subr.mxu0 %v3625
    %4825 = vmatpush1.msra.mxu0 %v3624
    %4826 = vmatprep.subr.mxu0 0.0
    %4827 = vmatpush1.msra.mxu0 0.0
    %4828 = vmatprep.subr.mxu0 0.0
    %4829 = vmatpush1.msra.mxu0 0.0
    %4830 = vmatprep.subr.mxu0 0.0
    %4831 = vmatpush1.msra.mxu0 0.0
    %4832 = vmatprep.subr.mxu0 0.0
    %4833 = vmatpush1.msra.mxu0 0.0
    %4834 = vmatprep.subr.mxu0 0.0
    %4835 = vmatpush1.msra.mxu0 0.0
    %4836 = vmatprep.subr.mxu0 0.0
    %4837 = vmatpush1.msra.mxu0 0.0
    %4838 = vmatprep.subr.mxu0 0.0
    %4839 = vmatpush1.msra.mxu0 0.0
    %4840 = vmatprep.subr.mxu0 0.0
    %4841 = vmatpush1.msra.mxu0 0.0
    %4842 = vmatprep.subr.mxu0 0.0
    %4843 = vmatpush1.msra.mxu0 0.0
    %4844 = vmatprep.subr.mxu0 0.0
    %4845 = vmatpush1.msra.mxu0 0.0
    %4846 = vmatprep.subr.mxu0 0.0
    %4847 = vmatpush1.msra.mxu0 0.0
    %4848 = vmatprep.subr.mxu0 0.0
    %4849 = vmatpush1.msra.mxu0 0.0
    %4850 = vmatprep.subr.mxu0 0.0
    %4851 = vmatpush1.msra.mxu0 0.0
    %4852 = vmatprep.subr.mxu0 0.0
    %4853 = vmatpush1.msra.mxu0 0.0
    %4854 = vmatprep.subr.mxu0 0.0
    %4855 = vmatpush1.msra.mxu0 0.0
    %4856 = vmatprep.subr.mxu0 0.0
    %4857 = vmatpush1.msra.mxu0 0.0
    %4858 = vmatprep.mubr.f32.mxu0 0.0
    %4859 = vmatmul.mubr.f32.gmra.mrb[0].mxu0 %v4789
    %v4860 = vpop.f32.mrb[0].mxu0
    %v4861 = vadd.f32 %v3952, %v4860
    %v4862 = vpop.f32.mrb[0].mxu0
    %v4863 = vadd.f32 %v3956, %v4862
    %4864 = vdwg.mxu0
    %4865 = vmatprep.subr.mxu0 0.0
    %4866 = vmatpush1.msra.mxu0 %v3581
    %4867 = vmatprep.subr.mxu0 0.0
    %4868 = vmatpush1.msra.mxu0 %v3584
    %4869 = vmatprep.subr.mxu0 0.0
    %4870 = vmatpush1.msra.mxu0 %v3587
    %4871 = vmatprep.subr.mxu0 0.0
    %4872 = vmatpush1.msra.mxu0 %v3590
    %4873 = vmatprep.subr.mxu0 0.0
    %4874 = vmatpush1.msra.mxu0 %v3593
    %4875 = vmatprep.subr.mxu0 0.0
    %4876 = vmatpush1.msra.mxu0 %v3596
    %4877 = vmatprep.subr.mxu0 0.0
    %4878 = vmatpush1.msra.mxu0 %v3599
    %4879 = vmatprep.subr.mxu0 0.0
    %4880 = vmatpush1.msra.mxu0 %v3602
    %4881 = vmatprep.subr.mxu0 0.0
    %4882 = vmatpush1.msra.mxu0 %v3605
    %4883 = vmatprep.subr.mxu0 0.0
    %4884 = vmatpush1.msra.mxu0 %v3608
    %4885 = vmatprep.subr.mxu0 0.0
    %4886 = vmatpush1.msra.mxu0 %v3611
    %4887 = vmatprep.subr.mxu0 0.0
    %4888 = vmatpush1.msra.mxu0 %v3614
    %4889 = vmatprep.subr.mxu0 0.0
    %4890 = vmatpush1.msra.mxu0 %v3617
    %4891 = vmatprep.subr.mxu0 0.0
    %4892 = vmatpush1.msra.mxu0 %v3620
    %4893 = vmatprep.subr.mxu0 0.0
    %4894 = vmatpush1.msra.mxu0 %v3623
    %4895 = vmatprep.subr.mxu0 0.0
    %4896 = vmatpush1.msra.mxu0 %v3626
    %4897 = vmatprep.subr.mxu0 0.0
    %4898 = vmatpush1.msra.mxu0 0.0
    %4899 = vmatprep.subr.mxu0 0.0
    %4900 = vmatpush1.msra.mxu0 0.0
    %4901 = vmatprep.subr.mxu0 0.0
    %4902 = vmatpush1.msra.mxu0 0.0
    %4903 = vmatprep.subr.mxu0 0.0
    %4904 = vmatpush1.msra.mxu0 0.0
    %4905 = vmatprep.subr.mxu0 0.0
    %4906 = vmatpush1.msra.mxu0 0.0
    %4907 = vmatprep.subr.mxu0 0.0
    %4908 = vmatpush1.msra.mxu0 0.0
    %4909 = vmatprep.subr.mxu0 0.0
    %4910 = vmatpush1.msra.mxu0 0.0
    %4911 = vmatprep.subr.mxu0 0.0
    %4912 = vmatpush1.msra.mxu0 0.0
    %4913 = vmatprep.subr.mxu0 0.0
    %4914 = vmatpush1.msra.mxu0 0.0
    %4915 = vmatprep.subr.mxu0 0.0
    %4916 = vmatpush1.msra.mxu0 0.0
    %4917 = vmatprep.subr.mxu0 0.0
    %4918 = vmatpush1.msra.mxu0 0.0
    %4919 = vmatprep.subr.mxu0 0.0
    %4920 = vmatpush1.msra.mxu0 0.0
    %4921 = vmatprep.subr.mxu0 0.0
    %4922 = vmatpush1.msra.mxu0 0.0
    %4923 = vmatprep.subr.mxu0 0.0
    %4924 = vmatpush1.msra.mxu0 0.0
    %4925 = vmatprep.subr.mxu0 0.0
    %4926 = vmatpush1.msra.mxu0 0.0
    %4927 = vmatprep.subr.mxu0 0.0
    %4928 = vmatpush1.msra.mxu0 0.0
    %4929 = vmatprep.mubr.f32.mxu0 0.0
    %4930 = vmatmul.mubr.f32.gmra.mrb[0].mxu0 %v4789
    %v4931 = vpop.f32.mrb[0].mxu0
    %v4932 = vadd.f32 %v3960, %v4931
    %v4933 = vpop.f32.mrb[0].mxu0
    %4934 = vdwg.mxu0
    %v4935 = vadd.f32 %v4791, %v4861
    %v4936 = vadd.f32 %v4792, %v4863
    %v4937 = vxor.u32 %v4935, 2147483648
    %v4938 = vxor.u32 %v4936, 2147483648
    %v4939 = vmul.f32 %v4937, 1.442695
    %v4940 = vpow.pop %v4939
    %v4941 = vmul.f32 %v4938, 1.442695
    %v4942 = vpow.pop %v4941
    %v4943 = vadd.f32 %v4940, 1.0
    %v4944 = vadd.f32 %v4942, 1.0
    %v4945 = vrcp.pop %v4943
    %v4946 = vmul.f32 1.0, %v4945
    %v4947 = vrcp.pop %v4944
    %v4948 = vmul.f32 1.0, %v4947
    %v4949 = vmul.f32 %v4946, %v4932
    %v4950 = vadd.f32 %v4793, %v4949
    %v4951 = vtanh.pop %v4950
    %v4952 = vsub.f32 1.0, %v4948
    %v4953 = vmul.f32 %v4952, %v4951
    %v4954 = vmul.f32 %v4948, %v4789
    %v4955 = vadd.f32 %v4953, %v4954
    %4956 = vst [vmem:[%s1528] sm:$0xff] %v4955
    %v4957 = vld [vmem:[%s1530] sm:$0xff]
    %v4958 = vld [vmem:[%s1530 + $0x8] sm:$0xff]
    %v4959 = vld [vmem:[%s1530 + $0x10] sm:$0xff]
    %4960 = vmatprep.subr.mxu0 %v3580
    %4961 = vmatpush1.msra.mxu0 %v3579
    %4962 = vmatprep.subr.mxu0 %v3583
    %4963 = vmatpush1.msra.mxu0 %v3582
    %4964 = vmatprep.subr.mxu0 %v3586
    %4965 = vmatpush1.msra.mxu0 %v3585
    %4966 = vmatprep.subr.mxu0 %v3589
    %4967 = vmatpush1.msra.mxu0 %v3588
    %4968 = vmatprep.subr.mxu0 %v3592
    %4969 = vmatpush1.msra.mxu0 %v3591
    %4970 = vmatprep.subr.mxu0 %v3595
    %4971 = vmatpush1.msra.mxu0 %v3594
    %4972 = vmatprep.subr.mxu0 %v3598
    %4973 = vmatpush1.msra.mxu0 %v3597
    %4974 = vmatprep.subr.mxu0 %v3601
    %4975 = vmatpush1.msra.mxu0 %v3600
    %4976 = vmatprep.subr.mxu0 %v3604
    %4977 = vmatpush1.msra.mxu0 %v3603
    %4978 = vmatprep.subr.mxu0 %v3607
    %4979 = vmatpush1.msra.mxu0 %v3606
    %4980 = vmatprep.subr.mxu0 %v3610
    %4981 = vmatpush1.msra.mxu0 %v3609
    %4982 = vmatprep.subr.mxu0 %v3613
    %4983 = vmatpush1.msra.mxu0 %v3612
    %4984 = vmatprep.subr.mxu0 %v3616
    %4985 = vmatpush1.msra.mxu0 %v3615
    %4986 = vmatprep.subr.mxu0 %v3619
    %4987 = vmatpush1.msra.mxu0 %v3618
    %4988 = vmatprep.subr.mxu0 %v3622
    %4989 = vmatpush1.msra.mxu0 %v3621
    %4990 = vmatprep.subr.mxu0 %v3625
    %4991 = vmatpush1.msra.mxu0 %v3624
    %4992 = vmatprep.subr.mxu0 0.0
    %4993 = vmatpush1.msra.mxu0 0.0
    %4994 = vmatprep.subr.mxu0 0.0
    %4995 = vmatpush1.msra.mxu0 0.0
    %4996 = vmatprep.subr.mxu0 0.0
    %4997 = vmatpush1.msra.mxu0 0.0
    %4998 = vmatprep.subr.mxu0 0.0
    %4999 = vmatpush1.msra.mxu0 0.0
    %5000 = vmatprep.subr.mxu0 0.0
    %5001 = vmatpush1.msra.mxu0 0.0
    %5002 = vmatprep.subr.mxu0 0.0
    %5003 = vmatpush1.msra.mxu0 0.0
    %5004 = vmatprep.subr.mxu0 0.0
    %5005 = vmatpush1.msra.mxu0 0.0
    %5006 = vmatprep.subr.mxu0 0.0
    %5007 = vmatpush1.msra.mxu0 0.0
    %5008 = vmatprep.subr.mxu0 0.0
    %5009 = vmatpush1.msra.mxu0 0.0
    %5010 = vmatprep.subr.mxu0 0.0
    %5011 = vmatpush1.msra.mxu0 0.0
    %5012 = vmatprep.subr.mxu0 0.0
    %5013 = vmatpush1.msra.mxu0 0.0
    %5014 = vmatprep.subr.mxu0 0.0
    %5015 = vmatpush1.msra.mxu0 0.0
    %5016 = vmatprep.subr.mxu0 0.0
    %5017 = vmatpush1.msra.mxu0 0.0
    %5018 = vmatprep.subr.mxu0 0.0
    %5019 = vmatpush1.msra.mxu0 0.0
    %5020 = vmatprep.subr.mxu0 0.0
    %5021 = vmatpush1.msra.mxu0 0.0
    %5022 = vmatprep.subr.mxu0 0.0
    %5023 = vmatpush1.msra.mxu0 0.0
    %5024 = vmatprep.mubr.f32.mxu0 0.0
    %5025 = vmatmul.mubr.f32.gmra.mrb[0].mxu0 %v4955
    %v5026 = vpop.f32.mrb[0].mxu0
    %v5027 = vadd.f32 %v3952, %v5026
    %v5028 = vpop.f32.mrb[0].mxu0
    %v5029 = vadd.f32 %v3956, %v5028
    %5030 = vdwg.mxu0
    %5031 = vmatprep.subr.mxu0 0.0
    %5032 = vmatpush1.msra.mxu0 %v3581
    %5033 = vmatprep.subr.mxu0 0.0
    %5034 = vmatpush1.msra.mxu0 %v3584
    %5035 = vmatprep.subr.mxu0 0.0
    %5036 = vmatpush1.msra.mxu0 %v3587
    %5037 = vmatprep.subr.mxu0 0.0
    %5038 = vmatpush1.msra.mxu0 %v3590
    %5039 = vmatprep.subr.mxu0 0.0
    %5040 = vmatpush1.msra.mxu0 %v3593
    %5041 = vmatprep.subr.mxu0 0.0
    %5042 = vmatpush1.msra.mxu0 %v3596
    %5043 = vmatprep.subr.mxu0 0.0
    %5044 = vmatpush1.msra.mxu0 %v3599
    %5045 = vmatprep.subr.mxu0 0.0
    %5046 = vmatpush1.msra.mxu0 %v3602
    %5047 = vmatprep.subr.mxu0 0.0
    %5048 = vmatpush1.msra.mxu0 %v3605
    %5049 = vmatprep.subr.mxu0 0.0
    %5050 = vmatpush1.msra.mxu0 %v3608
    %5051 = vmatprep.subr.mxu0 0.0
    %5052 = vmatpush1.msra.mxu0 %v3611
    %5053 = vmatprep.subr.mxu0 0.0
    %5054 = vmatpush1.msra.mxu0 %v3614
    %5055 = vmatprep.subr.mxu0 0.0
    %5056 = vmatpush1.msra.mxu0 %v3617
    %5057 = vmatprep.subr.mxu0 0.0
    %5058 = vmatpush1.msra.mxu0 %v3620
    %5059 = vmatprep.subr.mxu0 0.0
    %5060 = vmatpush1.msra.mxu0 %v3623
    %5061 = vmatprep.subr.mxu0 0.0
    %5062 = vmatpush1.msra.mxu0 %v3626
    %5063 = vmatprep.subr.mxu0 0.0
    %5064 = vmatpush1.msra.mxu0 0.0
    %5065 = vmatprep.subr.mxu0 0.0
    %5066 = vmatpush1.msra.mxu0 0.0
    %5067 = vmatprep.subr.mxu0 0.0
    %5068 = vmatpush1.msra.mxu0 0.0
    %5069 = vmatprep.subr.mxu0 0.0
    %5070 = vmatpush1.msra.mxu0 0.0
    %5071 = vmatprep.subr.mxu0 0.0
    %5072 = vmatpush1.msra.mxu0 0.0
    %5073 = vmatprep.subr.mxu0 0.0
    %5074 = vmatpush1.msra.mxu0 0.0
    %5075 = vmatprep.subr.mxu0 0.0
    %5076 = vmatpush1.msra.mxu0 0.0
    %5077 = vmatprep.subr.mxu0 0.0
    %5078 = vmatpush1.msra.mxu0 0.0
    %5079 = vmatprep.subr.mxu0 0.0
    %5080 = vmatpush1.msra.mxu0 0.0
    %5081 = vmatprep.subr.mxu0 0.0
    %5082 = vmatpush1.msra.mxu0 0.0
    %5083 = vmatprep.subr.mxu0 0.0
    %5084 = vmatpush1.msra.mxu0 0.0
    %5085 = vmatprep.subr.mxu0 0.0
    %5086 = vmatpush1.msra.mxu0 0.0
    %5087 = vmatprep.subr.mxu0 0.0
    %5088 = vmatpush1.msra.mxu0 0.0
    %5089 = vmatprep.subr.mxu0 0.0
    %5090 = vmatpush1.msra.mxu0 0.0
    %5091 = vmatprep.subr.mxu0 0.0
    %5092 = vmatpush1.msra.mxu0 0.0
    %5093 = vmatprep.subr.mxu0 0.0
    %5094 = vmatpush1.msra.mxu0 0.0
    %5095 = vmatprep.mubr.f32.mxu0 0.0
    %5096 = vmatmul.mubr.f32.gmra.mrb[0].mxu0 %v4955
    %v5097 = vpop.f32.mrb[0].mxu0
    %v5098 = vadd.f32 %v3960, %v5097
    %v5099 = vpop.f32.mrb[0].mxu0
    %5100 = vdwg.mxu0
    %v5101 = vadd.f32 %v4957, %v5027
    %v5102 = vadd.f32 %v4958, %v5029
    %v5103 = vxor.u32 %v5101, 2147483648
    %v5104 = vxor.u32 %v5102, 2147483648
    %v5105 = vmul.f32 %v5103, 1.442695
    %v5106 = vpow.pop %v5105
    %v5107 = vmul.f32 %v5104, 1.442695
    %v5108 = vpow.pop %v5107
    %v5109 = vadd.f32 %v5106, 1.0
    %v5110 = vadd.f32 %v5108, 1.0
    %v5111 = vrcp.pop %v5109
    %v5112 = vmul.f32 1.0, %v5111
    %v5113 = vrcp.pop %v5110
    %v5114 = vmul.f32 1.0, %v5113
    %v5115 = vmul.f32 %v5112, %v5098
    %v5116 = vadd.f32 %v4959, %v5115
    %v5117 = vtanh.pop %v5116
    %v5118 = vsub.f32 1.0, %v5114
    %v5119 = vmul.f32 %v5118, %v5117
    %v5120 = vmul.f32 %v5114, %v4955
    %v5121 = vadd.f32 %v5119, %v5120
    %5122 = vst [vmem:[%s1696] sm:$0xff] %v5121
    %v5123 = vld [vmem:[%s1698] sm:$0xff]
    %v5124 = vld [vmem:[%s1698 + $0x8] sm:$0xff]
    %v5125 = vld [vmem:[%s1698 + $0x10] sm:$0xff]
    %5126 = vmatprep.subr.mxu0 %v3580
    %5127 = vmatpush1.msra.mxu0 %v3579
    %5128 = vmatprep.subr.mxu0 %v3583
    %5129 = vmatpush1.msra.mxu0 %v3582
    %5130 = vmatprep.subr.mxu0 %v3586
    %5131 = vmatpush1.msra.mxu0 %v3585
    %5132 = vmatprep.subr.mxu0 %v3589
    %5133 = vmatpush1.msra.mxu0 %v3588
    %5134 = vmatprep.subr.mxu0 %v3592
    %5135 = vmatpush1.msra.mxu0 %v3591
    %5136 = vmatprep.subr.mxu0 %v3595
    %5137 = vmatpush1.msra.mxu0 %v3594
    %5138 = vmatprep.subr.mxu0 %v3598
    %5139 = vmatpush1.msra.mxu0 %v3597
    %5140 = vmatprep.subr.mxu0 %v3601
    %5141 = vmatpush1.msra.mxu0 %v3600
    %5142 = vmatprep.subr.mxu0 %v3604
    %5143 = vmatpush1.msra.mxu0 %v3603
    %5144 = vmatprep.subr.mxu0 %v3607
    %5145 = vmatpush1.msra.mxu0 %v3606
    %5146 = vmatprep.subr.mxu0 %v3610
    %5147 = vmatpush1.msra.mxu0 %v3609
    %5148 = vmatprep.subr.mxu0 %v3613
    %5149 = vmatpush1.msra.mxu0 %v3612
    %5150 = vmatprep.subr.mxu0 %v3616
    %5151 = vmatpush1.msra.mxu0 %v3615
    %5152 = vmatprep.subr.mxu0 %v3619
    %5153 = vmatpush1.msra.mxu0 %v3618
    %5154 = vmatprep.subr.mxu0 %v3622
    %5155 = vmatpush1.msra.mxu0 %v3621
    %5156 = vmatprep.subr.mxu0 %v3625
    %5157 = vmatpush1.msra.mxu0 %v3624
    %5158 = vmatprep.subr.mxu0 0.0
    %5159 = vmatpush1.msra.mxu0 0.0
    %5160 = vmatprep.subr.mxu0 0.0
    %5161 = vmatpush1.msra.mxu0 0.0
    %5162 = vmatprep.subr.mxu0 0.0
    %5163 = vmatpush1.msra.mxu0 0.0
    %5164 = vmatprep.subr.mxu0 0.0
    %5165 = vmatpush1.msra.mxu0 0.0
    %5166 = vmatprep.subr.mxu0 0.0
    %5167 = vmatpush1.msra.mxu0 0.0
    %5168 = vmatprep.subr.mxu0 0.0
    %5169 = vmatpush1.msra.mxu0 0.0
    %5170 = vmatprep.subr.mxu0 0.0
    %5171 = vmatpush1.msra.mxu0 0.0
    %5172 = vmatprep.subr.mxu0 0.0
    %5173 = vmatpush1.msra.mxu0 0.0
    %5174 = vmatprep.subr.mxu0 0.0
    %5175 = vmatpush1.msra.mxu0 0.0
    %5176 = vmatprep.subr.mxu0 0.0
    %5177 = vmatpush1.msra.mxu0 0.0
    %5178 = vmatprep.subr.mxu0 0.0
    %5179 = vmatpush1.msra.mxu0 0.0
    %5180 = vmatprep.subr.mxu0 0.0
    %5181 = vmatpush1.msra.mxu0 0.0
    %5182 = vmatprep.subr.mxu0 0.0
    %5183 = vmatpush1.msra.mxu0 0.0
    %5184 = vmatprep.subr.mxu0 0.0
    %5185 = vmatpush1.msra.mxu0 0.0
    %5186 = vmatprep.subr.mxu0 0.0
    %5187 = vmatpush1.msra.mxu0 0.0
    %5188 = vmatprep.subr.mxu0 0.0
    %5189 = vmatpush1.msra.mxu0 0.0
    %5190 = vmatprep.mubr.f32.mxu0 0.0
    %5191 = vmatmul.mubr.f32.gmra.mrb[0].mxu0 %v5121
    %v5192 = vpop.f32.mrb[0].mxu0
    %v5193 = vadd.f32 %v3952, %v5192
    %v5194 = vpop.f32.mrb[0].mxu0
    %v5195 = vadd.f32 %v3956, %v5194
    %5196 = vdwg.mxu0
    %5197 = vmatprep.subr.mxu0 0.0
    %5198 = vmatpush1.msra.mxu0 %v3581
    %5199 = vmatprep.subr.mxu0 0.0
    %5200 = vmatpush1.msra.mxu0 %v3584
    %5201 = vmatprep.subr.mxu0 0.0
    %5202 = vmatpush1.msra.mxu0 %v3587
    %5203 = vmatprep.subr.mxu0 0.0
    %5204 = vmatpush1.msra.mxu0 %v3590
    %5205 = vmatprep.subr.mxu0 0.0
    %5206 = vmatpush1.msra.mxu0 %v3593
    %5207 = vmatprep.subr.mxu0 0.0
    %5208 = vmatpush1.msra.mxu0 %v3596
    %5209 = vmatprep.subr.mxu0 0.0
    %5210 = vmatpush1.msra.mxu0 %v3599
    %5211 = vmatprep.subr.mxu0 0.0
    %5212 = vmatpush1.msra.mxu0 %v3602
    %5213 = vmatprep.subr.mxu0 0.0
    %5214 = vmatpush1.msra.mxu0 %v3605
    %5215 = vmatprep.subr.mxu0 0.0
    %5216 = vmatpush1.msra.mxu0 %v3608
    %5217 = vmatprep.subr.mxu0 0.0
    %5218 = vmatpush1.msra.mxu0 %v3611
    %5219 = vmatprep.subr.mxu0 0.0
    %5220 = vmatpush1.msra.mxu0 %v3614
    %5221 = vmatprep.subr.mxu0 0.0
    %5222 = vmatpush1.msra.mxu0 %v3617
    %5223 = vmatprep.subr.mxu0 0.0
    %5224 = vmatpush1.msra.mxu0 %v3620
    %5225 = vmatprep.subr.mxu0 0.0
    %5226 = vmatpush1.msra.mxu0 %v3623
    %5227 = vmatprep.subr.mxu0 0.0
    %5228 = vmatpush1.msra.mxu0 %v3626
    %5229 = vmatprep.subr.mxu0 0.0
    %5230 = vmatpush1.msra.mxu0 0.0
    %5231 = vmatprep.subr.mxu0 0.0
    %5232 = vmatpush1.msra.mxu0 0.0
    %5233 = vmatprep.subr.mxu0 0.0
    %5234 = vmatpush1.msra.mxu0 0.0
    %5235 = vmatprep.subr.mxu0 0.0
    %5236 = vmatpush1.msra.mxu0 0.0
    %5237 = vmatprep.subr.mxu0 0.0
    %5238 = vmatpush1.msra.mxu0 0.0
    %5239 = vmatprep.subr.mxu0 0.0
    %5240 = vmatpush1.msra.mxu0 0.0
    %5241 = vmatprep.subr.mxu0 0.0
    %5242 = vmatpush1.msra.mxu0 0.0
    %5243 = vmatprep.subr.mxu0 0.0
    %5244 = vmatpush1.msra.mxu0 0.0
    %5245 = vmatprep.subr.mxu0 0.0
    %5246 = vmatpush1.msra.mxu0 0.0
    %5247 = vmatprep.subr.mxu0 0.0
    %5248 = vmatpush1.msra.mxu0 0.0
    %5249 = vmatprep.subr.mxu0 0.0
    %5250 = vmatpush1.msra.mxu0 0.0
    %5251 = vmatprep.subr.mxu0 0.0
    %5252 = vmatpush1.msra.mxu0 0.0
    %5253 = vmatprep.subr.mxu0 0.0
    %5254 = vmatpush1.msra.mxu0 0.0
    %5255 = vmatprep.subr.mxu0 0.0
    %5256 = vmatpush1.msra.mxu0 0.0
    %5257 = vmatprep.subr.mxu0 0.0
    %5258 = vmatpush1.msra.mxu0 0.0
    %5259 = vmatprep.subr.mxu0 0.0
    %5260 = vmatpush1.msra.mxu0 0.0
    %5261 = vmatprep.mubr.f32.mxu0 0.0
    %5262 = vmatmul.mubr.f32.gmra.mrb[0].mxu0 %v5121
    %v5263 = vpop.f32.mrb[0].mxu0
    %v5264 = vadd.f32 %v3960, %v5263
    %v5265 = vpop.f32.mrb[0].mxu0
    %5266 = vdwg.mxu0
    %v5267 = vadd.f32 %v5123, %v5193
    %v5268 = vadd.f32 %v5124, %v5195
    %v5269 = vxor.u32 %v5267, 2147483648
    %v5270 = vxor.u32 %v5268, 2147483648
    %v5271 = vmul.f32 %v5269, 1.442695
    %v5272 = vpow.pop %v5271
    %v5273 = vmul.f32 %v5270, 1.442695
    %v5274 = vpow.pop %v5273
    %v5275 = vadd.f32 %v5272, 1.0
    %v5276 = vadd.f32 %v5274, 1.0
    %v5277 = vrcp.pop %v5275
    %v5278 = vmul.f32 1.0, %v5277
    %v5279 = vrcp.pop %v5276
    %v5280 = vmul.f32 1.0, %v5279
    %v5281 = vmul.f32 %v5278, %v5264
    %v5282 = vadd.f32 %v5125, %v5281
    %v5283 = vtanh.pop %v5282
    %v5284 = vsub.f32 1.0, %v5280
    %v5285 = vmul.f32 %v5284, %v5283
    %v5286 = vmul.f32 %v5280, %v5121
    %v5287 = vadd.f32 %v5285, %v5286
    %5288 = vst [vmem:[%s1864] sm:$0xff] %v5287
    %s5289 = scalar_lea.vmem [#allocation18], 16
    %5290 = vst [vmem:[%s5289] sm:$0xff] %v5287
    // Predicated region
    $region90: #{tpu_custom_call.1} parent=1 // pred_check
      _
    $region91: #{tpu_custom_call.1} parent=1 // pred_check_branch
      %5292 = sbr.rel (0) target = $region93
    $region92: #{tpu_custom_call.1} parent=1 // pred_region
      %s5294 = ssub.s32 1024, 1024
      %5295 = vsyncadd [#allocation5], %s5294
      %s5296 = sshll.u32 [#allocation17], 4
      %s5297 = int_to_ptr.vmem [resolvable:$true] %s5296
      %5302 = dma.vmem_to_hbm [thread:$0]  %s5297, 1024, %s14, [#allocation5], 128, 128, 8
    $region93: #{tpu_custom_call.1} parent=1 // pred_fallthru
      _
    // Predicated region
    $region94: #{tpu_custom_call.1} parent=1 // pred_check
      _
    $region95: #{tpu_custom_call.1} parent=1 // pred_check_branch
      %5304 = sbr.rel (0) target = $region97
    $region96: #{tpu_custom_call.1} parent=1 // pred_region
      %s5306 = ssub.s32 384, 384
      %5307 = vsyncadd [#allocation19], %s5306
      %s5308 = sshll.u32 [#allocation18], 4
      %s5309 = int_to_ptr.vmem [resolvable:$true] %s5308
      %5314 = dma.vmem_to_hbm [thread:$0]  %s5309, 384, %s15, [#allocation19], 128, 128, 8
    $region97: #{tpu_custom_call.1} parent=1 // pred_fallthru
      _
    // Predicated region
    $region98: #{tpu_custom_call.1} parent=1 // pred_check
      _
    $region99: #{tpu_custom_call.1} parent=1 // pred_check_branch
      %5316 = sbr.rel (0) target = $region101
    $region100: #{tpu_custom_call.1} parent=1 // pred_region
      %5317 = dma.done [#allocation5], 1024
    $region101: #{tpu_custom_call.1} parent=1 // pred_fallthru
      _
    // Predicated region
    $region102: #{tpu_custom_call.1} parent=1 // pred_check
      _
    $region103: #{tpu_custom_call.1} parent=1 // pred_check_branch
      %5319 = sbr.rel (0) target = $region105
    $region104: #{tpu_custom_call.1} parent=1 // pred_region
      %5320 = dma.done [#allocation19], 384
    $region105: #{tpu_custom_call.1} parent=1 // pred_fallthru
      _
    %5321 = vsyncpa [#allocation4], 1
    %5322 = vsyncpa [#allocation7], 1
    %5323 = vsyncpa [#allocation10], 1
    %5324 = vsyncpa [#allocation13], 1
    %5325 = vsyncpa [#allocation16], 1
    %5326 = vsyncpa [#allocation5], 1
    %5327 = vsyncpa [#allocation19], 1

</llo_original>
